<compile_context>
chip_gen: v7x
topology: tpu7x:2x2x1
jax: 0.10.0
libtpu: 0.0.40
codegen_flags: <defaults>
</compile_context>

<pallas_src>
import math
import functools

import jax
import jax.numpy as jnp
from jax import lax
from jax.experimental import pallas as pl
from jax.experimental.pallas import tpu as pltpu


# ----------------------------- kernel helpers ------------------------------

def _roll_lanes(x, shift, n):
    # Circular roll toward higher lane indices by static `shift`:
    #   out[..., j] = x[..., (j - shift) mod n]
    s = shift % n
    if s == 0:
        return x
    return jnp.concatenate([x[..., n - s:], x[..., :n - s]], axis=-1)


# --------------------------------- kernel ----------------------------------

def _mhsa_kernel(x_ref, pos_ref,
                 wqkv_ref, bqkv_ref, wp_ref,
                 u_ref, v_ref, wo_ref, bo_ref,
                 gamma_ref, beta_ref,
                 o_ref,
                 ctx_ref,                       # VMEM scratch (T, D) bf16
                 *, num_heads, d_head, eps):
    T = x_ref.shape[1]
    D = x_ref.shape[2]
    H = num_heads

    x = x_ref[0]                                        # (T, D) f32

    # ---- pre-norm LayerNorm (f32, rsqrt on EUP) ----
    mean = jnp.mean(x, axis=-1, keepdims=True)
    cen = x - mean
    var = jnp.mean(cen * cen, axis=-1, keepdims=True)
    xn = cen * lax.rsqrt(var + eps) * gamma_ref[...] + beta_ref[...]

    xn_bf = xn.astype(jnp.bfloat16)

    # ---- fused Q/K/V projection (bf16 MXU, f32 accumulate) ----
    qkv = jnp.dot(xn_bf, wqkv_ref[...],
                  preferred_element_type=jnp.float32) + bqkv_ref[...]   # (T, 3D)
    q = qkv[:, :D]
    k = qkv[:, D:2 * D]
    v = qkv[:, 2 * D:]

    # positional projection (no bias)
    p = jnp.dot(pos_ref[...].astype(jnp.bfloat16), wp_ref[...],
                preferred_element_type=jnp.float32)                     # (T, D)

    # fold 1/sqrt(d_model) into q and the u/v biases (no (T,T) scale later)
    scale = 1.0 / math.sqrt(D)
    qs = q * scale                                       # (T, D)
    us = u_ref[...] * scale                              # (H, dh)
    vs = v_ref[...] * scale                              # (H, dh)

    # ---- stack heads -> (H, T, dh) ----
    def head_stack(m):
        return jnp.stack([m[:, h * d_head:(h + 1) * d_head] for h in range(H)],
                         axis=0)

    qh = head_stack(qs)                                  # (H, T, dh) f32
    kh = head_stack(k).astype(jnp.bfloat16)
    vh = head_stack(v).astype(jnp.bfloat16)
    ph = head_stack(p).astype(jnp.bfloat16)

    qu = (qh + us[:, None, :]).astype(jnp.bfloat16)      # (H, T, dh)
    qv = (qh + vs[:, None, :]).astype(jnp.bfloat16)

    # ---- content and (un-shifted) positional scores, batched over heads ----
    content = jnp.einsum('hid,hjd->hij', qu, kh,
                         preferred_element_type=jnp.float32)            # (H,T,T)
    pos_raw = jnp.einsum('hid,hjd->hij', qv, ph,
                         preferred_element_type=jnp.float32)            # (H,T,T)

    # ---- Transformer-XL relative shift (exact torch semantics) ----
    # result[h,i,j] = P[h,i,(j-i-1) mod T]  for j <= i
    #              = 0                      for j == i+1
    #              = P[h,i+1,j-i-2]         for j >= i+2
    # Skew A[h,i,j] = P[h,i,(j-i-1) mod T] built with one lane rotation per
    # row, applied to all heads at once (T ops total, independent of H).
    rows = [_roll_lanes(pos_raw[:, i:i + 1, :], i + 1, T) for i in range(T)]
    A = jnp.concatenate(rows, axis=1)                    # (H, T, T)
    A_up = jnp.concatenate([A[:, 1:, :], A[:, :1, :]], axis=1)   # A_up[i]=A[i+1]

    row = lax.broadcasted_iota(jnp.int32, (T, T), 0)
    col = lax.broadcasted_iota(jnp.int32, (T, T), 1)
    pos_shift = jnp.where(col <= row, A,
                          jnp.where(col == row + 1, jnp.zeros_like(A), A_up))

    score = content + pos_shift                          # already scaled via qs

    # ---- softmax over keys (f32; reciprocal on EUP) ----
    m = jnp.max(score, axis=-1, keepdims=True)
    e = jnp.exp(score - m)
    attn = e * pl.reciprocal(jnp.sum(e, axis=-1, keepdims=True), approx=True)

    # ---- attention context, batched over heads ----
    ctx = jnp.einsum('hij,hjd->hid', attn.astype(jnp.bfloat16), vh,
                     preferred_element_type=jnp.float32)                # (H,T,dh)

    # lane-dense (T, D) context in VMEM scratch (avoids H-way lane concat)
    for h in range(H):
        ctx_ref[:, h * d_head:(h + 1) * d_head] = ctx[h].astype(jnp.bfloat16)

    # ---- output projection ----
    out = jnp.dot(ctx_ref[...], wo_ref[...],
                  preferred_element_type=jnp.float32) + bo_ref[...]
    o_ref[0] = out.astype(o_ref.dtype)


# -------------------------------- wrapper -----------------------------------

def mhsa_pallas(x, pos_emb, params, num_heads):
    B, T, D = x.shape
    assert D % num_heads == 0
    d_head = D // num_heads
    kernel = functools.partial(_mhsa_kernel, num_heads=num_heads,
                               d_head=d_head, eps=1e-5)

    # fuse QKV weights / biases; cast matmul weights to bf16 once (halves DMA)
    wqkv = jnp.concatenate([params['wq'], params['wk'], params['wv']],
                           axis=1).astype(jnp.bfloat16)          # (D, 3D)
    bqkv = jnp.concatenate([params['bq'], params['bk'], params['bv']],
                           axis=1)                                # (1, 3D) f32
    wp = params['wp'].astype(jnp.bfloat16)
    wo = params['wo'].astype(jnp.bfloat16)

    def rep(shape):
        # replicated: same block for every batch grid step
        return pl.BlockSpec(shape, lambda b: tuple(0 for _ in shape))

    in_specs = [
        pl.BlockSpec((1, T, D), lambda b: (b, 0, 0)),             # x
        rep((T, D)),                                              # pos embedding
        rep((D, 3 * D)), rep((1, 3 * D)),                         # fused wqkv, bqkv
        rep((D, D)),                                              # wp (no bias)
        rep((num_heads, d_head)), rep((num_heads, d_head)),       # u_bias, v_bias
        rep((D, D)), rep((1, D)),                                 # wo, bo
        rep((1, D)), rep((1, D)),                                 # ln gamma, beta
    ]
    out_spec = pl.BlockSpec((1, T, D), lambda b: (b, 0, 0))

    return pl.pallas_call(
        kernel,
        out_shape=jax.ShapeDtypeStruct((B, T, D), x.dtype),
        grid_spec=pltpu.PrefetchScalarGridSpec(
            num_scalar_prefetch=0,
            grid=(B,),
            in_specs=in_specs,
            out_specs=out_spec,
            scratch_shapes=[pltpu.VMEM((T, D), jnp.bfloat16)]),
        compiler_params=pltpu.CompilerParams(
            dimension_semantics=("parallel",)),
    )(x, pos_emb, wqkv, bqkv, wp,
      params['u'], params['v'], wo, params['bo'],
      params['gamma'], params['beta'])


# ------------------------------ glue / params -------------------------------

def sinusoidal_pe(length, d_model):
    position = jnp.arange(length, dtype=jnp.float32)[:, None]
    div_term = jnp.exp(jnp.arange(0, d_model, 2, dtype=jnp.float32)
                       * -(math.log(10000.0) / d_model))
    pe = jnp.zeros((length, d_model), jnp.float32)
    pe = pe.at[:, 0::2].set(jnp.sin(position * div_term))
    pe = pe.at[:, 1::2].set(jnp.cos(position * div_term))
    return pe


def init_params(key, d_model, num_heads):
    d_head = d_model // num_heads
    keys = jax.random.split(key, 11)

    def xavier(k, shape):
        lim = math.sqrt(6.0 / (shape[0] + shape[1]))
        return jax.random.uniform(k, shape, jnp.float32, -lim, lim)

    return dict(
        wq=xavier(keys[0], (d_model, d_model)),
        bq=0.02 * jax.random.normal(keys[1], (1, d_model), jnp.float32),
        wk=xavier(keys[2], (d_model, d_model)),
        bk=0.02 * jax.random.normal(keys[3], (1, d_model), jnp.float32),
        wv=xavier(keys[4], (d_model, d_model)),
        bv=0.02 * jax.random.normal(keys[5], (1, d_model), jnp.float32),
        wp=xavier(keys[6], (d_model, d_model)),
        u=xavier(keys[7], (num_heads, d_head)),
        v=xavier(keys[8], (num_heads, d_head)),
        wo=xavier(keys[9], (d_model, d_model)),
        bo=0.02 * jax.random.normal(keys[10], (1, d_model), jnp.float32),
        gamma=jnp.ones((1, d_model), jnp.float32),
        beta=jnp.zeros((1, d_model), jnp.float32),
    )


# --------------------------- pure-JAX reference -----------------------------

def ref_forward(x, pe, params, num_heads, eps=1e-5):
    B, T, D = x.shape
    d_head = D // num_heads
    HP = lax.Precision.HIGHEST

    mean = jnp.mean(x, -1, keepdims=True)
    var = jnp.mean((x - mean) ** 2, -1, keepdims=True)
    xn = (x - mean) / jnp.sqrt(var + eps) * params['gamma'][0] + params['beta'][0]
    pos = jnp.broadcast_to(pe, (B, T, D))

    q = jnp.einsum('btd,de->bte', xn, params['wq'], precision=HP) + params['bq'][0]
    k = jnp.einsum('btd,de->bte', xn, params['wk'], precision=HP) + params['bk'][0]
    v = jnp.einsum('btd,de->bte', xn, params['wv'], precision=HP) + params['bv'][0]
    p = jnp.einsum('btd,de->bte', pos, params['wp'], precision=HP)

    q = q.reshape(B, T, num_heads, d_head)
    k = k.reshape(B, T, num_heads, d_head).transpose(0, 2, 1, 3)
    v = v.reshape(B, T, num_heads, d_head).transpose(0, 2, 1, 3)
    p = p.reshape(B, T, num_heads, d_head)

    content = jnp.einsum('bthd,bhsd->bhts', q + params['u'], k, precision=HP)
    pos_score = jnp.einsum('bthd,bshd->bhts', q + params['v'], p, precision=HP)

    zeros = jnp.zeros((B, num_heads, T, 1), pos_score.dtype)
    padded = jnp.concatenate([zeros, pos_score], axis=-1)
    padded = padded.reshape(B, num_heads, T + 1, T)
    pos_score = padded[:, :, 1:].reshape(B, num_heads, T, T)

    score = (content + pos_score) / math.sqrt(D)
    attn = jax.nn.softmax(score, axis=-1)
    ctx = jnp.einsum('bhts,bhsd->bthd', attn, v, precision=HP).reshape(B, T, D)
    return jnp.einsum('btd,de->bte', ctx, params['wo'], precision=HP) + params['bo'][0]


# ---------------------------------- main -------------------------------------

if __name__ == "__main__":
    # small but TPU-layout-realistic shapes: lane-aligned T and D, d_head = 64
    B, T, D, H = 2, 128, 256, 4     # batch, time, d_model, num_heads

    key = jax.random.PRNGKey(0)
    kx, kp = jax.random.split(key)
    x = jax.random.normal(kx, (B, T, D), jnp.float32)
    params = init_params(kp, D, H)
    pe = sinusoidal_pe(T, D)        # repeated across batch implicitly

    out = jax.block_until_ready(mhsa_pallas(x, pe, params, H))

    ref = ref_forward(x, pe, params, H)
    assert out.shape == (B, T, D)
    max_err = float(jnp.max(jnp.abs(out - ref)))
    # bf16 MXU operands with f32 accumulation vs. f32 HIGHEST reference
    if not bool(jnp.allclose(out, ref, atol=3e-2, rtol=3e-2)):
        raise AssertionError(f"Pallas kernel mismatch vs JAX reference "
                             f"(max abs err = {max_err})")

    print("KERNEL_OK")
</pallas_src>

<mosaic_0001>
module attributes {stable_mosaic.version = 11 : i64} {
  func.func @_mhsa_kernel(%arg0: i32, %arg1: memref<1x128x256xf32, #tpu.memory_space<vmem>>, %arg2: memref<128x256xf32, #tpu.memory_space<vmem>>, %arg3: memref<256x768xbf16, #tpu.memory_space<vmem>>, %arg4: memref<1x768xf32, #tpu.memory_space<vmem>>, %arg5: memref<256x256xbf16, #tpu.memory_space<vmem>>, %arg6: memref<4x64xf32, #tpu.memory_space<vmem>>, %arg7: memref<4x64xf32, #tpu.memory_space<vmem>>, %arg8: memref<256x256xbf16, #tpu.memory_space<vmem>>, %arg9: memref<1x256xf32, #tpu.memory_space<vmem>>, %arg10: memref<1x256xf32, #tpu.memory_space<vmem>>, %arg11: memref<1x256xf32, #tpu.memory_space<vmem>>, %arg12: memref<1x128x256xf32, #tpu.memory_space<vmem>>, %arg13: memref<128x256xbf16, #tpu.memory_space<vmem>>) attributes {dimension_semantics = [#tpu.dimension_semantics<parallel>], iteration_bounds = array<i64: 2>, scalar_prefetch = 0 : i64, scratch_operands = 1 : i64, tpu.core_type = #tpu.core_type<tc>, window_params = [{transform_indices = @transform_0, window_bounds = array<i64: 1, 128, 256>}, {pipeline_mode = #tpu.pipeline_mode<synchronous>, transform_indices = @transform_1, window_bounds = array<i64: 128, 256>}, {pipeline_mode = #tpu.pipeline_mode<synchronous>, transform_indices = @transform_2, window_bounds = array<i64: 256, 768>}, {pipeline_mode = #tpu.pipeline_mode<synchronous>, transform_indices = @transform_3, window_bounds = array<i64: 1, 768>}, {pipeline_mode = #tpu.pipeline_mode<synchronous>, transform_indices = @transform_4, window_bounds = array<i64: 256, 256>}, {pipeline_mode = #tpu.pipeline_mode<synchronous>, transform_indices = @transform_5, window_bounds = array<i64: 4, 64>}, {pipeline_mode = #tpu.pipeline_mode<synchronous>, transform_indices = @transform_6, window_bounds = array<i64: 4, 64>}, {pipeline_mode = #tpu.pipeline_mode<synchronous>, transform_indices = @transform_7, window_bounds = array<i64: 256, 256>}, {pipeline_mode = #tpu.pipeline_mode<synchronous>, transform_indices = @transform_8, window_bounds = array<i64: 1, 256>}, {pipeline_mode = #tpu.pipeline_mode<synchronous>, transform_indices = @transform_9, window_bounds = array<i64: 1, 256>}, {pipeline_mode = #tpu.pipeline_mode<synchronous>, transform_indices = @transform_10, window_bounds = array<i64: 1, 256>}, {transform_indices = @transform_11, window_bounds = array<i64: 1, 128, 256>}]} {
    %c0 = arith.constant 0 : index
    %c0_0 = arith.constant 0 : index
    %c0_1 = arith.constant 0 : index
    %0 = vector.load %arg1[%c0, %c0_0, %c0_1] : memref<1x128x256xf32, #tpu.memory_space<vmem>>, vector<1x128x256xf32>
    %1 = vector.shape_cast %0 : vector<1x128x256xf32> to vector<128x256xf32>
    %cst = arith.constant dense<0.000000e+00> : vector<128xf32>
    %2 = vector.multi_reduction <add>, %1, %cst [1] : vector<128x256xf32> to vector<128xf32>
    %3 = vector.shape_cast %2 : vector<128xf32> to vector<128x1xf32>
    %cst_2 = arith.constant 2.560000e+02 : f32
    %4 = vector.broadcast %cst_2 : f32 to vector<128x1xf32>
    %5 = arith.divf %3, %4 : vector<128x1xf32>
    %6 = vector.broadcast %5 : vector<128x1xf32> to vector<128x256xf32>
    %7 = arith.subf %1, %6 : vector<128x256xf32>
    %8 = arith.mulf %7, %7 : vector<128x256xf32>
    %cst_3 = arith.constant dense<0.000000e+00> : vector<128xf32>
    %9 = vector.multi_reduction <add>, %8, %cst_3 [1] : vector<128x256xf32> to vector<128xf32>
    %10 = vector.shape_cast %9 : vector<128xf32> to vector<128x1xf32>
    %cst_4 = arith.constant 2.560000e+02 : f32
    %11 = vector.broadcast %cst_4 : f32 to vector<128x1xf32>
    %12 = arith.divf %10, %11 : vector<128x1xf32>
    %cst_5 = arith.constant 9.99999974E-6 : f32
    %13 = vector.broadcast %cst_5 : f32 to vector<128x1xf32>
    %14 = arith.addf %12, %13 : vector<128x1xf32>
    %15 = math.rsqrt %14 : vector<128x1xf32>
    %16 = vector.broadcast %15 : vector<128x1xf32> to vector<128x256xf32>
    %17 = arith.mulf %7, %16 : vector<128x256xf32>
    %c0_6 = arith.constant 0 : index
    %c0_7 = arith.constant 0 : index
    %18 = vector.load %arg10[%c0_6, %c0_7] : memref<1x256xf32, #tpu.memory_space<vmem>>, vector<1x256xf32>
    %19 = vector.broadcast %18 : vector<1x256xf32> to vector<128x256xf32>
    %20 = arith.mulf %17, %19 : vector<128x256xf32>
    %c0_8 = arith.constant 0 : index
    %c0_9 = arith.constant 0 : index
    %21 = vector.load %arg11[%c0_8, %c0_9] : memref<1x256xf32, #tpu.memory_space<vmem>>, vector<1x256xf32>
    %22 = vector.broadcast %21 : vector<1x256xf32> to vector<128x256xf32>
    %23 = arith.addf %20, %22 : vector<128x256xf32>
    %24 = arith.truncf %23 : vector<128x256xf32> to vector<128x256xbf16>
    %c0_10 = arith.constant 0 : index
    %c0_11 = arith.constant 0 : index
    %25 = vector.load %arg3[%c0_10, %c0_11] : memref<256x768xbf16, #tpu.memory_space<vmem>>, vector<256x768xbf16>
    %cst_12 = arith.constant dense<0.000000e+00> : vector<128x768xf32>
    %26 = tpu.matmul %24, %25, %cst_12 {dimension_numbers = #tpu.dot_dimension_numbers<[1], [0], [0], [1], [0, 0, 1, 1], [], []>} : vector<128x256xbf16>, vector<256x768xbf16>, vector<128x768xf32> -> vector<128x768xf32>
    %c0_13 = arith.constant 0 : index
    %c0_14 = arith.constant 0 : index
    %27 = vector.load %arg4[%c0_13, %c0_14] : memref<1x768xf32, #tpu.memory_space<vmem>>, vector<1x768xf32>
    %28 = vector.broadcast %27 : vector<1x768xf32> to vector<128x768xf32>
    %29 = arith.addf %26, %28 : vector<128x768xf32>
    %30 = vector.extract_strided_slice %29 {offsets = [0, 0], sizes = [128, 256], strides = [1, 1]} : vector<128x768xf32> to vector<128x256xf32>
    %31 = vector.extract_strided_slice %29 {offsets = [0, 256], sizes = [128, 256], strides = [1, 1]} : vector<128x768xf32> to vector<128x256xf32>
    %32 = vector.extract_strided_slice %29 {offsets = [0, 512], sizes = [128, 256], strides = [1, 1]} : vector<128x768xf32> to vector<128x256xf32>
    %c0_15 = arith.constant 0 : index
    %c0_16 = arith.constant 0 : index
    %33 = vector.load %arg2[%c0_15, %c0_16] : memref<128x256xf32, #tpu.memory_space<vmem>>, vector<128x256xf32>
    %34 = arith.truncf %33 : vector<128x256xf32> to vector<128x256xbf16>
    %c0_17 = arith.constant 0 : index
    %c0_18 = arith.constant 0 : index
    %35 = vector.load %arg5[%c0_17, %c0_18] : memref<256x256xbf16, #tpu.memory_space<vmem>>, vector<256x256xbf16>
    %cst_19 = arith.constant dense<0.000000e+00> : vector<128x256xf32>
    %36 = tpu.matmul %34, %35, %cst_19 {dimension_numbers = #tpu.dot_dimension_numbers<[1], [0], [0], [1], [0, 0, 1, 1], [], []>} : vector<128x256xbf16>, vector<256x256xbf16>, vector<128x256xf32> -> vector<128x256xf32>
    %cst_20 = arith.constant 6.250000e-02 : f32
    %37 = vector.broadcast %cst_20 : f32 to vector<128x256xf32>
    %38 = arith.mulf %30, %37 : vector<128x256xf32>
    %c0_21 = arith.constant 0 : index
    %c0_22 = arith.constant 0 : index
    %39 = vector.load %arg6[%c0_21, %c0_22] : memref<4x64xf32, #tpu.memory_space<vmem>>, vector<4x64xf32>
    %cst_23 = arith.constant 6.250000e-02 : f32
    %40 = vector.broadcast %cst_23 : f32 to vector<4x64xf32>
    %41 = arith.mulf %39, %40 : vector<4x64xf32>
    %c0_24 = arith.constant 0 : index
    %c0_25 = arith.constant 0 : index
    %42 = vector.load %arg7[%c0_24, %c0_25] : memref<4x64xf32, #tpu.memory_space<vmem>>, vector<4x64xf32>
    %cst_26 = arith.constant 6.250000e-02 : f32
    %43 = vector.broadcast %cst_26 : f32 to vector<4x64xf32>
    %44 = arith.mulf %42, %43 : vector<4x64xf32>
    %45 = vector.extract_strided_slice %38 {offsets = [0, 0], sizes = [128, 64], strides = [1, 1]} : vector<128x256xf32> to vector<128x64xf32>
    %46 = vector.extract_strided_slice %38 {offsets = [0, 64], sizes = [128, 64], strides = [1, 1]} : vector<128x256xf32> to vector<128x64xf32>
    %47 = vector.extract_strided_slice %38 {offsets = [0, 128], sizes = [128, 64], strides = [1, 1]} : vector<128x256xf32> to vector<128x64xf32>
    %48 = vector.extract_strided_slice %38 {offsets = [0, 192], sizes = [128, 64], strides = [1, 1]} : vector<128x256xf32> to vector<128x64xf32>
    %49 = vector.shape_cast %45 : vector<128x64xf32> to vector<1x128x64xf32>
    %50 = vector.shape_cast %46 : vector<128x64xf32> to vector<1x128x64xf32>
    %51 = vector.shape_cast %47 : vector<128x64xf32> to vector<1x128x64xf32>
    %52 = vector.shape_cast %48 : vector<128x64xf32> to vector<1x128x64xf32>
    %53 = tpu.concatenate %49, %50, %51, %52 in 0 : vector<1x128x64xf32>, vector<1x128x64xf32>, vector<1x128x64xf32>, vector<1x128x64xf32> -> vector<4x128x64xf32>
    %54 = vector.extract_strided_slice %31 {offsets = [0, 0], sizes = [128, 64], strides = [1, 1]} : vector<128x256xf32> to vector<128x64xf32>
    %55 = vector.extract_strided_slice %31 {offsets = [0, 64], sizes = [128, 64], strides = [1, 1]} : vector<128x256xf32> to vector<128x64xf32>
    %56 = vector.extract_strided_slice %31 {offsets = [0, 128], sizes = [128, 64], strides = [1, 1]} : vector<128x256xf32> to vector<128x64xf32>
    %57 = vector.extract_strided_slice %31 {offsets = [0, 192], sizes = [128, 64], strides = [1, 1]} : vector<128x256xf32> to vector<128x64xf32>
    %58 = vector.shape_cast %54 : vector<128x64xf32> to vector<1x128x64xf32>
    %59 = vector.shape_cast %55 : vector<128x64xf32> to vector<1x128x64xf32>
    %60 = vector.shape_cast %56 : vector<128x64xf32> to vector<1x128x64xf32>
    %61 = vector.shape_cast %57 : vector<128x64xf32> to vector<1x128x64xf32>
    %62 = tpu.concatenate %58, %59, %60, %61 in 0 : vector<1x128x64xf32>, vector<1x128x64xf32>, vector<1x128x64xf32>, vector<1x128x64xf32> -> vector<4x128x64xf32>
    %63 = arith.truncf %62 : vector<4x128x64xf32> to vector<4x128x64xbf16>
    %64 = vector.extract_strided_slice %32 {offsets = [0, 0], sizes = [128, 64], strides = [1, 1]} : vector<128x256xf32> to vector<128x64xf32>
    %65 = vector.extract_strided_slice %32 {offsets = [0, 64], sizes = [128, 64], strides = [1, 1]} : vector<128x256xf32> to vector<128x64xf32>
    %66 = vector.extract_strided_slice %32 {offsets = [0, 128], sizes = [128, 64], strides = [1, 1]} : vector<128x256xf32> to vector<128x64xf32>
    %67 = vector.extract_strided_slice %32 {offsets = [0, 192], sizes = [128, 64], strides = [1, 1]} : vector<128x256xf32> to vector<128x64xf32>
    %68 = vector.shape_cast %64 : vector<128x64xf32> to vector<1x128x64xf32>
    %69 = vector.shape_cast %65 : vector<128x64xf32> to vector<1x128x64xf32>
    %70 = vector.shape_cast %66 : vector<128x64xf32> to vector<1x128x64xf32>
    %71 = vector.shape_cast %67 : vector<128x64xf32> to vector<1x128x64xf32>
    %72 = tpu.concatenate %68, %69, %70, %71 in 0 : vector<1x128x64xf32>, vector<1x128x64xf32>, vector<1x128x64xf32>, vector<1x128x64xf32> -> vector<4x128x64xf32>
    %73 = arith.truncf %72 : vector<4x128x64xf32> to vector<4x128x64xbf16>
    %74 = vector.extract_strided_slice %36 {offsets = [0, 0], sizes = [128, 64], strides = [1, 1]} : vector<128x256xf32> to vector<128x64xf32>
    %75 = vector.extract_strided_slice %36 {offsets = [0, 64], sizes = [128, 64], strides = [1, 1]} : vector<128x256xf32> to vector<128x64xf32>
    %76 = vector.extract_strided_slice %36 {offsets = [0, 128], sizes = [128, 64], strides = [1, 1]} : vector<128x256xf32> to vector<128x64xf32>
    %77 = vector.extract_strided_slice %36 {offsets = [0, 192], sizes = [128, 64], strides = [1, 1]} : vector<128x256xf32> to vector<128x64xf32>
    %78 = vector.shape_cast %74 : vector<128x64xf32> to vector<1x128x64xf32>
    %79 = vector.shape_cast %75 : vector<128x64xf32> to vector<1x128x64xf32>
    %80 = vector.shape_cast %76 : vector<128x64xf32> to vector<1x128x64xf32>
    %81 = vector.shape_cast %77 : vector<128x64xf32> to vector<1x128x64xf32>
    %82 = tpu.concatenate %78, %79, %80, %81 in 0 : vector<1x128x64xf32>, vector<1x128x64xf32>, vector<1x128x64xf32>, vector<1x128x64xf32> -> vector<4x128x64xf32>
    %83 = arith.truncf %82 : vector<4x128x64xf32> to vector<4x128x64xbf16>
    %84 = vector.shape_cast %41 : vector<4x64xf32> to vector<4x1x64xf32>
    %85 = vector.broadcast %84 : vector<4x1x64xf32> to vector<4x128x64xf32>
    %86 = arith.addf %53, %85 : vector<4x128x64xf32>
    %87 = arith.truncf %86 : vector<4x128x64xf32> to vector<4x128x64xbf16>
    %88 = vector.shape_cast %44 : vector<4x64xf32> to vector<4x1x64xf32>
    %89 = vector.broadcast %88 : vector<4x1x64xf32> to vector<4x128x64xf32>
    %90 = arith.addf %53, %89 : vector<4x128x64xf32>
    %91 = arith.truncf %90 : vector<4x128x64xf32> to vector<4x128x64xbf16>
    "tpu.trace_start"() <{level = 10 : i32, message = "hid,hjd->hij"}> : () -> ()
    %cst_27 = arith.constant dense<0.000000e+00> : vector<4x128x128xf32>
    %92 = tpu.matmul %87, %63, %cst_27 {dimension_numbers = #tpu.dot_dimension_numbers<[2], [2], [1], [1], [0, 0, 0, 1, 1, 1], [0], [0]>} : vector<4x128x64xbf16>, vector<4x128x64xbf16>, vector<4x128x128xf32> -> vector<4x128x128xf32>
    %cst_28 = arith.constant dense<0.000000e+00> : vector<4x128x128xf32>
    %93 = tpu.matmul %91, %83, %cst_28 {dimension_numbers = #tpu.dot_dimension_numbers<[2], [2], [1], [1], [0, 0, 0, 1, 1, 1], [0], [0]>} : vector<4x128x64xbf16>, vector<4x128x64xbf16>, vector<4x128x128xf32> -> vector<4x128x128xf32>
    "tpu.trace_stop"() : () -> ()
    %94 = vector.extract_strided_slice %93 {offsets = [0, 0, 0], sizes = [4, 1, 128], strides = [1, 1, 1]} : vector<4x128x128xf32> to vector<4x1x128xf32>
    %95 = vector.extract_strided_slice %94 {offsets = [0, 0, 127], sizes = [4, 1, 1], strides = [1, 1, 1]} : vector<4x1x128xf32> to vector<4x1x1xf32>
    %96 = vector.extract_strided_slice %94 {offsets = [0, 0, 0], sizes = [4, 1, 127], strides = [1, 1, 1]} : vector<4x1x128xf32> to vector<4x1x127xf32>
    %97 = tpu.concatenate %95, %96 in 2 : vector<4x1x1xf32>, vector<4x1x127xf32> -> vector<4x1x128xf32>
    %98 = vector.extract_strided_slice %93 {offsets = [0, 1, 0], sizes = [4, 1, 128], strides = [1, 1, 1]} : vector<4x128x128xf32> to vector<4x1x128xf32>
    %99 = vector.extract_strided_slice %98 {offsets = [0, 0, 126], sizes = [4, 1, 2], strides = [1, 1, 1]} : vector<4x1x128xf32> to vector<4x1x2xf32>
    %100 = vector.extract_strided_slice %98 {offsets = [0, 0, 0], sizes = [4, 1, 126], strides = [1, 1, 1]} : vector<4x1x128xf32> to vector<4x1x126xf32>
    %101 = tpu.concatenate %99, %100 in 2 : vector<4x1x2xf32>, vector<4x1x126xf32> -> vector<4x1x128xf32>
    %102 = vector.extract_strided_slice %93 {offsets = [0, 2, 0], sizes = [4, 1, 128], strides = [1, 1, 1]} : vector<4x128x128xf32> to vector<4x1x128xf32>
    %103 = vector.extract_strided_slice %102 {offsets = [0, 0, 125], sizes = [4, 1, 3], strides = [1, 1, 1]} : vector<4x1x128xf32> to vector<4x1x3xf32>
    %104 = vector.extract_strided_slice %102 {offsets = [0, 0, 0], sizes = [4, 1, 125], strides = [1, 1, 1]} : vector<4x1x128xf32> to vector<4x1x125xf32>
    %105 = tpu.concatenate %103, %104 in 2 : vector<4x1x3xf32>, vector<4x1x125xf32> -> vector<4x1x128xf32>
    %106 = vector.extract_strided_slice %93 {offsets = [0, 3, 0], sizes = [4, 1, 128], strides = [1, 1, 1]} : vector<4x128x128xf32> to vector<4x1x128xf32>
    %107 = vector.extract_strided_slice %106 {offsets = [0, 0, 124], sizes = [4, 1, 4], strides = [1, 1, 1]} : vector<4x1x128xf32> to vector<4x1x4xf32>
    %108 = vector.extract_strided_slice %106 {offsets = [0, 0, 0], sizes = [4, 1, 124], strides = [1, 1, 1]} : vector<4x1x128xf32> to vector<4x1x124xf32>
    %109 = tpu.concatenate %107, %108 in 2 : vector<4x1x4xf32>, vector<4x1x124xf32> -> vector<4x1x128xf32>
    %110 = vector.extract_strided_slice %93 {offsets = [0, 4, 0], sizes = [4, 1, 128], strides = [1, 1, 1]} : vector<4x128x128xf32> to vector<4x1x128xf32>
    %111 = vector.extract_strided_slice %110 {offsets = [0, 0, 123], sizes = [4, 1, 5], strides = [1, 1, 1]} : vector<4x1x128xf32> to vector<4x1x5xf32>
    %112 = vector.extract_strided_slice %110 {offsets = [0, 0, 0], sizes = [4, 1, 123], strides = [1, 1, 1]} : vector<4x1x128xf32> to vector<4x1x123xf32>
    %113 = tpu.concatenate %111, %112 in 2 : vector<4x1x5xf32>, vector<4x1x123xf32> -> vector<4x1x128xf32>
    %114 = vector.extract_strided_slice %93 {offsets = [0, 5, 0], sizes = [4, 1, 128], strides = [1, 1, 1]} : vector<4x128x128xf32> to vector<4x1x128xf32>
    %115 = vector.extract_strided_slice %114 {offsets = [0, 0, 122], sizes = [4, 1, 6], strides = [1, 1, 1]} : vector<4x1x128xf32> to vector<4x1x6xf32>
    %116 = vector.extract_strided_slice %114 {offsets = [0, 0, 0], sizes = [4, 1, 122], strides = [1, 1, 1]} : vector<4x1x128xf32> to vector<4x1x122xf32>
    %117 = tpu.concatenate %115, %116 in 2 : vector<4x1x6xf32>, vector<4x1x122xf32> -> vector<4x1x128xf32>
    %118 = vector.extract_strided_slice %93 {offsets = [0, 6, 0], sizes = [4, 1, 128], strides = [1, 1, 1]} : vector<4x128x128xf32> to vector<4x1x128xf32>
    %119 = vector.extract_strided_slice %118 {offsets = [0, 0, 121], sizes = [4, 1, 7], strides = [1, 1, 1]} : vector<4x1x128xf32> to vector<4x1x7xf32>
    %120 = vector.extract_strided_slice %118 {offsets = [0, 0, 0], sizes = [4, 1, 121], strides = [1, 1, 1]} : vector<4x1x128xf32> to vector<4x1x121xf32>
    %121 = tpu.concatenate %119, %120 in 2 : vector<4x1x7xf32>, vector<4x1x121xf32> -> vector<4x1x128xf32>
    %122 = vector.extract_strided_slice %93 {offsets = [0, 7, 0], sizes = [4, 1, 128], strides = [1, 1, 1]} : vector<4x128x128xf32> to vector<4x1x128xf32>
    %123 = vector.extract_strided_slice %122 {offsets = [0, 0, 120], sizes = [4, 1, 8], strides = [1, 1, 1]} : vector<4x1x128xf32> to vector<4x1x8xf32>
    %124 = vector.extract_strided_slice %122 {offsets = [0, 0, 0], sizes = [4, 1, 120], strides = [1, 1, 1]} : vector<4x1x128xf32> to vector<4x1x120xf32>
    %125 = tpu.concatenate %123, %124 in 2 : vector<4x1x8xf32>, vector<4x1x120xf32> -> vector<4x1x128xf32>
    %126 = vector.extract_strided_slice %93 {offsets = [0, 8, 0], sizes = [4, 1, 128], strides = [1, 1, 1]} : vector<4x128x128xf32> to vector<4x1x128xf32>
    %127 = vector.extract_strided_slice %126 {offsets = [0, 0, 119], sizes = [4, 1, 9], strides = [1, 1, 1]} : vector<4x1x128xf32> to vector<4x1x9xf32>
    %128 = vector.extract_strided_slice %126 {offsets = [0, 0, 0], sizes = [4, 1, 119], strides = [1, 1, 1]} : vector<4x1x128xf32> to vector<4x1x119xf32>
    %129 = tpu.concatenate %127, %128 in 2 : vector<4x1x9xf32>, vector<4x1x119xf32> -> vector<4x1x128xf32>
    %130 = vector.extract_strided_slice %93 {offsets = [0, 9, 0], sizes = [4, 1, 128], strides = [1, 1, 1]} : vector<4x128x128xf32> to vector<4x1x128xf32>
    %131 = vector.extract_strided_slice %130 {offsets = [0, 0, 118], sizes = [4, 1, 10], strides = [1, 1, 1]} : vector<4x1x128xf32> to vector<4x1x10xf32>
    %132 = vector.extract_strided_slice %130 {offsets = [0, 0, 0], sizes = [4, 1, 118], strides = [1, 1, 1]} : vector<4x1x128xf32> to vector<4x1x118xf32>
    %133 = tpu.concatenate %131, %132 in 2 : vector<4x1x10xf32>, vector<4x1x118xf32> -> vector<4x1x128xf32>
    %134 = vector.extract_strided_slice %93 {offsets = [0, 10, 0], sizes = [4, 1, 128], strides = [1, 1, 1]} : vector<4x128x128xf32> to vector<4x1x128xf32>
    %135 = vector.extract_strided_slice %134 {offsets = [0, 0, 117], sizes = [4, 1, 11], strides = [1, 1, 1]} : vector<4x1x128xf32> to vector<4x1x11xf32>
    %136 = vector.extract_strided_slice %134 {offsets = [0, 0, 0], sizes = [4, 1, 117], strides = [1, 1, 1]} : vector<4x1x128xf32> to vector<4x1x117xf32>
    %137 = tpu.concatenate %135, %136 in 2 : vector<4x1x11xf32>, vector<4x1x117xf32> -> vector<4x1x128xf32>
    %138 = vector.extract_strided_slice %93 {offsets = [0, 11, 0], sizes = [4, 1, 128], strides = [1, 1, 1]} : vector<4x128x128xf32> to vector<4x1x128xf32>
    %139 = vector.extract_strided_slice %138 {offsets = [0, 0, 116], sizes = [4, 1, 12], strides = [1, 1, 1]} : vector<4x1x128xf32> to vector<4x1x12xf32>
    %140 = vector.extract_strided_slice %138 {offsets = [0, 0, 0], sizes = [4, 1, 116], strides = [1, 1, 1]} : vector<4x1x128xf32> to vector<4x1x116xf32>
    %141 = tpu.concatenate %139, %140 in 2 : vector<4x1x12xf32>, vector<4x1x116xf32> -> vector<4x1x128xf32>
    %142 = vector.extract_strided_slice %93 {offsets = [0, 12, 0], sizes = [4, 1, 128], strides = [1, 1, 1]} : vector<4x128x128xf32> to vector<4x1x128xf32>
    %143 = vector.extract_strided_slice %142 {offsets = [0, 0, 115], sizes = [4, 1, 13], strides = [1, 1, 1]} : vector<4x1x128xf32> to vector<4x1x13xf32>
    %144 = vector.extract_strided_slice %142 {offsets = [0, 0, 0], sizes = [4, 1, 115], strides = [1, 1, 1]} : vector<4x1x128xf32> to vector<4x1x115xf32>
    %145 = tpu.concatenate %143, %144 in 2 : vector<4x1x13xf32>, vector<4x1x115xf32> -> vector<4x1x128xf32>
    %146 = vector.extract_strided_slice %93 {offsets = [0, 13, 0], sizes = [4, 1, 128], strides = [1, 1, 1]} : vector<4x128x128xf32> to vector<4x1x128xf32>
    %147 = vector.extract_strided_slice %146 {offsets = [0, 0, 114], sizes = [4, 1, 14], strides = [1, 1, 1]} : vector<4x1x128xf32> to vector<4x1x14xf32>
    %148 = vector.extract_strided_slice %146 {offsets = [0, 0, 0], sizes = [4, 1, 114], strides = [1, 1, 1]} : vector<4x1x128xf32> to vector<4x1x114xf32>
    %149 = tpu.concatenate %147, %148 in 2 : vector<4x1x14xf32>, vector<4x1x114xf32> -> vector<4x1x128xf32>
    %150 = vector.extract_strided_slice %93 {offsets = [0, 14, 0], sizes = [4, 1, 128], strides = [1, 1, 1]} : vector<4x128x128xf32> to vector<4x1x128xf32>
    %151 = vector.extract_strided_slice %150 {offsets = [0, 0, 113], sizes = [4, 1, 15], strides = [1, 1, 1]} : vector<4x1x128xf32> to vector<4x1x15xf32>
    %152 = vector.extract_strided_slice %150 {offsets = [0, 0, 0], sizes = [4, 1, 113], strides = [1, 1, 1]} : vector<4x1x128xf32> to vector<4x1x113xf32>
    %153 = tpu.concatenate %151, %152 in 2 : vector<4x1x15xf32>, vector<4x1x113xf32> -> vector<4x1x128xf32>
    %154 = vector.extract_strided_slice %93 {offsets = [0, 15, 0], sizes = [4, 1, 128], strides = [1, 1, 1]} : vector<4x128x128xf32> to vector<4x1x128xf32>
    %155 = vector.extract_strided_slice %154 {offsets = [0, 0, 112], sizes = [4, 1, 16], strides = [1, 1, 1]} : vector<4x1x128xf32> to vector<4x1x16xf32>
    %156 = vector.extract_strided_slice %154 {offsets = [0, 0, 0], sizes = [4, 1, 112], strides = [1, 1, 1]} : vector<4x1x128xf32> to vector<4x1x112xf32>
    %157 = tpu.concatenate %155, %156 in 2 : vector<4x1x16xf32>, vector<4x1x112xf32> -> vector<4x1x128xf32>
    %158 = vector.extract_strided_slice %93 {offsets = [0, 16, 0], sizes = [4, 1, 128], strides = [1, 1, 1]} : vector<4x128x128xf32> to vector<4x1x128xf32>
    %159 = vector.extract_strided_slice %158 {offsets = [0, 0, 111], sizes = [4, 1, 17], strides = [1, 1, 1]} : vector<4x1x128xf32> to vector<4x1x17xf32>
    %160 = vector.extract_strided_slice %158 {offsets = [0, 0, 0], sizes = [4, 1, 111], strides = [1, 1, 1]} : vector<4x1x128xf32> to vector<4x1x111xf32>
    %161 = tpu.concatenate %159, %160 in 2 : vector<4x1x17xf32>, vector<4x1x111xf32> -> vector<4x1x128xf32>
    %162 = vector.extract_strided_slice %93 {offsets = [0, 17, 0], sizes = [4, 1, 128], strides = [1, 1, 1]} : vector<4x128x128xf32> to vector<4x1x128xf32>
    %163 = vector.extract_strided_slice %162 {offsets = [0, 0, 110], sizes = [4, 1, 18], strides = [1, 1, 1]} : vector<4x1x128xf32> to vector<4x1x18xf32>
    %164 = vector.extract_strided_slice %162 {offsets = [0, 0, 0], sizes = [4, 1, 110], strides = [1, 1, 1]} : vector<4x1x128xf32> to vector<4x1x110xf32>
    %165 = tpu.concatenate %163, %164 in 2 : vector<4x1x18xf32>, vector<4x1x110xf32> -> vector<4x1x128xf32>
    %166 = vector.extract_strided_slice %93 {offsets = [0, 18, 0], sizes = [4, 1, 128], strides = [1, 1, 1]} : vector<4x128x128xf32> to vector<4x1x128xf32>
    %167 = vector.extract_strided_slice %166 {offsets = [0, 0, 109], sizes = [4, 1, 19], strides = [1, 1, 1]} : vector<4x1x128xf32> to vector<4x1x19xf32>
    %168 = vector.extract_strided_slice %166 {offsets = [0, 0, 0], sizes = [4, 1, 109], strides = [1, 1, 1]} : vector<4x1x128xf32> to vector<4x1x109xf32>
    %169 = tpu.concatenate %167, %168 in 2 : vector<4x1x19xf32>, vector<4x1x109xf32> -> vector<4x1x128xf32>
    %170 = vector.extract_strided_slice %93 {offsets = [0, 19, 0], sizes = [4, 1, 128], strides = [1, 1, 1]} : vector<4x128x128xf32> to vector<4x1x128xf32>
    %171 = vector.extract_strided_slice %170 {offsets = [0, 0, 108], sizes = [4, 1, 20], strides = [1, 1, 1]} : vector<4x1x128xf32> to vector<4x1x20xf32>
    %172 = vector.extract_strided_slice %170 {offsets = [0, 0, 0], sizes = [4, 1, 108], strides = [1, 1, 1]} : vector<4x1x128xf32> to vector<4x1x108xf32>
    %173 = tpu.concatenate %171, %172 in 2 : vector<4x1x20xf32>, vector<4x1x108xf32> -> vector<4x1x128xf32>
    %174 = vector.extract_strided_slice %93 {offsets = [0, 20, 0], sizes = [4, 1, 128], strides = [1, 1, 1]} : vector<4x128x128xf32> to vector<4x1x128xf32>
    %175 = vector.extract_strided_slice %174 {offsets = [0, 0, 107], sizes = [4, 1, 21], strides = [1, 1, 1]} : vector<4x1x128xf32> to vector<4x1x21xf32>
    %176 = vector.extract_strided_slice %174 {offsets = [0, 0, 0], sizes = [4, 1, 107], strides = [1, 1, 1]} : vector<4x1x128xf32> to vector<4x1x107xf32>
    %177 = tpu.concatenate %175, %176 in 2 : vector<4x1x21xf32>, vector<4x1x107xf32> -> vector<4x1x128xf32>
    %178 = vector.extract_strided_slice %93 {offsets = [0, 21, 0], sizes = [4, 1, 128], strides = [1, 1, 1]} : vector<4x128x128xf32> to vector<4x1x128xf32>
    %179 = vector.extract_strided_slice %178 {offsets = [0, 0, 106], sizes = [4, 1, 22], strides = [1, 1, 1]} : vector<4x1x128xf32> to vector<4x1x22xf32>
    %180 = vector.extract_strided_slice %178 {offsets = [0, 0, 0], sizes = [4, 1, 106], strides = [1, 1, 1]} : vector<4x1x128xf32> to vector<4x1x106xf32>
    %181 = tpu.concatenate %179, %180 in 2 : vector<4x1x22xf32>, vector<4x1x106xf32> -> vector<4x1x128xf32>
    %182 = vector.extract_strided_slice %93 {offsets = [0, 22, 0], sizes = [4, 1, 128], strides = [1, 1, 1]} : vector<4x128x128xf32> to vector<4x1x128xf32>
    %183 = vector.extract_strided_slice %182 {offsets = [0, 0, 105], sizes = [4, 1, 23], strides = [1, 1, 1]} : vector<4x1x128xf32> to vector<4x1x23xf32>
    %184 = vector.extract_strided_slice %182 {offsets = [0, 0, 0], sizes = [4, 1, 105], strides = [1, 1, 1]} : vector<4x1x128xf32> to vector<4x1x105xf32>
    %185 = tpu.concatenate %183, %184 in 2 : vector<4x1x23xf32>, vector<4x1x105xf32> -> vector<4x1x128xf32>
    %186 = vector.extract_strided_slice %93 {offsets = [0, 23, 0], sizes = [4, 1, 128], strides = [1, 1, 1]} : vector<4x128x128xf32> to vector<4x1x128xf32>
    %187 = vector.extract_strided_slice %186 {offsets = [0, 0, 104], sizes = [4, 1, 24], strides = [1, 1, 1]} : vector<4x1x128xf32> to vector<4x1x24xf32>
    %188 = vector.extract_strided_slice %186 {offsets = [0, 0, 0], sizes = [4, 1, 104], strides = [1, 1, 1]} : vector<4x1x128xf32> to vector<4x1x104xf32>
    %189 = tpu.concatenate %187, %188 in 2 : vector<4x1x24xf32>, vector<4x1x104xf32> -> vector<4x1x128xf32>
    %190 = vector.extract_strided_slice %93 {offsets = [0, 24, 0], sizes = [4, 1, 128], strides = [1, 1, 1]} : vector<4x128x128xf32> to vector<4x1x128xf32>
    %191 = vector.extract_strided_slice %190 {offsets = [0, 0, 103], sizes = [4, 1, 25], strides = [1, 1, 1]} : vector<4x1x128xf32> to vector<4x1x25xf32>
    %192 = vector.extract_strided_slice %190 {offsets = [0, 0, 0], sizes = [4, 1, 103], strides = [1, 1, 1]} : vector<4x1x128xf32> to vector<4x1x103xf32>
    %193 = tpu.concatenate %191, %192 in 2 : vector<4x1x25xf32>, vector<4x1x103xf32> -> vector<4x1x128xf32>
    %194 = vector.extract_strided_slice %93 {offsets = [0, 25, 0], sizes = [4, 1, 128], strides = [1, 1, 1]} : vector<4x128x128xf32> to vector<4x1x128xf32>
    %195 = vector.extract_strided_slice %194 {offsets = [0, 0, 102], sizes = [4, 1, 26], strides = [1, 1, 1]} : vector<4x1x128xf32> to vector<4x1x26xf32>
    %196 = vector.extract_strided_slice %194 {offsets = [0, 0, 0], sizes = [4, 1, 102], strides = [1, 1, 1]} : vector<4x1x128xf32> to vector<4x1x102xf32>
    %197 = tpu.concatenate %195, %196 in 2 : vector<4x1x26xf32>, vector<4x1x102xf32> -> vector<4x1x128xf32>
    %198 = vector.extract_strided_slice %93 {offsets = [0, 26, 0], sizes = [4, 1, 128], strides = [1, 1, 1]} : vector<4x128x128xf32> to vector<4x1x128xf32>
    %199 = vector.extract_strided_slice %198 {offsets = [0, 0, 101], sizes = [4, 1, 27], strides = [1, 1, 1]} : vector<4x1x128xf32> to vector<4x1x27xf32>
    %200 = vector.extract_strided_slice %198 {offsets = [0, 0, 0], sizes = [4, 1, 101], strides = [1, 1, 1]} : vector<4x1x128xf32> to vector<4x1x101xf32>
    %201 = tpu.concatenate %199, %200 in 2 : vector<4x1x27xf32>, vector<4x1x101xf32> -> vector<4x1x128xf32>
    %202 = vector.extract_strided_slice %93 {offsets = [0, 27, 0], sizes = [4, 1, 128], strides = [1, 1, 1]} : vector<4x128x128xf32> to vector<4x1x128xf32>
    %203 = vector.extract_strided_slice %202 {offsets = [0, 0, 100], sizes = [4, 1, 28], strides = [1, 1, 1]} : vector<4x1x128xf32> to vector<4x1x28xf32>
    %204 = vector.extract_strided_slice %202 {offsets = [0, 0, 0], sizes = [4, 1, 100], strides = [1, 1, 1]} : vector<4x1x128xf32> to vector<4x1x100xf32>
    %205 = tpu.concatenate %203, %204 in 2 : vector<4x1x28xf32>, vector<4x1x100xf32> -> vector<4x1x128xf32>
    %206 = vector.extract_strided_slice %93 {offsets = [0, 28, 0], sizes = [4, 1, 128], strides = [1, 1, 1]} : vector<4x128x128xf32> to vector<4x1x128xf32>
    %207 = vector.extract_strided_slice %206 {offsets = [0, 0, 99], sizes = [4, 1, 29], strides = [1, 1, 1]} : vector<4x1x128xf32> to vector<4x1x29xf32>
    %208 = vector.extract_strided_slice %206 {offsets = [0, 0, 0], sizes = [4, 1, 99], strides = [1, 1, 1]} : vector<4x1x128xf32> to vector<4x1x99xf32>
    %209 = tpu.concatenate %207, %208 in 2 : vector<4x1x29xf32>, vector<4x1x99xf32> -> vector<4x1x128xf32>
    %210 = vector.extract_strided_slice %93 {offsets = [0, 29, 0], sizes = [4, 1, 128], strides = [1, 1, 1]} : vector<4x128x128xf32> to vector<4x1x128xf32>
    %211 = vector.extract_strided_slice %210 {offsets = [0, 0, 98], sizes = [4, 1, 30], strides = [1, 1, 1]} : vector<4x1x128xf32> to vector<4x1x30xf32>
    %212 = vector.extract_strided_slice %210 {offsets = [0, 0, 0], sizes = [4, 1, 98], strides = [1, 1, 1]} : vector<4x1x128xf32> to vector<4x1x98xf32>
    %213 = tpu.concatenate %211, %212 in 2 : vector<4x1x30xf32>, vector<4x1x98xf32> -> vector<4x1x128xf32>
    %214 = vector.extract_strided_slice %93 {offsets = [0, 30, 0], sizes = [4, 1, 128], strides = [1, 1, 1]} : vector<4x128x128xf32> to vector<4x1x128xf32>
    %215 = vector.extract_strided_slice %214 {offsets = [0, 0, 97], sizes = [4, 1, 31], strides = [1, 1, 1]} : vector<4x1x128xf32> to vector<4x1x31xf32>
    %216 = vector.extract_strided_slice %214 {offsets = [0, 0, 0], sizes = [4, 1, 97], strides = [1, 1, 1]} : vector<4x1x128xf32> to vector<4x1x97xf32>
    %217 = tpu.concatenate %215, %216 in 2 : vector<4x1x31xf32>, vector<4x1x97xf32> -> vector<4x1x128xf32>
    %218 = vector.extract_strided_slice %93 {offsets = [0, 31, 0], sizes = [4, 1, 128], strides = [1, 1, 1]} : vector<4x128x128xf32> to vector<4x1x128xf32>
    %219 = vector.extract_strided_slice %218 {offsets = [0, 0, 96], sizes = [4, 1, 32], strides = [1, 1, 1]} : vector<4x1x128xf32> to vector<4x1x32xf32>
    %220 = vector.extract_strided_slice %218 {offsets = [0, 0, 0], sizes = [4, 1, 96], strides = [1, 1, 1]} : vector<4x1x128xf32> to vector<4x1x96xf32>
    %221 = tpu.concatenate %219, %220 in 2 : vector<4x1x32xf32>, vector<4x1x96xf32> -> vector<4x1x128xf32>
    %222 = vector.extract_strided_slice %93 {offsets = [0, 32, 0], sizes = [4, 1, 128], strides = [1, 1, 1]} : vector<4x128x128xf32> to vector<4x1x128xf32>
    %223 = vector.extract_strided_slice %222 {offsets = [0, 0, 95], sizes = [4, 1, 33], strides = [1, 1, 1]} : vector<4x1x128xf32> to vector<4x1x33xf32>
    %224 = vector.extract_strided_slice %222 {offsets = [0, 0, 0], sizes = [4, 1, 95], strides = [1, 1, 1]} : vector<4x1x128xf32> to vector<4x1x95xf32>
    %225 = tpu.concatenate %223, %224 in 2 : vector<4x1x33xf32>, vector<4x1x95xf32> -> vector<4x1x128xf32>
    %226 = vector.extract_strided_slice %93 {offsets = [0, 33, 0], sizes = [4, 1, 128], strides = [1, 1, 1]} : vector<4x128x128xf32> to vector<4x1x128xf32>
    %227 = vector.extract_strided_slice %226 {offsets = [0, 0, 94], sizes = [4, 1, 34], strides = [1, 1, 1]} : vector<4x1x128xf32> to vector<4x1x34xf32>
    %228 = vector.extract_strided_slice %226 {offsets = [0, 0, 0], sizes = [4, 1, 94], strides = [1, 1, 1]} : vector<4x1x128xf32> to vector<4x1x94xf32>
    %229 = tpu.concatenate %227, %228 in 2 : vector<4x1x34xf32>, vector<4x1x94xf32> -> vector<4x1x128xf32>
    %230 = vector.extract_strided_slice %93 {offsets = [0, 34, 0], sizes = [4, 1, 128], strides = [1, 1, 1]} : vector<4x128x128xf32> to vector<4x1x128xf32>
    %231 = vector.extract_strided_slice %230 {offsets = [0, 0, 93], sizes = [4, 1, 35], strides = [1, 1, 1]} : vector<4x1x128xf32> to vector<4x1x35xf32>
    %232 = vector.extract_strided_slice %230 {offsets = [0, 0, 0], sizes = [4, 1, 93], strides = [1, 1, 1]} : vector<4x1x128xf32> to vector<4x1x93xf32>
    %233 = tpu.concatenate %231, %232 in 2 : vector<4x1x35xf32>, vector<4x1x93xf32> -> vector<4x1x128xf32>
    %234 = vector.extract_strided_slice %93 {offsets = [0, 35, 0], sizes = [4, 1, 128], strides = [1, 1, 1]} : vector<4x128x128xf32> to vector<4x1x128xf32>
    %235 = vector.extract_strided_slice %234 {offsets = [0, 0, 92], sizes = [4, 1, 36], strides = [1, 1, 1]} : vector<4x1x128xf32> to vector<4x1x36xf32>
    %236 = vector.extract_strided_slice %234 {offsets = [0, 0, 0], sizes = [4, 1, 92], strides = [1, 1, 1]} : vector<4x1x128xf32> to vector<4x1x92xf32>
    %237 = tpu.concatenate %235, %236 in 2 : vector<4x1x36xf32>, vector<4x1x92xf32> -> vector<4x1x128xf32>
    %238 = vector.extract_strided_slice %93 {offsets = [0, 36, 0], sizes = [4, 1, 128], strides = [1, 1, 1]} : vector<4x128x128xf32> to vector<4x1x128xf32>
    %239 = vector.extract_strided_slice %238 {offsets = [0, 0, 91], sizes = [4, 1, 37], strides = [1, 1, 1]} : vector<4x1x128xf32> to vector<4x1x37xf32>
    %240 = vector.extract_strided_slice %238 {offsets = [0, 0, 0], sizes = [4, 1, 91], strides = [1, 1, 1]} : vector<4x1x128xf32> to vector<4x1x91xf32>
    %241 = tpu.concatenate %239, %240 in 2 : vector<4x1x37xf32>, vector<4x1x91xf32> -> vector<4x1x128xf32>
    %242 = vector.extract_strided_slice %93 {offsets = [0, 37, 0], sizes = [4, 1, 128], strides = [1, 1, 1]} : vector<4x128x128xf32> to vector<4x1x128xf32>
    %243 = vector.extract_strided_slice %242 {offsets = [0, 0, 90], sizes = [4, 1, 38], strides = [1, 1, 1]} : vector<4x1x128xf32> to vector<4x1x38xf32>
    %244 = vector.extract_strided_slice %242 {offsets = [0, 0, 0], sizes = [4, 1, 90], strides = [1, 1, 1]} : vector<4x1x128xf32> to vector<4x1x90xf32>
    %245 = tpu.concatenate %243, %244 in 2 : vector<4x1x38xf32>, vector<4x1x90xf32> -> vector<4x1x128xf32>
    %246 = vector.extract_strided_slice %93 {offsets = [0, 38, 0], sizes = [4, 1, 128], strides = [1, 1, 1]} : vector<4x128x128xf32> to vector<4x1x128xf32>
    %247 = vector.extract_strided_slice %246 {offsets = [0, 0, 89], sizes = [4, 1, 39], strides = [1, 1, 1]} : vector<4x1x128xf32> to vector<4x1x39xf32>
    %248 = vector.extract_strided_slice %246 {offsets = [0, 0, 0], sizes = [4, 1, 89], strides = [1, 1, 1]} : vector<4x1x128xf32> to vector<4x1x89xf32>
    %249 = tpu.concatenate %247, %248 in 2 : vector<4x1x39xf32>, vector<4x1x89xf32> -> vector<4x1x128xf32>
    %250 = vector.extract_strided_slice %93 {offsets = [0, 39, 0], sizes = [4, 1, 128], strides = [1, 1, 1]} : vector<4x128x128xf32> to vector<4x1x128xf32>
    %251 = vector.extract_strided_slice %250 {offsets = [0, 0, 88], sizes = [4, 1, 40], strides = [1, 1, 1]} : vector<4x1x128xf32> to vector<4x1x40xf32>
    %252 = vector.extract_strided_slice %250 {offsets = [0, 0, 0], sizes = [4, 1, 88], strides = [1, 1, 1]} : vector<4x1x128xf32> to vector<4x1x88xf32>
    %253 = tpu.concatenate %251, %252 in 2 : vector<4x1x40xf32>, vector<4x1x88xf32> -> vector<4x1x128xf32>
    %254 = vector.extract_strided_slice %93 {offsets = [0, 40, 0], sizes = [4, 1, 128], strides = [1, 1, 1]} : vector<4x128x128xf32> to vector<4x1x128xf32>
    %255 = vector.extract_strided_slice %254 {offsets = [0, 0, 87], sizes = [4, 1, 41], strides = [1, 1, 1]} : vector<4x1x128xf32> to vector<4x1x41xf32>
    %256 = vector.extract_strided_slice %254 {offsets = [0, 0, 0], sizes = [4, 1, 87], strides = [1, 1, 1]} : vector<4x1x128xf32> to vector<4x1x87xf32>
    %257 = tpu.concatenate %255, %256 in 2 : vector<4x1x41xf32>, vector<4x1x87xf32> -> vector<4x1x128xf32>
    %258 = vector.extract_strided_slice %93 {offsets = [0, 41, 0], sizes = [4, 1, 128], strides = [1, 1, 1]} : vector<4x128x128xf32> to vector<4x1x128xf32>
    %259 = vector.extract_strided_slice %258 {offsets = [0, 0, 86], sizes = [4, 1, 42], strides = [1, 1, 1]} : vector<4x1x128xf32> to vector<4x1x42xf32>
    %260 = vector.extract_strided_slice %258 {offsets = [0, 0, 0], sizes = [4, 1, 86], strides = [1, 1, 1]} : vector<4x1x128xf32> to vector<4x1x86xf32>
    %261 = tpu.concatenate %259, %260 in 2 : vector<4x1x42xf32>, vector<4x1x86xf32> -> vector<4x1x128xf32>
    %262 = vector.extract_strided_slice %93 {offsets = [0, 42, 0], sizes = [4, 1, 128], strides = [1, 1, 1]} : vector<4x128x128xf32> to vector<4x1x128xf32>
    %263 = vector.extract_strided_slice %262 {offsets = [0, 0, 85], sizes = [4, 1, 43], strides = [1, 1, 1]} : vector<4x1x128xf32> to vector<4x1x43xf32>
    %264 = vector.extract_strided_slice %262 {offsets = [0, 0, 0], sizes = [4, 1, 85], strides = [1, 1, 1]} : vector<4x1x128xf32> to vector<4x1x85xf32>
    %265 = tpu.concatenate %263, %264 in 2 : vector<4x1x43xf32>, vector<4x1x85xf32> -> vector<4x1x128xf32>
    %266 = vector.extract_strided_slice %93 {offsets = [0, 43, 0], sizes = [4, 1, 128], strides = [1, 1, 1]} : vector<4x128x128xf32> to vector<4x1x128xf32>
    %267 = vector.extract_strided_slice %266 {offsets = [0, 0, 84], sizes = [4, 1, 44], strides = [1, 1, 1]} : vector<4x1x128xf32> to vector<4x1x44xf32>
    %268 = vector.extract_strided_slice %266 {offsets = [0, 0, 0], sizes = [4, 1, 84], strides = [1, 1, 1]} : vector<4x1x128xf32> to vector<4x1x84xf32>
    %269 = tpu.concatenate %267, %268 in 2 : vector<4x1x44xf32>, vector<4x1x84xf32> -> vector<4x1x128xf32>
    %270 = vector.extract_strided_slice %93 {offsets = [0, 44, 0], sizes = [4, 1, 128], strides = [1, 1, 1]} : vector<4x128x128xf32> to vector<4x1x128xf32>
    %271 = vector.extract_strided_slice %270 {offsets = [0, 0, 83], sizes = [4, 1, 45], strides = [1, 1, 1]} : vector<4x1x128xf32> to vector<4x1x45xf32>
    %272 = vector.extract_strided_slice %270 {offsets = [0, 0, 0], sizes = [4, 1, 83], strides = [1, 1, 1]} : vector<4x1x128xf32> to vector<4x1x83xf32>
    %273 = tpu.concatenate %271, %272 in 2 : vector<4x1x45xf32>, vector<4x1x83xf32> -> vector<4x1x128xf32>
    %274 = vector.extract_strided_slice %93 {offsets = [0, 45, 0], sizes = [4, 1, 128], strides = [1, 1, 1]} : vector<4x128x128xf32> to vector<4x1x128xf32>
    %275 = vector.extract_strided_slice %274 {offsets = [0, 0, 82], sizes = [4, 1, 46], strides = [1, 1, 1]} : vector<4x1x128xf32> to vector<4x1x46xf32>
    %276 = vector.extract_strided_slice %274 {offsets = [0, 0, 0], sizes = [4, 1, 82], strides = [1, 1, 1]} : vector<4x1x128xf32> to vector<4x1x82xf32>
    %277 = tpu.concatenate %275, %276 in 2 : vector<4x1x46xf32>, vector<4x1x82xf32> -> vector<4x1x128xf32>
    %278 = vector.extract_strided_slice %93 {offsets = [0, 46, 0], sizes = [4, 1, 128], strides = [1, 1, 1]} : vector<4x128x128xf32> to vector<4x1x128xf32>
    %279 = vector.extract_strided_slice %278 {offsets = [0, 0, 81], sizes = [4, 1, 47], strides = [1, 1, 1]} : vector<4x1x128xf32> to vector<4x1x47xf32>
    %280 = vector.extract_strided_slice %278 {offsets = [0, 0, 0], sizes = [4, 1, 81], strides = [1, 1, 1]} : vector<4x1x128xf32> to vector<4x1x81xf32>
    %281 = tpu.concatenate %279, %280 in 2 : vector<4x1x47xf32>, vector<4x1x81xf32> -> vector<4x1x128xf32>
    %282 = vector.extract_strided_slice %93 {offsets = [0, 47, 0], sizes = [4, 1, 128], strides = [1, 1, 1]} : vector<4x128x128xf32> to vector<4x1x128xf32>
    %283 = vector.extract_strided_slice %282 {offsets = [0, 0, 80], sizes = [4, 1, 48], strides = [1, 1, 1]} : vector<4x1x128xf32> to vector<4x1x48xf32>
    %284 = vector.extract_strided_slice %282 {offsets = [0, 0, 0], sizes = [4, 1, 80], strides = [1, 1, 1]} : vector<4x1x128xf32> to vector<4x1x80xf32>
    %285 = tpu.concatenate %283, %284 in 2 : vector<4x1x48xf32>, vector<4x1x80xf32> -> vector<4x1x128xf32>
    %286 = vector.extract_strided_slice %93 {offsets = [0, 48, 0], sizes = [4, 1, 128], strides = [1, 1, 1]} : vector<4x128x128xf32> to vector<4x1x128xf32>
    %287 = vector.extract_strided_slice %286 {offsets = [0, 0, 79], sizes = [4, 1, 49], strides = [1, 1, 1]} : vector<4x1x128xf32> to vector<4x1x49xf32>
    %288 = vector.extract_strided_slice %286 {offsets = [0, 0, 0], sizes = [4, 1, 79], strides = [1, 1, 1]} : vector<4x1x128xf32> to vector<4x1x79xf32>
    %289 = tpu.concatenate %287, %288 in 2 : vector<4x1x49xf32>, vector<4x1x79xf32> -> vector<4x1x128xf32>
    %290 = vector.extract_strided_slice %93 {offsets = [0, 49, 0], sizes = [4, 1, 128], strides = [1, 1, 1]} : vector<4x128x128xf32> to vector<4x1x128xf32>
    %291 = vector.extract_strided_slice %290 {offsets = [0, 0, 78], sizes = [4, 1, 50], strides = [1, 1, 1]} : vector<4x1x128xf32> to vector<4x1x50xf32>
    %292 = vector.extract_strided_slice %290 {offsets = [0, 0, 0], sizes = [4, 1, 78], strides = [1, 1, 1]} : vector<4x1x128xf32> to vector<4x1x78xf32>
    %293 = tpu.concatenate %291, %292 in 2 : vector<4x1x50xf32>, vector<4x1x78xf32> -> vector<4x1x128xf32>
    %294 = vector.extract_strided_slice %93 {offsets = [0, 50, 0], sizes = [4, 1, 128], strides = [1, 1, 1]} : vector<4x128x128xf32> to vector<4x1x128xf32>
    %295 = vector.extract_strided_slice %294 {offsets = [0, 0, 77], sizes = [4, 1, 51], strides = [1, 1, 1]} : vector<4x1x128xf32> to vector<4x1x51xf32>
    %296 = vector.extract_strided_slice %294 {offsets = [0, 0, 0], sizes = [4, 1, 77], strides = [1, 1, 1]} : vector<4x1x128xf32> to vector<4x1x77xf32>
    %297 = tpu.concatenate %295, %296 in 2 : vector<4x1x51xf32>, vector<4x1x77xf32> -> vector<4x1x128xf32>
    %298 = vector.extract_strided_slice %93 {offsets = [0, 51, 0], sizes = [4, 1, 128], strides = [1, 1, 1]} : vector<4x128x128xf32> to vector<4x1x128xf32>
    %299 = vector.extract_strided_slice %298 {offsets = [0, 0, 76], sizes = [4, 1, 52], strides = [1, 1, 1]} : vector<4x1x128xf32> to vector<4x1x52xf32>
    %300 = vector.extract_strided_slice %298 {offsets = [0, 0, 0], sizes = [4, 1, 76], strides = [1, 1, 1]} : vector<4x1x128xf32> to vector<4x1x76xf32>
    %301 = tpu.concatenate %299, %300 in 2 : vector<4x1x52xf32>, vector<4x1x76xf32> -> vector<4x1x128xf32>
    %302 = vector.extract_strided_slice %93 {offsets = [0, 52, 0], sizes = [4, 1, 128], strides = [1, 1, 1]} : vector<4x128x128xf32> to vector<4x1x128xf32>
    %303 = vector.extract_strided_slice %302 {offsets = [0, 0, 75], sizes = [4, 1, 53], strides = [1, 1, 1]} : vector<4x1x128xf32> to vector<4x1x53xf32>
    %304 = vector.extract_strided_slice %302 {offsets = [0, 0, 0], sizes = [4, 1, 75], strides = [1, 1, 1]} : vector<4x1x128xf32> to vector<4x1x75xf32>
    %305 = tpu.concatenate %303, %304 in 2 : vector<4x1x53xf32>, vector<4x1x75xf32> -> vector<4x1x128xf32>
    %306 = vector.extract_strided_slice %93 {offsets = [0, 53, 0], sizes = [4, 1, 128], strides = [1, 1, 1]} : vector<4x128x128xf32> to vector<4x1x128xf32>
    %307 = vector.extract_strided_slice %306 {offsets = [0, 0, 74], sizes = [4, 1, 54], strides = [1, 1, 1]} : vector<4x1x128xf32> to vector<4x1x54xf32>
    %308 = vector.extract_strided_slice %306 {offsets = [0, 0, 0], sizes = [4, 1, 74], strides = [1, 1, 1]} : vector<4x1x128xf32> to vector<4x1x74xf32>
    %309 = tpu.concatenate %307, %308 in 2 : vector<4x1x54xf32>, vector<4x1x74xf32> -> vector<4x1x128xf32>
    %310 = vector.extract_strided_slice %93 {offsets = [0, 54, 0], sizes = [4, 1, 128], strides = [1, 1, 1]} : vector<4x128x128xf32> to vector<4x1x128xf32>
    %311 = vector.extract_strided_slice %310 {offsets = [0, 0, 73], sizes = [4, 1, 55], strides = [1, 1, 1]} : vector<4x1x128xf32> to vector<4x1x55xf32>
    %312 = vector.extract_strided_slice %310 {offsets = [0, 0, 0], sizes = [4, 1, 73], strides = [1, 1, 1]} : vector<4x1x128xf32> to vector<4x1x73xf32>
    %313 = tpu.concatenate %311, %312 in 2 : vector<4x1x55xf32>, vector<4x1x73xf32> -> vector<4x1x128xf32>
    %314 = vector.extract_strided_slice %93 {offsets = [0, 55, 0], sizes = [4, 1, 128], strides = [1, 1, 1]} : vector<4x128x128xf32> to vector<4x1x128xf32>
    %315 = vector.extract_strided_slice %314 {offsets = [0, 0, 72], sizes = [4, 1, 56], strides = [1, 1, 1]} : vector<4x1x128xf32> to vector<4x1x56xf32>
    %316 = vector.extract_strided_slice %314 {offsets = [0, 0, 0], sizes = [4, 1, 72], strides = [1, 1, 1]} : vector<4x1x128xf32> to vector<4x1x72xf32>
    %317 = tpu.concatenate %315, %316 in 2 : vector<4x1x56xf32>, vector<4x1x72xf32> -> vector<4x1x128xf32>
    %318 = vector.extract_strided_slice %93 {offsets = [0, 56, 0], sizes = [4, 1, 128], strides = [1, 1, 1]} : vector<4x128x128xf32> to vector<4x1x128xf32>
    %319 = vector.extract_strided_slice %318 {offsets = [0, 0, 71], sizes = [4, 1, 57], strides = [1, 1, 1]} : vector<4x1x128xf32> to vector<4x1x57xf32>
    %320 = vector.extract_strided_slice %318 {offsets = [0, 0, 0], sizes = [4, 1, 71], strides = [1, 1, 1]} : vector<4x1x128xf32> to vector<4x1x71xf32>
    %321 = tpu.concatenate %319, %320 in 2 : vector<4x1x57xf32>, vector<4x1x71xf32> -> vector<4x1x128xf32>
    %322 = vector.extract_strided_slice %93 {offsets = [0, 57, 0], sizes = [4, 1, 128], strides = [1, 1, 1]} : vector<4x128x128xf32> to vector<4x1x128xf32>
    %323 = vector.extract_strided_slice %322 {offsets = [0, 0, 70], sizes = [4, 1, 58], strides = [1, 1, 1]} : vector<4x1x128xf32> to vector<4x1x58xf32>
    %324 = vector.extract_strided_slice %322 {offsets = [0, 0, 0], sizes = [4, 1, 70], strides = [1, 1, 1]} : vector<4x1x128xf32> to vector<4x1x70xf32>
    %325 = tpu.concatenate %323, %324 in 2 : vector<4x1x58xf32>, vector<4x1x70xf32> -> vector<4x1x128xf32>
    %326 = vector.extract_strided_slice %93 {offsets = [0, 58, 0], sizes = [4, 1, 128], strides = [1, 1, 1]} : vector<4x128x128xf32> to vector<4x1x128xf32>
    %327 = vector.extract_strided_slice %326 {offsets = [0, 0, 69], sizes = [4, 1, 59], strides = [1, 1, 1]} : vector<4x1x128xf32> to vector<4x1x59xf32>
    %328 = vector.extract_strided_slice %326 {offsets = [0, 0, 0], sizes = [4, 1, 69], strides = [1, 1, 1]} : vector<4x1x128xf32> to vector<4x1x69xf32>
    %329 = tpu.concatenate %327, %328 in 2 : vector<4x1x59xf32>, vector<4x1x69xf32> -> vector<4x1x128xf32>
    %330 = vector.extract_strided_slice %93 {offsets = [0, 59, 0], sizes = [4, 1, 128], strides = [1, 1, 1]} : vector<4x128x128xf32> to vector<4x1x128xf32>
    %331 = vector.extract_strided_slice %330 {offsets = [0, 0, 68], sizes = [4, 1, 60], strides = [1, 1, 1]} : vector<4x1x128xf32> to vector<4x1x60xf32>
    %332 = vector.extract_strided_slice %330 {offsets = [0, 0, 0], sizes = [4, 1, 68], strides = [1, 1, 1]} : vector<4x1x128xf32> to vector<4x1x68xf32>
    %333 = tpu.concatenate %331, %332 in 2 : vector<4x1x60xf32>, vector<4x1x68xf32> -> vector<4x1x128xf32>
    %334 = vector.extract_strided_slice %93 {offsets = [0, 60, 0], sizes = [4, 1, 128], strides = [1, 1, 1]} : vector<4x128x128xf32> to vector<4x1x128xf32>
    %335 = vector.extract_strided_slice %334 {offsets = [0, 0, 67], sizes = [4, 1, 61], strides = [1, 1, 1]} : vector<4x1x128xf32> to vector<4x1x61xf32>
    %336 = vector.extract_strided_slice %334 {offsets = [0, 0, 0], sizes = [4, 1, 67], strides = [1, 1, 1]} : vector<4x1x128xf32> to vector<4x1x67xf32>
    %337 = tpu.concatenate %335, %336 in 2 : vector<4x1x61xf32>, vector<4x1x67xf32> -> vector<4x1x128xf32>
    %338 = vector.extract_strided_slice %93 {offsets = [0, 61, 0], sizes = [4, 1, 128], strides = [1, 1, 1]} : vector<4x128x128xf32> to vector<4x1x128xf32>
    %339 = vector.extract_strided_slice %338 {offsets = [0, 0, 66], sizes = [4, 1, 62], strides = [1, 1, 1]} : vector<4x1x128xf32> to vector<4x1x62xf32>
    %340 = vector.extract_strided_slice %338 {offsets = [0, 0, 0], sizes = [4, 1, 66], strides = [1, 1, 1]} : vector<4x1x128xf32> to vector<4x1x66xf32>
    %341 = tpu.concatenate %339, %340 in 2 : vector<4x1x62xf32>, vector<4x1x66xf32> -> vector<4x1x128xf32>
    %342 = vector.extract_strided_slice %93 {offsets = [0, 62, 0], sizes = [4, 1, 128], strides = [1, 1, 1]} : vector<4x128x128xf32> to vector<4x1x128xf32>
    %343 = vector.extract_strided_slice %342 {offsets = [0, 0, 65], sizes = [4, 1, 63], strides = [1, 1, 1]} : vector<4x1x128xf32> to vector<4x1x63xf32>
    %344 = vector.extract_strided_slice %342 {offsets = [0, 0, 0], sizes = [4, 1, 65], strides = [1, 1, 1]} : vector<4x1x128xf32> to vector<4x1x65xf32>
    %345 = tpu.concatenate %343, %344 in 2 : vector<4x1x63xf32>, vector<4x1x65xf32> -> vector<4x1x128xf32>
    %346 = vector.extract_strided_slice %93 {offsets = [0, 63, 0], sizes = [4, 1, 128], strides = [1, 1, 1]} : vector<4x128x128xf32> to vector<4x1x128xf32>
    %347 = vector.extract_strided_slice %346 {offsets = [0, 0, 64], sizes = [4, 1, 64], strides = [1, 1, 1]} : vector<4x1x128xf32> to vector<4x1x64xf32>
    %348 = vector.extract_strided_slice %346 {offsets = [0, 0, 0], sizes = [4, 1, 64], strides = [1, 1, 1]} : vector<4x1x128xf32> to vector<4x1x64xf32>
    %349 = tpu.concatenate %347, %348 in 2 : vector<4x1x64xf32>, vector<4x1x64xf32> -> vector<4x1x128xf32>
    %350 = vector.extract_strided_slice %93 {offsets = [0, 64, 0], sizes = [4, 1, 128], strides = [1, 1, 1]} : vector<4x128x128xf32> to vector<4x1x128xf32>
    %351 = vector.extract_strided_slice %350 {offsets = [0, 0, 63], sizes = [4, 1, 65], strides = [1, 1, 1]} : vector<4x1x128xf32> to vector<4x1x65xf32>
    %352 = vector.extract_strided_slice %350 {offsets = [0, 0, 0], sizes = [4, 1, 63], strides = [1, 1, 1]} : vector<4x1x128xf32> to vector<4x1x63xf32>
    %353 = tpu.concatenate %351, %352 in 2 : vector<4x1x65xf32>, vector<4x1x63xf32> -> vector<4x1x128xf32>
    %354 = vector.extract_strided_slice %93 {offsets = [0, 65, 0], sizes = [4, 1, 128], strides = [1, 1, 1]} : vector<4x128x128xf32> to vector<4x1x128xf32>
    %355 = vector.extract_strided_slice %354 {offsets = [0, 0, 62], sizes = [4, 1, 66], strides = [1, 1, 1]} : vector<4x1x128xf32> to vector<4x1x66xf32>
    %356 = vector.extract_strided_slice %354 {offsets = [0, 0, 0], sizes = [4, 1, 62], strides = [1, 1, 1]} : vector<4x1x128xf32> to vector<4x1x62xf32>
    %357 = tpu.concatenate %355, %356 in 2 : vector<4x1x66xf32>, vector<4x1x62xf32> -> vector<4x1x128xf32>
    %358 = vector.extract_strided_slice %93 {offsets = [0, 66, 0], sizes = [4, 1, 128], strides = [1, 1, 1]} : vector<4x128x128xf32> to vector<4x1x128xf32>
    %359 = vector.extract_strided_slice %358 {offsets = [0, 0, 61], sizes = [4, 1, 67], strides = [1, 1, 1]} : vector<4x1x128xf32> to vector<4x1x67xf32>
    %360 = vector.extract_strided_slice %358 {offsets = [0, 0, 0], sizes = [4, 1, 61], strides = [1, 1, 1]} : vector<4x1x128xf32> to vector<4x1x61xf32>
    %361 = tpu.concatenate %359, %360 in 2 : vector<4x1x67xf32>, vector<4x1x61xf32> -> vector<4x1x128xf32>
    %362 = vector.extract_strided_slice %93 {offsets = [0, 67, 0], sizes = [4, 1, 128], strides = [1, 1, 1]} : vector<4x128x128xf32> to vector<4x1x128xf32>
    %363 = vector.extract_strided_slice %362 {offsets = [0, 0, 60], sizes = [4, 1, 68], strides = [1, 1, 1]} : vector<4x1x128xf32> to vector<4x1x68xf32>
    %364 = vector.extract_strided_slice %362 {offsets = [0, 0, 0], sizes = [4, 1, 60], strides = [1, 1, 1]} : vector<4x1x128xf32> to vector<4x1x60xf32>
    %365 = tpu.concatenate %363, %364 in 2 : vector<4x1x68xf32>, vector<4x1x60xf32> -> vector<4x1x128xf32>
    %366 = vector.extract_strided_slice %93 {offsets = [0, 68, 0], sizes = [4, 1, 128], strides = [1, 1, 1]} : vector<4x128x128xf32> to vector<4x1x128xf32>
    %367 = vector.extract_strided_slice %366 {offsets = [0, 0, 59], sizes = [4, 1, 69], strides = [1, 1, 1]} : vector<4x1x128xf32> to vector<4x1x69xf32>
    %368 = vector.extract_strided_slice %366 {offsets = [0, 0, 0], sizes = [4, 1, 59], strides = [1, 1, 1]} : vector<4x1x128xf32> to vector<4x1x59xf32>
    %369 = tpu.concatenate %367, %368 in 2 : vector<4x1x69xf32>, vector<4x1x59xf32> -> vector<4x1x128xf32>
    %370 = vector.extract_strided_slice %93 {offsets = [0, 69, 0], sizes = [4, 1, 128], strides = [1, 1, 1]} : vector<4x128x128xf32> to vector<4x1x128xf32>
    %371 = vector.extract_strided_slice %370 {offsets = [0, 0, 58], sizes = [4, 1, 70], strides = [1, 1, 1]} : vector<4x1x128xf32> to vector<4x1x70xf32>
    %372 = vector.extract_strided_slice %370 {offsets = [0, 0, 0], sizes = [4, 1, 58], strides = [1, 1, 1]} : vector<4x1x128xf32> to vector<4x1x58xf32>
    %373 = tpu.concatenate %371, %372 in 2 : vector<4x1x70xf32>, vector<4x1x58xf32> -> vector<4x1x128xf32>
    %374 = vector.extract_strided_slice %93 {offsets = [0, 70, 0], sizes = [4, 1, 128], strides = [1, 1, 1]} : vector<4x128x128xf32> to vector<4x1x128xf32>
    %375 = vector.extract_strided_slice %374 {offsets = [0, 0, 57], sizes = [4, 1, 71], strides = [1, 1, 1]} : vector<4x1x128xf32> to vector<4x1x71xf32>
    %376 = vector.extract_strided_slice %374 {offsets = [0, 0, 0], sizes = [4, 1, 57], strides = [1, 1, 1]} : vector<4x1x128xf32> to vector<4x1x57xf32>
    %377 = tpu.concatenate %375, %376 in 2 : vector<4x1x71xf32>, vector<4x1x57xf32> -> vector<4x1x128xf32>
    %378 = vector.extract_strided_slice %93 {offsets = [0, 71, 0], sizes = [4, 1, 128], strides = [1, 1, 1]} : vector<4x128x128xf32> to vector<4x1x128xf32>
    %379 = vector.extract_strided_slice %378 {offsets = [0, 0, 56], sizes = [4, 1, 72], strides = [1, 1, 1]} : vector<4x1x128xf32> to vector<4x1x72xf32>
    %380 = vector.extract_strided_slice %378 {offsets = [0, 0, 0], sizes = [4, 1, 56], strides = [1, 1, 1]} : vector<4x1x128xf32> to vector<4x1x56xf32>
    %381 = tpu.concatenate %379, %380 in 2 : vector<4x1x72xf32>, vector<4x1x56xf32> -> vector<4x1x128xf32>
    %382 = vector.extract_strided_slice %93 {offsets = [0, 72, 0], sizes = [4, 1, 128], strides = [1, 1, 1]} : vector<4x128x128xf32> to vector<4x1x128xf32>
    %383 = vector.extract_strided_slice %382 {offsets = [0, 0, 55], sizes = [4, 1, 73], strides = [1, 1, 1]} : vector<4x1x128xf32> to vector<4x1x73xf32>
    %384 = vector.extract_strided_slice %382 {offsets = [0, 0, 0], sizes = [4, 1, 55], strides = [1, 1, 1]} : vector<4x1x128xf32> to vector<4x1x55xf32>
    %385 = tpu.concatenate %383, %384 in 2 : vector<4x1x73xf32>, vector<4x1x55xf32> -> vector<4x1x128xf32>
    %386 = vector.extract_strided_slice %93 {offsets = [0, 73, 0], sizes = [4, 1, 128], strides = [1, 1, 1]} : vector<4x128x128xf32> to vector<4x1x128xf32>
    %387 = vector.extract_strided_slice %386 {offsets = [0, 0, 54], sizes = [4, 1, 74], strides = [1, 1, 1]} : vector<4x1x128xf32> to vector<4x1x74xf32>
    %388 = vector.extract_strided_slice %386 {offsets = [0, 0, 0], sizes = [4, 1, 54], strides = [1, 1, 1]} : vector<4x1x128xf32> to vector<4x1x54xf32>
    %389 = tpu.concatenate %387, %388 in 2 : vector<4x1x74xf32>, vector<4x1x54xf32> -> vector<4x1x128xf32>
    %390 = vector.extract_strided_slice %93 {offsets = [0, 74, 0], sizes = [4, 1, 128], strides = [1, 1, 1]} : vector<4x128x128xf32> to vector<4x1x128xf32>
    %391 = vector.extract_strided_slice %390 {offsets = [0, 0, 53], sizes = [4, 1, 75], strides = [1, 1, 1]} : vector<4x1x128xf32> to vector<4x1x75xf32>
    %392 = vector.extract_strided_slice %390 {offsets = [0, 0, 0], sizes = [4, 1, 53], strides = [1, 1, 1]} : vector<4x1x128xf32> to vector<4x1x53xf32>
    %393 = tpu.concatenate %391, %392 in 2 : vector<4x1x75xf32>, vector<4x1x53xf32> -> vector<4x1x128xf32>
    %394 = vector.extract_strided_slice %93 {offsets = [0, 75, 0], sizes = [4, 1, 128], strides = [1, 1, 1]} : vector<4x128x128xf32> to vector<4x1x128xf32>
    %395 = vector.extract_strided_slice %394 {offsets = [0, 0, 52], sizes = [4, 1, 76], strides = [1, 1, 1]} : vector<4x1x128xf32> to vector<4x1x76xf32>
    %396 = vector.extract_strided_slice %394 {offsets = [0, 0, 0], sizes = [4, 1, 52], strides = [1, 1, 1]} : vector<4x1x128xf32> to vector<4x1x52xf32>
    %397 = tpu.concatenate %395, %396 in 2 : vector<4x1x76xf32>, vector<4x1x52xf32> -> vector<4x1x128xf32>
    %398 = vector.extract_strided_slice %93 {offsets = [0, 76, 0], sizes = [4, 1, 128], strides = [1, 1, 1]} : vector<4x128x128xf32> to vector<4x1x128xf32>
    %399 = vector.extract_strided_slice %398 {offsets = [0, 0, 51], sizes = [4, 1, 77], strides = [1, 1, 1]} : vector<4x1x128xf32> to vector<4x1x77xf32>
    %400 = vector.extract_strided_slice %398 {offsets = [0, 0, 0], sizes = [4, 1, 51], strides = [1, 1, 1]} : vector<4x1x128xf32> to vector<4x1x51xf32>
    %401 = tpu.concatenate %399, %400 in 2 : vector<4x1x77xf32>, vector<4x1x51xf32> -> vector<4x1x128xf32>
    %402 = vector.extract_strided_slice %93 {offsets = [0, 77, 0], sizes = [4, 1, 128], strides = [1, 1, 1]} : vector<4x128x128xf32> to vector<4x1x128xf32>
    %403 = vector.extract_strided_slice %402 {offsets = [0, 0, 50], sizes = [4, 1, 78], strides = [1, 1, 1]} : vector<4x1x128xf32> to vector<4x1x78xf32>
    %404 = vector.extract_strided_slice %402 {offsets = [0, 0, 0], sizes = [4, 1, 50], strides = [1, 1, 1]} : vector<4x1x128xf32> to vector<4x1x50xf32>
    %405 = tpu.concatenate %403, %404 in 2 : vector<4x1x78xf32>, vector<4x1x50xf32> -> vector<4x1x128xf32>
    %406 = vector.extract_strided_slice %93 {offsets = [0, 78, 0], sizes = [4, 1, 128], strides = [1, 1, 1]} : vector<4x128x128xf32> to vector<4x1x128xf32>
    %407 = vector.extract_strided_slice %406 {offsets = [0, 0, 49], sizes = [4, 1, 79], strides = [1, 1, 1]} : vector<4x1x128xf32> to vector<4x1x79xf32>
    %408 = vector.extract_strided_slice %406 {offsets = [0, 0, 0], sizes = [4, 1, 49], strides = [1, 1, 1]} : vector<4x1x128xf32> to vector<4x1x49xf32>
    %409 = tpu.concatenate %407, %408 in 2 : vector<4x1x79xf32>, vector<4x1x49xf32> -> vector<4x1x128xf32>
    %410 = vector.extract_strided_slice %93 {offsets = [0, 79, 0], sizes = [4, 1, 128], strides = [1, 1, 1]} : vector<4x128x128xf32> to vector<4x1x128xf32>
    %411 = vector.extract_strided_slice %410 {offsets = [0, 0, 48], sizes = [4, 1, 80], strides = [1, 1, 1]} : vector<4x1x128xf32> to vector<4x1x80xf32>
    %412 = vector.extract_strided_slice %410 {offsets = [0, 0, 0], sizes = [4, 1, 48], strides = [1, 1, 1]} : vector<4x1x128xf32> to vector<4x1x48xf32>
    %413 = tpu.concatenate %411, %412 in 2 : vector<4x1x80xf32>, vector<4x1x48xf32> -> vector<4x1x128xf32>
    %414 = vector.extract_strided_slice %93 {offsets = [0, 80, 0], sizes = [4, 1, 128], strides = [1, 1, 1]} : vector<4x128x128xf32> to vector<4x1x128xf32>
    %415 = vector.extract_strided_slice %414 {offsets = [0, 0, 47], sizes = [4, 1, 81], strides = [1, 1, 1]} : vector<4x1x128xf32> to vector<4x1x81xf32>
    %416 = vector.extract_strided_slice %414 {offsets = [0, 0, 0], sizes = [4, 1, 47], strides = [1, 1, 1]} : vector<4x1x128xf32> to vector<4x1x47xf32>
    %417 = tpu.concatenate %415, %416 in 2 : vector<4x1x81xf32>, vector<4x1x47xf32> -> vector<4x1x128xf32>
    %418 = vector.extract_strided_slice %93 {offsets = [0, 81, 0], sizes = [4, 1, 128], strides = [1, 1, 1]} : vector<4x128x128xf32> to vector<4x1x128xf32>
    %419 = vector.extract_strided_slice %418 {offsets = [0, 0, 46], sizes = [4, 1, 82], strides = [1, 1, 1]} : vector<4x1x128xf32> to vector<4x1x82xf32>
    %420 = vector.extract_strided_slice %418 {offsets = [0, 0, 0], sizes = [4, 1, 46], strides = [1, 1, 1]} : vector<4x1x128xf32> to vector<4x1x46xf32>
    %421 = tpu.concatenate %419, %420 in 2 : vector<4x1x82xf32>, vector<4x1x46xf32> -> vector<4x1x128xf32>
    %422 = vector.extract_strided_slice %93 {offsets = [0, 82, 0], sizes = [4, 1, 128], strides = [1, 1, 1]} : vector<4x128x128xf32> to vector<4x1x128xf32>
    %423 = vector.extract_strided_slice %422 {offsets = [0, 0, 45], sizes = [4, 1, 83], strides = [1, 1, 1]} : vector<4x1x128xf32> to vector<4x1x83xf32>
    %424 = vector.extract_strided_slice %422 {offsets = [0, 0, 0], sizes = [4, 1, 45], strides = [1, 1, 1]} : vector<4x1x128xf32> to vector<4x1x45xf32>
    %425 = tpu.concatenate %423, %424 in 2 : vector<4x1x83xf32>, vector<4x1x45xf32> -> vector<4x1x128xf32>
    %426 = vector.extract_strided_slice %93 {offsets = [0, 83, 0], sizes = [4, 1, 128], strides = [1, 1, 1]} : vector<4x128x128xf32> to vector<4x1x128xf32>
    %427 = vector.extract_strided_slice %426 {offsets = [0, 0, 44], sizes = [4, 1, 84], strides = [1, 1, 1]} : vector<4x1x128xf32> to vector<4x1x84xf32>
    %428 = vector.extract_strided_slice %426 {offsets = [0, 0, 0], sizes = [4, 1, 44], strides = [1, 1, 1]} : vector<4x1x128xf32> to vector<4x1x44xf32>
    %429 = tpu.concatenate %427, %428 in 2 : vector<4x1x84xf32>, vector<4x1x44xf32> -> vector<4x1x128xf32>
    %430 = vector.extract_strided_slice %93 {offsets = [0, 84, 0], sizes = [4, 1, 128], strides = [1, 1, 1]} : vector<4x128x128xf32> to vector<4x1x128xf32>
    %431 = vector.extract_strided_slice %430 {offsets = [0, 0, 43], sizes = [4, 1, 85], strides = [1, 1, 1]} : vector<4x1x128xf32> to vector<4x1x85xf32>
    %432 = vector.extract_strided_slice %430 {offsets = [0, 0, 0], sizes = [4, 1, 43], strides = [1, 1, 1]} : vector<4x1x128xf32> to vector<4x1x43xf32>
    %433 = tpu.concatenate %431, %432 in 2 : vector<4x1x85xf32>, vector<4x1x43xf32> -> vector<4x1x128xf32>
    %434 = vector.extract_strided_slice %93 {offsets = [0, 85, 0], sizes = [4, 1, 128], strides = [1, 1, 1]} : vector<4x128x128xf32> to vector<4x1x128xf32>
    %435 = vector.extract_strided_slice %434 {offsets = [0, 0, 42], sizes = [4, 1, 86], strides = [1, 1, 1]} : vector<4x1x128xf32> to vector<4x1x86xf32>
    %436 = vector.extract_strided_slice %434 {offsets = [0, 0, 0], sizes = [4, 1, 42], strides = [1, 1, 1]} : vector<4x1x128xf32> to vector<4x1x42xf32>
    %437 = tpu.concatenate %435, %436 in 2 : vector<4x1x86xf32>, vector<4x1x42xf32> -> vector<4x1x128xf32>
    %438 = vector.extract_strided_slice %93 {offsets = [0, 86, 0], sizes = [4, 1, 128], strides = [1, 1, 1]} : vector<4x128x128xf32> to vector<4x1x128xf32>
    %439 = vector.extract_strided_slice %438 {offsets = [0, 0, 41], sizes = [4, 1, 87], strides = [1, 1, 1]} : vector<4x1x128xf32> to vector<4x1x87xf32>
    %440 = vector.extract_strided_slice %438 {offsets = [0, 0, 0], sizes = [4, 1, 41], strides = [1, 1, 1]} : vector<4x1x128xf32> to vector<4x1x41xf32>
    %441 = tpu.concatenate %439, %440 in 2 : vector<4x1x87xf32>, vector<4x1x41xf32> -> vector<4x1x128xf32>
    %442 = vector.extract_strided_slice %93 {offsets = [0, 87, 0], sizes = [4, 1, 128], strides = [1, 1, 1]} : vector<4x128x128xf32> to vector<4x1x128xf32>
    %443 = vector.extract_strided_slice %442 {offsets = [0, 0, 40], sizes = [4, 1, 88], strides = [1, 1, 1]} : vector<4x1x128xf32> to vector<4x1x88xf32>
    %444 = vector.extract_strided_slice %442 {offsets = [0, 0, 0], sizes = [4, 1, 40], strides = [1, 1, 1]} : vector<4x1x128xf32> to vector<4x1x40xf32>
    %445 = tpu.concatenate %443, %444 in 2 : vector<4x1x88xf32>, vector<4x1x40xf32> -> vector<4x1x128xf32>
    %446 = vector.extract_strided_slice %93 {offsets = [0, 88, 0], sizes = [4, 1, 128], strides = [1, 1, 1]} : vector<4x128x128xf32> to vector<4x1x128xf32>
    %447 = vector.extract_strided_slice %446 {offsets = [0, 0, 39], sizes = [4, 1, 89], strides = [1, 1, 1]} : vector<4x1x128xf32> to vector<4x1x89xf32>
    %448 = vector.extract_strided_slice %446 {offsets = [0, 0, 0], sizes = [4, 1, 39], strides = [1, 1, 1]} : vector<4x1x128xf32> to vector<4x1x39xf32>
    %449 = tpu.concatenate %447, %448 in 2 : vector<4x1x89xf32>, vector<4x1x39xf32> -> vector<4x1x128xf32>
    %450 = vector.extract_strided_slice %93 {offsets = [0, 89, 0], sizes = [4, 1, 128], strides = [1, 1, 1]} : vector<4x128x128xf32> to vector<4x1x128xf32>
    %451 = vector.extract_strided_slice %450 {offsets = [0, 0, 38], sizes = [4, 1, 90], strides = [1, 1, 1]} : vector<4x1x128xf32> to vector<4x1x90xf32>
    %452 = vector.extract_strided_slice %450 {offsets = [0, 0, 0], sizes = [4, 1, 38], strides = [1, 1, 1]} : vector<4x1x128xf32> to vector<4x1x38xf32>
    %453 = tpu.concatenate %451, %452 in 2 : vector<4x1x90xf32>, vector<4x1x38xf32> -> vector<4x1x128xf32>
    %454 = vector.extract_strided_slice %93 {offsets = [0, 90, 0], sizes = [4, 1, 128], strides = [1, 1, 1]} : vector<4x128x128xf32> to vector<4x1x128xf32>
    %455 = vector.extract_strided_slice %454 {offsets = [0, 0, 37], sizes = [4, 1, 91], strides = [1, 1, 1]} : vector<4x1x128xf32> to vector<4x1x91xf32>
    %456 = vector.extract_strided_slice %454 {offsets = [0, 0, 0], sizes = [4, 1, 37], strides = [1, 1, 1]} : vector<4x1x128xf32> to vector<4x1x37xf32>
    %457 = tpu.concatenate %455, %456 in 2 : vector<4x1x91xf32>, vector<4x1x37xf32> -> vector<4x1x128xf32>
    %458 = vector.extract_strided_slice %93 {offsets = [0, 91, 0], sizes = [4, 1, 128], strides = [1, 1, 1]} : vector<4x128x128xf32> to vector<4x1x128xf32>
    %459 = vector.extract_strided_slice %458 {offsets = [0, 0, 36], sizes = [4, 1, 92], strides = [1, 1, 1]} : vector<4x1x128xf32> to vector<4x1x92xf32>
    %460 = vector.extract_strided_slice %458 {offsets = [0, 0, 0], sizes = [4, 1, 36], strides = [1, 1, 1]} : vector<4x1x128xf32> to vector<4x1x36xf32>
    %461 = tpu.concatenate %459, %460 in 2 : vector<4x1x92xf32>, vector<4x1x36xf32> -> vector<4x1x128xf32>
    %462 = vector.extract_strided_slice %93 {offsets = [0, 92, 0], sizes = [4, 1, 128], strides = [1, 1, 1]} : vector<4x128x128xf32> to vector<4x1x128xf32>
    %463 = vector.extract_strided_slice %462 {offsets = [0, 0, 35], sizes = [4, 1, 93], strides = [1, 1, 1]} : vector<4x1x128xf32> to vector<4x1x93xf32>
    %464 = vector.extract_strided_slice %462 {offsets = [0, 0, 0], sizes = [4, 1, 35], strides = [1, 1, 1]} : vector<4x1x128xf32> to vector<4x1x35xf32>
    %465 = tpu.concatenate %463, %464 in 2 : vector<4x1x93xf32>, vector<4x1x35xf32> -> vector<4x1x128xf32>
    %466 = vector.extract_strided_slice %93 {offsets = [0, 93, 0], sizes = [4, 1, 128], strides = [1, 1, 1]} : vector<4x128x128xf32> to vector<4x1x128xf32>
    %467 = vector.extract_strided_slice %466 {offsets = [0, 0, 34], sizes = [4, 1, 94], strides = [1, 1, 1]} : vector<4x1x128xf32> to vector<4x1x94xf32>
    %468 = vector.extract_strided_slice %466 {offsets = [0, 0, 0], sizes = [4, 1, 34], strides = [1, 1, 1]} : vector<4x1x128xf32> to vector<4x1x34xf32>
    %469 = tpu.concatenate %467, %468 in 2 : vector<4x1x94xf32>, vector<4x1x34xf32> -> vector<4x1x128xf32>
    %470 = vector.extract_strided_slice %93 {offsets = [0, 94, 0], sizes = [4, 1, 128], strides = [1, 1, 1]} : vector<4x128x128xf32> to vector<4x1x128xf32>
    %471 = vector.extract_strided_slice %470 {offsets = [0, 0, 33], sizes = [4, 1, 95], strides = [1, 1, 1]} : vector<4x1x128xf32> to vector<4x1x95xf32>
    %472 = vector.extract_strided_slice %470 {offsets = [0, 0, 0], sizes = [4, 1, 33], strides = [1, 1, 1]} : vector<4x1x128xf32> to vector<4x1x33xf32>
    %473 = tpu.concatenate %471, %472 in 2 : vector<4x1x95xf32>, vector<4x1x33xf32> -> vector<4x1x128xf32>
    %474 = vector.extract_strided_slice %93 {offsets = [0, 95, 0], sizes = [4, 1, 128], strides = [1, 1, 1]} : vector<4x128x128xf32> to vector<4x1x128xf32>
    %475 = vector.extract_strided_slice %474 {offsets = [0, 0, 32], sizes = [4, 1, 96], strides = [1, 1, 1]} : vector<4x1x128xf32> to vector<4x1x96xf32>
    %476 = vector.extract_strided_slice %474 {offsets = [0, 0, 0], sizes = [4, 1, 32], strides = [1, 1, 1]} : vector<4x1x128xf32> to vector<4x1x32xf32>
    %477 = tpu.concatenate %475, %476 in 2 : vector<4x1x96xf32>, vector<4x1x32xf32> -> vector<4x1x128xf32>
    %478 = vector.extract_strided_slice %93 {offsets = [0, 96, 0], sizes = [4, 1, 128], strides = [1, 1, 1]} : vector<4x128x128xf32> to vector<4x1x128xf32>
    %479 = vector.extract_strided_slice %478 {offsets = [0, 0, 31], sizes = [4, 1, 97], strides = [1, 1, 1]} : vector<4x1x128xf32> to vector<4x1x97xf32>
    %480 = vector.extract_strided_slice %478 {offsets = [0, 0, 0], sizes = [4, 1, 31], strides = [1, 1, 1]} : vector<4x1x128xf32> to vector<4x1x31xf32>
    %481 = tpu.concatenate %479, %480 in 2 : vector<4x1x97xf32>, vector<4x1x31xf32> -> vector<4x1x128xf32>
    %482 = vector.extract_strided_slice %93 {offsets = [0, 97, 0], sizes = [4, 1, 128], strides = [1, 1, 1]} : vector<4x128x128xf32> to vector<4x1x128xf32>
    %483 = vector.extract_strided_slice %482 {offsets = [0, 0, 30], sizes = [4, 1, 98], strides = [1, 1, 1]} : vector<4x1x128xf32> to vector<4x1x98xf32>
    %484 = vector.extract_strided_slice %482 {offsets = [0, 0, 0], sizes = [4, 1, 30], strides = [1, 1, 1]} : vector<4x1x128xf32> to vector<4x1x30xf32>
    %485 = tpu.concatenate %483, %484 in 2 : vector<4x1x98xf32>, vector<4x1x30xf32> -> vector<4x1x128xf32>
    %486 = vector.extract_strided_slice %93 {offsets = [0, 98, 0], sizes = [4, 1, 128], strides = [1, 1, 1]} : vector<4x128x128xf32> to vector<4x1x128xf32>
    %487 = vector.extract_strided_slice %486 {offsets = [0, 0, 29], sizes = [4, 1, 99], strides = [1, 1, 1]} : vector<4x1x128xf32> to vector<4x1x99xf32>
    %488 = vector.extract_strided_slice %486 {offsets = [0, 0, 0], sizes = [4, 1, 29], strides = [1, 1, 1]} : vector<4x1x128xf32> to vector<4x1x29xf32>
    %489 = tpu.concatenate %487, %488 in 2 : vector<4x1x99xf32>, vector<4x1x29xf32> -> vector<4x1x128xf32>
    %490 = vector.extract_strided_slice %93 {offsets = [0, 99, 0], sizes = [4, 1, 128], strides = [1, 1, 1]} : vector<4x128x128xf32> to vector<4x1x128xf32>
    %491 = vector.extract_strided_slice %490 {offsets = [0, 0, 28], sizes = [4, 1, 100], strides = [1, 1, 1]} : vector<4x1x128xf32> to vector<4x1x100xf32>
    %492 = vector.extract_strided_slice %490 {offsets = [0, 0, 0], sizes = [4, 1, 28], strides = [1, 1, 1]} : vector<4x1x128xf32> to vector<4x1x28xf32>
    %493 = tpu.concatenate %491, %492 in 2 : vector<4x1x100xf32>, vector<4x1x28xf32> -> vector<4x1x128xf32>
    %494 = vector.extract_strided_slice %93 {offsets = [0, 100, 0], sizes = [4, 1, 128], strides = [1, 1, 1]} : vector<4x128x128xf32> to vector<4x1x128xf32>
    %495 = vector.extract_strided_slice %494 {offsets = [0, 0, 27], sizes = [4, 1, 101], strides = [1, 1, 1]} : vector<4x1x128xf32> to vector<4x1x101xf32>
    %496 = vector.extract_strided_slice %494 {offsets = [0, 0, 0], sizes = [4, 1, 27], strides = [1, 1, 1]} : vector<4x1x128xf32> to vector<4x1x27xf32>
    %497 = tpu.concatenate %495, %496 in 2 : vector<4x1x101xf32>, vector<4x1x27xf32> -> vector<4x1x128xf32>
    %498 = vector.extract_strided_slice %93 {offsets = [0, 101, 0], sizes = [4, 1, 128], strides = [1, 1, 1]} : vector<4x128x128xf32> to vector<4x1x128xf32>
    %499 = vector.extract_strided_slice %498 {offsets = [0, 0, 26], sizes = [4, 1, 102], strides = [1, 1, 1]} : vector<4x1x128xf32> to vector<4x1x102xf32>
    %500 = vector.extract_strided_slice %498 {offsets = [0, 0, 0], sizes = [4, 1, 26], strides = [1, 1, 1]} : vector<4x1x128xf32> to vector<4x1x26xf32>
    %501 = tpu.concatenate %499, %500 in 2 : vector<4x1x102xf32>, vector<4x1x26xf32> -> vector<4x1x128xf32>
    %502 = vector.extract_strided_slice %93 {offsets = [0, 102, 0], sizes = [4, 1, 128], strides = [1, 1, 1]} : vector<4x128x128xf32> to vector<4x1x128xf32>
    %503 = vector.extract_strided_slice %502 {offsets = [0, 0, 25], sizes = [4, 1, 103], strides = [1, 1, 1]} : vector<4x1x128xf32> to vector<4x1x103xf32>
    %504 = vector.extract_strided_slice %502 {offsets = [0, 0, 0], sizes = [4, 1, 25], strides = [1, 1, 1]} : vector<4x1x128xf32> to vector<4x1x25xf32>
    %505 = tpu.concatenate %503, %504 in 2 : vector<4x1x103xf32>, vector<4x1x25xf32> -> vector<4x1x128xf32>
    %506 = vector.extract_strided_slice %93 {offsets = [0, 103, 0], sizes = [4, 1, 128], strides = [1, 1, 1]} : vector<4x128x128xf32> to vector<4x1x128xf32>
    %507 = vector.extract_strided_slice %506 {offsets = [0, 0, 24], sizes = [4, 1, 104], strides = [1, 1, 1]} : vector<4x1x128xf32> to vector<4x1x104xf32>
    %508 = vector.extract_strided_slice %506 {offsets = [0, 0, 0], sizes = [4, 1, 24], strides = [1, 1, 1]} : vector<4x1x128xf32> to vector<4x1x24xf32>
    %509 = tpu.concatenate %507, %508 in 2 : vector<4x1x104xf32>, vector<4x1x24xf32> -> vector<4x1x128xf32>
    %510 = vector.extract_strided_slice %93 {offsets = [0, 104, 0], sizes = [4, 1, 128], strides = [1, 1, 1]} : vector<4x128x128xf32> to vector<4x1x128xf32>
    %511 = vector.extract_strided_slice %510 {offsets = [0, 0, 23], sizes = [4, 1, 105], strides = [1, 1, 1]} : vector<4x1x128xf32> to vector<4x1x105xf32>
    %512 = vector.extract_strided_slice %510 {offsets = [0, 0, 0], sizes = [4, 1, 23], strides = [1, 1, 1]} : vector<4x1x128xf32> to vector<4x1x23xf32>
    %513 = tpu.concatenate %511, %512 in 2 : vector<4x1x105xf32>, vector<4x1x23xf32> -> vector<4x1x128xf32>
    %514 = vector.extract_strided_slice %93 {offsets = [0, 105, 0], sizes = [4, 1, 128], strides = [1, 1, 1]} : vector<4x128x128xf32> to vector<4x1x128xf32>
    %515 = vector.extract_strided_slice %514 {offsets = [0, 0, 22], sizes = [4, 1, 106], strides = [1, 1, 1]} : vector<4x1x128xf32> to vector<4x1x106xf32>
    %516 = vector.extract_strided_slice %514 {offsets = [0, 0, 0], sizes = [4, 1, 22], strides = [1, 1, 1]} : vector<4x1x128xf32> to vector<4x1x22xf32>
    %517 = tpu.concatenate %515, %516 in 2 : vector<4x1x106xf32>, vector<4x1x22xf32> -> vector<4x1x128xf32>
    %518 = vector.extract_strided_slice %93 {offsets = [0, 106, 0], sizes = [4, 1, 128], strides = [1, 1, 1]} : vector<4x128x128xf32> to vector<4x1x128xf32>
    %519 = vector.extract_strided_slice %518 {offsets = [0, 0, 21], sizes = [4, 1, 107], strides = [1, 1, 1]} : vector<4x1x128xf32> to vector<4x1x107xf32>
    %520 = vector.extract_strided_slice %518 {offsets = [0, 0, 0], sizes = [4, 1, 21], strides = [1, 1, 1]} : vector<4x1x128xf32> to vector<4x1x21xf32>
    %521 = tpu.concatenate %519, %520 in 2 : vector<4x1x107xf32>, vector<4x1x21xf32> -> vector<4x1x128xf32>
    %522 = vector.extract_strided_slice %93 {offsets = [0, 107, 0], sizes = [4, 1, 128], strides = [1, 1, 1]} : vector<4x128x128xf32> to vector<4x1x128xf32>
    %523 = vector.extract_strided_slice %522 {offsets = [0, 0, 20], sizes = [4, 1, 108], strides = [1, 1, 1]} : vector<4x1x128xf32> to vector<4x1x108xf32>
    %524 = vector.extract_strided_slice %522 {offsets = [0, 0, 0], sizes = [4, 1, 20], strides = [1, 1, 1]} : vector<4x1x128xf32> to vector<4x1x20xf32>
    %525 = tpu.concatenate %523, %524 in 2 : vector<4x1x108xf32>, vector<4x1x20xf32> -> vector<4x1x128xf32>
    %526 = vector.extract_strided_slice %93 {offsets = [0, 108, 0], sizes = [4, 1, 128], strides = [1, 1, 1]} : vector<4x128x128xf32> to vector<4x1x128xf32>
    %527 = vector.extract_strided_slice %526 {offsets = [0, 0, 19], sizes = [4, 1, 109], strides = [1, 1, 1]} : vector<4x1x128xf32> to vector<4x1x109xf32>
    %528 = vector.extract_strided_slice %526 {offsets = [0, 0, 0], sizes = [4, 1, 19], strides = [1, 1, 1]} : vector<4x1x128xf32> to vector<4x1x19xf32>
    %529 = tpu.concatenate %527, %528 in 2 : vector<4x1x109xf32>, vector<4x1x19xf32> -> vector<4x1x128xf32>
    %530 = vector.extract_strided_slice %93 {offsets = [0, 109, 0], sizes = [4, 1, 128], strides = [1, 1, 1]} : vector<4x128x128xf32> to vector<4x1x128xf32>
    %531 = vector.extract_strided_slice %530 {offsets = [0, 0, 18], sizes = [4, 1, 110], strides = [1, 1, 1]} : vector<4x1x128xf32> to vector<4x1x110xf32>
    %532 = vector.extract_strided_slice %530 {offsets = [0, 0, 0], sizes = [4, 1, 18], strides = [1, 1, 1]} : vector<4x1x128xf32> to vector<4x1x18xf32>
    %533 = tpu.concatenate %531, %532 in 2 : vector<4x1x110xf32>, vector<4x1x18xf32> -> vector<4x1x128xf32>
    %534 = vector.extract_strided_slice %93 {offsets = [0, 110, 0], sizes = [4, 1, 128], strides = [1, 1, 1]} : vector<4x128x128xf32> to vector<4x1x128xf32>
    %535 = vector.extract_strided_slice %534 {offsets = [0, 0, 17], sizes = [4, 1, 111], strides = [1, 1, 1]} : vector<4x1x128xf32> to vector<4x1x111xf32>
    %536 = vector.extract_strided_slice %534 {offsets = [0, 0, 0], sizes = [4, 1, 17], strides = [1, 1, 1]} : vector<4x1x128xf32> to vector<4x1x17xf32>
    %537 = tpu.concatenate %535, %536 in 2 : vector<4x1x111xf32>, vector<4x1x17xf32> -> vector<4x1x128xf32>
    %538 = vector.extract_strided_slice %93 {offsets = [0, 111, 0], sizes = [4, 1, 128], strides = [1, 1, 1]} : vector<4x128x128xf32> to vector<4x1x128xf32>
    %539 = vector.extract_strided_slice %538 {offsets = [0, 0, 16], sizes = [4, 1, 112], strides = [1, 1, 1]} : vector<4x1x128xf32> to vector<4x1x112xf32>
    %540 = vector.extract_strided_slice %538 {offsets = [0, 0, 0], sizes = [4, 1, 16], strides = [1, 1, 1]} : vector<4x1x128xf32> to vector<4x1x16xf32>
    %541 = tpu.concatenate %539, %540 in 2 : vector<4x1x112xf32>, vector<4x1x16xf32> -> vector<4x1x128xf32>
    %542 = vector.extract_strided_slice %93 {offsets = [0, 112, 0], sizes = [4, 1, 128], strides = [1, 1, 1]} : vector<4x128x128xf32> to vector<4x1x128xf32>
    %543 = vector.extract_strided_slice %542 {offsets = [0, 0, 15], sizes = [4, 1, 113], strides = [1, 1, 1]} : vector<4x1x128xf32> to vector<4x1x113xf32>
    %544 = vector.extract_strided_slice %542 {offsets = [0, 0, 0], sizes = [4, 1, 15], strides = [1, 1, 1]} : vector<4x1x128xf32> to vector<4x1x15xf32>
    %545 = tpu.concatenate %543, %544 in 2 : vector<4x1x113xf32>, vector<4x1x15xf32> -> vector<4x1x128xf32>
    %546 = vector.extract_strided_slice %93 {offsets = [0, 113, 0], sizes = [4, 1, 128], strides = [1, 1, 1]} : vector<4x128x128xf32> to vector<4x1x128xf32>
    %547 = vector.extract_strided_slice %546 {offsets = [0, 0, 14], sizes = [4, 1, 114], strides = [1, 1, 1]} : vector<4x1x128xf32> to vector<4x1x114xf32>
    %548 = vector.extract_strided_slice %546 {offsets = [0, 0, 0], sizes = [4, 1, 14], strides = [1, 1, 1]} : vector<4x1x128xf32> to vector<4x1x14xf32>
    %549 = tpu.concatenate %547, %548 in 2 : vector<4x1x114xf32>, vector<4x1x14xf32> -> vector<4x1x128xf32>
    %550 = vector.extract_strided_slice %93 {offsets = [0, 114, 0], sizes = [4, 1, 128], strides = [1, 1, 1]} : vector<4x128x128xf32> to vector<4x1x128xf32>
    %551 = vector.extract_strided_slice %550 {offsets = [0, 0, 13], sizes = [4, 1, 115], strides = [1, 1, 1]} : vector<4x1x128xf32> to vector<4x1x115xf32>
    %552 = vector.extract_strided_slice %550 {offsets = [0, 0, 0], sizes = [4, 1, 13], strides = [1, 1, 1]} : vector<4x1x128xf32> to vector<4x1x13xf32>
    %553 = tpu.concatenate %551, %552 in 2 : vector<4x1x115xf32>, vector<4x1x13xf32> -> vector<4x1x128xf32>
    %554 = vector.extract_strided_slice %93 {offsets = [0, 115, 0], sizes = [4, 1, 128], strides = [1, 1, 1]} : vector<4x128x128xf32> to vector<4x1x128xf32>
    %555 = vector.extract_strided_slice %554 {offsets = [0, 0, 12], sizes = [4, 1, 116], strides = [1, 1, 1]} : vector<4x1x128xf32> to vector<4x1x116xf32>
    %556 = vector.extract_strided_slice %554 {offsets = [0, 0, 0], sizes = [4, 1, 12], strides = [1, 1, 1]} : vector<4x1x128xf32> to vector<4x1x12xf32>
    %557 = tpu.concatenate %555, %556 in 2 : vector<4x1x116xf32>, vector<4x1x12xf32> -> vector<4x1x128xf32>
    %558 = vector.extract_strided_slice %93 {offsets = [0, 116, 0], sizes = [4, 1, 128], strides = [1, 1, 1]} : vector<4x128x128xf32> to vector<4x1x128xf32>
    %559 = vector.extract_strided_slice %558 {offsets = [0, 0, 11], sizes = [4, 1, 117], strides = [1, 1, 1]} : vector<4x1x128xf32> to vector<4x1x117xf32>
    %560 = vector.extract_strided_slice %558 {offsets = [0, 0, 0], sizes = [4, 1, 11], strides = [1, 1, 1]} : vector<4x1x128xf32> to vector<4x1x11xf32>
    %561 = tpu.concatenate %559, %560 in 2 : vector<4x1x117xf32>, vector<4x1x11xf32> -> vector<4x1x128xf32>
    %562 = vector.extract_strided_slice %93 {offsets = [0, 117, 0], sizes = [4, 1, 128], strides = [1, 1, 1]} : vector<4x128x128xf32> to vector<4x1x128xf32>
    %563 = vector.extract_strided_slice %562 {offsets = [0, 0, 10], sizes = [4, 1, 118], strides = [1, 1, 1]} : vector<4x1x128xf32> to vector<4x1x118xf32>
    %564 = vector.extract_strided_slice %562 {offsets = [0, 0, 0], sizes = [4, 1, 10], strides = [1, 1, 1]} : vector<4x1x128xf32> to vector<4x1x10xf32>
    %565 = tpu.concatenate %563, %564 in 2 : vector<4x1x118xf32>, vector<4x1x10xf32> -> vector<4x1x128xf32>
    %566 = vector.extract_strided_slice %93 {offsets = [0, 118, 0], sizes = [4, 1, 128], strides = [1, 1, 1]} : vector<4x128x128xf32> to vector<4x1x128xf32>
    %567 = vector.extract_strided_slice %566 {offsets = [0, 0, 9], sizes = [4, 1, 119], strides = [1, 1, 1]} : vector<4x1x128xf32> to vector<4x1x119xf32>
    %568 = vector.extract_strided_slice %566 {offsets = [0, 0, 0], sizes = [4, 1, 9], strides = [1, 1, 1]} : vector<4x1x128xf32> to vector<4x1x9xf32>
    %569 = tpu.concatenate %567, %568 in 2 : vector<4x1x119xf32>, vector<4x1x9xf32> -> vector<4x1x128xf32>
    %570 = vector.extract_strided_slice %93 {offsets = [0, 119, 0], sizes = [4, 1, 128], strides = [1, 1, 1]} : vector<4x128x128xf32> to vector<4x1x128xf32>
    %571 = vector.extract_strided_slice %570 {offsets = [0, 0, 8], sizes = [4, 1, 120], strides = [1, 1, 1]} : vector<4x1x128xf32> to vector<4x1x120xf32>
    %572 = vector.extract_strided_slice %570 {offsets = [0, 0, 0], sizes = [4, 1, 8], strides = [1, 1, 1]} : vector<4x1x128xf32> to vector<4x1x8xf32>
    %573 = tpu.concatenate %571, %572 in 2 : vector<4x1x120xf32>, vector<4x1x8xf32> -> vector<4x1x128xf32>
    %574 = vector.extract_strided_slice %93 {offsets = [0, 120, 0], sizes = [4, 1, 128], strides = [1, 1, 1]} : vector<4x128x128xf32> to vector<4x1x128xf32>
    %575 = vector.extract_strided_slice %574 {offsets = [0, 0, 7], sizes = [4, 1, 121], strides = [1, 1, 1]} : vector<4x1x128xf32> to vector<4x1x121xf32>
    %576 = vector.extract_strided_slice %574 {offsets = [0, 0, 0], sizes = [4, 1, 7], strides = [1, 1, 1]} : vector<4x1x128xf32> to vector<4x1x7xf32>
    %577 = tpu.concatenate %575, %576 in 2 : vector<4x1x121xf32>, vector<4x1x7xf32> -> vector<4x1x128xf32>
    %578 = vector.extract_strided_slice %93 {offsets = [0, 121, 0], sizes = [4, 1, 128], strides = [1, 1, 1]} : vector<4x128x128xf32> to vector<4x1x128xf32>
    %579 = vector.extract_strided_slice %578 {offsets = [0, 0, 6], sizes = [4, 1, 122], strides = [1, 1, 1]} : vector<4x1x128xf32> to vector<4x1x122xf32>
    %580 = vector.extract_strided_slice %578 {offsets = [0, 0, 0], sizes = [4, 1, 6], strides = [1, 1, 1]} : vector<4x1x128xf32> to vector<4x1x6xf32>
    %581 = tpu.concatenate %579, %580 in 2 : vector<4x1x122xf32>, vector<4x1x6xf32> -> vector<4x1x128xf32>
    %582 = vector.extract_strided_slice %93 {offsets = [0, 122, 0], sizes = [4, 1, 128], strides = [1, 1, 1]} : vector<4x128x128xf32> to vector<4x1x128xf32>
    %583 = vector.extract_strided_slice %582 {offsets = [0, 0, 5], sizes = [4, 1, 123], strides = [1, 1, 1]} : vector<4x1x128xf32> to vector<4x1x123xf32>
    %584 = vector.extract_strided_slice %582 {offsets = [0, 0, 0], sizes = [4, 1, 5], strides = [1, 1, 1]} : vector<4x1x128xf32> to vector<4x1x5xf32>
    %585 = tpu.concatenate %583, %584 in 2 : vector<4x1x123xf32>, vector<4x1x5xf32> -> vector<4x1x128xf32>
    %586 = vector.extract_strided_slice %93 {offsets = [0, 123, 0], sizes = [4, 1, 128], strides = [1, 1, 1]} : vector<4x128x128xf32> to vector<4x1x128xf32>
    %587 = vector.extract_strided_slice %586 {offsets = [0, 0, 4], sizes = [4, 1, 124], strides = [1, 1, 1]} : vector<4x1x128xf32> to vector<4x1x124xf32>
    %588 = vector.extract_strided_slice %586 {offsets = [0, 0, 0], sizes = [4, 1, 4], strides = [1, 1, 1]} : vector<4x1x128xf32> to vector<4x1x4xf32>
    %589 = tpu.concatenate %587, %588 in 2 : vector<4x1x124xf32>, vector<4x1x4xf32> -> vector<4x1x128xf32>
    %590 = vector.extract_strided_slice %93 {offsets = [0, 124, 0], sizes = [4, 1, 128], strides = [1, 1, 1]} : vector<4x128x128xf32> to vector<4x1x128xf32>
    %591 = vector.extract_strided_slice %590 {offsets = [0, 0, 3], sizes = [4, 1, 125], strides = [1, 1, 1]} : vector<4x1x128xf32> to vector<4x1x125xf32>
    %592 = vector.extract_strided_slice %590 {offsets = [0, 0, 0], sizes = [4, 1, 3], strides = [1, 1, 1]} : vector<4x1x128xf32> to vector<4x1x3xf32>
    %593 = tpu.concatenate %591, %592 in 2 : vector<4x1x125xf32>, vector<4x1x3xf32> -> vector<4x1x128xf32>
    %594 = vector.extract_strided_slice %93 {offsets = [0, 125, 0], sizes = [4, 1, 128], strides = [1, 1, 1]} : vector<4x128x128xf32> to vector<4x1x128xf32>
    %595 = vector.extract_strided_slice %594 {offsets = [0, 0, 2], sizes = [4, 1, 126], strides = [1, 1, 1]} : vector<4x1x128xf32> to vector<4x1x126xf32>
    %596 = vector.extract_strided_slice %594 {offsets = [0, 0, 0], sizes = [4, 1, 2], strides = [1, 1, 1]} : vector<4x1x128xf32> to vector<4x1x2xf32>
    %597 = tpu.concatenate %595, %596 in 2 : vector<4x1x126xf32>, vector<4x1x2xf32> -> vector<4x1x128xf32>
    %598 = vector.extract_strided_slice %93 {offsets = [0, 126, 0], sizes = [4, 1, 128], strides = [1, 1, 1]} : vector<4x128x128xf32> to vector<4x1x128xf32>
    %599 = vector.extract_strided_slice %598 {offsets = [0, 0, 1], sizes = [4, 1, 127], strides = [1, 1, 1]} : vector<4x1x128xf32> to vector<4x1x127xf32>
    %600 = vector.extract_strided_slice %598 {offsets = [0, 0, 0], sizes = [4, 1, 1], strides = [1, 1, 1]} : vector<4x1x128xf32> to vector<4x1x1xf32>
    %601 = tpu.concatenate %599, %600 in 2 : vector<4x1x127xf32>, vector<4x1x1xf32> -> vector<4x1x128xf32>
    %602 = vector.extract_strided_slice %93 {offsets = [0, 127, 0], sizes = [4, 1, 128], strides = [1, 1, 1]} : vector<4x128x128xf32> to vector<4x1x128xf32>
    %603 = tpu.concatenate %97, %101, %105, %109, %113, %117, %121, %125, %129, %133, %137, %141, %145, %149, %153, %157 in 1 : vector<4x1x128xf32>, vector<4x1x128xf32>, vector<4x1x128xf32>, vector<4x1x128xf32>, vector<4x1x128xf32>, vector<4x1x128xf32>, vector<4x1x128xf32>, vector<4x1x128xf32>, vector<4x1x128xf32>, vector<4x1x128xf32>, vector<4x1x128xf32>, vector<4x1x128xf32>, vector<4x1x128xf32>, vector<4x1x128xf32>, vector<4x1x128xf32>, vector<4x1x128xf32> -> vector<4x16x128xf32>
    %604 = tpu.concatenate %161, %165, %169, %173, %177, %181, %185, %189, %193, %197, %201, %205, %209, %213, %217, %221 in 1 : vector<4x1x128xf32>, vector<4x1x128xf32>, vector<4x1x128xf32>, vector<4x1x128xf32>, vector<4x1x128xf32>, vector<4x1x128xf32>, vector<4x1x128xf32>, vector<4x1x128xf32>, vector<4x1x128xf32>, vector<4x1x128xf32>, vector<4x1x128xf32>, vector<4x1x128xf32>, vector<4x1x128xf32>, vector<4x1x128xf32>, vector<4x1x128xf32>, vector<4x1x128xf32> -> vector<4x16x128xf32>
    %605 = tpu.concatenate %225, %229, %233, %237, %241, %245, %249, %253, %257, %261, %265, %269, %273, %277, %281, %285 in 1 : vector<4x1x128xf32>, vector<4x1x128xf32>, vector<4x1x128xf32>, vector<4x1x128xf32>, vector<4x1x128xf32>, vector<4x1x128xf32>, vector<4x1x128xf32>, vector<4x1x128xf32>, vector<4x1x128xf32>, vector<4x1x128xf32>, vector<4x1x128xf32>, vector<4x1x128xf32>, vector<4x1x128xf32>, vector<4x1x128xf32>, vector<4x1x128xf32>, vector<4x1x128xf32> -> vector<4x16x128xf32>
    %606 = tpu.concatenate %289, %293, %297, %301, %305, %309, %313, %317, %321, %325, %329, %333, %337, %341, %345, %349 in 1 : vector<4x1x128xf32>, vector<4x1x128xf32>, vector<4x1x128xf32>, vector<4x1x128xf32>, vector<4x1x128xf32>, vector<4x1x128xf32>, vector<4x1x128xf32>, vector<4x1x128xf32>, vector<4x1x128xf32>, vector<4x1x128xf32>, vector<4x1x128xf32>, vector<4x1x128xf32>, vector<4x1x128xf32>, vector<4x1x128xf32>, vector<4x1x128xf32>, vector<4x1x128xf32> -> vector<4x16x128xf32>
    %607 = tpu.concatenate %353, %357, %361, %365, %369, %373, %377, %381, %385, %389, %393, %397, %401, %405, %409, %413 in 1 : vector<4x1x128xf32>, vector<4x1x128xf32>, vector<4x1x128xf32>, vector<4x1x128xf32>, vector<4x1x128xf32>, vector<4x1x128xf32>, vector<4x1x128xf32>, vector<4x1x128xf32>, vector<4x1x128xf32>, vector<4x1x128xf32>, vector<4x1x128xf32>, vector<4x1x128xf32>, vector<4x1x128xf32>, vector<4x1x128xf32>, vector<4x1x128xf32>, vector<4x1x128xf32> -> vector<4x16x128xf32>
    %608 = tpu.concatenate %417, %421, %425, %429, %433, %437, %441, %445, %449, %453, %457, %461, %465, %469, %473, %477 in 1 : vector<4x1x128xf32>, vector<4x1x128xf32>, vector<4x1x128xf32>, vector<4x1x128xf32>, vector<4x1x128xf32>, vector<4x1x128xf32>, vector<4x1x128xf32>, vector<4x1x128xf32>, vector<4x1x128xf32>, vector<4x1x128xf32>, vector<4x1x128xf32>, vector<4x1x128xf32>, vector<4x1x128xf32>, vector<4x1x128xf32>, vector<4x1x128xf32>, vector<4x1x128xf32> -> vector<4x16x128xf32>
    %609 = tpu.concatenate %481, %485, %489, %493, %497, %501, %505, %509, %513, %517, %521, %525, %529, %533, %537, %541 in 1 : vector<4x1x128xf32>, vector<4x1x128xf32>, vector<4x1x128xf32>, vector<4x1x128xf32>, vector<4x1x128xf32>, vector<4x1x128xf32>, vector<4x1x128xf32>, vector<4x1x128xf32>, vector<4x1x128xf32>, vector<4x1x128xf32>, vector<4x1x128xf32>, vector<4x1x128xf32>, vector<4x1x128xf32>, vector<4x1x128xf32>, vector<4x1x128xf32>, vector<4x1x128xf32> -> vector<4x16x128xf32>
    %610 = tpu.concatenate %545, %549, %553, %557, %561, %565, %569, %573, %577, %581, %585, %589, %593, %597, %601, %602 in 1 : vector<4x1x128xf32>, vector<4x1x128xf32>, vector<4x1x128xf32>, vector<4x1x128xf32>, vector<4x1x128xf32>, vector<4x1x128xf32>, vector<4x1x128xf32>, vector<4x1x128xf32>, vector<4x1x128xf32>, vector<4x1x128xf32>, vector<4x1x128xf32>, vector<4x1x128xf32>, vector<4x1x128xf32>, vector<4x1x128xf32>, vector<4x1x128xf32>, vector<4x1x128xf32> -> vector<4x16x128xf32>
    %611 = tpu.concatenate %603, %604, %605, %606, %607, %608, %609, %610 in 1 : vector<4x16x128xf32>, vector<4x16x128xf32>, vector<4x16x128xf32>, vector<4x16x128xf32>, vector<4x16x128xf32>, vector<4x16x128xf32>, vector<4x16x128xf32>, vector<4x16x128xf32> -> vector<4x128x128xf32>
    %612 = vector.extract_strided_slice %611 {offsets = [0, 1, 0], sizes = [4, 127, 128], strides = [1, 1, 1]} : vector<4x128x128xf32> to vector<4x127x128xf32>
    %613 = vector.extract_strided_slice %611 {offsets = [0, 0, 0], sizes = [4, 1, 128], strides = [1, 1, 1]} : vector<4x128x128xf32> to vector<4x1x128xf32>
    %614 = tpu.concatenate %612, %613 in 1 : vector<4x127x128xf32>, vector<4x1x128xf32> -> vector<4x128x128xf32>
    %615 = tpu.iota {dimensions = array<i32: 0>} : vector<128x128xi32>
    %616 = tpu.iota {dimensions = array<i32: 1>} : vector<128x128xi32>
    %617 = arith.cmpi sle, %616, %615 : vector<128x128xi32>
    %c1_i32 = arith.constant 1 : i32
    %618 = vector.broadcast %c1_i32 : i32 to vector<128x128xi32>
    %619 = arith.addi %615, %618 : vector<128x128xi32>
    %620 = arith.cmpi eq, %616, %619 : vector<128x128xi32>
    %cst_29 = arith.constant 0.000000e+00 : f32
    %621 = vector.broadcast %cst_29 : f32 to vector<4x128x128xf32>
    %622 = vector.shape_cast %620 : vector<128x128xi1> to vector<1x128x128xi1>
    %623 = vector.broadcast %622 : vector<1x128x128xi1> to vector<4x128x128xi1>
    %624 = arith.select %623, %621, %614 : vector<4x128x128xi1>, vector<4x128x128xf32>
    %625 = vector.shape_cast %617 : vector<128x128xi1> to vector<1x128x128xi1>
    %626 = vector.broadcast %625 : vector<1x128x128xi1> to vector<4x128x128xi1>
    %627 = arith.select %626, %611, %624 : vector<4x128x128xi1>, vector<4x128x128xf32>
    %628 = arith.addf %92, %627 : vector<4x128x128xf32>
    %cst_30 = arith.constant dense<0xFF800000> : vector<4x128xf32>
    %629 = vector.multi_reduction <maximumf>, %628, %cst_30 [2] : vector<4x128x128xf32> to vector<4x128xf32>
    %630 = vector.shape_cast %629 : vector<4x128xf32> to vector<4x128x1xf32>
    %631 = vector.broadcast %630 : vector<4x128x1xf32> to vector<4x128x128xf32>
    %632 = arith.subf %628, %631 : vector<4x128x128xf32>
    %633 = math.exp %632 : vector<4x128x128xf32>
    %cst_31 = arith.constant dense<0.000000e+00> : vector<4x128xf32>
    %634 = vector.multi_reduction <add>, %633, %cst_31 [2] : vector<4x128x128xf32> to vector<4x128xf32>
    %635 = vector.shape_cast %634 : vector<4x128xf32> to vector<4x128x1xf32>
    %636 = tpu.reciprocal %635 {approx = true} : vector<4x128x1xf32> -> vector<4x128x1xf32>
    %637 = vector.broadcast %636 : vector<4x128x1xf32> to vector<4x128x128xf32>
    %638 = arith.mulf %633, %637 : vector<4x128x128xf32>
    %639 = arith.truncf %638 : vector<4x128x128xf32> to vector<4x128x128xbf16>
    "tpu.trace_start"() <{level = 10 : i32, message = "hij,hjd->hid"}> : () -> ()
    %cst_32 = arith.constant dense<0.000000e+00> : vector<4x128x64xf32>
    %640 = tpu.matmul %639, %73, %cst_32 {dimension_numbers = #tpu.dot_dimension_numbers<[2], [1], [1], [2], [0, 0, 0, 1, 1, 2], [0], [0]>} : vector<4x128x128xbf16>, vector<4x128x64xbf16>, vector<4x128x64xf32> -> vector<4x128x64xf32>
    "tpu.trace_stop"() : () -> ()
    %641 = vector.extract_strided_slice %640 {offsets = [0, 0, 0], sizes = [1, 128, 64], strides = [1, 1, 1]} : vector<4x128x64xf32> to vector<1x128x64xf32>
    %642 = vector.shape_cast %641 : vector<1x128x64xf32> to vector<128x64xf32>
    %643 = arith.truncf %642 : vector<128x64xf32> to vector<128x64xbf16>
    %c0_33 = arith.constant 0 : index
    %c0_34 = arith.constant 0 : index
    %644 = vector.load %arg13[%c0_33, %c0_34] : memref<128x256xbf16, #tpu.memory_space<vmem>>, vector<128x64xbf16>
    tpu.vector_store %arg13[%c0_33, %c0_34], %643 {strides = array<i32>} : memref<128x256xbf16, #tpu.memory_space<vmem>>, vector<128x64xbf16>,
    %645 = vector.extract_strided_slice %640 {offsets = [1, 0, 0], sizes = [1, 128, 64], strides = [1, 1, 1]} : vector<4x128x64xf32> to vector<1x128x64xf32>
    %646 = vector.shape_cast %645 : vector<1x128x64xf32> to vector<128x64xf32>
    %647 = arith.truncf %646 : vector<128x64xf32> to vector<128x64xbf16>
    %c0_35 = arith.constant 0 : index
    %c64 = arith.constant 64 : index
    %648 = vector.load %arg13[%c0_35, %c64] : memref<128x256xbf16, #tpu.memory_space<vmem>>, vector<128x64xbf16>
    tpu.vector_store %arg13[%c0_35, %c64], %647 {strides = array<i32>} : memref<128x256xbf16, #tpu.memory_space<vmem>>, vector<128x64xbf16>,
    %649 = vector.extract_strided_slice %640 {offsets = [2, 0, 0], sizes = [1, 128, 64], strides = [1, 1, 1]} : vector<4x128x64xf32> to vector<1x128x64xf32>
    %650 = vector.shape_cast %649 : vector<1x128x64xf32> to vector<128x64xf32>
    %651 = arith.truncf %650 : vector<128x64xf32> to vector<128x64xbf16>
    %c0_36 = arith.constant 0 : index
    %c128 = arith.constant 128 : index
    %652 = vector.load %arg13[%c0_36, %c128] : memref<128x256xbf16, #tpu.memory_space<vmem>>, vector<128x64xbf16>
    tpu.vector_store %arg13[%c0_36, %c128], %651 {strides = array<i32>} : memref<128x256xbf16, #tpu.memory_space<vmem>>, vector<128x64xbf16>,
    %653 = vector.extract_strided_slice %640 {offsets = [3, 0, 0], sizes = [1, 128, 64], strides = [1, 1, 1]} : vector<4x128x64xf32> to vector<1x128x64xf32>
    %654 = vector.shape_cast %653 : vector<1x128x64xf32> to vector<128x64xf32>
    %655 = arith.truncf %654 : vector<128x64xf32> to vector<128x64xbf16>
    %c0_37 = arith.constant 0 : index
    %c192 = arith.constant 192 : index
    %656 = vector.load %arg13[%c0_37, %c192] : memref<128x256xbf16, #tpu.memory_space<vmem>>, vector<128x64xbf16>
    tpu.vector_store %arg13[%c0_37, %c192], %655 {strides = array<i32>} : memref<128x256xbf16, #tpu.memory_space<vmem>>, vector<128x64xbf16>,
    %c0_38 = arith.constant 0 : index
    %c0_39 = arith.constant 0 : index
    %657 = vector.load %arg13[%c0_38, %c0_39] : memref<128x256xbf16, #tpu.memory_space<vmem>>, vector<128x256xbf16>
    %c0_40 = arith.constant 0 : index
    %c0_41 = arith.constant 0 : index
    %658 = vector.load %arg8[%c0_40, %c0_41] : memref<256x256xbf16, #tpu.memory_space<vmem>>, vector<256x256xbf16>
    %cst_42 = arith.constant dense<0.000000e+00> : vector<128x256xf32>
    %659 = tpu.matmul %657, %658, %cst_42 {dimension_numbers = #tpu.dot_dimension_numbers<[1], [0], [0], [1], [0, 0, 1, 1], [], []>} : vector<128x256xbf16>, vector<256x256xbf16>, vector<128x256xf32> -> vector<128x256xf32>
    %c0_43 = arith.constant 0 : index
    %c0_44 = arith.constant 0 : index
    %660 = vector.load %arg9[%c0_43, %c0_44] : memref<1x256xf32, #tpu.memory_space<vmem>>, vector<1x256xf32>
    %661 = vector.broadcast %660 : vector<1x256xf32> to vector<128x256xf32>
    %662 = arith.addf %659, %661 : vector<128x256xf32>
    %c0_45 = arith.constant 0 : index
    %c0_46 = arith.constant 0 : index
    %c0_47 = arith.constant 0 : index
    %663 = vector.load %arg12[%c0_45, %c0_46, %c0_47] : memref<1x128x256xf32, #tpu.memory_space<vmem>>, vector<1x128x256xf32>
    %664 = vector.shape_cast %663 : vector<1x128x256xf32> to vector<128x256xf32>
    %665 = vector.shape_cast %662 : vector<128x256xf32> to vector<1x128x256xf32>
    tpu.vector_store %arg12[%c0_45, %c0_46, %c0_47], %665 {strides = array<i32>} : memref<1x128x256xf32, #tpu.memory_space<vmem>>, vector<1x128x256xf32>,
    return
  }
  func.func @transform_0(%arg0: i32) -> (i32, i32, i32) {
    %c0_i32 = arith.constant 0 : i32
    %c0_i32_0 = arith.constant 0 : i32
    %c0_i32_1 = arith.constant 0 : i32
    return %arg0, %c0_i32, %c0_i32_0 : i32, i32, i32
  }
  func.func @transform_1(%arg0: i32) -> (i32, i32) {
    %c0_i32 = arith.constant 0 : i32
    %c0_i32_0 = arith.constant 0 : i32
    %c0_i32_1 = arith.constant 0 : i32
    return %c0_i32, %c0_i32_0 : i32, i32
  }
  func.func @transform_2(%arg0: i32) -> (i32, i32) {
    %c0_i32 = arith.constant 0 : i32
    %c0_i32_0 = arith.constant 0 : i32
    %c0_i32_1 = arith.constant 0 : i32
    return %c0_i32, %c0_i32_0 : i32, i32
  }
  func.func @transform_3(%arg0: i32) -> (i32, i32) {
    %c0_i32 = arith.constant 0 : i32
    %c0_i32_0 = arith.constant 0 : i32
    %c0_i32_1 = arith.constant 0 : i32
    return %c0_i32, %c0_i32_0 : i32, i32
  }
  func.func @transform_4(%arg0: i32) -> (i32, i32) {
    %c0_i32 = arith.constant 0 : i32
    %c0_i32_0 = arith.constant 0 : i32
    %c0_i32_1 = arith.constant 0 : i32
    return %c0_i32, %c0_i32_0 : i32, i32
  }
  func.func @transform_5(%arg0: i32) -> (i32, i32) {
    %c0_i32 = arith.constant 0 : i32
    %c0_i32_0 = arith.constant 0 : i32
    %c0_i32_1 = arith.constant 0 : i32
    return %c0_i32, %c0_i32_0 : i32, i32
  }
  func.func @transform_6(%arg0: i32) -> (i32, i32) {
    %c0_i32 = arith.constant 0 : i32
    %c0_i32_0 = arith.constant 0 : i32
    %c0_i32_1 = arith.constant 0 : i32
    return %c0_i32, %c0_i32_0 : i32, i32
  }
  func.func @transform_7(%arg0: i32) -> (i32, i32) {
    %c0_i32 = arith.constant 0 : i32
    %c0_i32_0 = arith.constant 0 : i32
    %c0_i32_1 = arith.constant 0 : i32
    return %c0_i32, %c0_i32_0 : i32, i32
  }
  func.func @transform_8(%arg0: i32) -> (i32, i32) {
    %c0_i32 = arith.constant 0 : i32
    %c0_i32_0 = arith.constant 0 : i32
    %c0_i32_1 = arith.constant 0 : i32
    return %c0_i32, %c0_i32_0 : i32, i32
  }
  func.func @transform_9(%arg0: i32) -> (i32, i32) {
    %c0_i32 = arith.constant 0 : i32
    %c0_i32_0 = arith.constant 0 : i32
    %c0_i32_1 = arith.constant 0 : i32
    return %c0_i32, %c0_i32_0 : i32, i32
  }
  func.func @transform_10(%arg0: i32) -> (i32, i32) {
    %c0_i32 = arith.constant 0 : i32
    %c0_i32_0 = arith.constant 0 : i32
    %c0_i32_1 = arith.constant 0 : i32
    return %c0_i32, %c0_i32_0 : i32, i32
  }
  func.func @transform_11(%arg0: i32) -> (i32, i32, i32) {
    %c0_i32 = arith.constant 0 : i32
    %c0_i32_0 = arith.constant 0 : i32
    %c0_i32_1 = arith.constant 0 : i32
    return %arg0, %c0_i32, %c0_i32_0 : i32, i32, i32
  }
}

</mosaic_0001>

<llo_original>
// kernel: tpu_custom_call.1
$region0: #{tpu_custom_call.1}
  #allocation0 [shape = 'u32[]', space=smem, size = 0x4, offset = 0x4, fixed_abs, tag = 'smem constant byte address 0x4 - core index']
  #allocation1 [shape = 'u32[144,128]{1,0:T(1,128)}', space=vmem, size = 0x12000, scoped, tag = 'internal scratch']
  #allocation2 [shape = 'bf16[128,256]{1,0:T(16,128)(2,1)}', space=vmem, size = 0x10000, scoped, tag = 'scratch operand']
  %s0 = inlined_call_operand.hbm [shape: f32[2,128,256], index: 0, kind: input, shape index: {}]
  %s1 = inlined_call_operand.hbm [shape: f32[128,256], index: 1, kind: input, shape index: {}]
  %s2 = inlined_call_operand.hbm [shape: bf16[256,768], index: 2, kind: input, shape index: {}]
  %s3 = inlined_call_operand.vmem [shape: f32[1,768], index: 3, kind: input, shape index: {}]
  %s4 = inlined_call_operand.hbm [shape: bf16[256,256], index: 4, kind: input, shape index: {}]
  %s5 = inlined_call_operand.vmem [shape: f32[4,64], index: 5, kind: input, shape index: {}]
  %s6 = inlined_call_operand.vmem [shape: f32[4,64], index: 6, kind: input, shape index: {}]
  %s7 = inlined_call_operand.hbm [shape: bf16[256,256], index: 7, kind: input, shape index: {}]
  %s8 = inlined_call_operand.vmem [shape: f32[1,256], index: 8, kind: input, shape index: {}]
  %s9 = inlined_call_operand.vmem [shape: f32[1,256], index: 9, kind: input, shape index: {}]
  %s10 = inlined_call_operand.vmem [shape: f32[1,256], index: 10, kind: input, shape index: {}]
  %s11 = inlined_call_operand.hbm [shape: f32[2,128,256], index: 11, kind: output, shape index: {}]
  %s12 = sld [smem:[#allocation0]]
  $region97: #{tpu_custom_call.1} parent=0
    _
  %s14 = ssub.s32 1, %s12
  %s15 = scalar_select 0, %s14, %s12
  $region1: #{tpu_custom_call.1} parent=0
    #allocation3 [shape = 'u8[262144]{0}', space=vmem, size = 0x40000, scoped, tag = 'input window, operand 0']
    #allocation4 [shape = 's32[2]{0}', space=sflag, size = 0x8, scoped, tag = 'scoped memory for tpu_custom_call.1']
    #allocation5 [shape = 's32[2]{0}', space=sflag, size = 0x8, scoped, tag = 'scoped memory for tpu_custom_call.1']
    #allocation6 [shape = 'u8[131072]{0}', space=vmem, size = 0x20000, scoped, tag = 'input window, operand 1, single buffered']
    #allocation7 [shape = 's32[1]{0}', space=sflag, size = 0x4, scoped, tag = 'scoped memory for tpu_custom_call.1']
    #allocation8 [shape = 'u8[393216]{0}', space=vmem, size = 0x60000, scoped, tag = 'input window, operand 2, single buffered']
    #allocation9 [shape = 'u8[131072]{0}', space=vmem, size = 0x20000, scoped, tag = 'input window, operand 4, single buffered']
    #allocation10 [shape = 's32[1]{0}', space=sflag, size = 0x4, scoped, tag = 'scoped memory for tpu_custom_call.1']
    #allocation11 [shape = 'u8[131072]{0}', space=vmem, size = 0x20000, scoped, tag = 'input window, operand 7, single buffered']
    #allocation12 [shape = 'u8[262144]{0}', space=vmem, size = 0x40000, scoped, tag = 'output window, operand 0']
    %16 = vsyncpa [#allocation4], 0
    %s17 = scalar_lea.sflag [#allocation4], 1
    %18 = vsyncpa %s17, 0
    %19 = vsyncpa [#allocation7], 0
    %20 = vsyncpa [#allocation10], 0
    %21 = vsyncpa [#allocation5], 0
    %s22 = scalar_lea.sflag [#allocation5], 1
    %23 = vsyncpa %s22, 0
    loop: start=0, step=1, limit=4
    $region2: #{tpu_custom_call.1} parent=1 // loop_pre_header
      _
    $region3: #{tpu_custom_call.1} parent=1 // loop_header
      %s25 = sphi 0, %s29
      %p26 = scmp.ge.s32.totalorder %s25, 4
      %s35 = sphi 0, %s37
      %s38 = sphi 0, %s35
      %s39 = sphi 0, %s38
      %s55 = sphi 0, %s39
      %s59 = sphi 0, %s59
      %s61 = sphi 0, %s59
      %s62 = sphi 0, %s61
      %s76 = sphi 0, %s62
      %s80 = sphi 0, %s80
      %s82 = sphi 0, %s80
      %s83 = sphi 0, %s82
      %s97 = sphi 0, %s83
      %s101 = sphi 0, %s101
      %s103 = sphi 0, %s101
      %s104 = sphi 0, %s103
      %s118 = sphi 0, %s104
      %s122 = sphi 0, %s122
      %s124 = sphi 0, %s122
      %s125 = sphi 0, %s124
      %s139 = sphi 0, %s125
      %s143 = sphi 0, %s143
      %s145 = sphi 0, %s143
      %s146 = sphi 0, %s145
      %s160 = sphi 0, %s146
      %s164 = sphi 0, %s164
      %s166 = sphi 0, %s164
      %s167 = sphi 0, %s166
      %s181 = sphi 0, %s167
      %s185 = sphi 0, %s185
      %s187 = sphi 0, %s185
      %s188 = sphi 0, %s187
      %s202 = sphi 0, %s188
      %s206 = sphi 0, %s206
      %s208 = sphi 0, %s206
      %s209 = sphi 0, %s208
      %s223 = sphi 0, %s209
      %s227 = sphi 0, %s227
      %s229 = sphi 0, %s227
      %s230 = sphi 0, %s229
      %s244 = sphi 0, %s230
      %s248 = sphi 0, %s248
      %s250 = sphi 0, %s248
      %s251 = sphi 0, %s250
      %s265 = sphi 0, %s251
      %s271 = sphi 0, %s273
      %s274 = sphi 0, %s271
      %s275 = sphi 0, %s274
      %s291 = sphi 0, %s275
    $region4: #{tpu_custom_call.1} parent=1 // loop_header_branch
      %28 = sbr.rel (%p26) target = $region8
    $region5: #{tpu_custom_call.1} parent=1 // loop_body
      %s30 = ssub.s32 %s25, 1
      %s31 = ssub.s32 %s25, 2
      %s32 = sadd.s32 %s25, 1
      %s33 = ssub.s32 %s25, %s32
      %p34 = scmp.eq.s32.totalorder %s33, 0
      %s36 = sadd.s32 %s35, 1
      %s37 = scalar_select %p34, %s35, %s36
      %p40 = pneg %p34
      %p41 = scmp.eq.s32.totalorder %s25, 1
      %p42 = por %p40, %p41
      %p43 = scmp.ne.s32.totalorder %s35, %s38
      %p44 = scmp.eq.s32.totalorder %s25, 0
      %p45 = por %p43, %p44
      %p46 = scmp.ne.s32.totalorder %s35, %s38
      %p47 = scmp.eq.s32.totalorder %s30, 1
      %p48 = por %p46, %p47
      %p49 = scmp.ne.s32.totalorder %s38, %s39
      %p50 = scmp.eq.s32.totalorder %s30, 0
      %p51 = por %p49, %p50
      %p52 = scmp.ne.s32.totalorder %s38, %s39
      %p53 = scmp.eq.s32.totalorder %s31, 1
      %p54 = por %p52, %p53
      %p56 = scmp.ne.s32.totalorder %s39, %s55
      %p57 = scmp.eq.s32.totalorder %s31, 0
      %p58 = por %p56, %p57
      %s60 = sadd.s32 %s59, 1
      %p63 = scmp.eq.s32.totalorder %s25, 1
      %p64 = scmp.ne.s32.totalorder %s59, %s61
      %p65 = scmp.eq.s32.totalorder %s25, 0
      %p66 = por %p64, %p65
      %p67 = scmp.ne.s32.totalorder %s59, %s61
      %p68 = scmp.eq.s32.totalorder %s30, 1
      %p69 = por %p67, %p68
      %p70 = scmp.ne.s32.totalorder %s61, %s62
      %p71 = scmp.eq.s32.totalorder %s30, 0
      %p72 = por %p70, %p71
      %p73 = scmp.ne.s32.totalorder %s61, %s62
      %p74 = scmp.eq.s32.totalorder %s31, 1
      %p75 = por %p73, %p74
      %p77 = scmp.ne.s32.totalorder %s62, %s76
      %p78 = scmp.eq.s32.totalorder %s31, 0
      %p79 = por %p77, %p78
      %s81 = sadd.s32 %s80, 1
      %p84 = scmp.eq.s32.totalorder %s25, 1
      %p85 = scmp.ne.s32.totalorder %s80, %s82
      %p86 = scmp.eq.s32.totalorder %s25, 0
      %p87 = por %p85, %p86
      %p88 = scmp.ne.s32.totalorder %s80, %s82
      %p89 = scmp.eq.s32.totalorder %s30, 1
      %p90 = por %p88, %p89
      %p91 = scmp.ne.s32.totalorder %s82, %s83
      %p92 = scmp.eq.s32.totalorder %s30, 0
      %p93 = por %p91, %p92
      %p94 = scmp.ne.s32.totalorder %s82, %s83
      %p95 = scmp.eq.s32.totalorder %s31, 1
      %p96 = por %p94, %p95
      %p98 = scmp.ne.s32.totalorder %s83, %s97
      %p99 = scmp.eq.s32.totalorder %s31, 0
      %p100 = por %p98, %p99
      %s102 = sadd.s32 %s101, 1
      %p105 = scmp.eq.s32.totalorder %s25, 1
      %p106 = scmp.ne.s32.totalorder %s101, %s103
      %p107 = scmp.eq.s32.totalorder %s25, 0
      %p108 = por %p106, %p107
      %p109 = scmp.ne.s32.totalorder %s101, %s103
      %p110 = scmp.eq.s32.totalorder %s30, 1
      %p111 = por %p109, %p110
      %p112 = scmp.ne.s32.totalorder %s103, %s104
      %p113 = scmp.eq.s32.totalorder %s30, 0
      %p114 = por %p112, %p113
      %p115 = scmp.ne.s32.totalorder %s103, %s104
      %p116 = scmp.eq.s32.totalorder %s31, 1
      %p117 = por %p115, %p116
      %p119 = scmp.ne.s32.totalorder %s104, %s118
      %p120 = scmp.eq.s32.totalorder %s31, 0
      %p121 = por %p119, %p120
      %s123 = sadd.s32 %s122, 1
      %p126 = scmp.eq.s32.totalorder %s25, 1
      %p127 = scmp.ne.s32.totalorder %s122, %s124
      %p128 = scmp.eq.s32.totalorder %s25, 0
      %p129 = por %p127, %p128
      %p130 = scmp.ne.s32.totalorder %s122, %s124
      %p131 = scmp.eq.s32.totalorder %s30, 1
      %p132 = por %p130, %p131
      %p133 = scmp.ne.s32.totalorder %s124, %s125
      %p134 = scmp.eq.s32.totalorder %s30, 0
      %p135 = por %p133, %p134
      %p136 = scmp.ne.s32.totalorder %s124, %s125
      %p137 = scmp.eq.s32.totalorder %s31, 1
      %p138 = por %p136, %p137
      %p140 = scmp.ne.s32.totalorder %s125, %s139
      %p141 = scmp.eq.s32.totalorder %s31, 0
      %p142 = por %p140, %p141
      %s144 = sadd.s32 %s143, 1
      %p147 = scmp.eq.s32.totalorder %s25, 1
      %p148 = scmp.ne.s32.totalorder %s143, %s145
      %p149 = scmp.eq.s32.totalorder %s25, 0
      %p150 = por %p148, %p149
      %p151 = scmp.ne.s32.totalorder %s143, %s145
      %p152 = scmp.eq.s32.totalorder %s30, 1
      %p153 = por %p151, %p152
      %p154 = scmp.ne.s32.totalorder %s145, %s146
      %p155 = scmp.eq.s32.totalorder %s30, 0
      %p156 = por %p154, %p155
      %p157 = scmp.ne.s32.totalorder %s145, %s146
      %p158 = scmp.eq.s32.totalorder %s31, 1
      %p159 = por %p157, %p158
      %p161 = scmp.ne.s32.totalorder %s146, %s160
      %p162 = scmp.eq.s32.totalorder %s31, 0
      %p163 = por %p161, %p162
      %s165 = sadd.s32 %s164, 1
      %p168 = scmp.eq.s32.totalorder %s25, 1
      %p169 = scmp.ne.s32.totalorder %s164, %s166
      %p170 = scmp.eq.s32.totalorder %s25, 0
      %p171 = por %p169, %p170
      %p172 = scmp.ne.s32.totalorder %s164, %s166
      %p173 = scmp.eq.s32.totalorder %s30, 1
      %p174 = por %p172, %p173
      %p175 = scmp.ne.s32.totalorder %s166, %s167
      %p176 = scmp.eq.s32.totalorder %s30, 0
      %p177 = por %p175, %p176
      %p178 = scmp.ne.s32.totalorder %s166, %s167
      %p179 = scmp.eq.s32.totalorder %s31, 1
      %p180 = por %p178, %p179
      %p182 = scmp.ne.s32.totalorder %s167, %s181
      %p183 = scmp.eq.s32.totalorder %s31, 0
      %p184 = por %p182, %p183
      %s186 = sadd.s32 %s185, 1
      %p189 = scmp.eq.s32.totalorder %s25, 1
      %p190 = scmp.ne.s32.totalorder %s185, %s187
      %p191 = scmp.eq.s32.totalorder %s25, 0
      %p192 = por %p190, %p191
      %p193 = scmp.ne.s32.totalorder %s185, %s187
      %p194 = scmp.eq.s32.totalorder %s30, 1
      %p195 = por %p193, %p194
      %p196 = scmp.ne.s32.totalorder %s187, %s188
      %p197 = scmp.eq.s32.totalorder %s30, 0
      %p198 = por %p196, %p197
      %p199 = scmp.ne.s32.totalorder %s187, %s188
      %p200 = scmp.eq.s32.totalorder %s31, 1
      %p201 = por %p199, %p200
      %p203 = scmp.ne.s32.totalorder %s188, %s202
      %p204 = scmp.eq.s32.totalorder %s31, 0
      %p205 = por %p203, %p204
      %s207 = sadd.s32 %s206, 1
      %p210 = scmp.eq.s32.totalorder %s25, 1
      %p211 = scmp.ne.s32.totalorder %s206, %s208
      %p212 = scmp.eq.s32.totalorder %s25, 0
      %p213 = por %p211, %p212
      %p214 = scmp.ne.s32.totalorder %s206, %s208
      %p215 = scmp.eq.s32.totalorder %s30, 1
      %p216 = por %p214, %p215
      %p217 = scmp.ne.s32.totalorder %s208, %s209
      %p218 = scmp.eq.s32.totalorder %s30, 0
      %p219 = por %p217, %p218
      %p220 = scmp.ne.s32.totalorder %s208, %s209
      %p221 = scmp.eq.s32.totalorder %s31, 1
      %p222 = por %p220, %p221
      %p224 = scmp.ne.s32.totalorder %s209, %s223
      %p225 = scmp.eq.s32.totalorder %s31, 0
      %p226 = por %p224, %p225
      %s228 = sadd.s32 %s227, 1
      %p231 = scmp.eq.s32.totalorder %s25, 1
      %p232 = scmp.ne.s32.totalorder %s227, %s229
      %p233 = scmp.eq.s32.totalorder %s25, 0
      %p234 = por %p232, %p233
      %p235 = scmp.ne.s32.totalorder %s227, %s229
      %p236 = scmp.eq.s32.totalorder %s30, 1
      %p237 = por %p235, %p236
      %p238 = scmp.ne.s32.totalorder %s229, %s230
      %p239 = scmp.eq.s32.totalorder %s30, 0
      %p240 = por %p238, %p239
      %p241 = scmp.ne.s32.totalorder %s229, %s230
      %p242 = scmp.eq.s32.totalorder %s31, 1
      %p243 = por %p241, %p242
      %p245 = scmp.ne.s32.totalorder %s230, %s244
      %p246 = scmp.eq.s32.totalorder %s31, 0
      %p247 = por %p245, %p246
      %s249 = sadd.s32 %s248, 1
      %p252 = scmp.eq.s32.totalorder %s25, 1
      %p253 = scmp.ne.s32.totalorder %s248, %s250
      %p254 = scmp.eq.s32.totalorder %s25, 0
      %p255 = por %p253, %p254
      %p256 = scmp.ne.s32.totalorder %s248, %s250
      %p257 = scmp.eq.s32.totalorder %s30, 1
      %p258 = por %p256, %p257
      %p259 = scmp.ne.s32.totalorder %s250, %s251
      %p260 = scmp.eq.s32.totalorder %s30, 0
      %p261 = por %p259, %p260
      %p262 = scmp.ne.s32.totalorder %s250, %s251
      %p263 = scmp.eq.s32.totalorder %s31, 1
      %p264 = por %p262, %p263
      %p266 = scmp.ne.s32.totalorder %s251, %s265
      %p267 = scmp.eq.s32.totalorder %s31, 0
      %p268 = por %p266, %p267
      %s269 = ssub.s32 %s25, %s32
      %p270 = scmp.eq.s32.totalorder %s269, 0
      %s272 = sadd.s32 %s271, 1
      %s273 = scalar_select %p270, %s271, %s272
      %p276 = pneg %p270
      %p277 = scmp.eq.s32.totalorder %s25, 1
      %p278 = por %p276, %p277
      %p279 = scmp.ne.s32.totalorder %s271, %s274
      %p280 = scmp.eq.s32.totalorder %s25, 0
      %p281 = por %p279, %p280
      %p282 = scmp.ne.s32.totalorder %s271, %s274
      %p283 = scmp.eq.s32.totalorder %s30, 1
      %p284 = por %p282, %p283
      %p285 = scmp.ne.s32.totalorder %s274, %s275
      %p286 = scmp.eq.s32.totalorder %s30, 0
      %p287 = por %p285, %p286
      %p288 = scmp.ne.s32.totalorder %s274, %s275
      %p289 = scmp.eq.s32.totalorder %s31, 1
      %p290 = por %p288, %p289
      %p292 = scmp.ne.s32.totalorder %s275, %s291
      %p293 = scmp.eq.s32.totalorder %s31, 0
      %p294 = por %p292, %p293
      %p295 = scmp.le.s32.totalorder 1, %s25
      %p296 = scmp.lt.s32.totalorder %s25, 3
      %p297 = pnand %p295, %p296
      %p298 = pneg %p297
      // Predicated region
      $region9: #{tpu_custom_call.1} parent=5 // pred_check
        _
      $region10: #{tpu_custom_call.1} parent=5 // pred_check_branch
        %300 = sbr.rel (%p297) target = $region12
      $region11: #{tpu_custom_call.1} parent=5 // pred_region
        %s301 = ssub.s32 %s25, 1
        // Predicated region
        $region13: #{tpu_custom_call.1} parent=11 // pred_check
          %p302 = pneg %p72
        $region14: #{tpu_custom_call.1} parent=11 // pred_check_branch
          %304 = sbr.rel (%p302) target = $region16
        $region15: #{tpu_custom_call.1} parent=11 // pred_region
          %s306 = ssub.s32 4096, 4096
          %307 = vsyncadd [#allocation7], %s306
          %s308 = sshll.u32 [#allocation6], 4
          %s309 = int_to_ptr.vmem [resolvable:$true] %s308
          %314 = dma.hbm_to_vmem [thread:$0]  %s1, 4096, %s309, [#allocation7], 256, 256, 16
        $region16: #{tpu_custom_call.1} parent=11 // pred_fallthru
          _
        // Predicated region
        $region17: #{tpu_custom_call.1} parent=11 // pred_check
          %p315 = pneg %p93
        $region18: #{tpu_custom_call.1} parent=11 // pred_check_branch
          %317 = sbr.rel (%p315) target = $region20
        $region19: #{tpu_custom_call.1} parent=11 // pred_region
          %s319 = ssub.s32 12288, 12288
          %320 = vsyncadd [#allocation7], %s319
          %s321 = sshll.u32 [#allocation8], 4
          %s322 = int_to_ptr.vmem [resolvable:$true] %s321
          %327 = dma.hbm_to_vmem [thread:$0]  %s2, 12288, %s322, [#allocation7], 384, 384, 24
        $region20: #{tpu_custom_call.1} parent=11 // pred_fallthru
          _
        // Predicated region
        $region21: #{tpu_custom_call.1} parent=11 // pred_check
          %p328 = pneg %p114
        $region22: #{tpu_custom_call.1} parent=11 // pred_check_branch
          %330 = sbr.rel (%p328) target = $region24
        $region23: #{tpu_custom_call.1} parent=11 // pred_region
          _
        $region24: #{tpu_custom_call.1} parent=11 // pred_fallthru
          _
        // Predicated region
        $region25: #{tpu_custom_call.1} parent=11 // pred_check
          %p331 = pneg %p135
        $region26: #{tpu_custom_call.1} parent=11 // pred_check_branch
          %333 = sbr.rel (%p331) target = $region28
        $region27: #{tpu_custom_call.1} parent=11 // pred_region
          %s335 = ssub.s32 4096, 4096
          %336 = vsyncadd [#allocation10], %s335
          %s337 = sshll.u32 [#allocation9], 4
          %s338 = int_to_ptr.vmem [resolvable:$true] %s337
          %343 = dma.hbm_to_vmem [thread:$0]  %s4, 4096, %s338, [#allocation10], 128, 128, 8
        $region28: #{tpu_custom_call.1} parent=11 // pred_fallthru
          _
        // Predicated region
        $region29: #{tpu_custom_call.1} parent=11 // pred_check
          %p344 = pneg %p156
        $region30: #{tpu_custom_call.1} parent=11 // pred_check_branch
          %346 = sbr.rel (%p344) target = $region32
        $region31: #{tpu_custom_call.1} parent=11 // pred_region
          _
        $region32: #{tpu_custom_call.1} parent=11 // pred_fallthru
          _
        // Predicated region
        $region33: #{tpu_custom_call.1} parent=11 // pred_check
          %p347 = pneg %p177
        $region34: #{tpu_custom_call.1} parent=11 // pred_check_branch
          %349 = sbr.rel (%p347) target = $region36
        $region35: #{tpu_custom_call.1} parent=11 // pred_region
          _
        $region36: #{tpu_custom_call.1} parent=11 // pred_fallthru
          _
        // Predicated region
        $region37: #{tpu_custom_call.1} parent=11 // pred_check
          %p350 = pneg %p198
        $region38: #{tpu_custom_call.1} parent=11 // pred_check_branch
          %352 = sbr.rel (%p350) target = $region40
        $region39: #{tpu_custom_call.1} parent=11 // pred_region
          %s354 = ssub.s32 4096, 4096
          %355 = vsyncadd [#allocation10], %s354
          %s356 = sshll.u32 [#allocation11], 4
          %s357 = int_to_ptr.vmem [resolvable:$true] %s356
          %362 = dma.hbm_to_vmem [thread:$0]  %s7, 4096, %s357, [#allocation10], 128, 128, 8
        $region40: #{tpu_custom_call.1} parent=11 // pred_fallthru
          _
        // Predicated region
        $region41: #{tpu_custom_call.1} parent=11 // pred_check
          %p363 = pneg %p219
        $region42: #{tpu_custom_call.1} parent=11 // pred_check_branch
          %365 = sbr.rel (%p363) target = $region44
        $region43: #{tpu_custom_call.1} parent=11 // pred_region
          _
        $region44: #{tpu_custom_call.1} parent=11 // pred_fallthru
          _
        // Predicated region
        $region45: #{tpu_custom_call.1} parent=11 // pred_check
          %p366 = pneg %p240
        $region46: #{tpu_custom_call.1} parent=11 // pred_check_branch
          %368 = sbr.rel (%p366) target = $region48
        $region47: #{tpu_custom_call.1} parent=11 // pred_region
          _
        $region48: #{tpu_custom_call.1} parent=11 // pred_fallthru
          _
        // Predicated region
        $region49: #{tpu_custom_call.1} parent=11 // pred_check
          %p369 = pneg %p261
        $region50: #{tpu_custom_call.1} parent=11 // pred_check_branch
          %371 = sbr.rel (%p369) target = $region52
        $region51: #{tpu_custom_call.1} parent=11 // pred_region
          _
        $region52: #{tpu_custom_call.1} parent=11 // pred_fallthru
          _
      $region12: #{tpu_custom_call.1} parent=5 // pred_fallthru
        _
      %p372 = scmp.lt.s32.totalorder %s25, 2
      // Predicated region
      $region53: #{tpu_custom_call.1} parent=5 // pred_check
        %p373 = pneg %p372
      $region54: #{tpu_custom_call.1} parent=5 // pred_check_branch
        %375 = sbr.rel (%p373) target = $region56
      $region55: #{tpu_custom_call.1} parent=5 // pred_region
        // Predicated region
        $region57: #{tpu_custom_call.1} parent=55 // pred_check
          %p376 = pneg %p45
        $region58: #{tpu_custom_call.1} parent=55 // pred_check_branch
          %378 = sbr.rel (%p376) target = $region60
        $region59: #{tpu_custom_call.1} parent=55 // pred_region
          %s379 = sand.u32 %s35, 1
          %s380 = scalar_lea.sflag [#allocation4], %s379
          %s381 = sand.u32 %s35, 1
          %s382 = smul.addr %s381, 256
          %s383 = scalar_lea.vmem [#allocation3], %s382
          %s385 = ssub.s32 4096, 4096
          %386 = vsyncadd %s380, %s385
          %s387 = smul.addr %s25, 32
          %s388 = smul.addr %s387, 128
          %s389 = scalar_lea.hbm %s0, %s388
          %s390 = sshll.u32 %s383, 4
          %s391 = int_to_ptr.vmem [resolvable:$true] %s390
          %396 = dma.hbm_to_vmem [thread:$0]  %s389, 4096, %s391, %s380, 256, 256, 16
        $region60: #{tpu_custom_call.1} parent=55 // pred_fallthru
          _
      $region56: #{tpu_custom_call.1} parent=5 // pred_fallthru
        _
      %p397 = scmp.le.s32.totalorder 1, %s25
      %p398 = scmp.lt.s32.totalorder %s25, 3
      %p399 = pnand %p397, %p398
      %p400 = pneg %p399
      // Predicated region
      $region61: #{tpu_custom_call.1} parent=5 // pred_check
        _
      $region62: #{tpu_custom_call.1} parent=5 // pred_check_branch
        %402 = sbr.rel (%p399) target = $region64
      $region63: #{tpu_custom_call.1} parent=5 // pred_region
        %s403 = ssub.s32 %s25, 1
        %s404 = sand.u32 %s38, 1
        %s405 = scalar_lea.sflag [#allocation4], %s404
        %s406 = sand.u32 %s38, 1
        %s407 = smul.addr %s406, 256
        %s408 = scalar_lea.vmem [#allocation3], %s407
        // Predicated region
        $region65: #{tpu_custom_call.1} parent=63 // pred_check
          %p409 = pneg %p51
        $region66: #{tpu_custom_call.1} parent=63 // pred_check_branch
          %411 = sbr.rel (%p409) target = $region68
        $region67: #{tpu_custom_call.1} parent=63 // pred_region
          %412 = dma.done %s405, 4096
        $region68: #{tpu_custom_call.1} parent=63 // pred_fallthru
          _
        // Predicated region
        $region69: #{tpu_custom_call.1} parent=63 // pred_check
          %p413 = pneg %p72
        $region70: #{tpu_custom_call.1} parent=63 // pred_check_branch
          %415 = sbr.rel (%p413) target = $region72
        $region71: #{tpu_custom_call.1} parent=63 // pred_region
          %416 = dma.done [#allocation7], 4096
        $region72: #{tpu_custom_call.1} parent=63 // pred_fallthru
          _
        // Predicated region
        $region73: #{tpu_custom_call.1} parent=63 // pred_check
          %p417 = pneg %p93
        $region74: #{tpu_custom_call.1} parent=63 // pred_check_branch
          %419 = sbr.rel (%p417) target = $region76
        $region75: #{tpu_custom_call.1} parent=63 // pred_region
          %420 = dma.done [#allocation7], 12288
        $region76: #{tpu_custom_call.1} parent=63 // pred_fallthru
          _
        // Predicated region
        $region77: #{tpu_custom_call.1} parent=63 // pred_check
          %p421 = pneg %p135
        $region78: #{tpu_custom_call.1} parent=63 // pred_check_branch
          %423 = sbr.rel (%p421) target = $region80
        $region79: #{tpu_custom_call.1} parent=63 // pred_region
          %424 = dma.done [#allocation10], 4096
        $region80: #{tpu_custom_call.1} parent=63 // pred_fallthru
          _
        // Predicated region
        $region81: #{tpu_custom_call.1} parent=63 // pred_check
          %p425 = pneg %p198
        $region82: #{tpu_custom_call.1} parent=63 // pred_check_branch
          %427 = sbr.rel (%p425) target = $region84
        $region83: #{tpu_custom_call.1} parent=63 // pred_region
          %428 = dma.done [#allocation10], 4096
        $region84: #{tpu_custom_call.1} parent=63 // pred_fallthru
          _
        %s429 = sand.u32 %s38, 1
        %s430 = scalar_lea.sflag [#allocation4], %s429
        %s431 = sand.u32 %s38, 1
        %s432 = smul.addr %s431, 256
        %s433 = scalar_lea.vmem [#allocation3], %s432
        %p434 = pneg %p51
        %p435 = pneg %p48
        %p436 = pneg %p72
        %p437 = pneg %p69
        %p438 = pneg %p93
        %p439 = pneg %p90
        %p440 = pneg %p114
        %p441 = pneg %p111
        %p442 = pneg %p135
        %p443 = pneg %p132
        %p444 = pneg %p156
        %p445 = pneg %p153
        %p446 = pneg %p177
        %p447 = pneg %p174
        %p448 = pneg %p198
        %p449 = pneg %p195
        %p450 = pneg %p219
        %p451 = pneg %p216
        %p452 = pneg %p240
        %p453 = pneg %p237
        %p454 = pneg %p261
        %p455 = pneg %p258
        %p456 = pneg %p287
        %p457 = pneg %p284
        %s458 = sand.u32 %s274, 1
        %s459 = scalar_lea.sflag [#allocation5], %s458
        %s460 = sand.u32 %s274, 1
        %s461 = smul.addr %s460, 256
        %s462 = scalar_lea.vmem [#allocation12], %s461
        %v464 = vld [vmem:[%s408] sm:$0xff]
        %v465 = vld [vmem:[%s408 + $0x8] sm:$0xff]
        %v466 = vld [vmem:[%s408 + $0x10] sm:$0xff]
        %v467 = vld [vmem:[%s408 + $0x18] sm:$0xff]
        %v468 = vld [vmem:[%s408 + $0x20] sm:$0xff]
        %v469 = vld [vmem:[%s408 + $0x28] sm:$0xff]
        %v470 = vld [vmem:[%s408 + $0x30] sm:$0xff]
        %v471 = vld [vmem:[%s408 + $0x38] sm:$0xff]
        %v472 = vld [vmem:[%s408 + $0x40] sm:$0xff]
        %v473 = vld [vmem:[%s408 + $0x48] sm:$0xff]
        %v474 = vld [vmem:[%s408 + $0x50] sm:$0xff]
        %v475 = vld [vmem:[%s408 + $0x58] sm:$0xff]
        %v476 = vld [vmem:[%s408 + $0x60] sm:$0xff]
        %v477 = vld [vmem:[%s408 + $0x68] sm:$0xff]
        %v478 = vld [vmem:[%s408 + $0x70] sm:$0xff]
        %v479 = vld [vmem:[%s408 + $0x78] sm:$0xff]
        %v480 = vld [vmem:[%s408 + $0x80] sm:$0xff]
        %v481 = vld [vmem:[%s408 + $0x88] sm:$0xff]
        %v482 = vld [vmem:[%s408 + $0x90] sm:$0xff]
        %v483 = vld [vmem:[%s408 + $0x98] sm:$0xff]
        %v484 = vld [vmem:[%s408 + $0xa0] sm:$0xff]
        %v485 = vld [vmem:[%s408 + $0xa8] sm:$0xff]
        %v486 = vld [vmem:[%s408 + $0xb0] sm:$0xff]
        %v487 = vld [vmem:[%s408 + $0xb8] sm:$0xff]
        %v488 = vld [vmem:[%s408 + $0xc0] sm:$0xff]
        %v489 = vld [vmem:[%s408 + $0xc8] sm:$0xff]
        %v490 = vld [vmem:[%s408 + $0xd0] sm:$0xff]
        %v491 = vld [vmem:[%s408 + $0xd8] sm:$0xff]
        %v492 = vld [vmem:[%s408 + $0xe0] sm:$0xff]
        %v493 = vld [vmem:[%s408 + $0xe8] sm:$0xff]
        %v494 = vld [vmem:[%s408 + $0xf0] sm:$0xff]
        %v495 = vld [vmem:[%s408 + $0xf8] sm:$0xff]
        %v496 = vadd.f32 %v464, %v465
        %497 = vadd.xlane.f32.xlu0 %v496
        %v498 = vpop.xlane.xlu0 %497
        %v499 = vadd.f32 %v466, %v467
        %500 = vadd.xlane.f32.xlu0 %v499
        %v501 = vpop.xlane.xlu0 %500
        %v502 = vadd.f32 %v468, %v469
        %503 = vadd.xlane.f32.xlu0 %v502
        %v504 = vpop.xlane.xlu0 %503
        %v505 = vadd.f32 %v470, %v471
        %506 = vadd.xlane.f32.xlu0 %v505
        %v507 = vpop.xlane.xlu0 %506
        %v508 = vadd.f32 %v472, %v473
        %509 = vadd.xlane.f32.xlu0 %v508
        %v510 = vpop.xlane.xlu0 %509
        %v511 = vadd.f32 %v474, %v475
        %512 = vadd.xlane.f32.xlu0 %v511
        %v513 = vpop.xlane.xlu0 %512
        %v514 = vadd.f32 %v476, %v477
        %515 = vadd.xlane.f32.xlu0 %v514
        %v516 = vpop.xlane.xlu0 %515
        %v517 = vadd.f32 %v478, %v479
        %518 = vadd.xlane.f32.xlu0 %v517
        %v519 = vpop.xlane.xlu0 %518
        %v520 = vadd.f32 %v480, %v481
        %521 = vadd.xlane.f32.xlu0 %v520
        %v522 = vpop.xlane.xlu0 %521
        %v523 = vadd.f32 %v482, %v483
        %524 = vadd.xlane.f32.xlu0 %v523
        %v525 = vpop.xlane.xlu0 %524
        %v526 = vadd.f32 %v484, %v485
        %527 = vadd.xlane.f32.xlu0 %v526
        %v528 = vpop.xlane.xlu0 %527
        %v529 = vadd.f32 %v486, %v487
        %530 = vadd.xlane.f32.xlu0 %v529
        %v531 = vpop.xlane.xlu0 %530
        %v532 = vadd.f32 %v488, %v489
        %533 = vadd.xlane.f32.xlu0 %v532
        %v534 = vpop.xlane.xlu0 %533
        %v535 = vadd.f32 %v490, %v491
        %536 = vadd.xlane.f32.xlu0 %v535
        %v537 = vpop.xlane.xlu0 %536
        %v538 = vadd.f32 %v492, %v493
        %539 = vadd.xlane.f32.xlu0 %v538
        %v540 = vpop.xlane.xlu0 %539
        %v541 = vadd.f32 %v494, %v495
        %542 = vadd.xlane.f32.xlu0 %v541
        %v543 = vpop.xlane.xlu0 %542
        %v544 = vrcp.pop 256.0
        %v545 = vmul.f32 %v498, %v544
        %v546 = vmul.f32 %v501, %v544
        %v547 = vmul.f32 %v504, %v544
        %v548 = vmul.f32 %v507, %v544
        %v549 = vmul.f32 %v510, %v544
        %v550 = vmul.f32 %v513, %v544
        %v551 = vmul.f32 %v516, %v544
        %v552 = vmul.f32 %v519, %v544
        %v553 = vmul.f32 %v522, %v544
        %v554 = vmul.f32 %v525, %v544
        %v555 = vmul.f32 %v528, %v544
        %v556 = vmul.f32 %v531, %v544
        %v557 = vmul.f32 %v534, %v544
        %v558 = vmul.f32 %v537, %v544
        %v559 = vmul.f32 %v540, %v544
        %v560 = vmul.f32 %v543, %v544
        %v561 = vsub.f32 %v464, %v545
        %v562 = vsub.f32 %v465, %v545
        %v563 = vsub.f32 %v466, %v546
        %v564 = vsub.f32 %v467, %v546
        %v565 = vsub.f32 %v468, %v547
        %v566 = vsub.f32 %v469, %v547
        %v567 = vsub.f32 %v470, %v548
        %v568 = vsub.f32 %v471, %v548
        %v569 = vsub.f32 %v472, %v549
        %v570 = vsub.f32 %v473, %v549
        %v571 = vsub.f32 %v474, %v550
        %v572 = vsub.f32 %v475, %v550
        %v573 = vsub.f32 %v476, %v551
        %v574 = vsub.f32 %v477, %v551
        %v575 = vsub.f32 %v478, %v552
        %v576 = vsub.f32 %v479, %v552
        %v577 = vsub.f32 %v480, %v553
        %v578 = vsub.f32 %v481, %v553
        %v579 = vsub.f32 %v482, %v554
        %v580 = vsub.f32 %v483, %v554
        %v581 = vsub.f32 %v484, %v555
        %v582 = vsub.f32 %v485, %v555
        %v583 = vsub.f32 %v486, %v556
        %v584 = vsub.f32 %v487, %v556
        %v585 = vsub.f32 %v488, %v557
        %v586 = vsub.f32 %v489, %v557
        %v587 = vsub.f32 %v490, %v558
        %v588 = vsub.f32 %v491, %v558
        %v589 = vsub.f32 %v492, %v559
        %v590 = vsub.f32 %v493, %v559
        %v591 = vsub.f32 %v494, %v560
        %v592 = vsub.f32 %v495, %v560
        %v593 = vmul.f32 %v561, %v561
        %v594 = vmul.f32 %v562, %v562
        %v595 = vmul.f32 %v563, %v563
        %v596 = vmul.f32 %v564, %v564
        %v597 = vmul.f32 %v565, %v565
        %v598 = vmul.f32 %v566, %v566
        %v599 = vmul.f32 %v567, %v567
        %v600 = vmul.f32 %v568, %v568
        %v601 = vmul.f32 %v569, %v569
        %v602 = vmul.f32 %v570, %v570
        %v603 = vmul.f32 %v571, %v571
        %v604 = vmul.f32 %v572, %v572
        %v605 = vmul.f32 %v573, %v573
        %v606 = vmul.f32 %v574, %v574
        %v607 = vmul.f32 %v575, %v575
        %v608 = vmul.f32 %v576, %v576
        %v609 = vmul.f32 %v577, %v577
        %v610 = vmul.f32 %v578, %v578
        %v611 = vmul.f32 %v579, %v579
        %v612 = vmul.f32 %v580, %v580
        %v613 = vmul.f32 %v581, %v581
        %v614 = vmul.f32 %v582, %v582
        %v615 = vmul.f32 %v583, %v583
        %v616 = vmul.f32 %v584, %v584
        %v617 = vmul.f32 %v585, %v585
        %v618 = vmul.f32 %v586, %v586
        %v619 = vmul.f32 %v587, %v587
        %v620 = vmul.f32 %v588, %v588
        %v621 = vmul.f32 %v589, %v589
        %v622 = vmul.f32 %v590, %v590
        %v623 = vmul.f32 %v591, %v591
        %v624 = vmul.f32 %v592, %v592
        %v625 = vadd.f32 %v593, %v594
        %626 = vadd.xlane.f32.xlu0 %v625
        %v627 = vpop.xlane.xlu0 %626
        %v628 = vadd.f32 %v595, %v596
        %629 = vadd.xlane.f32.xlu0 %v628
        %v630 = vpop.xlane.xlu0 %629
        %v631 = vadd.f32 %v597, %v598
        %632 = vadd.xlane.f32.xlu0 %v631
        %v633 = vpop.xlane.xlu0 %632
        %v634 = vadd.f32 %v599, %v600
        %635 = vadd.xlane.f32.xlu0 %v634
        %v636 = vpop.xlane.xlu0 %635
        %v637 = vadd.f32 %v601, %v602
        %638 = vadd.xlane.f32.xlu0 %v637
        %v639 = vpop.xlane.xlu0 %638
        %v640 = vadd.f32 %v603, %v604
        %641 = vadd.xlane.f32.xlu0 %v640
        %v642 = vpop.xlane.xlu0 %641
        %v643 = vadd.f32 %v605, %v606
        %644 = vadd.xlane.f32.xlu0 %v643
        %v645 = vpop.xlane.xlu0 %644
        %v646 = vadd.f32 %v607, %v608
        %647 = vadd.xlane.f32.xlu0 %v646
        %v648 = vpop.xlane.xlu0 %647
        %v649 = vadd.f32 %v609, %v610
        %650 = vadd.xlane.f32.xlu0 %v649
        %v651 = vpop.xlane.xlu0 %650
        %v652 = vadd.f32 %v611, %v612
        %653 = vadd.xlane.f32.xlu0 %v652
        %v654 = vpop.xlane.xlu0 %653
        %v655 = vadd.f32 %v613, %v614
        %656 = vadd.xlane.f32.xlu0 %v655
        %v657 = vpop.xlane.xlu0 %656
        %v658 = vadd.f32 %v615, %v616
        %659 = vadd.xlane.f32.xlu0 %v658
        %v660 = vpop.xlane.xlu0 %659
        %v661 = vadd.f32 %v617, %v618
        %662 = vadd.xlane.f32.xlu0 %v661
        %v663 = vpop.xlane.xlu0 %662
        %v664 = vadd.f32 %v619, %v620
        %665 = vadd.xlane.f32.xlu0 %v664
        %v666 = vpop.xlane.xlu0 %665
        %v667 = vadd.f32 %v621, %v622
        %668 = vadd.xlane.f32.xlu0 %v667
        %v669 = vpop.xlane.xlu0 %668
        %v670 = vadd.f32 %v623, %v624
        %671 = vadd.xlane.f32.xlu0 %v670
        %v672 = vpop.xlane.xlu0 %671
        %v673 = vmul.f32 %v627, %v544
        %v674 = vmul.f32 %v630, %v544
        %v675 = vmul.f32 %v633, %v544
        %v676 = vmul.f32 %v636, %v544
        %v677 = vmul.f32 %v639, %v544
        %v678 = vmul.f32 %v642, %v544
        %v679 = vmul.f32 %v645, %v544
        %v680 = vmul.f32 %v648, %v544
        %v681 = vmul.f32 %v651, %v544
        %v682 = vmul.f32 %v654, %v544
        %v683 = vmul.f32 %v657, %v544
        %v684 = vmul.f32 %v660, %v544
        %v685 = vmul.f32 %v663, %v544
        %v686 = vmul.f32 %v666, %v544
        %v687 = vmul.f32 %v669, %v544
        %v688 = vmul.f32 %v672, %v544
        %v689 = vadd.f32 %v673, 1e-05
        %v690 = vadd.f32 %v674, 1e-05
        %v691 = vadd.f32 %v675, 1e-05
        %v692 = vadd.f32 %v676, 1e-05
        %v693 = vadd.f32 %v677, 1e-05
        %v694 = vadd.f32 %v678, 1e-05
        %v695 = vadd.f32 %v679, 1e-05
        %v696 = vadd.f32 %v680, 1e-05
        %v697 = vadd.f32 %v681, 1e-05
        %v698 = vadd.f32 %v682, 1e-05
        %v699 = vadd.f32 %v683, 1e-05
        %v700 = vadd.f32 %v684, 1e-05
        %v701 = vadd.f32 %v685, 1e-05
        %v702 = vadd.f32 %v686, 1e-05
        %v703 = vadd.f32 %v687, 1e-05
        %v704 = vadd.f32 %v688, 1e-05
        %v705 = vrsqrt.pop %v689
        %v706 = vrsqrt.pop %v690
        %v707 = vrsqrt.pop %v691
        %v708 = vrsqrt.pop %v692
        %v709 = vrsqrt.pop %v693
        %v710 = vrsqrt.pop %v694
        %v711 = vrsqrt.pop %v695
        %v712 = vrsqrt.pop %v696
        %v713 = vrsqrt.pop %v697
        %v714 = vrsqrt.pop %v698
        %v715 = vrsqrt.pop %v699
        %v716 = vrsqrt.pop %v700
        %v717 = vrsqrt.pop %v701
        %v718 = vrsqrt.pop %v702
        %v719 = vrsqrt.pop %v703
        %v720 = vrsqrt.pop %v704
        %v721 = vmul.f32 %v561, %v705
        %v722 = vmul.f32 %v562, %v705
        %v723 = vmul.f32 %v563, %v706
        %v724 = vmul.f32 %v564, %v706
        %v725 = vmul.f32 %v565, %v707
        %v726 = vmul.f32 %v566, %v707
        %v727 = vmul.f32 %v567, %v708
        %v728 = vmul.f32 %v568, %v708
        %v729 = vmul.f32 %v569, %v709
        %v730 = vmul.f32 %v570, %v709
        %v731 = vmul.f32 %v571, %v710
        %v732 = vmul.f32 %v572, %v710
        %v733 = vmul.f32 %v573, %v711
        %v734 = vmul.f32 %v574, %v711
        %v735 = vmul.f32 %v575, %v712
        %v736 = vmul.f32 %v576, %v712
        %v737 = vmul.f32 %v577, %v713
        %v738 = vmul.f32 %v578, %v713
        %v739 = vmul.f32 %v579, %v714
        %v740 = vmul.f32 %v580, %v714
        %v741 = vmul.f32 %v581, %v715
        %v742 = vmul.f32 %v582, %v715
        %v743 = vmul.f32 %v583, %v716
        %v744 = vmul.f32 %v584, %v716
        %v745 = vmul.f32 %v585, %v717
        %v746 = vmul.f32 %v586, %v717
        %v747 = vmul.f32 %v587, %v718
        %v748 = vmul.f32 %v588, %v718
        %v749 = vmul.f32 %v589, %v719
        %v750 = vmul.f32 %v590, %v719
        %v751 = vmul.f32 %v591, %v720
        %v752 = vmul.f32 %v592, %v720
        %v753 = vld [vmem:[%s9] sm:$0x3]
        %v755 = vlaneseq
        %v756 = vshrl.u32 %v755, 7
        %v757 = vsub.s32 0, %v756
        %v758 = vrot.slane %v753, %v757
        %v759 = vlaneseq
        %v760 = vshrl.u32 %v759, 7
        %v761 = vsub.s32 1, %v760
        %v762 = vrot.slane %v753, %v761
        %v765 = vmul.f32 %v721, %v758
        %v766 = vmul.f32 %v722, %v762
        %v767 = vmul.f32 %v723, %v758
        %v768 = vmul.f32 %v724, %v762
        %v769 = vmul.f32 %v725, %v758
        %v770 = vmul.f32 %v726, %v762
        %v771 = vmul.f32 %v727, %v758
        %v772 = vmul.f32 %v728, %v762
        %v773 = vmul.f32 %v729, %v758
        %v774 = vmul.f32 %v730, %v762
        %v775 = vmul.f32 %v731, %v758
        %v776 = vmul.f32 %v732, %v762
        %v777 = vmul.f32 %v733, %v758
        %v778 = vmul.f32 %v734, %v762
        %v779 = vmul.f32 %v735, %v758
        %v780 = vmul.f32 %v736, %v762
        %v781 = vmul.f32 %v737, %v758
        %v782 = vmul.f32 %v738, %v762
        %v783 = vmul.f32 %v739, %v758
        %v784 = vmul.f32 %v740, %v762
        %v785 = vmul.f32 %v741, %v758
        %v786 = vmul.f32 %v742, %v762
        %v787 = vmul.f32 %v743, %v758
        %v788 = vmul.f32 %v744, %v762
        %v789 = vmul.f32 %v745, %v758
        %v790 = vmul.f32 %v746, %v762
        %v791 = vmul.f32 %v747, %v758
        %v792 = vmul.f32 %v748, %v762
        %v793 = vmul.f32 %v749, %v758
        %v794 = vmul.f32 %v750, %v762
        %v795 = vmul.f32 %v751, %v758
        %v796 = vmul.f32 %v752, %v762
        %v797 = vld [vmem:[%s10] sm:$0x3]
        %v799 = vlaneseq
        %v800 = vshrl.u32 %v799, 7
        %v801 = vsub.s32 0, %v800
        %v802 = vrot.slane %v797, %v801
        %v803 = vlaneseq
        %v804 = vshrl.u32 %v803, 7
        %v805 = vsub.s32 1, %v804
        %v806 = vrot.slane %v797, %v805
        %v809 = vadd.f32 %v765, %v802
        %v810 = vadd.f32 %v766, %v806
        %v811 = vadd.f32 %v767, %v802
        %v812 = vadd.f32 %v768, %v806
        %v813 = vadd.f32 %v769, %v802
        %v814 = vadd.f32 %v770, %v806
        %v815 = vadd.f32 %v771, %v802
        %v816 = vadd.f32 %v772, %v806
        %v817 = vadd.f32 %v773, %v802
        %v818 = vadd.f32 %v774, %v806
        %v819 = vadd.f32 %v775, %v802
        %v820 = vadd.f32 %v776, %v806
        %v821 = vadd.f32 %v777, %v802
        %v822 = vadd.f32 %v778, %v806
        %v823 = vadd.f32 %v779, %v802
        %v824 = vadd.f32 %v780, %v806
        %v825 = vadd.f32 %v781, %v802
        %v826 = vadd.f32 %v782, %v806
        %v827 = vadd.f32 %v783, %v802
        %v828 = vadd.f32 %v784, %v806
        %v829 = vadd.f32 %v785, %v802
        %v830 = vadd.f32 %v786, %v806
        %v831 = vadd.f32 %v787, %v802
        %v832 = vadd.f32 %v788, %v806
        %v833 = vadd.f32 %v789, %v802
        %v834 = vadd.f32 %v790, %v806
        %v835 = vadd.f32 %v791, %v802
        %v836 = vadd.f32 %v792, %v806
        %v837 = vadd.f32 %v793, %v802
        %v838 = vadd.f32 %v794, %v806
        %v839 = vadd.f32 %v795, %v802
        %v840 = vadd.f32 %v796, %v806
        %v841 = vpack.c.bf16 %v811, %v809
        %v842 = vpack.c.bf16 %v812, %v810
        %v843 = vpack.c.bf16 %v815, %v813
        %v844 = vpack.c.bf16 %v816, %v814
        %v845 = vpack.c.bf16 %v819, %v817
        %v846 = vpack.c.bf16 %v820, %v818
        %v847 = vpack.c.bf16 %v823, %v821
        %v848 = vpack.c.bf16 %v824, %v822
        %v849 = vpack.c.bf16 %v827, %v825
        %v850 = vpack.c.bf16 %v828, %v826
        %v851 = vpack.c.bf16 %v831, %v829
        %v852 = vpack.c.bf16 %v832, %v830
        %v853 = vpack.c.bf16 %v835, %v833
        %v854 = vpack.c.bf16 %v836, %v834
        %v855 = vpack.c.bf16 %v839, %v837
        %v856 = vpack.c.bf16 %v840, %v838
        %v857 = vld [vmem:[#allocation8] sm:$0xff]
        %v858 = vld [vmem:[#allocation8 + $0x8] sm:$0xff]
        %v859 = vld [vmem:[#allocation8 + $0x10] sm:$0xff]
        %v860 = vld [vmem:[#allocation8 + $0x18] sm:$0xff]
        %v861 = vld [vmem:[#allocation8 + $0x20] sm:$0xff]
        %v862 = vld [vmem:[#allocation8 + $0x28] sm:$0xff]
        %v863 = vld [vmem:[#allocation8 + $0x30] sm:$0xff]
        %v864 = vld [vmem:[#allocation8 + $0x38] sm:$0xff]
        %v865 = vld [vmem:[#allocation8 + $0x40] sm:$0xff]
        %v866 = vld [vmem:[#allocation8 + $0x48] sm:$0xff]
        %v867 = vld [vmem:[#allocation8 + $0x50] sm:$0xff]
        %v868 = vld [vmem:[#allocation8 + $0x58] sm:$0xff]
        %v869 = vld [vmem:[#allocation8 + $0x60] sm:$0xff]
        %v870 = vld [vmem:[#allocation8 + $0x68] sm:$0xff]
        %v871 = vld [vmem:[#allocation8 + $0x70] sm:$0xff]
        %v872 = vld [vmem:[#allocation8 + $0x78] sm:$0xff]
        %v873 = vld [vmem:[#allocation8 + $0x80] sm:$0xff]
        %v874 = vld [vmem:[#allocation8 + $0x88] sm:$0xff]
        %v875 = vld [vmem:[#allocation8 + $0x90] sm:$0xff]
        %v876 = vld [vmem:[#allocation8 + $0x98] sm:$0xff]
        %v877 = vld [vmem:[#allocation8 + $0xa0] sm:$0xff]
        %v878 = vld [vmem:[#allocation8 + $0xa8] sm:$0xff]
        %v879 = vld [vmem:[#allocation8 + $0xb0] sm:$0xff]
        %v880 = vld [vmem:[#allocation8 + $0xb8] sm:$0xff]
        %v881 = vld [vmem:[#allocation8 + $0xc0] sm:$0xff]
        %v882 = vld [vmem:[#allocation8 + $0xc8] sm:$0xff]
        %v883 = vld [vmem:[#allocation8 + $0xd0] sm:$0xff]
        %v884 = vld [vmem:[#allocation8 + $0xd8] sm:$0xff]
        %v885 = vld [vmem:[#allocation8 + $0xe0] sm:$0xff]
        %v886 = vld [vmem:[#allocation8 + $0xe8] sm:$0xff]
        %v887 = vld [vmem:[#allocation8 + $0xf0] sm:$0xff]
        %v888 = vld [vmem:[#allocation8 + $0xf8] sm:$0xff]
        %v889 = vld [vmem:[#allocation8 + $0x100] sm:$0xff]
        %v890 = vld [vmem:[#allocation8 + $0x108] sm:$0xff]
        %v891 = vld [vmem:[#allocation8 + $0x110] sm:$0xff]
        %v892 = vld [vmem:[#allocation8 + $0x118] sm:$0xff]
        %v893 = vld [vmem:[#allocation8 + $0x120] sm:$0xff]
        %v894 = vld [vmem:[#allocation8 + $0x128] sm:$0xff]
        %v895 = vld [vmem:[#allocation8 + $0x130] sm:$0xff]
        %v896 = vld [vmem:[#allocation8 + $0x138] sm:$0xff]
        %v897 = vld [vmem:[#allocation8 + $0x140] sm:$0xff]
        %v898 = vld [vmem:[#allocation8 + $0x148] sm:$0xff]
        %v899 = vld [vmem:[#allocation8 + $0x150] sm:$0xff]
        %v900 = vld [vmem:[#allocation8 + $0x158] sm:$0xff]
        %v901 = vld [vmem:[#allocation8 + $0x160] sm:$0xff]
        %v902 = vld [vmem:[#allocation8 + $0x168] sm:$0xff]
        %v903 = vld [vmem:[#allocation8 + $0x170] sm:$0xff]
        %v904 = vld [vmem:[#allocation8 + $0x178] sm:$0xff]
        %v905 = vld [vmem:[#allocation8 + $0x180] sm:$0xff]
        %v906 = vld [vmem:[#allocation8 + $0x188] sm:$0xff]
        %v907 = vld [vmem:[#allocation8 + $0x190] sm:$0xff]
        %v908 = vld [vmem:[#allocation8 + $0x198] sm:$0xff]
        %v909 = vld [vmem:[#allocation8 + $0x1a0] sm:$0xff]
        %v910 = vld [vmem:[#allocation8 + $0x1a8] sm:$0xff]
        %v911 = vld [vmem:[#allocation8 + $0x1b0] sm:$0xff]
        %v912 = vld [vmem:[#allocation8 + $0x1b8] sm:$0xff]
        %v913 = vld [vmem:[#allocation8 + $0x1c0] sm:$0xff]
        %v914 = vld [vmem:[#allocation8 + $0x1c8] sm:$0xff]
        %v915 = vld [vmem:[#allocation8 + $0x1d0] sm:$0xff]
        %v916 = vld [vmem:[#allocation8 + $0x1d8] sm:$0xff]
        %v917 = vld [vmem:[#allocation8 + $0x1e0] sm:$0xff]
        %v918 = vld [vmem:[#allocation8 + $0x1e8] sm:$0xff]
        %v919 = vld [vmem:[#allocation8 + $0x1f0] sm:$0xff]
        %v920 = vld [vmem:[#allocation8 + $0x1f8] sm:$0xff]
        %v921 = vld [vmem:[#allocation8 + $0x200] sm:$0xff]
        %v922 = vld [vmem:[#allocation8 + $0x208] sm:$0xff]
        %v923 = vld [vmem:[#allocation8 + $0x210] sm:$0xff]
        %v924 = vld [vmem:[#allocation8 + $0x218] sm:$0xff]
        %v925 = vld [vmem:[#allocation8 + $0x220] sm:$0xff]
        %v926 = vld [vmem:[#allocation8 + $0x228] sm:$0xff]
        %v927 = vld [vmem:[#allocation8 + $0x230] sm:$0xff]
        %v928 = vld [vmem:[#allocation8 + $0x238] sm:$0xff]
        %v929 = vld [vmem:[#allocation8 + $0x240] sm:$0xff]
        %v930 = vld [vmem:[#allocation8 + $0x248] sm:$0xff]
        %v931 = vld [vmem:[#allocation8 + $0x250] sm:$0xff]
        %v932 = vld [vmem:[#allocation8 + $0x258] sm:$0xff]
        %v933 = vld [vmem:[#allocation8 + $0x260] sm:$0xff]
        %v934 = vld [vmem:[#allocation8 + $0x268] sm:$0xff]
        %v935 = vld [vmem:[#allocation8 + $0x270] sm:$0xff]
        %v936 = vld [vmem:[#allocation8 + $0x278] sm:$0xff]
        %v937 = vld [vmem:[#allocation8 + $0x280] sm:$0xff]
        %v938 = vld [vmem:[#allocation8 + $0x288] sm:$0xff]
        %v939 = vld [vmem:[#allocation8 + $0x290] sm:$0xff]
        %v940 = vld [vmem:[#allocation8 + $0x298] sm:$0xff]
        %v941 = vld [vmem:[#allocation8 + $0x2a0] sm:$0xff]
        %v942 = vld [vmem:[#allocation8 + $0x2a8] sm:$0xff]
        %v943 = vld [vmem:[#allocation8 + $0x2b0] sm:$0xff]
        %v944 = vld [vmem:[#allocation8 + $0x2b8] sm:$0xff]
        %v945 = vld [vmem:[#allocation8 + $0x2c0] sm:$0xff]
        %v946 = vld [vmem:[#allocation8 + $0x2c8] sm:$0xff]
        %v947 = vld [vmem:[#allocation8 + $0x2d0] sm:$0xff]
        %v948 = vld [vmem:[#allocation8 + $0x2d8] sm:$0xff]
        %v949 = vld [vmem:[#allocation8 + $0x2e0] sm:$0xff]
        %v950 = vld [vmem:[#allocation8 + $0x2e8] sm:$0xff]
        %v951 = vld [vmem:[#allocation8 + $0x2f0] sm:$0xff]
        %v952 = vld [vmem:[#allocation8 + $0x2f8] sm:$0xff]
        %v953 = vld [vmem:[%s3] sm:$0x3f]
        %v955 = vlaneseq
        %v956 = vshrl.u32 %v955, 7
        %v957 = vsub.s32 0, %v956
        %v958 = vrot.slane %v953, %v957
        %v959 = vlaneseq
        %v960 = vshrl.u32 %v959, 7
        %v961 = vsub.s32 1, %v960
        %v962 = vrot.slane %v953, %v961
        %v963 = vlaneseq
        %v964 = vshrl.u32 %v963, 7
        %v965 = vsub.s32 2, %v964
        %v966 = vrot.slane %v953, %v965
        %v967 = vlaneseq
        %v968 = vshrl.u32 %v967, 7
        %v969 = vsub.s32 3, %v968
        %v970 = vrot.slane %v953, %v969
        %v971 = vlaneseq
        %v972 = vshrl.u32 %v971, 7
        %v973 = vsub.s32 4, %v972
        %v974 = vrot.slane %v953, %v973
        %v975 = vlaneseq
        %v976 = vshrl.u32 %v975, 7
        %v977 = vsub.s32 5, %v976
        %v978 = vrot.slane %v953, %v977
        %v1081 = vunpack.c.l.b16 %v857
        %v1082 = vunpack.c.h.b16 %v857
        %v1083 = vunpack.c.l.b16 %v858
        %v1084 = vunpack.c.h.b16 %v858
        %v1085 = vunpack.c.l.b16 %v859
        %v1086 = vunpack.c.h.b16 %v859
        %v1087 = vunpack.c.l.b16 %v860
        %v1088 = vunpack.c.h.b16 %v860
        %v1089 = vunpack.c.l.b16 %v861
        %v1090 = vunpack.c.h.b16 %v861
        %v1091 = vunpack.c.l.b16 %v862
        %v1092 = vunpack.c.h.b16 %v862
        %v1093 = vunpack.c.l.b16 %v863
        %v1094 = vunpack.c.h.b16 %v863
        %v1095 = vunpack.c.l.b16 %v864
        %v1096 = vunpack.c.h.b16 %v864
        %v1097 = vunpack.c.l.b16 %v865
        %v1098 = vunpack.c.h.b16 %v865
        %v1099 = vunpack.c.l.b16 %v866
        %v1100 = vunpack.c.h.b16 %v866
        %v1101 = vunpack.c.l.b16 %v867
        %v1102 = vunpack.c.h.b16 %v867
        %v1103 = vunpack.c.l.b16 %v868
        %v1104 = vunpack.c.h.b16 %v868
        %v1105 = vunpack.c.l.b16 %v869
        %v1106 = vunpack.c.h.b16 %v869
        %v1107 = vunpack.c.l.b16 %v870
        %v1108 = vunpack.c.h.b16 %v870
        %v1109 = vunpack.c.l.b16 %v871
        %v1110 = vunpack.c.h.b16 %v871
        %v1111 = vunpack.c.l.b16 %v872
        %v1112 = vunpack.c.h.b16 %v872
        %v1113 = vunpack.c.l.b16 %v873
        %v1114 = vunpack.c.h.b16 %v873
        %v1115 = vunpack.c.l.b16 %v874
        %v1116 = vunpack.c.h.b16 %v874
        %v1117 = vunpack.c.l.b16 %v875
        %v1118 = vunpack.c.h.b16 %v875
        %v1119 = vunpack.c.l.b16 %v876
        %v1120 = vunpack.c.h.b16 %v876
        %v1121 = vunpack.c.l.b16 %v877
        %v1122 = vunpack.c.h.b16 %v877
        %v1123 = vunpack.c.l.b16 %v878
        %v1124 = vunpack.c.h.b16 %v878
        %v1125 = vunpack.c.l.b16 %v879
        %v1126 = vunpack.c.h.b16 %v879
        %v1127 = vunpack.c.l.b16 %v880
        %v1128 = vunpack.c.h.b16 %v880
        %v1129 = vunpack.c.l.b16 %v881
        %v1130 = vunpack.c.h.b16 %v881
        %v1131 = vunpack.c.l.b16 %v882
        %v1132 = vunpack.c.h.b16 %v882
        %v1133 = vunpack.c.l.b16 %v883
        %v1134 = vunpack.c.h.b16 %v883
        %v1135 = vunpack.c.l.b16 %v884
        %v1136 = vunpack.c.h.b16 %v884
        %v1137 = vunpack.c.l.b16 %v885
        %v1138 = vunpack.c.h.b16 %v885
        %v1139 = vunpack.c.l.b16 %v886
        %v1140 = vunpack.c.h.b16 %v886
        %v1141 = vunpack.c.l.b16 %v887
        %v1142 = vunpack.c.h.b16 %v887
        %v1143 = vunpack.c.l.b16 %v888
        %v1144 = vunpack.c.h.b16 %v888
        %v1145 = vunpack.c.l.b16 %v889
        %v1146 = vunpack.c.h.b16 %v889
        %v1147 = vunpack.c.l.b16 %v890
        %v1148 = vunpack.c.h.b16 %v890
        %v1149 = vunpack.c.l.b16 %v891
        %v1150 = vunpack.c.h.b16 %v891
        %v1151 = vunpack.c.l.b16 %v892
        %v1152 = vunpack.c.h.b16 %v892
        %v1153 = vunpack.c.l.b16 %v893
        %v1154 = vunpack.c.h.b16 %v893
        %v1155 = vunpack.c.l.b16 %v894
        %v1156 = vunpack.c.h.b16 %v894
        %v1157 = vunpack.c.l.b16 %v895
        %v1158 = vunpack.c.h.b16 %v895
        %v1159 = vunpack.c.l.b16 %v896
        %v1160 = vunpack.c.h.b16 %v896
        %v1161 = vunpack.c.l.b16 %v897
        %v1162 = vunpack.c.h.b16 %v897
        %v1163 = vunpack.c.l.b16 %v898
        %v1164 = vunpack.c.h.b16 %v898
        %v1165 = vunpack.c.l.b16 %v899
        %v1166 = vunpack.c.h.b16 %v899
        %v1167 = vunpack.c.l.b16 %v900
        %v1168 = vunpack.c.h.b16 %v900
        %v1169 = vunpack.c.l.b16 %v901
        %v1170 = vunpack.c.h.b16 %v901
        %v1171 = vunpack.c.l.b16 %v902
        %v1172 = vunpack.c.h.b16 %v902
        %v1173 = vunpack.c.l.b16 %v903
        %v1174 = vunpack.c.h.b16 %v903
        %v1175 = vunpack.c.l.b16 %v904
        %v1176 = vunpack.c.h.b16 %v904
        %v1177 = vunpack.c.l.b16 %v905
        %v1178 = vunpack.c.h.b16 %v905
        %v1179 = vunpack.c.l.b16 %v906
        %v1180 = vunpack.c.h.b16 %v906
        %v1181 = vunpack.c.l.b16 %v907
        %v1182 = vunpack.c.h.b16 %v907
        %v1183 = vunpack.c.l.b16 %v908
        %v1184 = vunpack.c.h.b16 %v908
        %v1185 = vunpack.c.l.b16 %v909
        %v1186 = vunpack.c.h.b16 %v909
        %v1187 = vunpack.c.l.b16 %v910
        %v1188 = vunpack.c.h.b16 %v910
        %v1189 = vunpack.c.l.b16 %v911
        %v1190 = vunpack.c.h.b16 %v911
        %v1191 = vunpack.c.l.b16 %v912
        %v1192 = vunpack.c.h.b16 %v912
        %v1193 = vunpack.c.l.b16 %v913
        %v1194 = vunpack.c.h.b16 %v913
        %v1195 = vunpack.c.l.b16 %v914
        %v1196 = vunpack.c.h.b16 %v914
        %v1197 = vunpack.c.l.b16 %v915
        %v1198 = vunpack.c.h.b16 %v915
        %v1199 = vunpack.c.l.b16 %v916
        %v1200 = vunpack.c.h.b16 %v916
        %v1201 = vunpack.c.l.b16 %v917
        %v1202 = vunpack.c.h.b16 %v917
        %v1203 = vunpack.c.l.b16 %v918
        %v1204 = vunpack.c.h.b16 %v918
        %v1205 = vunpack.c.l.b16 %v919
        %v1206 = vunpack.c.h.b16 %v919
        %v1207 = vunpack.c.l.b16 %v920
        %v1208 = vunpack.c.h.b16 %v920
        %v1209 = vunpack.c.l.b16 %v921
        %v1210 = vunpack.c.h.b16 %v921
        %v1211 = vunpack.c.l.b16 %v922
        %v1212 = vunpack.c.h.b16 %v922
        %v1213 = vunpack.c.l.b16 %v923
        %v1214 = vunpack.c.h.b16 %v923
        %v1215 = vunpack.c.l.b16 %v924
        %v1216 = vunpack.c.h.b16 %v924
        %v1217 = vunpack.c.l.b16 %v925
        %v1218 = vunpack.c.h.b16 %v925
        %v1219 = vunpack.c.l.b16 %v926
        %v1220 = vunpack.c.h.b16 %v926
        %v1221 = vunpack.c.l.b16 %v927
        %v1222 = vunpack.c.h.b16 %v927
        %v1223 = vunpack.c.l.b16 %v928
        %v1224 = vunpack.c.h.b16 %v928
        %v1225 = vunpack.c.l.b16 %v929
        %v1226 = vunpack.c.h.b16 %v929
        %v1227 = vunpack.c.l.b16 %v930
        %v1228 = vunpack.c.h.b16 %v930
        %v1229 = vunpack.c.l.b16 %v931
        %v1230 = vunpack.c.h.b16 %v931
        %v1231 = vunpack.c.l.b16 %v932
        %v1232 = vunpack.c.h.b16 %v932
        %v1233 = vunpack.c.l.b16 %v933
        %v1234 = vunpack.c.h.b16 %v933
        %v1235 = vunpack.c.l.b16 %v934
        %v1236 = vunpack.c.h.b16 %v934
        %v1237 = vunpack.c.l.b16 %v935
        %v1238 = vunpack.c.h.b16 %v935
        %v1239 = vunpack.c.l.b16 %v936
        %v1240 = vunpack.c.h.b16 %v936
        %v1241 = vunpack.c.l.b16 %v937
        %v1242 = vunpack.c.h.b16 %v937
        %v1243 = vunpack.c.l.b16 %v938
        %v1244 = vunpack.c.h.b16 %v938
        %v1245 = vunpack.c.l.b16 %v939
        %v1246 = vunpack.c.h.b16 %v939
        %v1247 = vunpack.c.l.b16 %v940
        %v1248 = vunpack.c.h.b16 %v940
        %v1249 = vunpack.c.l.b16 %v941
        %v1250 = vunpack.c.h.b16 %v941
        %v1251 = vunpack.c.l.b16 %v942
        %v1252 = vunpack.c.h.b16 %v942
        %v1253 = vunpack.c.l.b16 %v943
        %v1254 = vunpack.c.h.b16 %v943
        %v1255 = vunpack.c.l.b16 %v944
        %v1256 = vunpack.c.h.b16 %v944
        %v1257 = vunpack.c.l.b16 %v945
        %v1258 = vunpack.c.h.b16 %v945
        %v1259 = vunpack.c.l.b16 %v946
        %v1260 = vunpack.c.h.b16 %v946
        %v1261 = vunpack.c.l.b16 %v947
        %v1262 = vunpack.c.h.b16 %v947
        %v1263 = vunpack.c.l.b16 %v948
        %v1264 = vunpack.c.h.b16 %v948
        %v1265 = vunpack.c.l.b16 %v949
        %v1266 = vunpack.c.h.b16 %v949
        %v1267 = vunpack.c.l.b16 %v950
        %v1268 = vunpack.c.h.b16 %v950
        %v1269 = vunpack.c.l.b16 %v951
        %v1270 = vunpack.c.h.b16 %v951
        %v1271 = vunpack.c.l.b16 %v952
        %v1272 = vunpack.c.h.b16 %v952
        %v1273 = vpack.c.b16 %v1087, %v1081
        %v1274 = vpack.c.b16 %v1088, %v1082
        %v1275 = vpack.c.b16 %v1089, %v1083
        %v1276 = vpack.c.b16 %v1090, %v1084
        %v1277 = vpack.c.b16 %v1091, %v1085
        %v1278 = vpack.c.b16 %v1092, %v1086
        %v1279 = vpack.c.b16 %v1099, %v1093
        %v1280 = vpack.c.b16 %v1100, %v1094
        %v1281 = vpack.c.b16 %v1101, %v1095
        %v1282 = vpack.c.b16 %v1102, %v1096
        %v1283 = vpack.c.b16 %v1103, %v1097
        %v1284 = vpack.c.b16 %v1104, %v1098
        %v1285 = vpack.c.b16 %v1111, %v1105
        %v1286 = vpack.c.b16 %v1112, %v1106
        %v1287 = vpack.c.b16 %v1113, %v1107
        %v1288 = vpack.c.b16 %v1114, %v1108
        %v1289 = vpack.c.b16 %v1115, %v1109
        %v1290 = vpack.c.b16 %v1116, %v1110
        %v1291 = vpack.c.b16 %v1123, %v1117
        %v1292 = vpack.c.b16 %v1124, %v1118
        %v1293 = vpack.c.b16 %v1125, %v1119
        %v1294 = vpack.c.b16 %v1126, %v1120
        %v1295 = vpack.c.b16 %v1127, %v1121
        %v1296 = vpack.c.b16 %v1128, %v1122
        %v1297 = vpack.c.b16 %v1135, %v1129
        %v1298 = vpack.c.b16 %v1136, %v1130
        %v1299 = vpack.c.b16 %v1137, %v1131
        %v1300 = vpack.c.b16 %v1138, %v1132
        %v1301 = vpack.c.b16 %v1139, %v1133
        %v1302 = vpack.c.b16 %v1140, %v1134
        %v1303 = vpack.c.b16 %v1147, %v1141
        %v1304 = vpack.c.b16 %v1148, %v1142
        %v1305 = vpack.c.b16 %v1149, %v1143
        %v1306 = vpack.c.b16 %v1150, %v1144
        %v1307 = vpack.c.b16 %v1151, %v1145
        %v1308 = vpack.c.b16 %v1152, %v1146
        %v1309 = vpack.c.b16 %v1159, %v1153
        %v1310 = vpack.c.b16 %v1160, %v1154
        %v1311 = vpack.c.b16 %v1161, %v1155
        %v1312 = vpack.c.b16 %v1162, %v1156
        %v1313 = vpack.c.b16 %v1163, %v1157
        %v1314 = vpack.c.b16 %v1164, %v1158
        %v1315 = vpack.c.b16 %v1171, %v1165
        %v1316 = vpack.c.b16 %v1172, %v1166
        %v1317 = vpack.c.b16 %v1173, %v1167
        %v1318 = vpack.c.b16 %v1174, %v1168
        %v1319 = vpack.c.b16 %v1175, %v1169
        %v1320 = vpack.c.b16 %v1176, %v1170
        %v1321 = vpack.c.b16 %v1183, %v1177
        %v1322 = vpack.c.b16 %v1184, %v1178
        %v1323 = vpack.c.b16 %v1185, %v1179
        %v1324 = vpack.c.b16 %v1186, %v1180
        %v1325 = vpack.c.b16 %v1187, %v1181
        %v1326 = vpack.c.b16 %v1188, %v1182
        %v1327 = vpack.c.b16 %v1195, %v1189
        %v1328 = vpack.c.b16 %v1196, %v1190
        %v1329 = vpack.c.b16 %v1197, %v1191
        %v1330 = vpack.c.b16 %v1198, %v1192
        %v1331 = vpack.c.b16 %v1199, %v1193
        %v1332 = vpack.c.b16 %v1200, %v1194
        %v1333 = vpack.c.b16 %v1207, %v1201
        %v1334 = vpack.c.b16 %v1208, %v1202
        %v1335 = vpack.c.b16 %v1209, %v1203
        %v1336 = vpack.c.b16 %v1210, %v1204
        %v1337 = vpack.c.b16 %v1211, %v1205
        %v1338 = vpack.c.b16 %v1212, %v1206
        %v1339 = vpack.c.b16 %v1219, %v1213
        %v1340 = vpack.c.b16 %v1220, %v1214
        %v1341 = vpack.c.b16 %v1221, %v1215
        %v1342 = vpack.c.b16 %v1222, %v1216
        %v1343 = vpack.c.b16 %v1223, %v1217
        %v1344 = vpack.c.b16 %v1224, %v1218
        %v1345 = vpack.c.b16 %v1231, %v1225
        %v1346 = vpack.c.b16 %v1232, %v1226
        %v1347 = vpack.c.b16 %v1233, %v1227
        %v1348 = vpack.c.b16 %v1234, %v1228
        %v1349 = vpack.c.b16 %v1235, %v1229
        %v1350 = vpack.c.b16 %v1236, %v1230
        %v1351 = vpack.c.b16 %v1243, %v1237
        %v1352 = vpack.c.b16 %v1244, %v1238
        %v1353 = vpack.c.b16 %v1245, %v1239
        %v1354 = vpack.c.b16 %v1246, %v1240
        %v1355 = vpack.c.b16 %v1247, %v1241
        %v1356 = vpack.c.b16 %v1248, %v1242
        %v1357 = vpack.c.b16 %v1255, %v1249
        %v1358 = vpack.c.b16 %v1256, %v1250
        %v1359 = vpack.c.b16 %v1257, %v1251
        %v1360 = vpack.c.b16 %v1258, %v1252
        %v1361 = vpack.c.b16 %v1259, %v1253
        %v1362 = vpack.c.b16 %v1260, %v1254
        %v1363 = vpack.c.b16 %v1267, %v1261
        %v1364 = vpack.c.b16 %v1268, %v1262
        %v1365 = vpack.c.b16 %v1269, %v1263
        %v1366 = vpack.c.b16 %v1270, %v1264
        %v1367 = vpack.c.b16 %v1271, %v1265
        %v1368 = vpack.c.b16 %v1272, %v1266
        %1465 = vmatprep.subr.bf16.mxu0 %v1274
        %1466 = vmatpush1.bf16.msra.mxu0 %v1273
        %1467 = vmatprep.subr.bf16.mxu0 %v1280
        %1468 = vmatpush1.bf16.msra.mxu0 %v1279
        %1469 = vmatprep.subr.bf16.mxu0 %v1286
        %1470 = vmatpush1.bf16.msra.mxu0 %v1285
        %1471 = vmatprep.subr.bf16.mxu0 %v1292
        %1472 = vmatpush1.bf16.msra.mxu0 %v1291
        %1473 = vmatprep.subr.bf16.mxu0 %v1298
        %1474 = vmatpush1.bf16.msra.mxu0 %v1297
        %1475 = vmatprep.subr.bf16.mxu0 %v1304
        %1476 = vmatpush1.bf16.msra.mxu0 %v1303
        %1477 = vmatprep.subr.bf16.mxu0 %v1310
        %1478 = vmatpush1.bf16.msra.mxu0 %v1309
        %1479 = vmatprep.subr.bf16.mxu0 %v1316
        %1480 = vmatpush1.bf16.msra.mxu0 %v1315
        %1481 = vmatprep.subr.bf16.mxu0 %v1322
        %1482 = vmatpush1.bf16.msra.mxu0 %v1321
        %1483 = vmatprep.subr.bf16.mxu0 %v1328
        %1484 = vmatpush1.bf16.msra.mxu0 %v1327
        %1485 = vmatprep.subr.bf16.mxu0 %v1334
        %1486 = vmatpush1.bf16.msra.mxu0 %v1333
        %1487 = vmatprep.subr.bf16.mxu0 %v1340
        %1488 = vmatpush1.bf16.msra.mxu0 %v1339
        %1489 = vmatprep.subr.bf16.mxu0 %v1346
        %1490 = vmatpush1.bf16.msra.mxu0 %v1345
        %1491 = vmatprep.subr.bf16.mxu0 %v1352
        %1492 = vmatpush1.bf16.msra.mxu0 %v1351
        %1493 = vmatprep.subr.bf16.mxu0 %v1358
        %1494 = vmatpush1.bf16.msra.mxu0 %v1357
        %1495 = vmatprep.subr.bf16.mxu0 %v1364
        %1496 = vmatpush1.bf16.msra.mxu0 %v1363
        %1497 = vmatprep.mubr.bf16.mxu0 %v842
        %1498 = vmatmul.mubr.bf16.gmra.mrb[0].mxu0 %v841
        %v1499 = vpop.f32.mrb[0].mxu0
        %v1500 = vadd.f32 %v958, %v1499
        %v1501 = vpop.f32.mrb[0].mxu0
        %v1502 = vadd.f32 %v962, %v1501
        %v1503 = vpop.f32.mrb[0].mxu0
        %v1504 = vadd.f32 %v958, %v1503
        %v1505 = vpop.f32.mrb[0].mxu0
        %v1506 = vadd.f32 %v962, %v1505
        %1507 = vmatprep.mubr.bf16.mxu0 %v844
        %1508 = vmatmul.mubr.bf16.gmra.mrb[0].mxu0 %v843
        %v1509 = vpop.f32.mrb[0].mxu0
        %v1510 = vadd.f32 %v958, %v1509
        %v1511 = vpop.f32.mrb[0].mxu0
        %v1512 = vadd.f32 %v962, %v1511
        %v1513 = vpop.f32.mrb[0].mxu0
        %v1514 = vadd.f32 %v958, %v1513
        %v1515 = vpop.f32.mrb[0].mxu0
        %v1516 = vadd.f32 %v962, %v1515
        %1517 = vmatprep.mubr.bf16.mxu0 %v846
        %1518 = vmatmul.mubr.bf16.gmra.mrb[0].mxu0 %v845
        %v1519 = vpop.f32.mrb[0].mxu0
        %v1520 = vadd.f32 %v958, %v1519
        %v1521 = vpop.f32.mrb[0].mxu0
        %v1522 = vadd.f32 %v962, %v1521
        %v1523 = vpop.f32.mrb[0].mxu0
        %v1524 = vadd.f32 %v958, %v1523
        %v1525 = vpop.f32.mrb[0].mxu0
        %v1526 = vadd.f32 %v962, %v1525
        %1527 = vmatprep.mubr.bf16.mxu0 %v848
        %1528 = vmatmul.mubr.bf16.gmra.mrb[0].mxu0 %v847
        %v1529 = vpop.f32.mrb[0].mxu0
        %v1530 = vadd.f32 %v958, %v1529
        %v1531 = vpop.f32.mrb[0].mxu0
        %v1532 = vadd.f32 %v962, %v1531
        %v1533 = vpop.f32.mrb[0].mxu0
        %v1534 = vadd.f32 %v958, %v1533
        %v1535 = vpop.f32.mrb[0].mxu0
        %v1536 = vadd.f32 %v962, %v1535
        %1537 = vmatprep.mubr.bf16.mxu0 %v850
        %1538 = vmatmul.mubr.bf16.gmra.mrb[0].mxu0 %v849
        %v1539 = vpop.f32.mrb[0].mxu0
        %v1540 = vadd.f32 %v958, %v1539
        %v1541 = vpop.f32.mrb[0].mxu0
        %v1542 = vadd.f32 %v962, %v1541
        %v1543 = vpop.f32.mrb[0].mxu0
        %v1544 = vadd.f32 %v958, %v1543
        %v1545 = vpop.f32.mrb[0].mxu0
        %v1546 = vadd.f32 %v962, %v1545
        %1547 = vmatprep.mubr.bf16.mxu0 %v852
        %1548 = vmatmul.mubr.bf16.gmra.mrb[0].mxu0 %v851
        %v1549 = vpop.f32.mrb[0].mxu0
        %v1550 = vadd.f32 %v958, %v1549
        %v1551 = vpop.f32.mrb[0].mxu0
        %v1552 = vadd.f32 %v962, %v1551
        %v1553 = vpop.f32.mrb[0].mxu0
        %v1554 = vadd.f32 %v958, %v1553
        %v1555 = vpop.f32.mrb[0].mxu0
        %v1556 = vadd.f32 %v962, %v1555
        %1557 = vmatprep.mubr.bf16.mxu0 %v854
        %1558 = vmatmul.mubr.bf16.gmra.mrb[0].mxu0 %v853
        %v1559 = vpop.f32.mrb[0].mxu0
        %v1560 = vadd.f32 %v958, %v1559
        %v1561 = vpop.f32.mrb[0].mxu0
        %v1562 = vadd.f32 %v962, %v1561
        %v1563 = vpop.f32.mrb[0].mxu0
        %v1564 = vadd.f32 %v958, %v1563
        %v1565 = vpop.f32.mrb[0].mxu0
        %v1566 = vadd.f32 %v962, %v1565
        %1567 = vmatprep.mubr.bf16.mxu0 %v856
        %1568 = vmatmul.mubr.bf16.gmra.mrb[0].mxu0 %v855
        %v1569 = vpop.f32.mrb[0].mxu0
        %v1570 = vadd.f32 %v958, %v1569
        %v1571 = vpop.f32.mrb[0].mxu0
        %v1572 = vadd.f32 %v962, %v1571
        %v1573 = vpop.f32.mrb[0].mxu0
        %v1574 = vadd.f32 %v958, %v1573
        %v1575 = vpop.f32.mrb[0].mxu0
        %v1576 = vadd.f32 %v962, %v1575
        %1577 = vdwg.mxu0
        %1578 = vmatprep.subr.bf16.mxu0 %v1276
        %1579 = vmatpush1.bf16.msra.mxu0 %v1275
        %1580 = vmatprep.subr.bf16.mxu0 %v1282
        %1581 = vmatpush1.bf16.msra.mxu0 %v1281
        %1582 = vmatprep.subr.bf16.mxu0 %v1288
        %1583 = vmatpush1.bf16.msra.mxu0 %v1287
        %1584 = vmatprep.subr.bf16.mxu0 %v1294
        %1585 = vmatpush1.bf16.msra.mxu0 %v1293
        %1586 = vmatprep.subr.bf16.mxu0 %v1300
        %1587 = vmatpush1.bf16.msra.mxu0 %v1299
        %1588 = vmatprep.subr.bf16.mxu0 %v1306
        %1589 = vmatpush1.bf16.msra.mxu0 %v1305
        %1590 = vmatprep.subr.bf16.mxu0 %v1312
        %1591 = vmatpush1.bf16.msra.mxu0 %v1311
        %1592 = vmatprep.subr.bf16.mxu0 %v1318
        %1593 = vmatpush1.bf16.msra.mxu0 %v1317
        %1594 = vmatprep.subr.bf16.mxu0 %v1324
        %1595 = vmatpush1.bf16.msra.mxu0 %v1323
        %1596 = vmatprep.subr.bf16.mxu0 %v1330
        %1597 = vmatpush1.bf16.msra.mxu0 %v1329
        %1598 = vmatprep.subr.bf16.mxu0 %v1336
        %1599 = vmatpush1.bf16.msra.mxu0 %v1335
        %1600 = vmatprep.subr.bf16.mxu0 %v1342
        %1601 = vmatpush1.bf16.msra.mxu0 %v1341
        %1602 = vmatprep.subr.bf16.mxu0 %v1348
        %1603 = vmatpush1.bf16.msra.mxu0 %v1347
        %1604 = vmatprep.subr.bf16.mxu0 %v1354
        %1605 = vmatpush1.bf16.msra.mxu0 %v1353
        %1606 = vmatprep.subr.bf16.mxu0 %v1360
        %1607 = vmatpush1.bf16.msra.mxu0 %v1359
        %1608 = vmatprep.subr.bf16.mxu0 %v1366
        %1609 = vmatpush1.bf16.msra.mxu0 %v1365
        %1610 = vmatprep.mubr.bf16.mxu0 %v842
        %1611 = vmatmul.mubr.bf16.gmra.mrb[0].mxu0 %v841
        %v1612 = vpop.f32.mrb[0].mxu0
        %v1613 = vadd.f32 %v966, %v1612
        %v1614 = vpop.f32.mrb[0].mxu0
        %v1615 = vadd.f32 %v970, %v1614
        %v1616 = vpop.f32.mrb[0].mxu0
        %v1617 = vadd.f32 %v966, %v1616
        %v1618 = vpop.f32.mrb[0].mxu0
        %v1619 = vadd.f32 %v970, %v1618
        %1620 = vmatprep.mubr.bf16.mxu0 %v844
        %1621 = vmatmul.mubr.bf16.gmra.mrb[0].mxu0 %v843
        %v1622 = vpop.f32.mrb[0].mxu0
        %v1623 = vadd.f32 %v966, %v1622
        %v1624 = vpop.f32.mrb[0].mxu0
        %v1625 = vadd.f32 %v970, %v1624
        %v1626 = vpop.f32.mrb[0].mxu0
        %v1627 = vadd.f32 %v966, %v1626
        %v1628 = vpop.f32.mrb[0].mxu0
        %v1629 = vadd.f32 %v970, %v1628
        %1630 = vmatprep.mubr.bf16.mxu0 %v846
        %1631 = vmatmul.mubr.bf16.gmra.mrb[0].mxu0 %v845
        %v1632 = vpop.f32.mrb[0].mxu0
        %v1633 = vadd.f32 %v966, %v1632
        %v1634 = vpop.f32.mrb[0].mxu0
        %v1635 = vadd.f32 %v970, %v1634
        %v1636 = vpop.f32.mrb[0].mxu0
        %v1637 = vadd.f32 %v966, %v1636
        %v1638 = vpop.f32.mrb[0].mxu0
        %v1639 = vadd.f32 %v970, %v1638
        %1640 = vmatprep.mubr.bf16.mxu0 %v848
        %1641 = vmatmul.mubr.bf16.gmra.mrb[0].mxu0 %v847
        %v1642 = vpop.f32.mrb[0].mxu0
        %v1643 = vadd.f32 %v966, %v1642
        %v1644 = vpop.f32.mrb[0].mxu0
        %v1645 = vadd.f32 %v970, %v1644
        %v1646 = vpop.f32.mrb[0].mxu0
        %v1647 = vadd.f32 %v966, %v1646
        %v1648 = vpop.f32.mrb[0].mxu0
        %v1649 = vadd.f32 %v970, %v1648
        %1650 = vmatprep.mubr.bf16.mxu0 %v850
        %1651 = vmatmul.mubr.bf16.gmra.mrb[0].mxu0 %v849
        %v1652 = vpop.f32.mrb[0].mxu0
        %v1653 = vadd.f32 %v966, %v1652
        %v1654 = vpop.f32.mrb[0].mxu0
        %v1655 = vadd.f32 %v970, %v1654
        %v1656 = vpop.f32.mrb[0].mxu0
        %v1657 = vadd.f32 %v966, %v1656
        %v1658 = vpop.f32.mrb[0].mxu0
        %v1659 = vadd.f32 %v970, %v1658
        %1660 = vmatprep.mubr.bf16.mxu0 %v852
        %1661 = vmatmul.mubr.bf16.gmra.mrb[0].mxu0 %v851
        %v1662 = vpop.f32.mrb[0].mxu0
        %v1663 = vadd.f32 %v966, %v1662
        %v1664 = vpop.f32.mrb[0].mxu0
        %v1665 = vadd.f32 %v970, %v1664
        %v1666 = vpop.f32.mrb[0].mxu0
        %v1667 = vadd.f32 %v966, %v1666
        %v1668 = vpop.f32.mrb[0].mxu0
        %v1669 = vadd.f32 %v970, %v1668
        %1670 = vmatprep.mubr.bf16.mxu0 %v854
        %1671 = vmatmul.mubr.bf16.gmra.mrb[0].mxu0 %v853
        %v1672 = vpop.f32.mrb[0].mxu0
        %v1673 = vadd.f32 %v966, %v1672
        %v1674 = vpop.f32.mrb[0].mxu0
        %v1675 = vadd.f32 %v970, %v1674
        %v1676 = vpop.f32.mrb[0].mxu0
        %v1677 = vadd.f32 %v966, %v1676
        %v1678 = vpop.f32.mrb[0].mxu0
        %v1679 = vadd.f32 %v970, %v1678
        %1680 = vmatprep.mubr.bf16.mxu0 %v856
        %1681 = vmatmul.mubr.bf16.gmra.mrb[0].mxu0 %v855
        %v1682 = vpop.f32.mrb[0].mxu0
        %v1683 = vadd.f32 %v966, %v1682
        %v1684 = vpop.f32.mrb[0].mxu0
        %v1685 = vadd.f32 %v970, %v1684
        %v1686 = vpop.f32.mrb[0].mxu0
        %v1687 = vadd.f32 %v966, %v1686
        %v1688 = vpop.f32.mrb[0].mxu0
        %v1689 = vadd.f32 %v970, %v1688
        %1690 = vdwg.mxu0
        %1691 = vmatprep.subr.bf16.mxu0 %v1278
        %1692 = vmatpush1.bf16.msra.mxu0 %v1277
        %1693 = vmatprep.subr.bf16.mxu0 %v1284
        %1694 = vmatpush1.bf16.msra.mxu0 %v1283
        %1695 = vmatprep.subr.bf16.mxu0 %v1290
        %1696 = vmatpush1.bf16.msra.mxu0 %v1289
        %1697 = vmatprep.subr.bf16.mxu0 %v1296
        %1698 = vmatpush1.bf16.msra.mxu0 %v1295
        %1699 = vmatprep.subr.bf16.mxu0 %v1302
        %1700 = vmatpush1.bf16.msra.mxu0 %v1301
        %1701 = vmatprep.subr.bf16.mxu0 %v1308
        %1702 = vmatpush1.bf16.msra.mxu0 %v1307
        %1703 = vmatprep.subr.bf16.mxu0 %v1314
        %1704 = vmatpush1.bf16.msra.mxu0 %v1313
        %1705 = vmatprep.subr.bf16.mxu0 %v1320
        %1706 = vmatpush1.bf16.msra.mxu0 %v1319
        %1707 = vmatprep.subr.bf16.mxu0 %v1326
        %1708 = vmatpush1.bf16.msra.mxu0 %v1325
        %1709 = vmatprep.subr.bf16.mxu0 %v1332
        %1710 = vmatpush1.bf16.msra.mxu0 %v1331
        %1711 = vmatprep.subr.bf16.mxu0 %v1338
        %1712 = vmatpush1.bf16.msra.mxu0 %v1337
        %1713 = vmatprep.subr.bf16.mxu0 %v1344
        %1714 = vmatpush1.bf16.msra.mxu0 %v1343
        %1715 = vmatprep.subr.bf16.mxu0 %v1350
        %1716 = vmatpush1.bf16.msra.mxu0 %v1349
        %1717 = vmatprep.subr.bf16.mxu0 %v1356
        %1718 = vmatpush1.bf16.msra.mxu0 %v1355
        %1719 = vmatprep.subr.bf16.mxu0 %v1362
        %1720 = vmatpush1.bf16.msra.mxu0 %v1361
        %1721 = vmatprep.subr.bf16.mxu0 %v1368
        %1722 = vmatpush1.bf16.msra.mxu0 %v1367
        %1723 = vmatprep.mubr.bf16.mxu0 %v842
        %1724 = vmatmul.mubr.bf16.gmra.mrb[0].mxu0 %v841
        %v1725 = vpop.f32.mrb[0].mxu0
        %v1726 = vadd.f32 %v974, %v1725
        %v1727 = vpop.f32.mrb[0].mxu0
        %v1728 = vadd.f32 %v978, %v1727
        %v1729 = vpop.f32.mrb[0].mxu0
        %v1730 = vadd.f32 %v974, %v1729
        %v1731 = vpop.f32.mrb[0].mxu0
        %v1732 = vadd.f32 %v978, %v1731
        %1733 = vmatprep.mubr.bf16.mxu0 %v844
        %1734 = vmatmul.mubr.bf16.gmra.mrb[0].mxu0 %v843
        %v1735 = vpop.f32.mrb[0].mxu0
        %v1736 = vadd.f32 %v974, %v1735
        %v1737 = vpop.f32.mrb[0].mxu0
        %v1738 = vadd.f32 %v978, %v1737
        %v1739 = vpop.f32.mrb[0].mxu0
        %v1740 = vadd.f32 %v974, %v1739
        %v1741 = vpop.f32.mrb[0].mxu0
        %v1742 = vadd.f32 %v978, %v1741
        %1743 = vmatprep.mubr.bf16.mxu0 %v846
        %1744 = vmatmul.mubr.bf16.gmra.mrb[0].mxu0 %v845
        %v1745 = vpop.f32.mrb[0].mxu0
        %v1746 = vadd.f32 %v974, %v1745
        %v1747 = vpop.f32.mrb[0].mxu0
        %v1748 = vadd.f32 %v978, %v1747
        %v1749 = vpop.f32.mrb[0].mxu0
        %v1750 = vadd.f32 %v974, %v1749
        %v1751 = vpop.f32.mrb[0].mxu0
        %v1752 = vadd.f32 %v978, %v1751
        %1753 = vmatprep.mubr.bf16.mxu0 %v848
        %1754 = vmatmul.mubr.bf16.gmra.mrb[0].mxu0 %v847
        %v1755 = vpop.f32.mrb[0].mxu0
        %v1756 = vadd.f32 %v974, %v1755
        %v1757 = vpop.f32.mrb[0].mxu0
        %v1758 = vadd.f32 %v978, %v1757
        %v1759 = vpop.f32.mrb[0].mxu0
        %v1760 = vadd.f32 %v974, %v1759
        %v1761 = vpop.f32.mrb[0].mxu0
        %v1762 = vadd.f32 %v978, %v1761
        %1763 = vmatprep.mubr.bf16.mxu0 %v850
        %1764 = vmatmul.mubr.bf16.gmra.mrb[0].mxu0 %v849
        %v1765 = vpop.f32.mrb[0].mxu0
        %v1766 = vadd.f32 %v974, %v1765
        %v1767 = vpop.f32.mrb[0].mxu0
        %v1768 = vadd.f32 %v978, %v1767
        %v1769 = vpop.f32.mrb[0].mxu0
        %v1770 = vadd.f32 %v974, %v1769
        %v1771 = vpop.f32.mrb[0].mxu0
        %v1772 = vadd.f32 %v978, %v1771
        %1773 = vmatprep.mubr.bf16.mxu0 %v852
        %1774 = vmatmul.mubr.bf16.gmra.mrb[0].mxu0 %v851
        %v1775 = vpop.f32.mrb[0].mxu0
        %v1776 = vadd.f32 %v974, %v1775
        %v1777 = vpop.f32.mrb[0].mxu0
        %v1778 = vadd.f32 %v978, %v1777
        %v1779 = vpop.f32.mrb[0].mxu0
        %v1780 = vadd.f32 %v974, %v1779
        %v1781 = vpop.f32.mrb[0].mxu0
        %v1782 = vadd.f32 %v978, %v1781
        %1783 = vmatprep.mubr.bf16.mxu0 %v854
        %1784 = vmatmul.mubr.bf16.gmra.mrb[0].mxu0 %v853
        %v1785 = vpop.f32.mrb[0].mxu0
        %v1786 = vadd.f32 %v974, %v1785
        %v1787 = vpop.f32.mrb[0].mxu0
        %v1788 = vadd.f32 %v978, %v1787
        %v1789 = vpop.f32.mrb[0].mxu0
        %v1790 = vadd.f32 %v974, %v1789
        %v1791 = vpop.f32.mrb[0].mxu0
        %v1792 = vadd.f32 %v978, %v1791
        %1793 = vmatprep.mubr.bf16.mxu0 %v856
        %1794 = vmatmul.mubr.bf16.gmra.mrb[0].mxu0 %v855
        %v1795 = vpop.f32.mrb[0].mxu0
        %v1796 = vadd.f32 %v974, %v1795
        %v1797 = vpop.f32.mrb[0].mxu0
        %v1798 = vadd.f32 %v978, %v1797
        %v1799 = vpop.f32.mrb[0].mxu0
        %v1800 = vadd.f32 %v974, %v1799
        %v1801 = vpop.f32.mrb[0].mxu0
        %v1802 = vadd.f32 %v978, %v1801
        %1803 = vdwg.mxu0
        %v1804 = vld [vmem:[#allocation6] sm:$0xff]
        %v1805 = vld [vmem:[#allocation6 + $0x8] sm:$0xff]
        %v1806 = vld [vmem:[#allocation6 + $0x10] sm:$0xff]
        %v1807 = vld [vmem:[#allocation6 + $0x18] sm:$0xff]
        %v1808 = vld [vmem:[#allocation6 + $0x20] sm:$0xff]
        %v1809 = vld [vmem:[#allocation6 + $0x28] sm:$0xff]
        %v1810 = vld [vmem:[#allocation6 + $0x30] sm:$0xff]
        %v1811 = vld [vmem:[#allocation6 + $0x38] sm:$0xff]
        %v1812 = vld [vmem:[#allocation6 + $0x40] sm:$0xff]
        %v1813 = vld [vmem:[#allocation6 + $0x48] sm:$0xff]
        %v1814 = vld [vmem:[#allocation6 + $0x50] sm:$0xff]
        %v1815 = vld [vmem:[#allocation6 + $0x58] sm:$0xff]
        %v1816 = vld [vmem:[#allocation6 + $0x60] sm:$0xff]
        %v1817 = vld [vmem:[#allocation6 + $0x68] sm:$0xff]
        %v1818 = vld [vmem:[#allocation6 + $0x70] sm:$0xff]
        %v1819 = vld [vmem:[#allocation6 + $0x78] sm:$0xff]
        %v1820 = vld [vmem:[#allocation6 + $0x80] sm:$0xff]
        %v1821 = vld [vmem:[#allocation6 + $0x88] sm:$0xff]
        %v1822 = vld [vmem:[#allocation6 + $0x90] sm:$0xff]
        %v1823 = vld [vmem:[#allocation6 + $0x98] sm:$0xff]
        %v1824 = vld [vmem:[#allocation6 + $0xa0] sm:$0xff]
        %v1825 = vld [vmem:[#allocation6 + $0xa8] sm:$0xff]
        %v1826 = vld [vmem:[#allocation6 + $0xb0] sm:$0xff]
        %v1827 = vld [vmem:[#allocation6 + $0xb8] sm:$0xff]
        %v1828 = vld [vmem:[#allocation6 + $0xc0] sm:$0xff]
        %v1829 = vld [vmem:[#allocation6 + $0xc8] sm:$0xff]
        %v1830 = vld [vmem:[#allocation6 + $0xd0] sm:$0xff]
        %v1831 = vld [vmem:[#allocation6 + $0xd8] sm:$0xff]
        %v1832 = vld [vmem:[#allocation6 + $0xe0] sm:$0xff]
        %v1833 = vld [vmem:[#allocation6 + $0xe8] sm:$0xff]
        %v1834 = vld [vmem:[#allocation6 + $0xf0] sm:$0xff]
        %v1835 = vld [vmem:[#allocation6 + $0xf8] sm:$0xff]
        %v1836 = vpack.c.bf16 %v1806, %v1804
        %v1837 = vpack.c.bf16 %v1807, %v1805
        %v1838 = vpack.c.bf16 %v1810, %v1808
        %v1839 = vpack.c.bf16 %v1811, %v1809
        %v1840 = vpack.c.bf16 %v1814, %v1812
        %v1841 = vpack.c.bf16 %v1815, %v1813
        %v1842 = vpack.c.bf16 %v1818, %v1816
        %v1843 = vpack.c.bf16 %v1819, %v1817
        %v1844 = vpack.c.bf16 %v1822, %v1820
        %v1845 = vpack.c.bf16 %v1823, %v1821
        %v1846 = vpack.c.bf16 %v1826, %v1824
        %v1847 = vpack.c.bf16 %v1827, %v1825
        %v1848 = vpack.c.bf16 %v1830, %v1828
        %v1849 = vpack.c.bf16 %v1831, %v1829
        %v1850 = vpack.c.bf16 %v1834, %v1832
        %v1851 = vpack.c.bf16 %v1835, %v1833
        %v1852 = vld [vmem:[#allocation9] sm:$0xff]
        %v1853 = vld [vmem:[#allocation9 + $0x8] sm:$0xff]
        %v1854 = vld [vmem:[#allocation9 + $0x10] sm:$0xff]
        %v1855 = vld [vmem:[#allocation9 + $0x18] sm:$0xff]
        %v1856 = vld [vmem:[#allocation9 + $0x20] sm:$0xff]
        %v1857 = vld [vmem:[#allocation9 + $0x28] sm:$0xff]
        %v1858 = vld [vmem:[#allocation9 + $0x30] sm:$0xff]
        %v1859 = vld [vmem:[#allocation9 + $0x38] sm:$0xff]
        %v1860 = vld [vmem:[#allocation9 + $0x40] sm:$0xff]
        %v1861 = vld [vmem:[#allocation9 + $0x48] sm:$0xff]
        %v1862 = vld [vmem:[#allocation9 + $0x50] sm:$0xff]
        %v1863 = vld [vmem:[#allocation9 + $0x58] sm:$0xff]
        %v1864 = vld [vmem:[#allocation9 + $0x60] sm:$0xff]
        %v1865 = vld [vmem:[#allocation9 + $0x68] sm:$0xff]
        %v1866 = vld [vmem:[#allocation9 + $0x70] sm:$0xff]
        %v1867 = vld [vmem:[#allocation9 + $0x78] sm:$0xff]
        %v1868 = vld [vmem:[#allocation9 + $0x80] sm:$0xff]
        %v1869 = vld [vmem:[#allocation9 + $0x88] sm:$0xff]
        %v1870 = vld [vmem:[#allocation9 + $0x90] sm:$0xff]
        %v1871 = vld [vmem:[#allocation9 + $0x98] sm:$0xff]
        %v1872 = vld [vmem:[#allocation9 + $0xa0] sm:$0xff]
        %v1873 = vld [vmem:[#allocation9 + $0xa8] sm:$0xff]
        %v1874 = vld [vmem:[#allocation9 + $0xb0] sm:$0xff]
        %v1875 = vld [vmem:[#allocation9 + $0xb8] sm:$0xff]
        %v1876 = vld [vmem:[#allocation9 + $0xc0] sm:$0xff]
        %v1877 = vld [vmem:[#allocation9 + $0xc8] sm:$0xff]
        %v1878 = vld [vmem:[#allocation9 + $0xd0] sm:$0xff]
        %v1879 = vld [vmem:[#allocation9 + $0xd8] sm:$0xff]
        %v1880 = vld [vmem:[#allocation9 + $0xe0] sm:$0xff]
        %v1881 = vld [vmem:[#allocation9 + $0xe8] sm:$0xff]
        %v1882 = vld [vmem:[#allocation9 + $0xf0] sm:$0xff]
        %v1883 = vld [vmem:[#allocation9 + $0xf8] sm:$0xff]
        %v1916 = vunpack.c.l.b16 %v1852
        %v1917 = vunpack.c.h.b16 %v1852
        %v1918 = vunpack.c.l.b16 %v1853
        %v1919 = vunpack.c.h.b16 %v1853
        %v1920 = vunpack.c.l.b16 %v1854
        %v1921 = vunpack.c.h.b16 %v1854
        %v1922 = vunpack.c.l.b16 %v1855
        %v1923 = vunpack.c.h.b16 %v1855
        %v1924 = vunpack.c.l.b16 %v1856
        %v1925 = vunpack.c.h.b16 %v1856
        %v1926 = vunpack.c.l.b16 %v1857
        %v1927 = vunpack.c.h.b16 %v1857
        %v1928 = vunpack.c.l.b16 %v1858
        %v1929 = vunpack.c.h.b16 %v1858
        %v1930 = vunpack.c.l.b16 %v1859
        %v1931 = vunpack.c.h.b16 %v1859
        %v1932 = vunpack.c.l.b16 %v1860
        %v1933 = vunpack.c.h.b16 %v1860
        %v1934 = vunpack.c.l.b16 %v1861
        %v1935 = vunpack.c.h.b16 %v1861
        %v1936 = vunpack.c.l.b16 %v1862
        %v1937 = vunpack.c.h.b16 %v1862
        %v1938 = vunpack.c.l.b16 %v1863
        %v1939 = vunpack.c.h.b16 %v1863
        %v1940 = vunpack.c.l.b16 %v1864
        %v1941 = vunpack.c.h.b16 %v1864
        %v1942 = vunpack.c.l.b16 %v1865
        %v1943 = vunpack.c.h.b16 %v1865
        %v1944 = vunpack.c.l.b16 %v1866
        %v1945 = vunpack.c.h.b16 %v1866
        %v1946 = vunpack.c.l.b16 %v1867
        %v1947 = vunpack.c.h.b16 %v1867
        %v1948 = vunpack.c.l.b16 %v1868
        %v1949 = vunpack.c.h.b16 %v1868
        %v1950 = vunpack.c.l.b16 %v1869
        %v1951 = vunpack.c.h.b16 %v1869
        %v1952 = vunpack.c.l.b16 %v1870
        %v1953 = vunpack.c.h.b16 %v1870
        %v1954 = vunpack.c.l.b16 %v1871
        %v1955 = vunpack.c.h.b16 %v1871
        %v1956 = vunpack.c.l.b16 %v1872
        %v1957 = vunpack.c.h.b16 %v1872
        %v1958 = vunpack.c.l.b16 %v1873
        %v1959 = vunpack.c.h.b16 %v1873
        %v1960 = vunpack.c.l.b16 %v1874
        %v1961 = vunpack.c.h.b16 %v1874
        %v1962 = vunpack.c.l.b16 %v1875
        %v1963 = vunpack.c.h.b16 %v1875
        %v1964 = vunpack.c.l.b16 %v1876
        %v1965 = vunpack.c.h.b16 %v1876
        %v1966 = vunpack.c.l.b16 %v1877
        %v1967 = vunpack.c.h.b16 %v1877
        %v1968 = vunpack.c.l.b16 %v1878
        %v1969 = vunpack.c.h.b16 %v1878
        %v1970 = vunpack.c.l.b16 %v1879
        %v1971 = vunpack.c.h.b16 %v1879
        %v1972 = vunpack.c.l.b16 %v1880
        %v1973 = vunpack.c.h.b16 %v1880
        %v1974 = vunpack.c.l.b16 %v1881
        %v1975 = vunpack.c.h.b16 %v1881
        %v1976 = vunpack.c.l.b16 %v1882
        %v1977 = vunpack.c.h.b16 %v1882
        %v1978 = vunpack.c.l.b16 %v1883
        %v1979 = vunpack.c.h.b16 %v1883
        %v1980 = vpack.c.b16 %v1918, %v1916
        %v1981 = vpack.c.b16 %v1919, %v1917
        %v1982 = vpack.c.b16 %v1922, %v1920
        %v1983 = vpack.c.b16 %v1923, %v1921
        %v1984 = vpack.c.b16 %v1926, %v1924
        %v1985 = vpack.c.b16 %v1927, %v1925
        %v1986 = vpack.c.b16 %v1930, %v1928
        %v1987 = vpack.c.b16 %v1931, %v1929
        %v1988 = vpack.c.b16 %v1934, %v1932
        %v1989 = vpack.c.b16 %v1935, %v1933
        %v1990 = vpack.c.b16 %v1938, %v1936
        %v1991 = vpack.c.b16 %v1939, %v1937
        %v1992 = vpack.c.b16 %v1942, %v1940
        %v1993 = vpack.c.b16 %v1943, %v1941
        %v1994 = vpack.c.b16 %v1946, %v1944
        %v1995 = vpack.c.b16 %v1947, %v1945
        %v1996 = vpack.c.b16 %v1950, %v1948
        %v1997 = vpack.c.b16 %v1951, %v1949
        %v1998 = vpack.c.b16 %v1954, %v1952
        %v1999 = vpack.c.b16 %v1955, %v1953
        %v2000 = vpack.c.b16 %v1958, %v1956
        %v2001 = vpack.c.b16 %v1959, %v1957
        %v2002 = vpack.c.b16 %v1962, %v1960
        %v2003 = vpack.c.b16 %v1963, %v1961
        %v2004 = vpack.c.b16 %v1966, %v1964
        %v2005 = vpack.c.b16 %v1967, %v1965
        %v2006 = vpack.c.b16 %v1970, %v1968
        %v2007 = vpack.c.b16 %v1971, %v1969
        %v2008 = vpack.c.b16 %v1974, %v1972
        %v2009 = vpack.c.b16 %v1975, %v1973
        %v2010 = vpack.c.b16 %v1978, %v1976
        %v2011 = vpack.c.b16 %v1979, %v1977
        %2044 = vmatprep.subr.bf16.mxu0 %v1981
        %2045 = vmatpush1.bf16.msra.mxu0 %v1980
        %2046 = vmatprep.subr.bf16.mxu0 %v1983
        %2047 = vmatpush1.bf16.msra.mxu0 %v1982
        %2048 = vmatprep.subr.bf16.mxu0 %v1985
        %2049 = vmatpush1.bf16.msra.mxu0 %v1984
        %2050 = vmatprep.subr.bf16.mxu0 %v1987
        %2051 = vmatpush1.bf16.msra.mxu0 %v1986
        %2052 = vmatprep.subr.bf16.mxu0 %v1989
        %2053 = vmatpush1.bf16.msra.mxu0 %v1988
        %2054 = vmatprep.subr.bf16.mxu0 %v1991
        %2055 = vmatpush1.bf16.msra.mxu0 %v1990
        %2056 = vmatprep.subr.bf16.mxu0 %v1993
        %2057 = vmatpush1.bf16.msra.mxu0 %v1992
        %2058 = vmatprep.subr.bf16.mxu0 %v1995
        %2059 = vmatpush1.bf16.msra.mxu0 %v1994
        %2060 = vmatprep.subr.bf16.mxu0 %v1997
        %2061 = vmatpush1.bf16.msra.mxu0 %v1996
        %2062 = vmatprep.subr.bf16.mxu0 %v1999
        %2063 = vmatpush1.bf16.msra.mxu0 %v1998
        %2064 = vmatprep.subr.bf16.mxu0 %v2001
        %2065 = vmatpush1.bf16.msra.mxu0 %v2000
        %2066 = vmatprep.subr.bf16.mxu0 %v2003
        %2067 = vmatpush1.bf16.msra.mxu0 %v2002
        %2068 = vmatprep.subr.bf16.mxu0 %v2005
        %2069 = vmatpush1.bf16.msra.mxu0 %v2004
        %2070 = vmatprep.subr.bf16.mxu0 %v2007
        %2071 = vmatpush1.bf16.msra.mxu0 %v2006
        %2072 = vmatprep.subr.bf16.mxu0 %v2009
        %2073 = vmatpush1.bf16.msra.mxu0 %v2008
        %2074 = vmatprep.subr.bf16.mxu0 %v2011
        %2075 = vmatpush1.bf16.msra.mxu0 %v2010
        %2076 = vmatprep.mubr.bf16.mxu0 %v1837
        %2077 = vmatmul.mubr.bf16.gmra.mrb[0].mxu0 %v1836
        %v2078 = vpop.f32.mrb[0].mxu0
        %v2079 = vadd.f32 0.0, %v2078
        %v2080 = vpop.f32.mrb[0].mxu0
        %v2081 = vadd.f32 0.0, %v2080
        %v2082 = vpop.f32.mrb[0].mxu0
        %v2083 = vadd.f32 0.0, %v2082
        %v2084 = vpop.f32.mrb[0].mxu0
        %v2085 = vadd.f32 0.0, %v2084
        %2086 = vmatprep.mubr.bf16.mxu0 %v1839
        %2087 = vmatmul.mubr.bf16.gmra.mrb[0].mxu0 %v1838
        %v2088 = vpop.f32.mrb[0].mxu0
        %v2089 = vadd.f32 0.0, %v2088
        %v2090 = vpop.f32.mrb[0].mxu0
        %v2091 = vadd.f32 0.0, %v2090
        %v2092 = vpop.f32.mrb[0].mxu0
        %v2093 = vadd.f32 0.0, %v2092
        %v2094 = vpop.f32.mrb[0].mxu0
        %v2095 = vadd.f32 0.0, %v2094
        %2096 = vmatprep.mubr.bf16.mxu0 %v1841
        %2097 = vmatmul.mubr.bf16.gmra.mrb[0].mxu0 %v1840
        %v2098 = vpop.f32.mrb[0].mxu0
        %v2099 = vadd.f32 0.0, %v2098
        %v2100 = vpop.f32.mrb[0].mxu0
        %v2101 = vadd.f32 0.0, %v2100
        %v2102 = vpop.f32.mrb[0].mxu0
        %v2103 = vadd.f32 0.0, %v2102
        %v2104 = vpop.f32.mrb[0].mxu0
        %v2105 = vadd.f32 0.0, %v2104
        %2106 = vmatprep.mubr.bf16.mxu0 %v1843
        %2107 = vmatmul.mubr.bf16.gmra.mrb[0].mxu0 %v1842
        %v2108 = vpop.f32.mrb[0].mxu0
        %v2109 = vadd.f32 0.0, %v2108
        %v2110 = vpop.f32.mrb[0].mxu0
        %v2111 = vadd.f32 0.0, %v2110
        %v2112 = vpop.f32.mrb[0].mxu0
        %v2113 = vadd.f32 0.0, %v2112
        %v2114 = vpop.f32.mrb[0].mxu0
        %v2115 = vadd.f32 0.0, %v2114
        %2116 = vmatprep.mubr.bf16.mxu0 %v1845
        %2117 = vmatmul.mubr.bf16.gmra.mrb[0].mxu0 %v1844
        %v2118 = vpop.f32.mrb[0].mxu0
        %v2119 = vadd.f32 0.0, %v2118
        %v2120 = vpop.f32.mrb[0].mxu0
        %v2121 = vadd.f32 0.0, %v2120
        %v2122 = vpop.f32.mrb[0].mxu0
        %v2123 = vadd.f32 0.0, %v2122
        %v2124 = vpop.f32.mrb[0].mxu0
        %v2125 = vadd.f32 0.0, %v2124
        %2126 = vmatprep.mubr.bf16.mxu0 %v1847
        %2127 = vmatmul.mubr.bf16.gmra.mrb[0].mxu0 %v1846
        %v2128 = vpop.f32.mrb[0].mxu0
        %v2129 = vadd.f32 0.0, %v2128
        %v2130 = vpop.f32.mrb[0].mxu0
        %v2131 = vadd.f32 0.0, %v2130
        %v2132 = vpop.f32.mrb[0].mxu0
        %v2133 = vadd.f32 0.0, %v2132
        %v2134 = vpop.f32.mrb[0].mxu0
        %v2135 = vadd.f32 0.0, %v2134
        %2136 = vmatprep.mubr.bf16.mxu0 %v1849
        %2137 = vmatmul.mubr.bf16.gmra.mrb[0].mxu0 %v1848
        %v2138 = vpop.f32.mrb[0].mxu0
        %v2139 = vadd.f32 0.0, %v2138
        %v2140 = vpop.f32.mrb[0].mxu0
        %v2141 = vadd.f32 0.0, %v2140
        %v2142 = vpop.f32.mrb[0].mxu0
        %v2143 = vadd.f32 0.0, %v2142
        %v2144 = vpop.f32.mrb[0].mxu0
        %v2145 = vadd.f32 0.0, %v2144
        %2146 = vmatprep.mubr.bf16.mxu0 %v1851
        %2147 = vmatmul.mubr.bf16.gmra.mrb[0].mxu0 %v1850
        %v2148 = vpop.f32.mrb[0].mxu0
        %v2149 = vadd.f32 0.0, %v2148
        %v2150 = vpop.f32.mrb[0].mxu0
        %v2151 = vadd.f32 0.0, %v2150
        %v2152 = vpop.f32.mrb[0].mxu0
        %v2153 = vadd.f32 0.0, %v2152
        %v2154 = vpop.f32.mrb[0].mxu0
        %v2155 = vadd.f32 0.0, %v2154
        %2156 = vdwg.mxu0
        %v2157 = vmul.f32 %v1500, 0.0625
        %v2158 = vmul.f32 %v1502, 0.0625
        %v2159 = vmul.f32 %v1504, 0.0625
        %v2160 = vmul.f32 %v1506, 0.0625
        %v2161 = vmul.f32 %v1510, 0.0625
        %v2162 = vmul.f32 %v1512, 0.0625
        %v2163 = vmul.f32 %v1514, 0.0625
        %v2164 = vmul.f32 %v1516, 0.0625
        %v2165 = vmul.f32 %v1520, 0.0625
        %v2166 = vmul.f32 %v1522, 0.0625
        %v2167 = vmul.f32 %v1524, 0.0625
        %v2168 = vmul.f32 %v1526, 0.0625
        %v2169 = vmul.f32 %v1530, 0.0625
        %v2170 = vmul.f32 %v1532, 0.0625
        %v2171 = vmul.f32 %v1534, 0.0625
        %v2172 = vmul.f32 %v1536, 0.0625
        %v2173 = vmul.f32 %v1540, 0.0625
        %v2174 = vmul.f32 %v1542, 0.0625
        %v2175 = vmul.f32 %v1544, 0.0625
        %v2176 = vmul.f32 %v1546, 0.0625
        %v2177 = vmul.f32 %v1550, 0.0625
        %v2178 = vmul.f32 %v1552, 0.0625
        %v2179 = vmul.f32 %v1554, 0.0625
        %v2180 = vmul.f32 %v1556, 0.0625
        %v2181 = vmul.f32 %v1560, 0.0625
        %v2182 = vmul.f32 %v1562, 0.0625
        %v2183 = vmul.f32 %v1564, 0.0625
        %v2184 = vmul.f32 %v1566, 0.0625
        %v2185 = vmul.f32 %v1570, 0.0625
        %v2186 = vmul.f32 %v1572, 0.0625
        %v2187 = vmul.f32 %v1574, 0.0625
        %v2188 = vmul.f32 %v1576, 0.0625
        %v2189 = vld [vmem:[%s5] sm:$0xf]
        %v2190 = vmul.f32 %v2189, 0.0625
        %v2191 = vld [vmem:[%s6] sm:$0xf]
        %v2192 = vmul.f32 %v2191, 0.0625
        %2209 = vrot.lane.b32.xlu0 %v2157, 64
        %v2210 = vpop.permute.xlu0 %2209
        %2211 = vrot.lane.b32.xlu0 %v2159, 64
        %v2212 = vpop.permute.xlu0 %2211
        %2213 = vrot.lane.b32.xlu0 %v2161, 64
        %v2214 = vpop.permute.xlu0 %2213
        %2215 = vrot.lane.b32.xlu0 %v2163, 64
        %v2216 = vpop.permute.xlu0 %2215
        %2217 = vrot.lane.b32.xlu0 %v2165, 64
        %v2218 = vpop.permute.xlu0 %2217
        %2219 = vrot.lane.b32.xlu0 %v2167, 64
        %v2220 = vpop.permute.xlu0 %2219
        %2221 = vrot.lane.b32.xlu0 %v2169, 64
        %v2222 = vpop.permute.xlu0 %2221
        %2223 = vrot.lane.b32.xlu0 %v2171, 64
        %v2224 = vpop.permute.xlu0 %2223
        %2225 = vrot.lane.b32.xlu0 %v2173, 64
        %v2226 = vpop.permute.xlu0 %2225
        %2227 = vrot.lane.b32.xlu0 %v2175, 64
        %v2228 = vpop.permute.xlu0 %2227
        %2229 = vrot.lane.b32.xlu0 %v2177, 64
        %v2230 = vpop.permute.xlu0 %2229
        %2231 = vrot.lane.b32.xlu0 %v2179, 64
        %v2232 = vpop.permute.xlu0 %2231
        %2233 = vrot.lane.b32.xlu0 %v2181, 64
        %v2234 = vpop.permute.xlu0 %2233
        %2235 = vrot.lane.b32.xlu0 %v2183, 64
        %v2236 = vpop.permute.xlu0 %2235
        %2237 = vrot.lane.b32.xlu0 %v2185, 64
        %v2238 = vpop.permute.xlu0 %2237
        %2239 = vrot.lane.b32.xlu0 %v2187, 64
        %v2240 = vpop.permute.xlu0 %2239
        %2273 = vrot.lane.b32.xlu0 %v2158, 64
        %v2274 = vpop.permute.xlu0 %2273
        %2275 = vrot.lane.b32.xlu0 %v2160, 64
        %v2276 = vpop.permute.xlu0 %2275
        %2277 = vrot.lane.b32.xlu0 %v2162, 64
        %v2278 = vpop.permute.xlu0 %2277
        %2279 = vrot.lane.b32.xlu0 %v2164, 64
        %v2280 = vpop.permute.xlu0 %2279
        %2281 = vrot.lane.b32.xlu0 %v2166, 64
        %v2282 = vpop.permute.xlu0 %2281
        %2283 = vrot.lane.b32.xlu0 %v2168, 64
        %v2284 = vpop.permute.xlu0 %2283
        %2285 = vrot.lane.b32.xlu0 %v2170, 64
        %v2286 = vpop.permute.xlu0 %2285
        %2287 = vrot.lane.b32.xlu0 %v2172, 64
        %v2288 = vpop.permute.xlu0 %2287
        %2289 = vrot.lane.b32.xlu0 %v2174, 64
        %v2290 = vpop.permute.xlu0 %2289
        %2291 = vrot.lane.b32.xlu0 %v2176, 64
        %v2292 = vpop.permute.xlu0 %2291
        %2293 = vrot.lane.b32.xlu0 %v2178, 64
        %v2294 = vpop.permute.xlu0 %2293
        %2295 = vrot.lane.b32.xlu0 %v2180, 64
        %v2296 = vpop.permute.xlu0 %2295
        %2297 = vrot.lane.b32.xlu0 %v2182, 64
        %v2298 = vpop.permute.xlu0 %2297
        %2299 = vrot.lane.b32.xlu0 %v2184, 64
        %v2300 = vpop.permute.xlu0 %2299
        %2301 = vrot.lane.b32.xlu0 %v2186, 64
        %v2302 = vpop.permute.xlu0 %2301
        %2303 = vrot.lane.b32.xlu0 %v2188, 64
        %v2304 = vpop.permute.xlu0 %2303
        %2337 = vrot.lane.b32.xlu0 %v1613, 64
        %v2338 = vpop.permute.xlu0 %2337
        %2339 = vrot.lane.b32.xlu0 %v1617, 64
        %v2340 = vpop.permute.xlu0 %2339
        %2341 = vrot.lane.b32.xlu0 %v1623, 64
        %v2342 = vpop.permute.xlu0 %2341
        %2343 = vrot.lane.b32.xlu0 %v1627, 64
        %v2344 = vpop.permute.xlu0 %2343
        %2345 = vrot.lane.b32.xlu0 %v1633, 64
        %v2346 = vpop.permute.xlu0 %2345
        %2347 = vrot.lane.b32.xlu0 %v1637, 64
        %v2348 = vpop.permute.xlu0 %2347
        %2349 = vrot.lane.b32.xlu0 %v1643, 64
        %v2350 = vpop.permute.xlu0 %2349
        %2351 = vrot.lane.b32.xlu0 %v1647, 64
        %v2352 = vpop.permute.xlu0 %2351
        %2353 = vrot.lane.b32.xlu0 %v1653, 64
        %v2354 = vpop.permute.xlu0 %2353
        %2355 = vrot.lane.b32.xlu0 %v1657, 64
        %v2356 = vpop.permute.xlu0 %2355
        %2357 = vrot.lane.b32.xlu0 %v1663, 64
        %v2358 = vpop.permute.xlu0 %2357
        %2359 = vrot.lane.b32.xlu0 %v1667, 64
        %v2360 = vpop.permute.xlu0 %2359
        %2361 = vrot.lane.b32.xlu0 %v1673, 64
        %v2362 = vpop.permute.xlu0 %2361
        %2363 = vrot.lane.b32.xlu0 %v1677, 64
        %v2364 = vpop.permute.xlu0 %2363
        %2365 = vrot.lane.b32.xlu0 %v1683, 64
        %v2366 = vpop.permute.xlu0 %2365
        %2367 = vrot.lane.b32.xlu0 %v1687, 64
        %v2368 = vpop.permute.xlu0 %2367
        %2401 = vrot.lane.b32.xlu0 %v1615, 64
        %v2402 = vpop.permute.xlu0 %2401
        %2403 = vrot.lane.b32.xlu0 %v1619, 64
        %v2404 = vpop.permute.xlu0 %2403
        %2405 = vrot.lane.b32.xlu0 %v1625, 64
        %v2406 = vpop.permute.xlu0 %2405
        %2407 = vrot.lane.b32.xlu0 %v1629, 64
        %v2408 = vpop.permute.xlu0 %2407
        %2409 = vrot.lane.b32.xlu0 %v1635, 64
        %v2410 = vpop.permute.xlu0 %2409
        %2411 = vrot.lane.b32.xlu0 %v1639, 64
        %v2412 = vpop.permute.xlu0 %2411
        %2413 = vrot.lane.b32.xlu0 %v1645, 64
        %v2414 = vpop.permute.xlu0 %2413
        %2415 = vrot.lane.b32.xlu0 %v1649, 64
        %v2416 = vpop.permute.xlu0 %2415
        %2417 = vrot.lane.b32.xlu0 %v1655, 64
        %v2418 = vpop.permute.xlu0 %2417
        %2419 = vrot.lane.b32.xlu0 %v1659, 64
        %v2420 = vpop.permute.xlu0 %2419
        %2421 = vrot.lane.b32.xlu0 %v1665, 64
        %v2422 = vpop.permute.xlu0 %2421
        %2423 = vrot.lane.b32.xlu0 %v1669, 64
        %v2424 = vpop.permute.xlu0 %2423
        %2425 = vrot.lane.b32.xlu0 %v1675, 64
        %v2426 = vpop.permute.xlu0 %2425
        %2427 = vrot.lane.b32.xlu0 %v1679, 64
        %v2428 = vpop.permute.xlu0 %2427
        %2429 = vrot.lane.b32.xlu0 %v1685, 64
        %v2430 = vpop.permute.xlu0 %2429
        %2431 = vrot.lane.b32.xlu0 %v1689, 64
        %v2432 = vpop.permute.xlu0 %2431
        %v2449 = vpack.c.bf16 %v1617, %v1613
        %v2450 = vpack.c.bf16 %v1627, %v1623
        %v2451 = vpack.c.bf16 %v1637, %v1633
        %v2452 = vpack.c.bf16 %v1647, %v1643
        %v2453 = vpack.c.bf16 %v1657, %v1653
        %v2454 = vpack.c.bf16 %v1667, %v1663
        %v2455 = vpack.c.bf16 %v1677, %v1673
        %v2456 = vpack.c.bf16 %v1687, %v1683
        %v2457 = vpack.c.bf16 %v2340, %v2338
        %v2458 = vpack.c.bf16 %v2344, %v2342
        %v2459 = vpack.c.bf16 %v2348, %v2346
        %v2460 = vpack.c.bf16 %v2352, %v2350
        %v2461 = vpack.c.bf16 %v2356, %v2354
        %v2462 = vpack.c.bf16 %v2360, %v2358
        %v2463 = vpack.c.bf16 %v2364, %v2362
        %v2464 = vpack.c.bf16 %v2368, %v2366
        %v2465 = vpack.c.bf16 %v1619, %v1615
        %v2466 = vpack.c.bf16 %v1629, %v1625
        %v2467 = vpack.c.bf16 %v1639, %v1635
        %v2468 = vpack.c.bf16 %v1649, %v1645
        %v2469 = vpack.c.bf16 %v1659, %v1655
        %v2470 = vpack.c.bf16 %v1669, %v1665
        %v2471 = vpack.c.bf16 %v1679, %v1675
        %v2472 = vpack.c.bf16 %v1689, %v1685
        %v2473 = vpack.c.bf16 %v2404, %v2402
        %v2474 = vpack.c.bf16 %v2408, %v2406
        %v2475 = vpack.c.bf16 %v2412, %v2410
        %v2476 = vpack.c.bf16 %v2416, %v2414
        %v2477 = vpack.c.bf16 %v2420, %v2418
        %v2478 = vpack.c.bf16 %v2424, %v2422
        %v2479 = vpack.c.bf16 %v2428, %v2426
        %v2480 = vpack.c.bf16 %v2432, %v2430
        %2497 = vrot.lane.b32.xlu0 %v1726, 64
        %v2498 = vpop.permute.xlu0 %2497
        %2499 = vrot.lane.b32.xlu0 %v1730, 64
        %v2500 = vpop.permute.xlu0 %2499
        %2501 = vrot.lane.b32.xlu0 %v1736, 64
        %v2502 = vpop.permute.xlu0 %2501
        %2503 = vrot.lane.b32.xlu0 %v1740, 64
        %v2504 = vpop.permute.xlu0 %2503
        %2505 = vrot.lane.b32.xlu0 %v1746, 64
        %v2506 = vpop.permute.xlu0 %2505
        %2507 = vrot.lane.b32.xlu0 %v1750, 64
        %v2508 = vpop.permute.xlu0 %2507
        %2509 = vrot.lane.b32.xlu0 %v1756, 64
        %v2510 = vpop.permute.xlu0 %2509
        %2511 = vrot.lane.b32.xlu0 %v1760, 64
        %v2512 = vpop.permute.xlu0 %2511
        %2513 = vrot.lane.b32.xlu0 %v1766, 64
        %v2514 = vpop.permute.xlu0 %2513
        %2515 = vrot.lane.b32.xlu0 %v1770, 64
        %v2516 = vpop.permute.xlu0 %2515
        %2517 = vrot.lane.b32.xlu0 %v1776, 64
        %v2518 = vpop.permute.xlu0 %2517
        %2519 = vrot.lane.b32.xlu0 %v1780, 64
        %v2520 = vpop.permute.xlu0 %2519
        %2521 = vrot.lane.b32.xlu0 %v1786, 64
        %v2522 = vpop.permute.xlu0 %2521
        %2523 = vrot.lane.b32.xlu0 %v1790, 64
        %v2524 = vpop.permute.xlu0 %2523
        %2525 = vrot.lane.b32.xlu0 %v1796, 64
        %v2526 = vpop.permute.xlu0 %2525
        %2527 = vrot.lane.b32.xlu0 %v1800, 64
        %v2528 = vpop.permute.xlu0 %2527
        %2561 = vrot.lane.b32.xlu0 %v1728, 64
        %v2562 = vpop.permute.xlu0 %2561
        %2563 = vrot.lane.b32.xlu0 %v1732, 64
        %v2564 = vpop.permute.xlu0 %2563
        %2565 = vrot.lane.b32.xlu0 %v1738, 64
        %v2566 = vpop.permute.xlu0 %2565
        %2567 = vrot.lane.b32.xlu0 %v1742, 64
        %v2568 = vpop.permute.xlu0 %2567
        %2569 = vrot.lane.b32.xlu0 %v1748, 64
        %v2570 = vpop.permute.xlu0 %2569
        %2571 = vrot.lane.b32.xlu0 %v1752, 64
        %v2572 = vpop.permute.xlu0 %2571
        %2573 = vrot.lane.b32.xlu0 %v1758, 64
        %v2574 = vpop.permute.xlu0 %2573
        %2575 = vrot.lane.b32.xlu0 %v1762, 64
        %v2576 = vpop.permute.xlu0 %2575
        %2577 = vrot.lane.b32.xlu0 %v1768, 64
        %v2578 = vpop.permute.xlu0 %2577
        %2579 = vrot.lane.b32.xlu0 %v1772, 64
        %v2580 = vpop.permute.xlu0 %2579
        %2581 = vrot.lane.b32.xlu0 %v1778, 64
        %v2582 = vpop.permute.xlu0 %2581
        %2583 = vrot.lane.b32.xlu0 %v1782, 64
        %v2584 = vpop.permute.xlu0 %2583
        %2585 = vrot.lane.b32.xlu0 %v1788, 64
        %v2586 = vpop.permute.xlu0 %2585
        %2587 = vrot.lane.b32.xlu0 %v1792, 64
        %v2588 = vpop.permute.xlu0 %2587
        %2589 = vrot.lane.b32.xlu0 %v1798, 64
        %v2590 = vpop.permute.xlu0 %2589
        %2591 = vrot.lane.b32.xlu0 %v1802, 64
        %v2592 = vpop.permute.xlu0 %2591
        %v2609 = vpack.c.bf16 %v1730, %v1726
        %v2610 = vpack.c.bf16 %v1740, %v1736
        %v2611 = vpack.c.bf16 %v1750, %v1746
        %v2612 = vpack.c.bf16 %v1760, %v1756
        %v2613 = vpack.c.bf16 %v1770, %v1766
        %v2614 = vpack.c.bf16 %v1780, %v1776
        %v2615 = vpack.c.bf16 %v1790, %v1786
        %v2616 = vpack.c.bf16 %v1800, %v1796
        %v2617 = vpack.c.bf16 %v2500, %v2498
        %v2618 = vpack.c.bf16 %v2504, %v2502
        %v2619 = vpack.c.bf16 %v2508, %v2506
        %v2620 = vpack.c.bf16 %v2512, %v2510
        %v2621 = vpack.c.bf16 %v2516, %v2514
        %v2622 = vpack.c.bf16 %v2520, %v2518
        %v2623 = vpack.c.bf16 %v2524, %v2522
        %v2624 = vpack.c.bf16 %v2528, %v2526
        %v2625 = vpack.c.bf16 %v1732, %v1728
        %v2626 = vpack.c.bf16 %v1742, %v1738
        %v2627 = vpack.c.bf16 %v1752, %v1748
        %v2628 = vpack.c.bf16 %v1762, %v1758
        %v2629 = vpack.c.bf16 %v1772, %v1768
        %v2630 = vpack.c.bf16 %v1782, %v1778
        %v2631 = vpack.c.bf16 %v1792, %v1788
        %v2632 = vpack.c.bf16 %v1802, %v1798
        %v2633 = vpack.c.bf16 %v2564, %v2562
        %v2634 = vpack.c.bf16 %v2568, %v2566
        %v2635 = vpack.c.bf16 %v2572, %v2570
        %v2636 = vpack.c.bf16 %v2576, %v2574
        %v2637 = vpack.c.bf16 %v2580, %v2578
        %v2638 = vpack.c.bf16 %v2584, %v2582
        %v2639 = vpack.c.bf16 %v2588, %v2586
        %v2640 = vpack.c.bf16 %v2592, %v2590
        %2657 = vrot.lane.b32.xlu0 %v2079, 64
        %v2658 = vpop.permute.xlu0 %2657
        %2659 = vrot.lane.b32.xlu0 %v2083, 64
        %v2660 = vpop.permute.xlu0 %2659
        %2661 = vrot.lane.b32.xlu0 %v2089, 64
        %v2662 = vpop.permute.xlu0 %2661
        %2663 = vrot.lane.b32.xlu0 %v2093, 64
        %v2664 = vpop.permute.xlu0 %2663
        %2665 = vrot.lane.b32.xlu0 %v2099, 64
        %v2666 = vpop.permute.xlu0 %2665
        %2667 = vrot.lane.b32.xlu0 %v2103, 64
        %v2668 = vpop.permute.xlu0 %2667
        %2669 = vrot.lane.b32.xlu0 %v2109, 64
        %v2670 = vpop.permute.xlu0 %2669
        %2671 = vrot.lane.b32.xlu0 %v2113, 64
        %v2672 = vpop.permute.xlu0 %2671
        %2673 = vrot.lane.b32.xlu0 %v2119, 64
        %v2674 = vpop.permute.xlu0 %2673
        %2675 = vrot.lane.b32.xlu0 %v2123, 64
        %v2676 = vpop.permute.xlu0 %2675
        %2677 = vrot.lane.b32.xlu0 %v2129, 64
        %v2678 = vpop.permute.xlu0 %2677
        %2679 = vrot.lane.b32.xlu0 %v2133, 64
        %v2680 = vpop.permute.xlu0 %2679
        %2681 = vrot.lane.b32.xlu0 %v2139, 64
        %v2682 = vpop.permute.xlu0 %2681
        %2683 = vrot.lane.b32.xlu0 %v2143, 64
        %v2684 = vpop.permute.xlu0 %2683
        %2685 = vrot.lane.b32.xlu0 %v2149, 64
        %v2686 = vpop.permute.xlu0 %2685
        %2687 = vrot.lane.b32.xlu0 %v2153, 64
        %v2688 = vpop.permute.xlu0 %2687
        %2721 = vrot.lane.b32.xlu0 %v2081, 64
        %v2722 = vpop.permute.xlu0 %2721
        %2723 = vrot.lane.b32.xlu0 %v2085, 64
        %v2724 = vpop.permute.xlu0 %2723
        %2725 = vrot.lane.b32.xlu0 %v2091, 64
        %v2726 = vpop.permute.xlu0 %2725
        %2727 = vrot.lane.b32.xlu0 %v2095, 64
        %v2728 = vpop.permute.xlu0 %2727
        %2729 = vrot.lane.b32.xlu0 %v2101, 64
        %v2730 = vpop.permute.xlu0 %2729
        %2731 = vrot.lane.b32.xlu0 %v2105, 64
        %v2732 = vpop.permute.xlu0 %2731
        %2733 = vrot.lane.b32.xlu0 %v2111, 64
        %v2734 = vpop.permute.xlu0 %2733
        %2735 = vrot.lane.b32.xlu0 %v2115, 64
        %v2736 = vpop.permute.xlu0 %2735
        %2737 = vrot.lane.b32.xlu0 %v2121, 64
        %v2738 = vpop.permute.xlu0 %2737
        %2739 = vrot.lane.b32.xlu0 %v2125, 64
        %v2740 = vpop.permute.xlu0 %2739
        %2741 = vrot.lane.b32.xlu0 %v2131, 64
        %v2742 = vpop.permute.xlu0 %2741
        %2743 = vrot.lane.b32.xlu0 %v2135, 64
        %v2744 = vpop.permute.xlu0 %2743
        %2745 = vrot.lane.b32.xlu0 %v2141, 64
        %v2746 = vpop.permute.xlu0 %2745
        %2747 = vrot.lane.b32.xlu0 %v2145, 64
        %v2748 = vpop.permute.xlu0 %2747
        %2749 = vrot.lane.b32.xlu0 %v2151, 64
        %v2750 = vpop.permute.xlu0 %2749
        %2751 = vrot.lane.b32.xlu0 %v2155, 64
        %v2752 = vpop.permute.xlu0 %2751
        %v2769 = vpack.c.bf16 %v2083, %v2079
        %v2770 = vpack.c.bf16 %v2093, %v2089
        %v2771 = vpack.c.bf16 %v2103, %v2099
        %v2772 = vpack.c.bf16 %v2113, %v2109
        %v2773 = vpack.c.bf16 %v2123, %v2119
        %v2774 = vpack.c.bf16 %v2133, %v2129
        %v2775 = vpack.c.bf16 %v2143, %v2139
        %v2776 = vpack.c.bf16 %v2153, %v2149
        %v2777 = vpack.c.bf16 %v2660, %v2658
        %v2778 = vpack.c.bf16 %v2664, %v2662
        %v2779 = vpack.c.bf16 %v2668, %v2666
        %v2780 = vpack.c.bf16 %v2672, %v2670
        %v2781 = vpack.c.bf16 %v2676, %v2674
        %v2782 = vpack.c.bf16 %v2680, %v2678
        %v2783 = vpack.c.bf16 %v2684, %v2682
        %v2784 = vpack.c.bf16 %v2688, %v2686
        %v2785 = vpack.c.bf16 %v2085, %v2081
        %v2786 = vpack.c.bf16 %v2095, %v2091
        %v2787 = vpack.c.bf16 %v2105, %v2101
        %v2788 = vpack.c.bf16 %v2115, %v2111
        %v2789 = vpack.c.bf16 %v2125, %v2121
        %v2790 = vpack.c.bf16 %v2135, %v2131
        %v2791 = vpack.c.bf16 %v2145, %v2141
        %v2792 = vpack.c.bf16 %v2155, %v2151
        %v2793 = vpack.c.bf16 %v2724, %v2722
        %v2794 = vpack.c.bf16 %v2728, %v2726
        %v2795 = vpack.c.bf16 %v2732, %v2730
        %v2796 = vpack.c.bf16 %v2736, %v2734
        %v2797 = vpack.c.bf16 %v2740, %v2738
        %v2798 = vpack.c.bf16 %v2744, %v2742
        %v2799 = vpack.c.bf16 %v2748, %v2746
        %v2800 = vpack.c.bf16 %v2752, %v2750
        %v2803 = vunpack.c.l.s4 1966171168
        %v2804 = vunpack.c.0.s8 %v2803
        %v2805 = vlaneseq
        %v2806 = vshrl.u32 %v2805, 7
        %v2807 = vsub.s32 %v2804, %v2806
        %v2808 = vrot.slane %v2190, %v2807
        %v2809 = vcombine.high %v2808, %v2808
        %v2811 = vunpack.c.l.s4 1966171168
        %v2812 = vunpack.c.0.s8 %v2811
        %v2813 = vlaneseq
        %v2814 = vshrl.u32 %v2813, 7
        %v2815 = vsub.s32 %v2812, %v2814
        %v2816 = vrot.slane %v2808, %v2815
        %v2818 = vunpack.c.l.s4 1966171168
        %v2819 = vunpack.c.0.s8 %v2818
        %v2820 = vlaneseq
        %v2821 = vshrl.u32 %v2820, 7
        %v2822 = vsub.s32 %v2819, %v2821
        %v2823 = vrot.slane %v2809, %v2822
        %v2824 = vcombine.high %v2816, %v2816
        %v2825 = vcombine.high %v2823, %v2823
        %v2826 = vlaneseq
        %v2827 = vshrl.u32 %v2826, 7
        %v2828 = vsub.s32 0, %v2827
        %v2829 = vrot.slane %v2816, %v2828
        %v2830 = vlaneseq
        %v2831 = vshrl.u32 %v2830, 7
        %v2832 = vsub.s32 0, %v2831
        %v2833 = vrot.slane %v2823, %v2832
        %v2834 = vlaneseq
        %v2835 = vshrl.u32 %v2834, 7
        %v2836 = vsub.s32 0, %v2835
        %v2837 = vrot.slane %v2824, %v2836
        %v2838 = vlaneseq
        %v2839 = vshrl.u32 %v2838, 7
        %v2840 = vsub.s32 0, %v2839
        %v2841 = vrot.slane %v2825, %v2840
        %v2846 = vadd.f32 %v2157, %v2829
        %v2847 = vadd.f32 %v2159, %v2829
        %v2848 = vadd.f32 %v2161, %v2829
        %v2849 = vadd.f32 %v2163, %v2829
        %v2850 = vadd.f32 %v2165, %v2829
        %v2851 = vadd.f32 %v2167, %v2829
        %v2852 = vadd.f32 %v2169, %v2829
        %v2853 = vadd.f32 %v2171, %v2829
        %v2854 = vadd.f32 %v2173, %v2829
        %v2855 = vadd.f32 %v2175, %v2829
        %v2856 = vadd.f32 %v2177, %v2829
        %v2857 = vadd.f32 %v2179, %v2829
        %v2858 = vadd.f32 %v2181, %v2829
        %v2859 = vadd.f32 %v2183, %v2829
        %v2860 = vadd.f32 %v2185, %v2829
        %v2861 = vadd.f32 %v2187, %v2829
        %v2862 = vadd.f32 %v2210, %v2833
        %v2863 = vadd.f32 %v2212, %v2833
        %v2864 = vadd.f32 %v2214, %v2833
        %v2865 = vadd.f32 %v2216, %v2833
        %v2866 = vadd.f32 %v2218, %v2833
        %v2867 = vadd.f32 %v2220, %v2833
        %v2868 = vadd.f32 %v2222, %v2833
        %v2869 = vadd.f32 %v2224, %v2833
        %v2870 = vadd.f32 %v2226, %v2833
        %v2871 = vadd.f32 %v2228, %v2833
        %v2872 = vadd.f32 %v2230, %v2833
        %v2873 = vadd.f32 %v2232, %v2833
        %v2874 = vadd.f32 %v2234, %v2833
        %v2875 = vadd.f32 %v2236, %v2833
        %v2876 = vadd.f32 %v2238, %v2833
        %v2877 = vadd.f32 %v2240, %v2833
        %v2878 = vadd.f32 %v2158, %v2837
        %v2879 = vadd.f32 %v2160, %v2837
        %v2880 = vadd.f32 %v2162, %v2837
        %v2881 = vadd.f32 %v2164, %v2837
        %v2882 = vadd.f32 %v2166, %v2837
        %v2883 = vadd.f32 %v2168, %v2837
        %v2884 = vadd.f32 %v2170, %v2837
        %v2885 = vadd.f32 %v2172, %v2837
        %v2886 = vadd.f32 %v2174, %v2837
        %v2887 = vadd.f32 %v2176, %v2837
        %v2888 = vadd.f32 %v2178, %v2837
        %v2889 = vadd.f32 %v2180, %v2837
        %v2890 = vadd.f32 %v2182, %v2837
        %v2891 = vadd.f32 %v2184, %v2837
        %v2892 = vadd.f32 %v2186, %v2837
        %v2893 = vadd.f32 %v2188, %v2837
        %v2894 = vadd.f32 %v2274, %v2841
        %v2895 = vadd.f32 %v2276, %v2841
        %v2896 = vadd.f32 %v2278, %v2841
        %v2897 = vadd.f32 %v2280, %v2841
        %v2898 = vadd.f32 %v2282, %v2841
        %v2899 = vadd.f32 %v2284, %v2841
        %v2900 = vadd.f32 %v2286, %v2841
        %v2901 = vadd.f32 %v2288, %v2841
        %v2902 = vadd.f32 %v2290, %v2841
        %v2903 = vadd.f32 %v2292, %v2841
        %v2904 = vadd.f32 %v2294, %v2841
        %v2905 = vadd.f32 %v2296, %v2841
        %v2906 = vadd.f32 %v2298, %v2841
        %v2907 = vadd.f32 %v2300, %v2841
        %v2908 = vadd.f32 %v2302, %v2841
        %v2909 = vadd.f32 %v2304, %v2841
        %v2910 = vpack.c.bf16 %v2847, %v2846
        %v2911 = vpack.c.bf16 %v2849, %v2848
        %v2912 = vpack.c.bf16 %v2851, %v2850
        %v2913 = vpack.c.bf16 %v2853, %v2852
        %v2914 = vpack.c.bf16 %v2855, %v2854
        %v2915 = vpack.c.bf16 %v2857, %v2856
        %v2916 = vpack.c.bf16 %v2859, %v2858
        %v2917 = vpack.c.bf16 %v2861, %v2860
        %v2918 = vpack.c.bf16 %v2863, %v2862
        %v2919 = vpack.c.bf16 %v2865, %v2864
        %v2920 = vpack.c.bf16 %v2867, %v2866
        %v2921 = vpack.c.bf16 %v2869, %v2868
        %v2922 = vpack.c.bf16 %v2871, %v2870
        %v2923 = vpack.c.bf16 %v2873, %v2872
        %v2924 = vpack.c.bf16 %v2875, %v2874
        %v2925 = vpack.c.bf16 %v2877, %v2876
        %v2926 = vpack.c.bf16 %v2879, %v2878
        %v2927 = vpack.c.bf16 %v2881, %v2880
        %v2928 = vpack.c.bf16 %v2883, %v2882
        %v2929 = vpack.c.bf16 %v2885, %v2884
        %v2930 = vpack.c.bf16 %v2887, %v2886
        %v2931 = vpack.c.bf16 %v2889, %v2888
        %v2932 = vpack.c.bf16 %v2891, %v2890
        %v2933 = vpack.c.bf16 %v2893, %v2892
        %v2934 = vpack.c.bf16 %v2895, %v2894
        %v2935 = vpack.c.bf16 %v2897, %v2896
        %v2936 = vpack.c.bf16 %v2899, %v2898
        %v2937 = vpack.c.bf16 %v2901, %v2900
        %v2938 = vpack.c.bf16 %v2903, %v2902
        %v2939 = vpack.c.bf16 %v2905, %v2904
        %v2940 = vpack.c.bf16 %v2907, %v2906
        %v2941 = vpack.c.bf16 %v2909, %v2908
        %v2944 = vunpack.c.l.s4 1966171168
        %v2945 = vunpack.c.0.s8 %v2944
        %v2946 = vlaneseq
        %v2947 = vshrl.u32 %v2946, 7
        %v2948 = vsub.s32 %v2945, %v2947
        %v2949 = vrot.slane %v2192, %v2948
        %v2950 = vcombine.high %v2949, %v2949
        %v2952 = vunpack.c.l.s4 1966171168
        %v2953 = vunpack.c.0.s8 %v2952
        %v2954 = vlaneseq
        %v2955 = vshrl.u32 %v2954, 7
        %v2956 = vsub.s32 %v2953, %v2955
        %v2957 = vrot.slane %v2949, %v2956
        %v2959 = vunpack.c.l.s4 1966171168
        %v2960 = vunpack.c.0.s8 %v2959
        %v2961 = vlaneseq
        %v2962 = vshrl.u32 %v2961, 7
        %v2963 = vsub.s32 %v2960, %v2962
        %v2964 = vrot.slane %v2950, %v2963
        %v2965 = vcombine.high %v2957, %v2957
        %v2966 = vcombine.high %v2964, %v2964
        %v2967 = vlaneseq
        %v2968 = vshrl.u32 %v2967, 7
        %v2969 = vsub.s32 0, %v2968
        %v2970 = vrot.slane %v2957, %v2969
        %v2971 = vlaneseq
        %v2972 = vshrl.u32 %v2971, 7
        %v2973 = vsub.s32 0, %v2972
        %v2974 = vrot.slane %v2964, %v2973
        %v2975 = vlaneseq
        %v2976 = vshrl.u32 %v2975, 7
        %v2977 = vsub.s32 0, %v2976
        %v2978 = vrot.slane %v2965, %v2977
        %v2979 = vlaneseq
        %v2980 = vshrl.u32 %v2979, 7
        %v2981 = vsub.s32 0, %v2980
        %v2982 = vrot.slane %v2966, %v2981
        %v2987 = vadd.f32 %v2157, %v2970
        %v2988 = vadd.f32 %v2159, %v2970
        %v2989 = vadd.f32 %v2161, %v2970
        %v2990 = vadd.f32 %v2163, %v2970
        %v2991 = vadd.f32 %v2165, %v2970
        %v2992 = vadd.f32 %v2167, %v2970
        %v2993 = vadd.f32 %v2169, %v2970
        %v2994 = vadd.f32 %v2171, %v2970
        %v2995 = vadd.f32 %v2173, %v2970
        %v2996 = vadd.f32 %v2175, %v2970
        %v2997 = vadd.f32 %v2177, %v2970
        %v2998 = vadd.f32 %v2179, %v2970
        %v2999 = vadd.f32 %v2181, %v2970
        %v3000 = vadd.f32 %v2183, %v2970
        %v3001 = vadd.f32 %v2185, %v2970
        %v3002 = vadd.f32 %v2187, %v2970
        %v3003 = vadd.f32 %v2210, %v2974
        %v3004 = vadd.f32 %v2212, %v2974
        %v3005 = vadd.f32 %v2214, %v2974
        %v3006 = vadd.f32 %v2216, %v2974
        %v3007 = vadd.f32 %v2218, %v2974
        %v3008 = vadd.f32 %v2220, %v2974
        %v3009 = vadd.f32 %v2222, %v2974
        %v3010 = vadd.f32 %v2224, %v2974
        %v3011 = vadd.f32 %v2226, %v2974
        %v3012 = vadd.f32 %v2228, %v2974
        %v3013 = vadd.f32 %v2230, %v2974
        %v3014 = vadd.f32 %v2232, %v2974
        %v3015 = vadd.f32 %v2234, %v2974
        %v3016 = vadd.f32 %v2236, %v2974
        %v3017 = vadd.f32 %v2238, %v2974
        %v3018 = vadd.f32 %v2240, %v2974
        %v3019 = vadd.f32 %v2158, %v2978
        %v3020 = vadd.f32 %v2160, %v2978
        %v3021 = vadd.f32 %v2162, %v2978
        %v3022 = vadd.f32 %v2164, %v2978
        %v3023 = vadd.f32 %v2166, %v2978
        %v3024 = vadd.f32 %v2168, %v2978
        %v3025 = vadd.f32 %v2170, %v2978
        %v3026 = vadd.f32 %v2172, %v2978
        %v3027 = vadd.f32 %v2174, %v2978
        %v3028 = vadd.f32 %v2176, %v2978
        %v3029 = vadd.f32 %v2178, %v2978
        %v3030 = vadd.f32 %v2180, %v2978
        %v3031 = vadd.f32 %v2182, %v2978
        %v3032 = vadd.f32 %v2184, %v2978
        %v3033 = vadd.f32 %v2186, %v2978
        %v3034 = vadd.f32 %v2188, %v2978
        %v3035 = vadd.f32 %v2274, %v2982
        %v3036 = vadd.f32 %v2276, %v2982
        %v3037 = vadd.f32 %v2278, %v2982
        %v3038 = vadd.f32 %v2280, %v2982
        %v3039 = vadd.f32 %v2282, %v2982
        %v3040 = vadd.f32 %v2284, %v2982
        %v3041 = vadd.f32 %v2286, %v2982
        %v3042 = vadd.f32 %v2288, %v2982
        %v3043 = vadd.f32 %v2290, %v2982
        %v3044 = vadd.f32 %v2292, %v2982
        %v3045 = vadd.f32 %v2294, %v2982
        %v3046 = vadd.f32 %v2296, %v2982
        %v3047 = vadd.f32 %v2298, %v2982
        %v3048 = vadd.f32 %v2300, %v2982
        %v3049 = vadd.f32 %v2302, %v2982
        %v3050 = vadd.f32 %v2304, %v2982
        %v3051 = vpack.c.bf16 %v2988, %v2987
        %v3052 = vpack.c.bf16 %v2990, %v2989
        %v3053 = vpack.c.bf16 %v2992, %v2991
        %v3054 = vpack.c.bf16 %v2994, %v2993
        %v3055 = vpack.c.bf16 %v2996, %v2995
        %v3056 = vpack.c.bf16 %v2998, %v2997
        %v3057 = vpack.c.bf16 %v3000, %v2999
        %v3058 = vpack.c.bf16 %v3002, %v3001
        %v3059 = vpack.c.bf16 %v3004, %v3003
        %v3060 = vpack.c.bf16 %v3006, %v3005
        %v3061 = vpack.c.bf16 %v3008, %v3007
        %v3062 = vpack.c.bf16 %v3010, %v3009
        %v3063 = vpack.c.bf16 %v3012, %v3011
        %v3064 = vpack.c.bf16 %v3014, %v3013
        %v3065 = vpack.c.bf16 %v3016, %v3015
        %v3066 = vpack.c.bf16 %v3018, %v3017
        %v3067 = vpack.c.bf16 %v3020, %v3019
        %v3068 = vpack.c.bf16 %v3022, %v3021
        %v3069 = vpack.c.bf16 %v3024, %v3023
        %v3070 = vpack.c.bf16 %v3026, %v3025
        %v3071 = vpack.c.bf16 %v3028, %v3027
        %v3072 = vpack.c.bf16 %v3030, %v3029
        %v3073 = vpack.c.bf16 %v3032, %v3031
        %v3074 = vpack.c.bf16 %v3034, %v3033
        %v3075 = vpack.c.bf16 %v3036, %v3035
        %v3076 = vpack.c.bf16 %v3038, %v3037
        %v3077 = vpack.c.bf16 %v3040, %v3039
        %v3078 = vpack.c.bf16 %v3042, %v3041
        %v3079 = vpack.c.bf16 %v3044, %v3043
        %v3080 = vpack.c.bf16 %v3046, %v3045
        %v3081 = vpack.c.bf16 %v3048, %v3047
        %v3082 = vpack.c.bf16 %v3050, %v3049
        %vm3083 = vcmask 523264
        %v3085 = vsel %vm3083, %v3051, 0
        %v3088 = vsel %vm3083, %v3052, 0
        %v3091 = vsel %vm3083, %v3053, 0
        %v3094 = vsel %vm3083, %v3054, 0
        %v3097 = vsel %vm3083, %v3055, 0
        %v3100 = vsel %vm3083, %v3056, 0
        %v3103 = vsel %vm3083, %v3057, 0
        %v3106 = vsel %vm3083, %v3058, 0
        %v3109 = vsel %vm3083, %v2769, 0
        %v3112 = vsel %vm3083, %v2770, 0
        %v3115 = vsel %vm3083, %v2771, 0
        %v3118 = vsel %vm3083, %v2772, 0
        %v3121 = vsel %vm3083, %v2773, 0
        %v3124 = vsel %vm3083, %v2774, 0
        %v3127 = vsel %vm3083, %v2775, 0
        %v3130 = vsel %vm3083, %v2776, 0
        %3132 = vmatprep.subr.bf16.mxu0 0
        %3133 = vmatpush1.bf16.xpose.msra.mxu0 %v3109
        %3134 = vmatprep.subr.bf16.mxu0 0
        %3135 = vmatpush1.bf16.xpose.msra.mxu0 %v3112
        %3136 = vmatprep.subr.bf16.mxu0 0
        %3137 = vmatpush1.bf16.xpose.msra.mxu0 %v3115
        %3138 = vmatprep.subr.bf16.mxu0 0
        %3139 = vmatpush1.bf16.xpose.msra.mxu0 %v3118
        %3140 = vmatprep.subr.bf16.mxu0 0
        %3141 = vmatpush1.bf16.xpose.msra.mxu0 %v3121
        %3142 = vmatprep.subr.bf16.mxu0 0
        %3143 = vmatpush1.bf16.xpose.msra.mxu0 %v3124
        %3144 = vmatprep.subr.bf16.mxu0 0
        %3145 = vmatpush1.bf16.xpose.msra.mxu0 %v3127
        %3146 = vmatprep.subr.bf16.mxu0 0
        %3147 = vmatpush1.bf16.xpose.msra.mxu0 %v3130
        %3148 = vmatprep.subr.bf16.mxu0 0
        %3149 = vmatpush1.bf16.xpose.msra.mxu0 0
        %3150 = vmatprep.subr.bf16.mxu0 0
        %3151 = vmatpush1.bf16.xpose.msra.mxu0 0
        %3152 = vmatprep.subr.bf16.mxu0 0
        %3153 = vmatpush1.bf16.xpose.msra.mxu0 0
        %3154 = vmatprep.subr.bf16.mxu0 0
        %3155 = vmatpush1.bf16.xpose.msra.mxu0 0
        %3156 = vmatprep.subr.bf16.mxu0 0
        %3157 = vmatpush1.bf16.xpose.msra.mxu0 0
        %3158 = vmatprep.subr.bf16.mxu0 0
        %3159 = vmatpush1.bf16.xpose.msra.mxu0 0
        %3160 = vmatprep.subr.bf16.mxu0 0
        %3161 = vmatpush1.bf16.xpose.msra.mxu0 0
        %3162 = vmatprep.subr.bf16.mxu0 0
        %3163 = vmatpush1.bf16.xpose.msra.mxu0 0
        %3164 = vmatprep.mubr.bf16.mxu0 0
        %3165 = vmatmul.mubr.bf16.gmra.mrb[0].mxu0 %v3085
        %v3166 = vpop.f32.mrb[0].mxu0
        %v3167 = vadd.f32 0.0, %v3166
        %v3168 = vpop.f32.mrb[0].mxu0
        %v3169 = vpop.f32.mrb[0].mxu0
        %v3170 = vadd.f32 0.0, %v3169
        %v3171 = vpop.f32.mrb[0].mxu0
        %3172 = vmatprep.mubr.bf16.mxu0 0
        %3173 = vmatmul.mubr.bf16.gmra.mrb[0].mxu0 %v3088
        %v3174 = vpop.f32.mrb[0].mxu0
        %v3175 = vadd.f32 0.0, %v3174
        %v3176 = vpop.f32.mrb[0].mxu0
        %v3177 = vpop.f32.mrb[0].mxu0
        %v3178 = vadd.f32 0.0, %v3177
        %v3179 = vpop.f32.mrb[0].mxu0
        %3180 = vmatprep.mubr.bf16.mxu0 0
        %3181 = vmatmul.mubr.bf16.gmra.mrb[0].mxu0 %v3091
        %v3182 = vpop.f32.mrb[0].mxu0
        %v3183 = vadd.f32 0.0, %v3182
        %v3184 = vpop.f32.mrb[0].mxu0
        %v3185 = vpop.f32.mrb[0].mxu0
        %v3186 = vadd.f32 0.0, %v3185
        %v3187 = vpop.f32.mrb[0].mxu0
        %3188 = vmatprep.mubr.bf16.mxu0 0
        %3189 = vmatmul.mubr.bf16.gmra.mrb[0].mxu0 %v3094
        %v3190 = vpop.f32.mrb[0].mxu0
        %v3191 = vadd.f32 0.0, %v3190
        %v3192 = vpop.f32.mrb[0].mxu0
        %v3193 = vpop.f32.mrb[0].mxu0
        %v3194 = vadd.f32 0.0, %v3193
        %v3195 = vpop.f32.mrb[0].mxu0
        %3196 = vmatprep.mubr.bf16.mxu0 0
        %3197 = vmatmul.mubr.bf16.gmra.mrb[0].mxu0 %v3097
        %v3198 = vpop.f32.mrb[0].mxu0
        %v3199 = vadd.f32 0.0, %v3198
        %v3200 = vpop.f32.mrb[0].mxu0
        %v3201 = vpop.f32.mrb[0].mxu0
        %v3202 = vadd.f32 0.0, %v3201
        %v3203 = vpop.f32.mrb[0].mxu0
        %3204 = vmatprep.mubr.bf16.mxu0 0
        %3205 = vmatmul.mubr.bf16.gmra.mrb[0].mxu0 %v3100
        %v3206 = vpop.f32.mrb[0].mxu0
        %v3207 = vadd.f32 0.0, %v3206
        %v3208 = vpop.f32.mrb[0].mxu0
        %v3209 = vpop.f32.mrb[0].mxu0
        %v3210 = vadd.f32 0.0, %v3209
        %v3211 = vpop.f32.mrb[0].mxu0
        %3212 = vmatprep.mubr.bf16.mxu0 0
        %3213 = vmatmul.mubr.bf16.gmra.mrb[0].mxu0 %v3103
        %v3214 = vpop.f32.mrb[0].mxu0
        %v3215 = vadd.f32 0.0, %v3214
        %v3216 = vpop.f32.mrb[0].mxu0
        %v3217 = vpop.f32.mrb[0].mxu0
        %v3218 = vadd.f32 0.0, %v3217
        %v3219 = vpop.f32.mrb[0].mxu0
        %3220 = vmatprep.mubr.bf16.mxu0 0
        %3221 = vmatmul.mubr.bf16.gmra.mrb[0].mxu0 %v3106
        %v3222 = vpop.f32.mrb[0].mxu0
        %v3223 = vadd.f32 0.0, %v3222
        %v3224 = vpop.f32.mrb[0].mxu0
        %v3225 = vpop.f32.mrb[0].mxu0
        %v3226 = vadd.f32 0.0, %v3225
        %v3227 = vpop.f32.mrb[0].mxu0
        %3228 = vdwg.mxu0
        %v3230 = vsel %vm3083, %v3059, 0
        %v3233 = vsel %vm3083, %v3060, 0
        %v3236 = vsel %vm3083, %v3061, 0
        %v3239 = vsel %vm3083, %v3062, 0
        %v3242 = vsel %vm3083, %v3063, 0
        %v3245 = vsel %vm3083, %v3064, 0
        %v3248 = vsel %vm3083, %v3065, 0
        %v3251 = vsel %vm3083, %v3066, 0
        %v3254 = vsel %vm3083, %v2777, 0
        %v3257 = vsel %vm3083, %v2778, 0
        %v3260 = vsel %vm3083, %v2779, 0
        %v3263 = vsel %vm3083, %v2780, 0
        %v3266 = vsel %vm3083, %v2781, 0
        %v3269 = vsel %vm3083, %v2782, 0
        %v3272 = vsel %vm3083, %v2783, 0
        %v3275 = vsel %vm3083, %v2784, 0
        %3277 = vmatprep.subr.bf16.mxu0 0
        %3278 = vmatpush1.bf16.xpose.msra.mxu0 %v3254
        %3279 = vmatprep.subr.bf16.mxu0 0
        %3280 = vmatpush1.bf16.xpose.msra.mxu0 %v3257
        %3281 = vmatprep.subr.bf16.mxu0 0
        %3282 = vmatpush1.bf16.xpose.msra.mxu0 %v3260
        %3283 = vmatprep.subr.bf16.mxu0 0
        %3284 = vmatpush1.bf16.xpose.msra.mxu0 %v3263
        %3285 = vmatprep.subr.bf16.mxu0 0
        %3286 = vmatpush1.bf16.xpose.msra.mxu0 %v3266
        %3287 = vmatprep.subr.bf16.mxu0 0
        %3288 = vmatpush1.bf16.xpose.msra.mxu0 %v3269
        %3289 = vmatprep.subr.bf16.mxu0 0
        %3290 = vmatpush1.bf16.xpose.msra.mxu0 %v3272
        %3291 = vmatprep.subr.bf16.mxu0 0
        %3292 = vmatpush1.bf16.xpose.msra.mxu0 %v3275
        %3293 = vmatprep.subr.bf16.mxu0 0
        %3294 = vmatpush1.bf16.xpose.msra.mxu0 0
        %3295 = vmatprep.subr.bf16.mxu0 0
        %3296 = vmatpush1.bf16.xpose.msra.mxu0 0
        %3297 = vmatprep.subr.bf16.mxu0 0
        %3298 = vmatpush1.bf16.xpose.msra.mxu0 0
        %3299 = vmatprep.subr.bf16.mxu0 0
        %3300 = vmatpush1.bf16.xpose.msra.mxu0 0
        %3301 = vmatprep.subr.bf16.mxu0 0
        %3302 = vmatpush1.bf16.xpose.msra.mxu0 0
        %3303 = vmatprep.subr.bf16.mxu0 0
        %3304 = vmatpush1.bf16.xpose.msra.mxu0 0
        %3305 = vmatprep.subr.bf16.mxu0 0
        %3306 = vmatpush1.bf16.xpose.msra.mxu0 0
        %3307 = vmatprep.subr.bf16.mxu0 0
        %3308 = vmatpush1.bf16.xpose.msra.mxu0 0
        %3309 = vmatprep.mubr.bf16.mxu0 0
        %3310 = vmatmul.mubr.bf16.gmra.mrb[0].mxu0 %v3230
        %v3311 = vpop.f32.mrb[0].mxu0
        %v3312 = vadd.f32 0.0, %v3311
        %v3313 = vpop.f32.mrb[0].mxu0
        %v3314 = vpop.f32.mrb[0].mxu0
        %v3315 = vadd.f32 0.0, %v3314
        %v3316 = vpop.f32.mrb[0].mxu0
        %3317 = vmatprep.mubr.bf16.mxu0 0
        %3318 = vmatmul.mubr.bf16.gmra.mrb[0].mxu0 %v3233
        %v3319 = vpop.f32.mrb[0].mxu0
        %v3320 = vadd.f32 0.0, %v3319
        %v3321 = vpop.f32.mrb[0].mxu0
        %v3322 = vpop.f32.mrb[0].mxu0
        %v3323 = vadd.f32 0.0, %v3322
        %v3324 = vpop.f32.mrb[0].mxu0
        %3325 = vmatprep.mubr.bf16.mxu0 0
        %3326 = vmatmul.mubr.bf16.gmra.mrb[0].mxu0 %v3236
        %v3327 = vpop.f32.mrb[0].mxu0
        %v3328 = vadd.f32 0.0, %v3327
        %v3329 = vpop.f32.mrb[0].mxu0
        %v3330 = vpop.f32.mrb[0].mxu0
        %v3331 = vadd.f32 0.0, %v3330
        %v3332 = vpop.f32.mrb[0].mxu0
        %3333 = vmatprep.mubr.bf16.mxu0 0
        %3334 = vmatmul.mubr.bf16.gmra.mrb[0].mxu0 %v3239
        %v3335 = vpop.f32.mrb[0].mxu0
        %v3336 = vadd.f32 0.0, %v3335
        %v3337 = vpop.f32.mrb[0].mxu0
        %v3338 = vpop.f32.mrb[0].mxu0
        %v3339 = vadd.f32 0.0, %v3338
        %v3340 = vpop.f32.mrb[0].mxu0
        %3341 = vmatprep.mubr.bf16.mxu0 0
        %3342 = vmatmul.mubr.bf16.gmra.mrb[0].mxu0 %v3242
        %v3343 = vpop.f32.mrb[0].mxu0
        %v3344 = vadd.f32 0.0, %v3343
        %v3345 = vpop.f32.mrb[0].mxu0
        %v3346 = vpop.f32.mrb[0].mxu0
        %v3347 = vadd.f32 0.0, %v3346
        %v3348 = vpop.f32.mrb[0].mxu0
        %3349 = vmatprep.mubr.bf16.mxu0 0
        %3350 = vmatmul.mubr.bf16.gmra.mrb[0].mxu0 %v3245
        %v3351 = vpop.f32.mrb[0].mxu0
        %v3352 = vadd.f32 0.0, %v3351
        %v3353 = vpop.f32.mrb[0].mxu0
        %v3354 = vpop.f32.mrb[0].mxu0
        %v3355 = vadd.f32 0.0, %v3354
        %v3356 = vpop.f32.mrb[0].mxu0
        %3357 = vmatprep.mubr.bf16.mxu0 0
        %3358 = vmatmul.mubr.bf16.gmra.mrb[0].mxu0 %v3248
        %v3359 = vpop.f32.mrb[0].mxu0
        %v3360 = vadd.f32 0.0, %v3359
        %v3361 = vpop.f32.mrb[0].mxu0
        %v3362 = vpop.f32.mrb[0].mxu0
        %v3363 = vadd.f32 0.0, %v3362
        %v3364 = vpop.f32.mrb[0].mxu0
        %3365 = vmatprep.mubr.bf16.mxu0 0
        %3366 = vmatmul.mubr.bf16.gmra.mrb[0].mxu0 %v3251
        %v3367 = vpop.f32.mrb[0].mxu0
        %v3368 = vadd.f32 0.0, %v3367
        %v3369 = vpop.f32.mrb[0].mxu0
        %v3370 = vpop.f32.mrb[0].mxu0
        %v3371 = vadd.f32 0.0, %v3370
        %v3372 = vpop.f32.mrb[0].mxu0
        %3373 = vdwg.mxu0
        %v3375 = vsel %vm3083, %v3067, 0
        %v3378 = vsel %vm3083, %v3068, 0
        %v3381 = vsel %vm3083, %v3069, 0
        %v3384 = vsel %vm3083, %v3070, 0
        %v3387 = vsel %vm3083, %v3071, 0
        %v3390 = vsel %vm3083, %v3072, 0
        %v3393 = vsel %vm3083, %v3073, 0
        %v3396 = vsel %vm3083, %v3074, 0
        %v3399 = vsel %vm3083, %v2785, 0
        %v3402 = vsel %vm3083, %v2786, 0
        %v3405 = vsel %vm3083, %v2787, 0
        %v3408 = vsel %vm3083, %v2788, 0
        %v3411 = vsel %vm3083, %v2789, 0
        %v3414 = vsel %vm3083, %v2790, 0
        %v3417 = vsel %vm3083, %v2791, 0
        %v3420 = vsel %vm3083, %v2792, 0
        %3422 = vmatprep.subr.bf16.mxu0 0
        %3423 = vmatpush1.bf16.xpose.msra.mxu0 %v3399
        %3424 = vmatprep.subr.bf16.mxu0 0
        %3425 = vmatpush1.bf16.xpose.msra.mxu0 %v3402
        %3426 = vmatprep.subr.bf16.mxu0 0
        %3427 = vmatpush1.bf16.xpose.msra.mxu0 %v3405
        %3428 = vmatprep.subr.bf16.mxu0 0
        %3429 = vmatpush1.bf16.xpose.msra.mxu0 %v3408
        %3430 = vmatprep.subr.bf16.mxu0 0
        %3431 = vmatpush1.bf16.xpose.msra.mxu0 %v3411
        %3432 = vmatprep.subr.bf16.mxu0 0
        %3433 = vmatpush1.bf16.xpose.msra.mxu0 %v3414
        %3434 = vmatprep.subr.bf16.mxu0 0
        %3435 = vmatpush1.bf16.xpose.msra.mxu0 %v3417
        %3436 = vmatprep.subr.bf16.mxu0 0
        %3437 = vmatpush1.bf16.xpose.msra.mxu0 %v3420
        %3438 = vmatprep.subr.bf16.mxu0 0
        %3439 = vmatpush1.bf16.xpose.msra.mxu0 0
        %3440 = vmatprep.subr.bf16.mxu0 0
        %3441 = vmatpush1.bf16.xpose.msra.mxu0 0
        %3442 = vmatprep.subr.bf16.mxu0 0
        %3443 = vmatpush1.bf16.xpose.msra.mxu0 0
        %3444 = vmatprep.subr.bf16.mxu0 0
        %3445 = vmatpush1.bf16.xpose.msra.mxu0 0
        %3446 = vmatprep.subr.bf16.mxu0 0
        %3447 = vmatpush1.bf16.xpose.msra.mxu0 0
        %3448 = vmatprep.subr.bf16.mxu0 0
        %3449 = vmatpush1.bf16.xpose.msra.mxu0 0
        %3450 = vmatprep.subr.bf16.mxu0 0
        %3451 = vmatpush1.bf16.xpose.msra.mxu0 0
        %3452 = vmatprep.subr.bf16.mxu0 0
        %3453 = vmatpush1.bf16.xpose.msra.mxu0 0
        %3454 = vmatprep.mubr.bf16.mxu0 0
        %3455 = vmatmul.mubr.bf16.gmra.mrb[0].mxu0 %v3375
        %v3456 = vpop.f32.mrb[0].mxu0
        %v3457 = vadd.f32 0.0, %v3456
        %v3458 = vpop.f32.mrb[0].mxu0
        %v3459 = vpop.f32.mrb[0].mxu0
        %v3460 = vadd.f32 0.0, %v3459
        %v3461 = vpop.f32.mrb[0].mxu0
        %3462 = vmatprep.mubr.bf16.mxu0 0
        %3463 = vmatmul.mubr.bf16.gmra.mrb[0].mxu0 %v3378
        %v3464 = vpop.f32.mrb[0].mxu0
        %v3465 = vadd.f32 0.0, %v3464
        %v3466 = vpop.f32.mrb[0].mxu0
        %v3467 = vpop.f32.mrb[0].mxu0
        %v3468 = vadd.f32 0.0, %v3467
        %v3469 = vpop.f32.mrb[0].mxu0
        %3470 = vmatprep.mubr.bf16.mxu0 0
        %3471 = vmatmul.mubr.bf16.gmra.mrb[0].mxu0 %v3381
        %v3472 = vpop.f32.mrb[0].mxu0
        %v3473 = vadd.f32 0.0, %v3472
        %v3474 = vpop.f32.mrb[0].mxu0
        %v3475 = vpop.f32.mrb[0].mxu0
        %v3476 = vadd.f32 0.0, %v3475
        %v3477 = vpop.f32.mrb[0].mxu0
        %3478 = vmatprep.mubr.bf16.mxu0 0
        %3479 = vmatmul.mubr.bf16.gmra.mrb[0].mxu0 %v3384
        %v3480 = vpop.f32.mrb[0].mxu0
        %v3481 = vadd.f32 0.0, %v3480
        %v3482 = vpop.f32.mrb[0].mxu0
        %v3483 = vpop.f32.mrb[0].mxu0
        %v3484 = vadd.f32 0.0, %v3483
        %v3485 = vpop.f32.mrb[0].mxu0
        %3486 = vmatprep.mubr.bf16.mxu0 0
        %3487 = vmatmul.mubr.bf16.gmra.mrb[0].mxu0 %v3387
        %v3488 = vpop.f32.mrb[0].mxu0
        %v3489 = vadd.f32 0.0, %v3488
        %v3490 = vpop.f32.mrb[0].mxu0
        %v3491 = vpop.f32.mrb[0].mxu0
        %v3492 = vadd.f32 0.0, %v3491
        %v3493 = vpop.f32.mrb[0].mxu0
        %3494 = vmatprep.mubr.bf16.mxu0 0
        %3495 = vmatmul.mubr.bf16.gmra.mrb[0].mxu0 %v3390
        %v3496 = vpop.f32.mrb[0].mxu0
        %v3497 = vadd.f32 0.0, %v3496
        %v3498 = vpop.f32.mrb[0].mxu0
        %v3499 = vpop.f32.mrb[0].mxu0
        %v3500 = vadd.f32 0.0, %v3499
        %v3501 = vpop.f32.mrb[0].mxu0
        %3502 = vmatprep.mubr.bf16.mxu0 0
        %3503 = vmatmul.mubr.bf16.gmra.mrb[0].mxu0 %v3393
        %v3504 = vpop.f32.mrb[0].mxu0
        %v3505 = vadd.f32 0.0, %v3504
        %v3506 = vpop.f32.mrb[0].mxu0
        %v3507 = vpop.f32.mrb[0].mxu0
        %v3508 = vadd.f32 0.0, %v3507
        %v3509 = vpop.f32.mrb[0].mxu0
        %3510 = vmatprep.mubr.bf16.mxu0 0
        %3511 = vmatmul.mubr.bf16.gmra.mrb[0].mxu0 %v3396
        %v3512 = vpop.f32.mrb[0].mxu0
        %v3513 = vadd.f32 0.0, %v3512
        %v3514 = vpop.f32.mrb[0].mxu0
        %v3515 = vpop.f32.mrb[0].mxu0
        %v3516 = vadd.f32 0.0, %v3515
        %v3517 = vpop.f32.mrb[0].mxu0
        %3518 = vdwg.mxu0
        %v3520 = vsel %vm3083, %v3075, 0
        %v3523 = vsel %vm3083, %v3076, 0
        %v3526 = vsel %vm3083, %v3077, 0
        %v3529 = vsel %vm3083, %v3078, 0
        %v3532 = vsel %vm3083, %v3079, 0
        %v3535 = vsel %vm3083, %v3080, 0
        %v3538 = vsel %vm3083, %v3081, 0
        %v3541 = vsel %vm3083, %v3082, 0
        %v3544 = vsel %vm3083, %v2793, 0
        %v3547 = vsel %vm3083, %v2794, 0
        %v3550 = vsel %vm3083, %v2795, 0
        %v3553 = vsel %vm3083, %v2796, 0
        %v3556 = vsel %vm3083, %v2797, 0
        %v3559 = vsel %vm3083, %v2798, 0
        %v3562 = vsel %vm3083, %v2799, 0
        %v3565 = vsel %vm3083, %v2800, 0
        %3567 = vmatprep.subr.bf16.mxu0 0
        %3568 = vmatpush1.bf16.xpose.msra.mxu0 %v3544
        %3569 = vmatprep.subr.bf16.mxu0 0
        %3570 = vmatpush1.bf16.xpose.msra.mxu0 %v3547
        %3571 = vmatprep.subr.bf16.mxu0 0
        %3572 = vmatpush1.bf16.xpose.msra.mxu0 %v3550
        %3573 = vmatprep.subr.bf16.mxu0 0
        %3574 = vmatpush1.bf16.xpose.msra.mxu0 %v3553
        %3575 = vmatprep.subr.bf16.mxu0 0
        %3576 = vmatpush1.bf16.xpose.msra.mxu0 %v3556
        %3577 = vmatprep.subr.bf16.mxu0 0
        %3578 = vmatpush1.bf16.xpose.msra.mxu0 %v3559
        %3579 = vmatprep.subr.bf16.mxu0 0
        %3580 = vmatpush1.bf16.xpose.msra.mxu0 %v3562
        %3581 = vmatprep.subr.bf16.mxu0 0
        %3582 = vmatpush1.bf16.xpose.msra.mxu0 %v3565
        %3583 = vmatprep.subr.bf16.mxu0 0
        %3584 = vmatpush1.bf16.xpose.msra.mxu0 0
        %3585 = vmatprep.subr.bf16.mxu0 0
        %3586 = vmatpush1.bf16.xpose.msra.mxu0 0
        %3587 = vmatprep.subr.bf16.mxu0 0
        %3588 = vmatpush1.bf16.xpose.msra.mxu0 0
        %3589 = vmatprep.subr.bf16.mxu0 0
        %3590 = vmatpush1.bf16.xpose.msra.mxu0 0
        %3591 = vmatprep.subr.bf16.mxu0 0
        %3592 = vmatpush1.bf16.xpose.msra.mxu0 0
        %3593 = vmatprep.subr.bf16.mxu0 0
        %3594 = vmatpush1.bf16.xpose.msra.mxu0 0
        %3595 = vmatprep.subr.bf16.mxu0 0
        %3596 = vmatpush1.bf16.xpose.msra.mxu0 0
        %3597 = vmatprep.subr.bf16.mxu0 0
        %3598 = vmatpush1.bf16.xpose.msra.mxu0 0
        %3599 = vmatprep.mubr.bf16.mxu0 0
        %3600 = vmatmul.mubr.bf16.gmra.mrb[0].mxu0 %v3520
        %v3601 = vpop.f32.mrb[0].mxu0
        %v3602 = vadd.f32 0.0, %v3601
        %v3603 = vpop.f32.mrb[0].mxu0
        %v3604 = vpop.f32.mrb[0].mxu0
        %v3605 = vadd.f32 0.0, %v3604
        %v3606 = vpop.f32.mrb[0].mxu0
        %3607 = vmatprep.mubr.bf16.mxu0 0
        %3608 = vmatmul.mubr.bf16.gmra.mrb[0].mxu0 %v3523
        %v3609 = vpop.f32.mrb[0].mxu0
        %v3610 = vadd.f32 0.0, %v3609
        %v3611 = vpop.f32.mrb[0].mxu0
        %v3612 = vpop.f32.mrb[0].mxu0
        %v3613 = vadd.f32 0.0, %v3612
        %v3614 = vpop.f32.mrb[0].mxu0
        %3615 = vmatprep.mubr.bf16.mxu0 0
        %3616 = vmatmul.mubr.bf16.gmra.mrb[0].mxu0 %v3526
        %v3617 = vpop.f32.mrb[0].mxu0
        %v3618 = vadd.f32 0.0, %v3617
        %v3619 = vpop.f32.mrb[0].mxu0
        %v3620 = vpop.f32.mrb[0].mxu0
        %v3621 = vadd.f32 0.0, %v3620
        %v3622 = vpop.f32.mrb[0].mxu0
        %3623 = vmatprep.mubr.bf16.mxu0 0
        %3624 = vmatmul.mubr.bf16.gmra.mrb[0].mxu0 %v3529
        %v3625 = vpop.f32.mrb[0].mxu0
        %v3626 = vadd.f32 0.0, %v3625
        %v3627 = vpop.f32.mrb[0].mxu0
        %v3628 = vpop.f32.mrb[0].mxu0
        %v3629 = vadd.f32 0.0, %v3628
        %v3630 = vpop.f32.mrb[0].mxu0
        %3631 = vmatprep.mubr.bf16.mxu0 0
        %3632 = vmatmul.mubr.bf16.gmra.mrb[0].mxu0 %v3532
        %v3633 = vpop.f32.mrb[0].mxu0
        %v3634 = vadd.f32 0.0, %v3633
        %v3635 = vpop.f32.mrb[0].mxu0
        %v3636 = vpop.f32.mrb[0].mxu0
        %v3637 = vadd.f32 0.0, %v3636
        %v3638 = vpop.f32.mrb[0].mxu0
        %3639 = vmatprep.mubr.bf16.mxu0 0
        %3640 = vmatmul.mubr.bf16.gmra.mrb[0].mxu0 %v3535
        %v3641 = vpop.f32.mrb[0].mxu0
        %v3642 = vadd.f32 0.0, %v3641
        %v3643 = vpop.f32.mrb[0].mxu0
        %v3644 = vpop.f32.mrb[0].mxu0
        %v3645 = vadd.f32 0.0, %v3644
        %v3646 = vpop.f32.mrb[0].mxu0
        %3647 = vmatprep.mubr.bf16.mxu0 0
        %3648 = vmatmul.mubr.bf16.gmra.mrb[0].mxu0 %v3538
        %v3649 = vpop.f32.mrb[0].mxu0
        %v3650 = vadd.f32 0.0, %v3649
        %v3651 = vpop.f32.mrb[0].mxu0
        %v3652 = vpop.f32.mrb[0].mxu0
        %v3653 = vadd.f32 0.0, %v3652
        %v3654 = vpop.f32.mrb[0].mxu0
        %3655 = vmatprep.mubr.bf16.mxu0 0
        %3656 = vmatmul.mubr.bf16.gmra.mrb[0].mxu0 %v3541
        %v3657 = vpop.f32.mrb[0].mxu0
        %v3658 = vadd.f32 0.0, %v3657
        %v3659 = vpop.f32.mrb[0].mxu0
        %v3660 = vpop.f32.mrb[0].mxu0
        %v3661 = vadd.f32 0.0, %v3660
        %v3662 = vpop.f32.mrb[0].mxu0
        %3663 = vdwg.mxu0
        %3668 = vrot.lane.b32.xlu0 %v3167, 1
        %v3669 = vpop.permute.xlu0 %3668
        %3670 = vrot.lane.b32.xlu0 %v3312, 1
        %v3671 = vpop.permute.xlu0 %3670
        %3672 = vrot.lane.b32.xlu0 %v3457, 1
        %v3673 = vpop.permute.xlu0 %3672
        %3674 = vrot.lane.b32.xlu0 %v3602, 1
        %v3675 = vpop.permute.xlu0 %3674
        %3680 = vrot.lane.b32.xlu0 %v3167, 2
        %v3681 = vpop.permute.xlu0 %3680
        %3682 = vrot.lane.b32.xlu0 %v3312, 2
        %v3683 = vpop.permute.xlu0 %3682
        %3684 = vrot.lane.b32.xlu0 %v3457, 2
        %v3685 = vpop.permute.xlu0 %3684
        %3686 = vrot.lane.b32.xlu0 %v3602, 2
        %v3687 = vpop.permute.xlu0 %3686
        %3692 = vrot.lane.b32.xlu0 %v3167, 3
        %v3693 = vpop.permute.xlu0 %3692
        %3694 = vrot.lane.b32.xlu0 %v3312, 3
        %v3695 = vpop.permute.xlu0 %3694
        %3696 = vrot.lane.b32.xlu0 %v3457, 3
        %v3697 = vpop.permute.xlu0 %3696
        %3698 = vrot.lane.b32.xlu0 %v3602, 3
        %v3699 = vpop.permute.xlu0 %3698
        %3704 = vrot.lane.b32.xlu0 %v3167, 4
        %v3705 = vpop.permute.xlu0 %3704
        %3706 = vrot.lane.b32.xlu0 %v3312, 4
        %v3707 = vpop.permute.xlu0 %3706
        %3708 = vrot.lane.b32.xlu0 %v3457, 4
        %v3709 = vpop.permute.xlu0 %3708
        %3710 = vrot.lane.b32.xlu0 %v3602, 4
        %v3711 = vpop.permute.xlu0 %3710
        %3716 = vrot.lane.b32.xlu0 %v3167, 5
        %v3717 = vpop.permute.xlu0 %3716
        %3718 = vrot.lane.b32.xlu0 %v3312, 5
        %v3719 = vpop.permute.xlu0 %3718
        %3720 = vrot.lane.b32.xlu0 %v3457, 5
        %v3721 = vpop.permute.xlu0 %3720
        %3722 = vrot.lane.b32.xlu0 %v3602, 5
        %v3723 = vpop.permute.xlu0 %3722
        %3728 = vrot.lane.b32.xlu0 %v3167, 6
        %v3729 = vpop.permute.xlu0 %3728
        %3730 = vrot.lane.b32.xlu0 %v3312, 6
        %v3731 = vpop.permute.xlu0 %3730
        %3732 = vrot.lane.b32.xlu0 %v3457, 6
        %v3733 = vpop.permute.xlu0 %3732
        %3734 = vrot.lane.b32.xlu0 %v3602, 6
        %v3735 = vpop.permute.xlu0 %3734
        %3740 = vrot.lane.b32.xlu0 %v3167, 7
        %v3741 = vpop.permute.xlu0 %3740
        %3742 = vrot.lane.b32.xlu0 %v3312, 7
        %v3743 = vpop.permute.xlu0 %3742
        %3744 = vrot.lane.b32.xlu0 %v3457, 7
        %v3745 = vpop.permute.xlu0 %3744
        %3746 = vrot.lane.b32.xlu0 %v3602, 7
        %v3747 = vpop.permute.xlu0 %3746
        %3752 = vrot.lane.b32.xlu0 %v3167, 8
        %v3753 = vpop.permute.xlu0 %3752
        %3754 = vrot.lane.b32.xlu0 %v3312, 8
        %v3755 = vpop.permute.xlu0 %3754
        %3756 = vrot.lane.b32.xlu0 %v3457, 8
        %v3757 = vpop.permute.xlu0 %3756
        %3758 = vrot.lane.b32.xlu0 %v3602, 8
        %v3759 = vpop.permute.xlu0 %3758
        %3768 = vrot.lane.b32.xlu0 %v3170, 9
        %v3769 = vpop.permute.xlu0 %3768
        %3770 = vrot.lane.b32.xlu0 %v3315, 9
        %v3771 = vpop.permute.xlu0 %3770
        %3772 = vrot.lane.b32.xlu0 %v3460, 9
        %v3773 = vpop.permute.xlu0 %3772
        %3774 = vrot.lane.b32.xlu0 %v3605, 9
        %v3775 = vpop.permute.xlu0 %3774
        %3780 = vrot.lane.b32.xlu0 %v3170, 10
        %v3781 = vpop.permute.xlu0 %3780
        %3782 = vrot.lane.b32.xlu0 %v3315, 10
        %v3783 = vpop.permute.xlu0 %3782
        %3784 = vrot.lane.b32.xlu0 %v3460, 10
        %v3785 = vpop.permute.xlu0 %3784
        %3786 = vrot.lane.b32.xlu0 %v3605, 10
        %v3787 = vpop.permute.xlu0 %3786
        %3792 = vrot.lane.b32.xlu0 %v3170, 11
        %v3793 = vpop.permute.xlu0 %3792
        %3794 = vrot.lane.b32.xlu0 %v3315, 11
        %v3795 = vpop.permute.xlu0 %3794
        %3796 = vrot.lane.b32.xlu0 %v3460, 11
        %v3797 = vpop.permute.xlu0 %3796
        %3798 = vrot.lane.b32.xlu0 %v3605, 11
        %v3799 = vpop.permute.xlu0 %3798
        %3804 = vrot.lane.b32.xlu0 %v3170, 12
        %v3805 = vpop.permute.xlu0 %3804
        %3806 = vrot.lane.b32.xlu0 %v3315, 12
        %v3807 = vpop.permute.xlu0 %3806
        %3808 = vrot.lane.b32.xlu0 %v3460, 12
        %v3809 = vpop.permute.xlu0 %3808
        %3810 = vrot.lane.b32.xlu0 %v3605, 12
        %v3811 = vpop.permute.xlu0 %3810
        %3816 = vrot.lane.b32.xlu0 %v3170, 13
        %v3817 = vpop.permute.xlu0 %3816
        %3818 = vrot.lane.b32.xlu0 %v3315, 13
        %v3819 = vpop.permute.xlu0 %3818
        %3820 = vrot.lane.b32.xlu0 %v3460, 13
        %v3821 = vpop.permute.xlu0 %3820
        %3822 = vrot.lane.b32.xlu0 %v3605, 13
        %v3823 = vpop.permute.xlu0 %3822
        %3828 = vrot.lane.b32.xlu0 %v3170, 14
        %v3829 = vpop.permute.xlu0 %3828
        %3830 = vrot.lane.b32.xlu0 %v3315, 14
        %v3831 = vpop.permute.xlu0 %3830
        %3832 = vrot.lane.b32.xlu0 %v3460, 14
        %v3833 = vpop.permute.xlu0 %3832
        %3834 = vrot.lane.b32.xlu0 %v3605, 14
        %v3835 = vpop.permute.xlu0 %3834
        %3840 = vrot.lane.b32.xlu0 %v3170, 15
        %v3841 = vpop.permute.xlu0 %3840
        %3842 = vrot.lane.b32.xlu0 %v3315, 15
        %v3843 = vpop.permute.xlu0 %3842
        %3844 = vrot.lane.b32.xlu0 %v3460, 15
        %v3845 = vpop.permute.xlu0 %3844
        %3846 = vrot.lane.b32.xlu0 %v3605, 15
        %v3847 = vpop.permute.xlu0 %3846
        %3852 = vrot.lane.b32.xlu0 %v3170, 16
        %v3853 = vpop.permute.xlu0 %3852
        %3854 = vrot.lane.b32.xlu0 %v3315, 16
        %v3855 = vpop.permute.xlu0 %3854
        %3856 = vrot.lane.b32.xlu0 %v3460, 16
        %v3857 = vpop.permute.xlu0 %3856
        %3858 = vrot.lane.b32.xlu0 %v3605, 16
        %v3859 = vpop.permute.xlu0 %3858
        %3868 = vrot.lane.b32.xlu0 %v3175, 17
        %v3869 = vpop.permute.xlu0 %3868
        %3870 = vrot.lane.b32.xlu0 %v3320, 17
        %v3871 = vpop.permute.xlu0 %3870
        %3872 = vrot.lane.b32.xlu0 %v3465, 17
        %v3873 = vpop.permute.xlu0 %3872
        %3874 = vrot.lane.b32.xlu0 %v3610, 17
        %v3875 = vpop.permute.xlu0 %3874
        %3880 = vrot.lane.b32.xlu0 %v3175, 18
        %v3881 = vpop.permute.xlu0 %3880
        %3882 = vrot.lane.b32.xlu0 %v3320, 18
        %v3883 = vpop.permute.xlu0 %3882
        %3884 = vrot.lane.b32.xlu0 %v3465, 18
        %v3885 = vpop.permute.xlu0 %3884
        %3886 = vrot.lane.b32.xlu0 %v3610, 18
        %v3887 = vpop.permute.xlu0 %3886
        %3892 = vrot.lane.b32.xlu0 %v3175, 19
        %v3893 = vpop.permute.xlu0 %3892
        %3894 = vrot.lane.b32.xlu0 %v3320, 19
        %v3895 = vpop.permute.xlu0 %3894
        %3896 = vrot.lane.b32.xlu0 %v3465, 19
        %v3897 = vpop.permute.xlu0 %3896
        %3898 = vrot.lane.b32.xlu0 %v3610, 19
        %v3899 = vpop.permute.xlu0 %3898
        %3904 = vrot.lane.b32.xlu0 %v3175, 20
        %v3905 = vpop.permute.xlu0 %3904
        %3906 = vrot.lane.b32.xlu0 %v3320, 20
        %v3907 = vpop.permute.xlu0 %3906
        %3908 = vrot.lane.b32.xlu0 %v3465, 20
        %v3909 = vpop.permute.xlu0 %3908
        %3910 = vrot.lane.b32.xlu0 %v3610, 20
        %v3911 = vpop.permute.xlu0 %3910
        %3916 = vrot.lane.b32.xlu0 %v3175, 21
        %v3917 = vpop.permute.xlu0 %3916
        %3918 = vrot.lane.b32.xlu0 %v3320, 21
        %v3919 = vpop.permute.xlu0 %3918
        %3920 = vrot.lane.b32.xlu0 %v3465, 21
        %v3921 = vpop.permute.xlu0 %3920
        %3922 = vrot.lane.b32.xlu0 %v3610, 21
        %v3923 = vpop.permute.xlu0 %3922
        %3928 = vrot.lane.b32.xlu0 %v3175, 22
        %v3929 = vpop.permute.xlu0 %3928
        %3930 = vrot.lane.b32.xlu0 %v3320, 22
        %v3931 = vpop.permute.xlu0 %3930
        %3932 = vrot.lane.b32.xlu0 %v3465, 22
        %v3933 = vpop.permute.xlu0 %3932
        %3934 = vrot.lane.b32.xlu0 %v3610, 22
        %v3935 = vpop.permute.xlu0 %3934
        %3940 = vrot.lane.b32.xlu0 %v3175, 23
        %v3941 = vpop.permute.xlu0 %3940
        %3942 = vrot.lane.b32.xlu0 %v3320, 23
        %v3943 = vpop.permute.xlu0 %3942
        %3944 = vrot.lane.b32.xlu0 %v3465, 23
        %v3945 = vpop.permute.xlu0 %3944
        %3946 = vrot.lane.b32.xlu0 %v3610, 23
        %v3947 = vpop.permute.xlu0 %3946
        %3952 = vrot.lane.b32.xlu0 %v3175, 24
        %v3953 = vpop.permute.xlu0 %3952
        %3954 = vrot.lane.b32.xlu0 %v3320, 24
        %v3955 = vpop.permute.xlu0 %3954
        %3956 = vrot.lane.b32.xlu0 %v3465, 24
        %v3957 = vpop.permute.xlu0 %3956
        %3958 = vrot.lane.b32.xlu0 %v3610, 24
        %v3959 = vpop.permute.xlu0 %3958
        %3968 = vrot.lane.b32.xlu0 %v3178, 25
        %v3969 = vpop.permute.xlu0 %3968
        %3970 = vrot.lane.b32.xlu0 %v3323, 25
        %v3971 = vpop.permute.xlu0 %3970
        %3972 = vrot.lane.b32.xlu0 %v3468, 25
        %v3973 = vpop.permute.xlu0 %3972
        %3974 = vrot.lane.b32.xlu0 %v3613, 25
        %v3975 = vpop.permute.xlu0 %3974
        %3980 = vrot.lane.b32.xlu0 %v3178, 26
        %v3981 = vpop.permute.xlu0 %3980
        %3982 = vrot.lane.b32.xlu0 %v3323, 26
        %v3983 = vpop.permute.xlu0 %3982
        %3984 = vrot.lane.b32.xlu0 %v3468, 26
        %v3985 = vpop.permute.xlu0 %3984
        %3986 = vrot.lane.b32.xlu0 %v3613, 26
        %v3987 = vpop.permute.xlu0 %3986
        %3992 = vrot.lane.b32.xlu0 %v3178, 27
        %v3993 = vpop.permute.xlu0 %3992
        %3994 = vrot.lane.b32.xlu0 %v3323, 27
        %v3995 = vpop.permute.xlu0 %3994
        %3996 = vrot.lane.b32.xlu0 %v3468, 27
        %v3997 = vpop.permute.xlu0 %3996
        %3998 = vrot.lane.b32.xlu0 %v3613, 27
        %v3999 = vpop.permute.xlu0 %3998
        %4004 = vrot.lane.b32.xlu0 %v3178, 28
        %v4005 = vpop.permute.xlu0 %4004
        %4006 = vrot.lane.b32.xlu0 %v3323, 28
        %v4007 = vpop.permute.xlu0 %4006
        %4008 = vrot.lane.b32.xlu0 %v3468, 28
        %v4009 = vpop.permute.xlu0 %4008
        %4010 = vrot.lane.b32.xlu0 %v3613, 28
        %v4011 = vpop.permute.xlu0 %4010
        %4016 = vrot.lane.b32.xlu0 %v3178, 29
        %v4017 = vpop.permute.xlu0 %4016
        %4018 = vrot.lane.b32.xlu0 %v3323, 29
        %v4019 = vpop.permute.xlu0 %4018
        %4020 = vrot.lane.b32.xlu0 %v3468, 29
        %v4021 = vpop.permute.xlu0 %4020
        %4022 = vrot.lane.b32.xlu0 %v3613, 29
        %v4023 = vpop.permute.xlu0 %4022
        %4028 = vrot.lane.b32.xlu0 %v3178, 30
        %v4029 = vpop.permute.xlu0 %4028
        %4030 = vrot.lane.b32.xlu0 %v3323, 30
        %v4031 = vpop.permute.xlu0 %4030
        %4032 = vrot.lane.b32.xlu0 %v3468, 30
        %v4033 = vpop.permute.xlu0 %4032
        %4034 = vrot.lane.b32.xlu0 %v3613, 30
        %v4035 = vpop.permute.xlu0 %4034
        %4040 = vrot.lane.b32.xlu0 %v3178, 31
        %v4041 = vpop.permute.xlu0 %4040
        %4042 = vrot.lane.b32.xlu0 %v3323, 31
        %v4043 = vpop.permute.xlu0 %4042
        %4044 = vrot.lane.b32.xlu0 %v3468, 31
        %v4045 = vpop.permute.xlu0 %4044
        %4046 = vrot.lane.b32.xlu0 %v3613, 31
        %v4047 = vpop.permute.xlu0 %4046
        %4052 = vrot.lane.b32.xlu0 %v3178, 32
        %v4053 = vpop.permute.xlu0 %4052
        %4054 = vrot.lane.b32.xlu0 %v3323, 32
        %v4055 = vpop.permute.xlu0 %4054
        %4056 = vrot.lane.b32.xlu0 %v3468, 32
        %v4057 = vpop.permute.xlu0 %4056
        %4058 = vrot.lane.b32.xlu0 %v3613, 32
        %v4059 = vpop.permute.xlu0 %4058
        %4068 = vrot.lane.b32.xlu0 %v3183, 33
        %v4069 = vpop.permute.xlu0 %4068
        %4070 = vrot.lane.b32.xlu0 %v3328, 33
        %v4071 = vpop.permute.xlu0 %4070
        %4072 = vrot.lane.b32.xlu0 %v3473, 33
        %v4073 = vpop.permute.xlu0 %4072
        %4074 = vrot.lane.b32.xlu0 %v3618, 33
        %v4075 = vpop.permute.xlu0 %4074
        %4080 = vrot.lane.b32.xlu0 %v3183, 34
        %v4081 = vpop.permute.xlu0 %4080
        %4082 = vrot.lane.b32.xlu0 %v3328, 34
        %v4083 = vpop.permute.xlu0 %4082
        %4084 = vrot.lane.b32.xlu0 %v3473, 34
        %v4085 = vpop.permute.xlu0 %4084
        %4086 = vrot.lane.b32.xlu0 %v3618, 34
        %v4087 = vpop.permute.xlu0 %4086
        %4092 = vrot.lane.b32.xlu0 %v3183, 35
        %v4093 = vpop.permute.xlu0 %4092
        %4094 = vrot.lane.b32.xlu0 %v3328, 35
        %v4095 = vpop.permute.xlu0 %4094
        %4096 = vrot.lane.b32.xlu0 %v3473, 35
        %v4097 = vpop.permute.xlu0 %4096
        %4098 = vrot.lane.b32.xlu0 %v3618, 35
        %v4099 = vpop.permute.xlu0 %4098
        %4104 = vrot.lane.b32.xlu0 %v3183, 36
        %v4105 = vpop.permute.xlu0 %4104
        %4106 = vrot.lane.b32.xlu0 %v3328, 36
        %v4107 = vpop.permute.xlu0 %4106
        %4108 = vrot.lane.b32.xlu0 %v3473, 36
        %v4109 = vpop.permute.xlu0 %4108
        %4110 = vrot.lane.b32.xlu0 %v3618, 36
        %v4111 = vpop.permute.xlu0 %4110
        %4116 = vrot.lane.b32.xlu0 %v3183, 37
        %v4117 = vpop.permute.xlu0 %4116
        %4118 = vrot.lane.b32.xlu0 %v3328, 37
        %v4119 = vpop.permute.xlu0 %4118
        %4120 = vrot.lane.b32.xlu0 %v3473, 37
        %v4121 = vpop.permute.xlu0 %4120
        %4122 = vrot.lane.b32.xlu0 %v3618, 37
        %v4123 = vpop.permute.xlu0 %4122
        %4128 = vrot.lane.b32.xlu0 %v3183, 38
        %v4129 = vpop.permute.xlu0 %4128
        %4130 = vrot.lane.b32.xlu0 %v3328, 38
        %v4131 = vpop.permute.xlu0 %4130
        %4132 = vrot.lane.b32.xlu0 %v3473, 38
        %v4133 = vpop.permute.xlu0 %4132
        %4134 = vrot.lane.b32.xlu0 %v3618, 38
        %v4135 = vpop.permute.xlu0 %4134
        %4140 = vrot.lane.b32.xlu0 %v3183, 39
        %v4141 = vpop.permute.xlu0 %4140
        %4142 = vrot.lane.b32.xlu0 %v3328, 39
        %v4143 = vpop.permute.xlu0 %4142
        %4144 = vrot.lane.b32.xlu0 %v3473, 39
        %v4145 = vpop.permute.xlu0 %4144
        %4146 = vrot.lane.b32.xlu0 %v3618, 39
        %v4147 = vpop.permute.xlu0 %4146
        %4152 = vrot.lane.b32.xlu0 %v3183, 40
        %v4153 = vpop.permute.xlu0 %4152
        %4154 = vrot.lane.b32.xlu0 %v3328, 40
        %v4155 = vpop.permute.xlu0 %4154
        %4156 = vrot.lane.b32.xlu0 %v3473, 40
        %v4157 = vpop.permute.xlu0 %4156
        %4158 = vrot.lane.b32.xlu0 %v3618, 40
        %v4159 = vpop.permute.xlu0 %4158
        %4168 = vrot.lane.b32.xlu0 %v3186, 41
        %v4169 = vpop.permute.xlu0 %4168
        %4170 = vrot.lane.b32.xlu0 %v3331, 41
        %v4171 = vpop.permute.xlu0 %4170
        %4172 = vrot.lane.b32.xlu0 %v3476, 41
        %v4173 = vpop.permute.xlu0 %4172
        %4174 = vrot.lane.b32.xlu0 %v3621, 41
        %v4175 = vpop.permute.xlu0 %4174
        %4180 = vrot.lane.b32.xlu0 %v3186, 42
        %v4181 = vpop.permute.xlu0 %4180
        %4182 = vrot.lane.b32.xlu0 %v3331, 42
        %v4183 = vpop.permute.xlu0 %4182
        %4184 = vrot.lane.b32.xlu0 %v3476, 42
        %v4185 = vpop.permute.xlu0 %4184
        %4186 = vrot.lane.b32.xlu0 %v3621, 42
        %v4187 = vpop.permute.xlu0 %4186
        %4192 = vrot.lane.b32.xlu0 %v3186, 43
        %v4193 = vpop.permute.xlu0 %4192
        %4194 = vrot.lane.b32.xlu0 %v3331, 43
        %v4195 = vpop.permute.xlu0 %4194
        %4196 = vrot.lane.b32.xlu0 %v3476, 43
        %v4197 = vpop.permute.xlu0 %4196
        %4198 = vrot.lane.b32.xlu0 %v3621, 43
        %v4199 = vpop.permute.xlu0 %4198
        %4204 = vrot.lane.b32.xlu0 %v3186, 44
        %v4205 = vpop.permute.xlu0 %4204
        %4206 = vrot.lane.b32.xlu0 %v3331, 44
        %v4207 = vpop.permute.xlu0 %4206
        %4208 = vrot.lane.b32.xlu0 %v3476, 44
        %v4209 = vpop.permute.xlu0 %4208
        %4210 = vrot.lane.b32.xlu0 %v3621, 44
        %v4211 = vpop.permute.xlu0 %4210
        %4216 = vrot.lane.b32.xlu0 %v3186, 45
        %v4217 = vpop.permute.xlu0 %4216
        %4218 = vrot.lane.b32.xlu0 %v3331, 45
        %v4219 = vpop.permute.xlu0 %4218
        %4220 = vrot.lane.b32.xlu0 %v3476, 45
        %v4221 = vpop.permute.xlu0 %4220
        %4222 = vrot.lane.b32.xlu0 %v3621, 45
        %v4223 = vpop.permute.xlu0 %4222
        %4228 = vrot.lane.b32.xlu0 %v3186, 46
        %v4229 = vpop.permute.xlu0 %4228
        %4230 = vrot.lane.b32.xlu0 %v3331, 46
        %v4231 = vpop.permute.xlu0 %4230
        %4232 = vrot.lane.b32.xlu0 %v3476, 46
        %v4233 = vpop.permute.xlu0 %4232
        %4234 = vrot.lane.b32.xlu0 %v3621, 46
        %v4235 = vpop.permute.xlu0 %4234
        %4240 = vrot.lane.b32.xlu0 %v3186, 47
        %v4241 = vpop.permute.xlu0 %4240
        %4242 = vrot.lane.b32.xlu0 %v3331, 47
        %v4243 = vpop.permute.xlu0 %4242
        %4244 = vrot.lane.b32.xlu0 %v3476, 47
        %v4245 = vpop.permute.xlu0 %4244
        %4246 = vrot.lane.b32.xlu0 %v3621, 47
        %v4247 = vpop.permute.xlu0 %4246
        %4252 = vrot.lane.b32.xlu0 %v3186, 48
        %v4253 = vpop.permute.xlu0 %4252
        %4254 = vrot.lane.b32.xlu0 %v3331, 48
        %v4255 = vpop.permute.xlu0 %4254
        %4256 = vrot.lane.b32.xlu0 %v3476, 48
        %v4257 = vpop.permute.xlu0 %4256
        %4258 = vrot.lane.b32.xlu0 %v3621, 48
        %v4259 = vpop.permute.xlu0 %4258
        %4268 = vrot.lane.b32.xlu0 %v3191, 49
        %v4269 = vpop.permute.xlu0 %4268
        %4270 = vrot.lane.b32.xlu0 %v3336, 49
        %v4271 = vpop.permute.xlu0 %4270
        %4272 = vrot.lane.b32.xlu0 %v3481, 49
        %v4273 = vpop.permute.xlu0 %4272
        %4274 = vrot.lane.b32.xlu0 %v3626, 49
        %v4275 = vpop.permute.xlu0 %4274
        %4280 = vrot.lane.b32.xlu0 %v3191, 50
        %v4281 = vpop.permute.xlu0 %4280
        %4282 = vrot.lane.b32.xlu0 %v3336, 50
        %v4283 = vpop.permute.xlu0 %4282
        %4284 = vrot.lane.b32.xlu0 %v3481, 50
        %v4285 = vpop.permute.xlu0 %4284
        %4286 = vrot.lane.b32.xlu0 %v3626, 50
        %v4287 = vpop.permute.xlu0 %4286
        %4292 = vrot.lane.b32.xlu0 %v3191, 51
        %v4293 = vpop.permute.xlu0 %4292
        %4294 = vrot.lane.b32.xlu0 %v3336, 51
        %v4295 = vpop.permute.xlu0 %4294
        %4296 = vrot.lane.b32.xlu0 %v3481, 51
        %v4297 = vpop.permute.xlu0 %4296
        %4298 = vrot.lane.b32.xlu0 %v3626, 51
        %v4299 = vpop.permute.xlu0 %4298
        %4304 = vrot.lane.b32.xlu0 %v3191, 52
        %v4305 = vpop.permute.xlu0 %4304
        %4306 = vrot.lane.b32.xlu0 %v3336, 52
        %v4307 = vpop.permute.xlu0 %4306
        %4308 = vrot.lane.b32.xlu0 %v3481, 52
        %v4309 = vpop.permute.xlu0 %4308
        %4310 = vrot.lane.b32.xlu0 %v3626, 52
        %v4311 = vpop.permute.xlu0 %4310
        %4316 = vrot.lane.b32.xlu0 %v3191, 53
        %v4317 = vpop.permute.xlu0 %4316
        %4318 = vrot.lane.b32.xlu0 %v3336, 53
        %v4319 = vpop.permute.xlu0 %4318
        %4320 = vrot.lane.b32.xlu0 %v3481, 53
        %v4321 = vpop.permute.xlu0 %4320
        %4322 = vrot.lane.b32.xlu0 %v3626, 53
        %v4323 = vpop.permute.xlu0 %4322
        %4328 = vrot.lane.b32.xlu0 %v3191, 54
        %v4329 = vpop.permute.xlu0 %4328
        %4330 = vrot.lane.b32.xlu0 %v3336, 54
        %v4331 = vpop.permute.xlu0 %4330
        %4332 = vrot.lane.b32.xlu0 %v3481, 54
        %v4333 = vpop.permute.xlu0 %4332
        %4334 = vrot.lane.b32.xlu0 %v3626, 54
        %v4335 = vpop.permute.xlu0 %4334
        %4340 = vrot.lane.b32.xlu0 %v3191, 55
        %v4341 = vpop.permute.xlu0 %4340
        %4342 = vrot.lane.b32.xlu0 %v3336, 55
        %v4343 = vpop.permute.xlu0 %4342
        %4344 = vrot.lane.b32.xlu0 %v3481, 55
        %v4345 = vpop.permute.xlu0 %4344
        %4346 = vrot.lane.b32.xlu0 %v3626, 55
        %v4347 = vpop.permute.xlu0 %4346
        %4352 = vrot.lane.b32.xlu0 %v3191, 56
        %v4353 = vpop.permute.xlu0 %4352
        %4354 = vrot.lane.b32.xlu0 %v3336, 56
        %v4355 = vpop.permute.xlu0 %4354
        %4356 = vrot.lane.b32.xlu0 %v3481, 56
        %v4357 = vpop.permute.xlu0 %4356
        %4358 = vrot.lane.b32.xlu0 %v3626, 56
        %v4359 = vpop.permute.xlu0 %4358
        %4368 = vrot.lane.b32.xlu0 %v3194, 57
        %v4369 = vpop.permute.xlu0 %4368
        %4370 = vrot.lane.b32.xlu0 %v3339, 57
        %v4371 = vpop.permute.xlu0 %4370
        %4372 = vrot.lane.b32.xlu0 %v3484, 57
        %v4373 = vpop.permute.xlu0 %4372
        %4374 = vrot.lane.b32.xlu0 %v3629, 57
        %v4375 = vpop.permute.xlu0 %4374
        %4380 = vrot.lane.b32.xlu0 %v3194, 58
        %v4381 = vpop.permute.xlu0 %4380
        %4382 = vrot.lane.b32.xlu0 %v3339, 58
        %v4383 = vpop.permute.xlu0 %4382
        %4384 = vrot.lane.b32.xlu0 %v3484, 58
        %v4385 = vpop.permute.xlu0 %4384
        %4386 = vrot.lane.b32.xlu0 %v3629, 58
        %v4387 = vpop.permute.xlu0 %4386
        %4392 = vrot.lane.b32.xlu0 %v3194, 59
        %v4393 = vpop.permute.xlu0 %4392
        %4394 = vrot.lane.b32.xlu0 %v3339, 59
        %v4395 = vpop.permute.xlu0 %4394
        %4396 = vrot.lane.b32.xlu0 %v3484, 59
        %v4397 = vpop.permute.xlu0 %4396
        %4398 = vrot.lane.b32.xlu0 %v3629, 59
        %v4399 = vpop.permute.xlu0 %4398
        %4404 = vrot.lane.b32.xlu0 %v3194, 60
        %v4405 = vpop.permute.xlu0 %4404
        %4406 = vrot.lane.b32.xlu0 %v3339, 60
        %v4407 = vpop.permute.xlu0 %4406
        %4408 = vrot.lane.b32.xlu0 %v3484, 60
        %v4409 = vpop.permute.xlu0 %4408
        %4410 = vrot.lane.b32.xlu0 %v3629, 60
        %v4411 = vpop.permute.xlu0 %4410
        %4416 = vrot.lane.b32.xlu0 %v3194, 61
        %v4417 = vpop.permute.xlu0 %4416
        %4418 = vrot.lane.b32.xlu0 %v3339, 61
        %v4419 = vpop.permute.xlu0 %4418
        %4420 = vrot.lane.b32.xlu0 %v3484, 61
        %v4421 = vpop.permute.xlu0 %4420
        %4422 = vrot.lane.b32.xlu0 %v3629, 61
        %v4423 = vpop.permute.xlu0 %4422
        %4428 = vrot.lane.b32.xlu0 %v3194, 62
        %v4429 = vpop.permute.xlu0 %4428
        %4430 = vrot.lane.b32.xlu0 %v3339, 62
        %v4431 = vpop.permute.xlu0 %4430
        %4432 = vrot.lane.b32.xlu0 %v3484, 62
        %v4433 = vpop.permute.xlu0 %4432
        %4434 = vrot.lane.b32.xlu0 %v3629, 62
        %v4435 = vpop.permute.xlu0 %4434
        %4440 = vrot.lane.b32.xlu0 %v3194, 63
        %v4441 = vpop.permute.xlu0 %4440
        %4442 = vrot.lane.b32.xlu0 %v3339, 63
        %v4443 = vpop.permute.xlu0 %4442
        %4444 = vrot.lane.b32.xlu0 %v3484, 63
        %v4445 = vpop.permute.xlu0 %4444
        %4446 = vrot.lane.b32.xlu0 %v3629, 63
        %v4447 = vpop.permute.xlu0 %4446
        %4452 = vrot.lane.b32.xlu0 %v3194, 64
        %v4453 = vpop.permute.xlu0 %4452
        %4454 = vrot.lane.b32.xlu0 %v3339, 64
        %v4455 = vpop.permute.xlu0 %4454
        %4456 = vrot.lane.b32.xlu0 %v3484, 64
        %v4457 = vpop.permute.xlu0 %4456
        %4458 = vrot.lane.b32.xlu0 %v3629, 64
        %v4459 = vpop.permute.xlu0 %4458
        %4468 = vrot.lane.b32.xlu0 %v3199, 65
        %v4469 = vpop.permute.xlu0 %4468
        %4470 = vrot.lane.b32.xlu0 %v3344, 65
        %v4471 = vpop.permute.xlu0 %4470
        %4472 = vrot.lane.b32.xlu0 %v3489, 65
        %v4473 = vpop.permute.xlu0 %4472
        %4474 = vrot.lane.b32.xlu0 %v3634, 65
        %v4475 = vpop.permute.xlu0 %4474
        %4480 = vrot.lane.b32.xlu0 %v3199, 66
        %v4481 = vpop.permute.xlu0 %4480
        %4482 = vrot.lane.b32.xlu0 %v3344, 66
        %v4483 = vpop.permute.xlu0 %4482
        %4484 = vrot.lane.b32.xlu0 %v3489, 66
        %v4485 = vpop.permute.xlu0 %4484
        %4486 = vrot.lane.b32.xlu0 %v3634, 66
        %v4487 = vpop.permute.xlu0 %4486
        %4492 = vrot.lane.b32.xlu0 %v3199, 67
        %v4493 = vpop.permute.xlu0 %4492
        %4494 = vrot.lane.b32.xlu0 %v3344, 67
        %v4495 = vpop.permute.xlu0 %4494
        %4496 = vrot.lane.b32.xlu0 %v3489, 67
        %v4497 = vpop.permute.xlu0 %4496
        %4498 = vrot.lane.b32.xlu0 %v3634, 67
        %v4499 = vpop.permute.xlu0 %4498
        %4504 = vrot.lane.b32.xlu0 %v3199, 68
        %v4505 = vpop.permute.xlu0 %4504
        %4506 = vrot.lane.b32.xlu0 %v3344, 68
        %v4507 = vpop.permute.xlu0 %4506
        %4508 = vrot.lane.b32.xlu0 %v3489, 68
        %v4509 = vpop.permute.xlu0 %4508
        %4510 = vrot.lane.b32.xlu0 %v3634, 68
        %v4511 = vpop.permute.xlu0 %4510
        %4516 = vrot.lane.b32.xlu0 %v3199, 69
        %v4517 = vpop.permute.xlu0 %4516
        %4518 = vrot.lane.b32.xlu0 %v3344, 69
        %v4519 = vpop.permute.xlu0 %4518
        %4520 = vrot.lane.b32.xlu0 %v3489, 69
        %v4521 = vpop.permute.xlu0 %4520
        %4522 = vrot.lane.b32.xlu0 %v3634, 69
        %v4523 = vpop.permute.xlu0 %4522
        %4528 = vrot.lane.b32.xlu0 %v3199, 70
        %v4529 = vpop.permute.xlu0 %4528
        %4530 = vrot.lane.b32.xlu0 %v3344, 70
        %v4531 = vpop.permute.xlu0 %4530
        %4532 = vrot.lane.b32.xlu0 %v3489, 70
        %v4533 = vpop.permute.xlu0 %4532
        %4534 = vrot.lane.b32.xlu0 %v3634, 70
        %v4535 = vpop.permute.xlu0 %4534
        %4540 = vrot.lane.b32.xlu0 %v3199, 71
        %v4541 = vpop.permute.xlu0 %4540
        %4542 = vrot.lane.b32.xlu0 %v3344, 71
        %v4543 = vpop.permute.xlu0 %4542
        %4544 = vrot.lane.b32.xlu0 %v3489, 71
        %v4545 = vpop.permute.xlu0 %4544
        %4546 = vrot.lane.b32.xlu0 %v3634, 71
        %v4547 = vpop.permute.xlu0 %4546
        %4552 = vrot.lane.b32.xlu0 %v3199, 72
        %v4553 = vpop.permute.xlu0 %4552
        %4554 = vrot.lane.b32.xlu0 %v3344, 72
        %v4555 = vpop.permute.xlu0 %4554
        %4556 = vrot.lane.b32.xlu0 %v3489, 72
        %v4557 = vpop.permute.xlu0 %4556
        %4558 = vrot.lane.b32.xlu0 %v3634, 72
        %v4559 = vpop.permute.xlu0 %4558
        %4568 = vrot.lane.b32.xlu0 %v3202, 73
        %v4569 = vpop.permute.xlu0 %4568
        %4570 = vrot.lane.b32.xlu0 %v3347, 73
        %v4571 = vpop.permute.xlu0 %4570
        %4572 = vrot.lane.b32.xlu0 %v3492, 73
        %v4573 = vpop.permute.xlu0 %4572
        %4574 = vrot.lane.b32.xlu0 %v3637, 73
        %v4575 = vpop.permute.xlu0 %4574
        %4580 = vrot.lane.b32.xlu0 %v3202, 74
        %v4581 = vpop.permute.xlu0 %4580
        %4582 = vrot.lane.b32.xlu0 %v3347, 74
        %v4583 = vpop.permute.xlu0 %4582
        %4584 = vrot.lane.b32.xlu0 %v3492, 74
        %v4585 = vpop.permute.xlu0 %4584
        %4586 = vrot.lane.b32.xlu0 %v3637, 74
        %v4587 = vpop.permute.xlu0 %4586
        %4592 = vrot.lane.b32.xlu0 %v3202, 75
        %v4593 = vpop.permute.xlu0 %4592
        %4594 = vrot.lane.b32.xlu0 %v3347, 75
        %v4595 = vpop.permute.xlu0 %4594
        %4596 = vrot.lane.b32.xlu0 %v3492, 75
        %v4597 = vpop.permute.xlu0 %4596
        %4598 = vrot.lane.b32.xlu0 %v3637, 75
        %v4599 = vpop.permute.xlu0 %4598
        %4604 = vrot.lane.b32.xlu0 %v3202, 76
        %v4605 = vpop.permute.xlu0 %4604
        %4606 = vrot.lane.b32.xlu0 %v3347, 76
        %v4607 = vpop.permute.xlu0 %4606
        %4608 = vrot.lane.b32.xlu0 %v3492, 76
        %v4609 = vpop.permute.xlu0 %4608
        %4610 = vrot.lane.b32.xlu0 %v3637, 76
        %v4611 = vpop.permute.xlu0 %4610
        %4616 = vrot.lane.b32.xlu0 %v3202, 77
        %v4617 = vpop.permute.xlu0 %4616
        %4618 = vrot.lane.b32.xlu0 %v3347, 77
        %v4619 = vpop.permute.xlu0 %4618
        %4620 = vrot.lane.b32.xlu0 %v3492, 77
        %v4621 = vpop.permute.xlu0 %4620
        %4622 = vrot.lane.b32.xlu0 %v3637, 77
        %v4623 = vpop.permute.xlu0 %4622
        %4628 = vrot.lane.b32.xlu0 %v3202, 78
        %v4629 = vpop.permute.xlu0 %4628
        %4630 = vrot.lane.b32.xlu0 %v3347, 78
        %v4631 = vpop.permute.xlu0 %4630
        %4632 = vrot.lane.b32.xlu0 %v3492, 78
        %v4633 = vpop.permute.xlu0 %4632
        %4634 = vrot.lane.b32.xlu0 %v3637, 78
        %v4635 = vpop.permute.xlu0 %4634
        %4640 = vrot.lane.b32.xlu0 %v3202, 79
        %v4641 = vpop.permute.xlu0 %4640
        %4642 = vrot.lane.b32.xlu0 %v3347, 79
        %v4643 = vpop.permute.xlu0 %4642
        %4644 = vrot.lane.b32.xlu0 %v3492, 79
        %v4645 = vpop.permute.xlu0 %4644
        %4646 = vrot.lane.b32.xlu0 %v3637, 79
        %v4647 = vpop.permute.xlu0 %4646
        %4652 = vrot.lane.b32.xlu0 %v3202, 80
        %v4653 = vpop.permute.xlu0 %4652
        %4654 = vrot.lane.b32.xlu0 %v3347, 80
        %v4655 = vpop.permute.xlu0 %4654
        %4656 = vrot.lane.b32.xlu0 %v3492, 80
        %v4657 = vpop.permute.xlu0 %4656
        %4658 = vrot.lane.b32.xlu0 %v3637, 80
        %v4659 = vpop.permute.xlu0 %4658
        %4668 = vrot.lane.b32.xlu0 %v3207, 81
        %v4669 = vpop.permute.xlu0 %4668
        %4670 = vrot.lane.b32.xlu0 %v3352, 81
        %v4671 = vpop.permute.xlu0 %4670
        %4672 = vrot.lane.b32.xlu0 %v3497, 81
        %v4673 = vpop.permute.xlu0 %4672
        %4674 = vrot.lane.b32.xlu0 %v3642, 81
        %v4675 = vpop.permute.xlu0 %4674
        %4680 = vrot.lane.b32.xlu0 %v3207, 82
        %v4681 = vpop.permute.xlu0 %4680
        %4682 = vrot.lane.b32.xlu0 %v3352, 82
        %v4683 = vpop.permute.xlu0 %4682
        %4684 = vrot.lane.b32.xlu0 %v3497, 82
        %v4685 = vpop.permute.xlu0 %4684
        %4686 = vrot.lane.b32.xlu0 %v3642, 82
        %v4687 = vpop.permute.xlu0 %4686
        %4692 = vrot.lane.b32.xlu0 %v3207, 83
        %v4693 = vpop.permute.xlu0 %4692
        %4694 = vrot.lane.b32.xlu0 %v3352, 83
        %v4695 = vpop.permute.xlu0 %4694
        %4696 = vrot.lane.b32.xlu0 %v3497, 83
        %v4697 = vpop.permute.xlu0 %4696
        %4698 = vrot.lane.b32.xlu0 %v3642, 83
        %v4699 = vpop.permute.xlu0 %4698
        %4704 = vrot.lane.b32.xlu0 %v3207, 84
        %v4705 = vpop.permute.xlu0 %4704
        %4706 = vrot.lane.b32.xlu0 %v3352, 84
        %v4707 = vpop.permute.xlu0 %4706
        %4708 = vrot.lane.b32.xlu0 %v3497, 84
        %v4709 = vpop.permute.xlu0 %4708
        %4710 = vrot.lane.b32.xlu0 %v3642, 84
        %v4711 = vpop.permute.xlu0 %4710
        %4716 = vrot.lane.b32.xlu0 %v3207, 85
        %v4717 = vpop.permute.xlu0 %4716
        %4718 = vrot.lane.b32.xlu0 %v3352, 85
        %v4719 = vpop.permute.xlu0 %4718
        %4720 = vrot.lane.b32.xlu0 %v3497, 85
        %v4721 = vpop.permute.xlu0 %4720
        %4722 = vrot.lane.b32.xlu0 %v3642, 85
        %v4723 = vpop.permute.xlu0 %4722
        %4728 = vrot.lane.b32.xlu0 %v3207, 86
        %v4729 = vpop.permute.xlu0 %4728
        %4730 = vrot.lane.b32.xlu0 %v3352, 86
        %v4731 = vpop.permute.xlu0 %4730
        %4732 = vrot.lane.b32.xlu0 %v3497, 86
        %v4733 = vpop.permute.xlu0 %4732
        %4734 = vrot.lane.b32.xlu0 %v3642, 86
        %v4735 = vpop.permute.xlu0 %4734
        %4740 = vrot.lane.b32.xlu0 %v3207, 87
        %v4741 = vpop.permute.xlu0 %4740
        %4742 = vrot.lane.b32.xlu0 %v3352, 87
        %v4743 = vpop.permute.xlu0 %4742
        %4744 = vrot.lane.b32.xlu0 %v3497, 87
        %v4745 = vpop.permute.xlu0 %4744
        %4746 = vrot.lane.b32.xlu0 %v3642, 87
        %v4747 = vpop.permute.xlu0 %4746
        %4752 = vrot.lane.b32.xlu0 %v3207, 88
        %v4753 = vpop.permute.xlu0 %4752
        %4754 = vrot.lane.b32.xlu0 %v3352, 88
        %v4755 = vpop.permute.xlu0 %4754
        %4756 = vrot.lane.b32.xlu0 %v3497, 88
        %v4757 = vpop.permute.xlu0 %4756
        %4758 = vrot.lane.b32.xlu0 %v3642, 88
        %v4759 = vpop.permute.xlu0 %4758
        %4768 = vrot.lane.b32.xlu0 %v3210, 89
        %v4769 = vpop.permute.xlu0 %4768
        %4770 = vrot.lane.b32.xlu0 %v3355, 89
        %v4771 = vpop.permute.xlu0 %4770
        %4772 = vrot.lane.b32.xlu0 %v3500, 89
        %v4773 = vpop.permute.xlu0 %4772
        %4774 = vrot.lane.b32.xlu0 %v3645, 89
        %v4775 = vpop.permute.xlu0 %4774
        %4780 = vrot.lane.b32.xlu0 %v3210, 90
        %v4781 = vpop.permute.xlu0 %4780
        %4782 = vrot.lane.b32.xlu0 %v3355, 90
        %v4783 = vpop.permute.xlu0 %4782
        %4784 = vrot.lane.b32.xlu0 %v3500, 90
        %v4785 = vpop.permute.xlu0 %4784
        %4786 = vrot.lane.b32.xlu0 %v3645, 90
        %v4787 = vpop.permute.xlu0 %4786
        %4792 = vrot.lane.b32.xlu0 %v3210, 91
        %v4793 = vpop.permute.xlu0 %4792
        %4794 = vrot.lane.b32.xlu0 %v3355, 91
        %v4795 = vpop.permute.xlu0 %4794
        %4796 = vrot.lane.b32.xlu0 %v3500, 91
        %v4797 = vpop.permute.xlu0 %4796
        %4798 = vrot.lane.b32.xlu0 %v3645, 91
        %v4799 = vpop.permute.xlu0 %4798
        %4804 = vrot.lane.b32.xlu0 %v3210, 92
        %v4805 = vpop.permute.xlu0 %4804
        %4806 = vrot.lane.b32.xlu0 %v3355, 92
        %v4807 = vpop.permute.xlu0 %4806
        %4808 = vrot.lane.b32.xlu0 %v3500, 92
        %v4809 = vpop.permute.xlu0 %4808
        %4810 = vrot.lane.b32.xlu0 %v3645, 92
        %v4811 = vpop.permute.xlu0 %4810
        %4816 = vrot.lane.b32.xlu0 %v3210, 93
        %v4817 = vpop.permute.xlu0 %4816
        %4818 = vrot.lane.b32.xlu0 %v3355, 93
        %v4819 = vpop.permute.xlu0 %4818
        %4820 = vrot.lane.b32.xlu0 %v3500, 93
        %v4821 = vpop.permute.xlu0 %4820
        %4822 = vrot.lane.b32.xlu0 %v3645, 93
        %v4823 = vpop.permute.xlu0 %4822
        %4828 = vrot.lane.b32.xlu0 %v3210, 94
        %v4829 = vpop.permute.xlu0 %4828
        %4830 = vrot.lane.b32.xlu0 %v3355, 94
        %v4831 = vpop.permute.xlu0 %4830
        %4832 = vrot.lane.b32.xlu0 %v3500, 94
        %v4833 = vpop.permute.xlu0 %4832
        %4834 = vrot.lane.b32.xlu0 %v3645, 94
        %v4835 = vpop.permute.xlu0 %4834
        %4840 = vrot.lane.b32.xlu0 %v3210, 95
        %v4841 = vpop.permute.xlu0 %4840
        %4842 = vrot.lane.b32.xlu0 %v3355, 95
        %v4843 = vpop.permute.xlu0 %4842
        %4844 = vrot.lane.b32.xlu0 %v3500, 95
        %v4845 = vpop.permute.xlu0 %4844
        %4846 = vrot.lane.b32.xlu0 %v3645, 95
        %v4847 = vpop.permute.xlu0 %4846
        %4852 = vrot.lane.b32.xlu0 %v3210, 96
        %v4853 = vpop.permute.xlu0 %4852
        %4854 = vrot.lane.b32.xlu0 %v3355, 96
        %v4855 = vpop.permute.xlu0 %4854
        %4856 = vrot.lane.b32.xlu0 %v3500, 96
        %v4857 = vpop.permute.xlu0 %4856
        %4858 = vrot.lane.b32.xlu0 %v3645, 96
        %v4859 = vpop.permute.xlu0 %4858
        %4868 = vrot.lane.b32.xlu0 %v3215, 97
        %v4869 = vpop.permute.xlu0 %4868
        %4870 = vrot.lane.b32.xlu0 %v3360, 97
        %v4871 = vpop.permute.xlu0 %4870
        %4872 = vrot.lane.b32.xlu0 %v3505, 97
        %v4873 = vpop.permute.xlu0 %4872
        %4874 = vrot.lane.b32.xlu0 %v3650, 97
        %v4875 = vpop.permute.xlu0 %4874
        %4880 = vrot.lane.b32.xlu0 %v3215, 98
        %v4881 = vpop.permute.xlu0 %4880
        %4882 = vrot.lane.b32.xlu0 %v3360, 98
        %v4883 = vpop.permute.xlu0 %4882
        %4884 = vrot.lane.b32.xlu0 %v3505, 98
        %v4885 = vpop.permute.xlu0 %4884
        %4886 = vrot.lane.b32.xlu0 %v3650, 98
        %v4887 = vpop.permute.xlu0 %4886
        %4892 = vrot.lane.b32.xlu0 %v3215, 99
        %v4893 = vpop.permute.xlu0 %4892
        %4894 = vrot.lane.b32.xlu0 %v3360, 99
        %v4895 = vpop.permute.xlu0 %4894
        %4896 = vrot.lane.b32.xlu0 %v3505, 99
        %v4897 = vpop.permute.xlu0 %4896
        %4898 = vrot.lane.b32.xlu0 %v3650, 99
        %v4899 = vpop.permute.xlu0 %4898
        %4904 = vrot.lane.b32.xlu0 %v3215, 100
        %v4905 = vpop.permute.xlu0 %4904
        %4906 = vrot.lane.b32.xlu0 %v3360, 100
        %v4907 = vpop.permute.xlu0 %4906
        %4908 = vrot.lane.b32.xlu0 %v3505, 100
        %v4909 = vpop.permute.xlu0 %4908
        %4910 = vrot.lane.b32.xlu0 %v3650, 100
        %v4911 = vpop.permute.xlu0 %4910
        %4916 = vrot.lane.b32.xlu0 %v3215, 101
        %v4917 = vpop.permute.xlu0 %4916
        %4918 = vrot.lane.b32.xlu0 %v3360, 101
        %v4919 = vpop.permute.xlu0 %4918
        %4920 = vrot.lane.b32.xlu0 %v3505, 101
        %v4921 = vpop.permute.xlu0 %4920
        %4922 = vrot.lane.b32.xlu0 %v3650, 101
        %v4923 = vpop.permute.xlu0 %4922
        %4928 = vrot.lane.b32.xlu0 %v3215, 102
        %v4929 = vpop.permute.xlu0 %4928
        %4930 = vrot.lane.b32.xlu0 %v3360, 102
        %v4931 = vpop.permute.xlu0 %4930
        %4932 = vrot.lane.b32.xlu0 %v3505, 102
        %v4933 = vpop.permute.xlu0 %4932
        %4934 = vrot.lane.b32.xlu0 %v3650, 102
        %v4935 = vpop.permute.xlu0 %4934
        %4940 = vrot.lane.b32.xlu0 %v3215, 103
        %v4941 = vpop.permute.xlu0 %4940
        %4942 = vrot.lane.b32.xlu0 %v3360, 103
        %v4943 = vpop.permute.xlu0 %4942
        %4944 = vrot.lane.b32.xlu0 %v3505, 103
        %v4945 = vpop.permute.xlu0 %4944
        %4946 = vrot.lane.b32.xlu0 %v3650, 103
        %v4947 = vpop.permute.xlu0 %4946
        %4952 = vrot.lane.b32.xlu0 %v3215, 104
        %v4953 = vpop.permute.xlu0 %4952
        %4954 = vrot.lane.b32.xlu0 %v3360, 104
        %v4955 = vpop.permute.xlu0 %4954
        %4956 = vrot.lane.b32.xlu0 %v3505, 104
        %v4957 = vpop.permute.xlu0 %4956
        %4958 = vrot.lane.b32.xlu0 %v3650, 104
        %v4959 = vpop.permute.xlu0 %4958
        %4968 = vrot.lane.b32.xlu0 %v3218, 105
        %v4969 = vpop.permute.xlu0 %4968
        %4970 = vrot.lane.b32.xlu0 %v3363, 105
        %v4971 = vpop.permute.xlu0 %4970
        %4972 = vrot.lane.b32.xlu0 %v3508, 105
        %v4973 = vpop.permute.xlu0 %4972
        %4974 = vrot.lane.b32.xlu0 %v3653, 105
        %v4975 = vpop.permute.xlu0 %4974
        %4980 = vrot.lane.b32.xlu0 %v3218, 106
        %v4981 = vpop.permute.xlu0 %4980
        %4982 = vrot.lane.b32.xlu0 %v3363, 106
        %v4983 = vpop.permute.xlu0 %4982
        %4984 = vrot.lane.b32.xlu0 %v3508, 106
        %v4985 = vpop.permute.xlu0 %4984
        %4986 = vrot.lane.b32.xlu0 %v3653, 106
        %v4987 = vpop.permute.xlu0 %4986
        %4992 = vrot.lane.b32.xlu0 %v3218, 107
        %v4993 = vpop.permute.xlu0 %4992
        %4994 = vrot.lane.b32.xlu0 %v3363, 107
        %v4995 = vpop.permute.xlu0 %4994
        %4996 = vrot.lane.b32.xlu0 %v3508, 107
        %v4997 = vpop.permute.xlu0 %4996
        %4998 = vrot.lane.b32.xlu0 %v3653, 107
        %v4999 = vpop.permute.xlu0 %4998
        %5004 = vrot.lane.b32.xlu0 %v3218, 108
        %v5005 = vpop.permute.xlu0 %5004
        %5006 = vrot.lane.b32.xlu0 %v3363, 108
        %v5007 = vpop.permute.xlu0 %5006
        %5008 = vrot.lane.b32.xlu0 %v3508, 108
        %v5009 = vpop.permute.xlu0 %5008
        %5010 = vrot.lane.b32.xlu0 %v3653, 108
        %v5011 = vpop.permute.xlu0 %5010
        %5016 = vrot.lane.b32.xlu0 %v3218, 109
        %v5017 = vpop.permute.xlu0 %5016
        %5018 = vrot.lane.b32.xlu0 %v3363, 109
        %v5019 = vpop.permute.xlu0 %5018
        %5020 = vrot.lane.b32.xlu0 %v3508, 109
        %v5021 = vpop.permute.xlu0 %5020
        %5022 = vrot.lane.b32.xlu0 %v3653, 109
        %v5023 = vpop.permute.xlu0 %5022
        %5028 = vrot.lane.b32.xlu0 %v3218, 110
        %v5029 = vpop.permute.xlu0 %5028
        %5030 = vrot.lane.b32.xlu0 %v3363, 110
        %v5031 = vpop.permute.xlu0 %5030
        %5032 = vrot.lane.b32.xlu0 %v3508, 110
        %v5033 = vpop.permute.xlu0 %5032
        %5034 = vrot.lane.b32.xlu0 %v3653, 110
        %v5035 = vpop.permute.xlu0 %5034
        %5040 = vrot.lane.b32.xlu0 %v3218, 111
        %v5041 = vpop.permute.xlu0 %5040
        %5042 = vrot.lane.b32.xlu0 %v3363, 111
        %v5043 = vpop.permute.xlu0 %5042
        %5044 = vrot.lane.b32.xlu0 %v3508, 111
        %v5045 = vpop.permute.xlu0 %5044
        %5046 = vrot.lane.b32.xlu0 %v3653, 111
        %v5047 = vpop.permute.xlu0 %5046
        %5052 = vrot.lane.b32.xlu0 %v3218, 112
        %v5053 = vpop.permute.xlu0 %5052
        %5054 = vrot.lane.b32.xlu0 %v3363, 112
        %v5055 = vpop.permute.xlu0 %5054
        %5056 = vrot.lane.b32.xlu0 %v3508, 112
        %v5057 = vpop.permute.xlu0 %5056
        %5058 = vrot.lane.b32.xlu0 %v3653, 112
        %v5059 = vpop.permute.xlu0 %5058
        %5068 = vrot.lane.b32.xlu0 %v3223, 113
        %v5069 = vpop.permute.xlu0 %5068
        %5070 = vrot.lane.b32.xlu0 %v3368, 113
        %v5071 = vpop.permute.xlu0 %5070
        %5072 = vrot.lane.b32.xlu0 %v3513, 113
        %v5073 = vpop.permute.xlu0 %5072
        %5074 = vrot.lane.b32.xlu0 %v3658, 113
        %v5075 = vpop.permute.xlu0 %5074
        %5080 = vrot.lane.b32.xlu0 %v3223, 114
        %v5081 = vpop.permute.xlu0 %5080
        %5082 = vrot.lane.b32.xlu0 %v3368, 114
        %v5083 = vpop.permute.xlu0 %5082
        %5084 = vrot.lane.b32.xlu0 %v3513, 114
        %v5085 = vpop.permute.xlu0 %5084
        %5086 = vrot.lane.b32.xlu0 %v3658, 114
        %v5087 = vpop.permute.xlu0 %5086
        %5092 = vrot.lane.b32.xlu0 %v3223, 115
        %v5093 = vpop.permute.xlu0 %5092
        %5094 = vrot.lane.b32.xlu0 %v3368, 115
        %v5095 = vpop.permute.xlu0 %5094
        %5096 = vrot.lane.b32.xlu0 %v3513, 115
        %v5097 = vpop.permute.xlu0 %5096
        %5098 = vrot.lane.b32.xlu0 %v3658, 115
        %v5099 = vpop.permute.xlu0 %5098
        %5104 = vrot.lane.b32.xlu0 %v3223, 116
        %v5105 = vpop.permute.xlu0 %5104
        %5106 = vrot.lane.b32.xlu0 %v3368, 116
        %v5107 = vpop.permute.xlu0 %5106
        %5108 = vrot.lane.b32.xlu0 %v3513, 116
        %v5109 = vpop.permute.xlu0 %5108
        %5110 = vrot.lane.b32.xlu0 %v3658, 116
        %v5111 = vpop.permute.xlu0 %5110
        %5116 = vrot.lane.b32.xlu0 %v3223, 117
        %v5117 = vpop.permute.xlu0 %5116
        %5118 = vrot.lane.b32.xlu0 %v3368, 117
        %v5119 = vpop.permute.xlu0 %5118
        %5120 = vrot.lane.b32.xlu0 %v3513, 117
        %v5121 = vpop.permute.xlu0 %5120
        %5122 = vrot.lane.b32.xlu0 %v3658, 117
        %v5123 = vpop.permute.xlu0 %5122
        %5128 = vrot.lane.b32.xlu0 %v3223, 118
        %v5129 = vpop.permute.xlu0 %5128
        %5130 = vrot.lane.b32.xlu0 %v3368, 118
        %v5131 = vpop.permute.xlu0 %5130
        %5132 = vrot.lane.b32.xlu0 %v3513, 118
        %v5133 = vpop.permute.xlu0 %5132
        %5134 = vrot.lane.b32.xlu0 %v3658, 118
        %v5135 = vpop.permute.xlu0 %5134
        %5140 = vrot.lane.b32.xlu0 %v3223, 119
        %v5141 = vpop.permute.xlu0 %5140
        %5142 = vrot.lane.b32.xlu0 %v3368, 119
        %v5143 = vpop.permute.xlu0 %5142
        %5144 = vrot.lane.b32.xlu0 %v3513, 119
        %v5145 = vpop.permute.xlu0 %5144
        %5146 = vrot.lane.b32.xlu0 %v3658, 119
        %v5147 = vpop.permute.xlu0 %5146
        %5152 = vrot.lane.b32.xlu0 %v3223, 120
        %v5153 = vpop.permute.xlu0 %5152
        %5154 = vrot.lane.b32.xlu0 %v3368, 120
        %v5155 = vpop.permute.xlu0 %5154
        %5156 = vrot.lane.b32.xlu0 %v3513, 120
        %v5157 = vpop.permute.xlu0 %5156
        %5158 = vrot.lane.b32.xlu0 %v3658, 120
        %v5159 = vpop.permute.xlu0 %5158
        %5168 = vrot.lane.b32.xlu0 %v3226, 121
        %v5169 = vpop.permute.xlu0 %5168
        %5170 = vrot.lane.b32.xlu0 %v3371, 121
        %v5171 = vpop.permute.xlu0 %5170
        %5172 = vrot.lane.b32.xlu0 %v3516, 121
        %v5173 = vpop.permute.xlu0 %5172
        %5174 = vrot.lane.b32.xlu0 %v3661, 121
        %v5175 = vpop.permute.xlu0 %5174
        %5180 = vrot.lane.b32.xlu0 %v3226, 122
        %v5181 = vpop.permute.xlu0 %5180
        %5182 = vrot.lane.b32.xlu0 %v3371, 122
        %v5183 = vpop.permute.xlu0 %5182
        %5184 = vrot.lane.b32.xlu0 %v3516, 122
        %v5185 = vpop.permute.xlu0 %5184
        %5186 = vrot.lane.b32.xlu0 %v3661, 122
        %v5187 = vpop.permute.xlu0 %5186
        %5192 = vrot.lane.b32.xlu0 %v3226, 123
        %v5193 = vpop.permute.xlu0 %5192
        %5194 = vrot.lane.b32.xlu0 %v3371, 123
        %v5195 = vpop.permute.xlu0 %5194
        %5196 = vrot.lane.b32.xlu0 %v3516, 123
        %v5197 = vpop.permute.xlu0 %5196
        %5198 = vrot.lane.b32.xlu0 %v3661, 123
        %v5199 = vpop.permute.xlu0 %5198
        %5204 = vrot.lane.b32.xlu0 %v3226, 124
        %v5205 = vpop.permute.xlu0 %5204
        %5206 = vrot.lane.b32.xlu0 %v3371, 124
        %v5207 = vpop.permute.xlu0 %5206
        %5208 = vrot.lane.b32.xlu0 %v3516, 124
        %v5209 = vpop.permute.xlu0 %5208
        %5210 = vrot.lane.b32.xlu0 %v3661, 124
        %v5211 = vpop.permute.xlu0 %5210
        %5216 = vrot.lane.b32.xlu0 %v3226, 125
        %v5217 = vpop.permute.xlu0 %5216
        %5218 = vrot.lane.b32.xlu0 %v3371, 125
        %v5219 = vpop.permute.xlu0 %5218
        %5220 = vrot.lane.b32.xlu0 %v3516, 125
        %v5221 = vpop.permute.xlu0 %5220
        %5222 = vrot.lane.b32.xlu0 %v3661, 125
        %v5223 = vpop.permute.xlu0 %5222
        %5228 = vrot.lane.b32.xlu0 %v3226, 126
        %v5229 = vpop.permute.xlu0 %5228
        %5230 = vrot.lane.b32.xlu0 %v3371, 126
        %v5231 = vpop.permute.xlu0 %5230
        %5232 = vrot.lane.b32.xlu0 %v3516, 126
        %v5233 = vpop.permute.xlu0 %5232
        %5234 = vrot.lane.b32.xlu0 %v3661, 126
        %v5235 = vpop.permute.xlu0 %5234
        %5240 = vrot.lane.b32.xlu0 %v3226, 127
        %v5241 = vpop.permute.xlu0 %5240
        %5242 = vrot.lane.b32.xlu0 %v3371, 127
        %v5243 = vpop.permute.xlu0 %5242
        %5244 = vrot.lane.b32.xlu0 %v3516, 127
        %v5245 = vpop.permute.xlu0 %5244
        %5246 = vrot.lane.b32.xlu0 %v3661, 127
        %v5247 = vpop.permute.xlu0 %5246
        %vm5252 = vcmask 1040384
        %v5253 = vsel %vm5252, %v3669, %v3681
        %v5254 = vsel %vm5252, %v3671, %v3683
        %v5255 = vsel %vm5252, %v3673, %v3685
        %v5256 = vsel %vm5252, %v3675, %v3687
        %vm5257 = vcmask 1041408
        %v5258 = vsel %vm5257, %v5253, %v3693
        %v5259 = vsel %vm5257, %v5254, %v3695
        %v5260 = vsel %vm5257, %v5255, %v3697
        %v5261 = vsel %vm5257, %v5256, %v3699
        %vm5262 = vcmask 1042432
        %v5263 = vsel %vm5262, %v5258, %v3705
        %v5264 = vsel %vm5262, %v5259, %v3707
        %v5265 = vsel %vm5262, %v5260, %v3709
        %v5266 = vsel %vm5262, %v5261, %v3711
        %vm5267 = vcmask 1043456
        %v5268 = vsel %vm5267, %v5263, %v3717
        %v5269 = vsel %vm5267, %v5264, %v3719
        %v5270 = vsel %vm5267, %v5265, %v3721
        %v5271 = vsel %vm5267, %v5266, %v3723
        %vm5272 = vcmask 1044480
        %v5273 = vsel %vm5272, %v5268, %v3729
        %v5274 = vsel %vm5272, %v5269, %v3731
        %v5275 = vsel %vm5272, %v5270, %v3733
        %v5276 = vsel %vm5272, %v5271, %v3735
        %vm5277 = vcmask 1045504
        %v5278 = vsel %vm5277, %v5273, %v3741
        %v5279 = vsel %vm5277, %v5274, %v3743
        %v5280 = vsel %vm5277, %v5275, %v3745
        %v5281 = vsel %vm5277, %v5276, %v3747
        %vm5282 = vcmask 1046528
        %v5283 = vsel %vm5282, %v5278, %v3753
        %v5284 = vsel %vm5282, %v5279, %v3755
        %v5285 = vsel %vm5282, %v5280, %v3757
        %v5286 = vsel %vm5282, %v5281, %v3759
        %v5287 = vsel %vm5252, %v3769, %v3781
        %v5288 = vsel %vm5252, %v3771, %v3783
        %v5289 = vsel %vm5252, %v3773, %v3785
        %v5290 = vsel %vm5252, %v3775, %v3787
        %v5291 = vsel %vm5257, %v5287, %v3793
        %v5292 = vsel %vm5257, %v5288, %v3795
        %v5293 = vsel %vm5257, %v5289, %v3797
        %v5294 = vsel %vm5257, %v5290, %v3799
        %v5295 = vsel %vm5262, %v5291, %v3805
        %v5296 = vsel %vm5262, %v5292, %v3807
        %v5297 = vsel %vm5262, %v5293, %v3809
        %v5298 = vsel %vm5262, %v5294, %v3811
        %v5299 = vsel %vm5267, %v5295, %v3817
        %v5300 = vsel %vm5267, %v5296, %v3819
        %v5301 = vsel %vm5267, %v5297, %v3821
        %v5302 = vsel %vm5267, %v5298, %v3823
        %v5303 = vsel %vm5272, %v5299, %v3829
        %v5304 = vsel %vm5272, %v5300, %v3831
        %v5305 = vsel %vm5272, %v5301, %v3833
        %v5306 = vsel %vm5272, %v5302, %v3835
        %v5307 = vsel %vm5277, %v5303, %v3841
        %v5308 = vsel %vm5277, %v5304, %v3843
        %v5309 = vsel %vm5277, %v5305, %v3845
        %v5310 = vsel %vm5277, %v5306, %v3847
        %v5311 = vsel %vm5282, %v5307, %v3853
        %v5312 = vsel %vm5282, %v5308, %v3855
        %v5313 = vsel %vm5282, %v5309, %v3857
        %v5314 = vsel %vm5282, %v5310, %v3859
        %v5315 = vsel %vm5252, %v3869, %v3881
        %v5316 = vsel %vm5252, %v3871, %v3883
        %v5317 = vsel %vm5252, %v3873, %v3885
        %v5318 = vsel %vm5252, %v3875, %v3887
        %v5319 = vsel %vm5257, %v5315, %v3893
        %v5320 = vsel %vm5257, %v5316, %v3895
        %v5321 = vsel %vm5257, %v5317, %v3897
        %v5322 = vsel %vm5257, %v5318, %v3899
        %v5323 = vsel %vm5262, %v5319, %v3905
        %v5324 = vsel %vm5262, %v5320, %v3907
        %v5325 = vsel %vm5262, %v5321, %v3909
        %v5326 = vsel %vm5262, %v5322, %v3911
        %v5327 = vsel %vm5267, %v5323, %v3917
        %v5328 = vsel %vm5267, %v5324, %v3919
        %v5329 = vsel %vm5267, %v5325, %v3921
        %v5330 = vsel %vm5267, %v5326, %v3923
        %v5331 = vsel %vm5272, %v5327, %v3929
        %v5332 = vsel %vm5272, %v5328, %v3931
        %v5333 = vsel %vm5272, %v5329, %v3933
        %v5334 = vsel %vm5272, %v5330, %v3935
        %v5335 = vsel %vm5277, %v5331, %v3941
        %v5336 = vsel %vm5277, %v5332, %v3943
        %v5337 = vsel %vm5277, %v5333, %v3945
        %v5338 = vsel %vm5277, %v5334, %v3947
        %v5339 = vsel %vm5282, %v5335, %v3953
        %v5340 = vsel %vm5282, %v5336, %v3955
        %v5341 = vsel %vm5282, %v5337, %v3957
        %v5342 = vsel %vm5282, %v5338, %v3959
        %v5343 = vsel %vm5252, %v3969, %v3981
        %v5344 = vsel %vm5252, %v3971, %v3983
        %v5345 = vsel %vm5252, %v3973, %v3985
        %v5346 = vsel %vm5252, %v3975, %v3987
        %v5347 = vsel %vm5257, %v5343, %v3993
        %v5348 = vsel %vm5257, %v5344, %v3995
        %v5349 = vsel %vm5257, %v5345, %v3997
        %v5350 = vsel %vm5257, %v5346, %v3999
        %v5351 = vsel %vm5262, %v5347, %v4005
        %v5352 = vsel %vm5262, %v5348, %v4007
        %v5353 = vsel %vm5262, %v5349, %v4009
        %v5354 = vsel %vm5262, %v5350, %v4011
        %v5355 = vsel %vm5267, %v5351, %v4017
        %v5356 = vsel %vm5267, %v5352, %v4019
        %v5357 = vsel %vm5267, %v5353, %v4021
        %v5358 = vsel %vm5267, %v5354, %v4023
        %v5359 = vsel %vm5272, %v5355, %v4029
        %v5360 = vsel %vm5272, %v5356, %v4031
        %v5361 = vsel %vm5272, %v5357, %v4033
        %v5362 = vsel %vm5272, %v5358, %v4035
        %v5363 = vsel %vm5277, %v5359, %v4041
        %v5364 = vsel %vm5277, %v5360, %v4043
        %v5365 = vsel %vm5277, %v5361, %v4045
        %v5366 = vsel %vm5277, %v5362, %v4047
        %v5367 = vsel %vm5282, %v5363, %v4053
        %v5368 = vsel %vm5282, %v5364, %v4055
        %v5369 = vsel %vm5282, %v5365, %v4057
        %v5370 = vsel %vm5282, %v5366, %v4059
        %v5371 = vsel %vm5252, %v4069, %v4081
        %v5372 = vsel %vm5252, %v4071, %v4083
        %v5373 = vsel %vm5252, %v4073, %v4085
        %v5374 = vsel %vm5252, %v4075, %v4087
        %v5375 = vsel %vm5257, %v5371, %v4093
        %v5376 = vsel %vm5257, %v5372, %v4095
        %v5377 = vsel %vm5257, %v5373, %v4097
        %v5378 = vsel %vm5257, %v5374, %v4099
        %v5379 = vsel %vm5262, %v5375, %v4105
        %v5380 = vsel %vm5262, %v5376, %v4107
        %v5381 = vsel %vm5262, %v5377, %v4109
        %v5382 = vsel %vm5262, %v5378, %v4111
        %v5383 = vsel %vm5267, %v5379, %v4117
        %v5384 = vsel %vm5267, %v5380, %v4119
        %v5385 = vsel %vm5267, %v5381, %v4121
        %v5386 = vsel %vm5267, %v5382, %v4123
        %v5387 = vsel %vm5272, %v5383, %v4129
        %v5388 = vsel %vm5272, %v5384, %v4131
        %v5389 = vsel %vm5272, %v5385, %v4133
        %v5390 = vsel %vm5272, %v5386, %v4135
        %v5391 = vsel %vm5277, %v5387, %v4141
        %v5392 = vsel %vm5277, %v5388, %v4143
        %v5393 = vsel %vm5277, %v5389, %v4145
        %v5394 = vsel %vm5277, %v5390, %v4147
        %v5395 = vsel %vm5282, %v5391, %v4153
        %v5396 = vsel %vm5282, %v5392, %v4155
        %v5397 = vsel %vm5282, %v5393, %v4157
        %v5398 = vsel %vm5282, %v5394, %v4159
        %v5399 = vsel %vm5252, %v4169, %v4181
        %v5400 = vsel %vm5252, %v4171, %v4183
        %v5401 = vsel %vm5252, %v4173, %v4185
        %v5402 = vsel %vm5252, %v4175, %v4187
        %v5403 = vsel %vm5257, %v5399, %v4193
        %v5404 = vsel %vm5257, %v5400, %v4195
        %v5405 = vsel %vm5257, %v5401, %v4197
        %v5406 = vsel %vm5257, %v5402, %v4199
        %v5407 = vsel %vm5262, %v5403, %v4205
        %v5408 = vsel %vm5262, %v5404, %v4207
        %v5409 = vsel %vm5262, %v5405, %v4209
        %v5410 = vsel %vm5262, %v5406, %v4211
        %v5411 = vsel %vm5267, %v5407, %v4217
        %v5412 = vsel %vm5267, %v5408, %v4219
        %v5413 = vsel %vm5267, %v5409, %v4221
        %v5414 = vsel %vm5267, %v5410, %v4223
        %v5415 = vsel %vm5272, %v5411, %v4229
        %v5416 = vsel %vm5272, %v5412, %v4231
        %v5417 = vsel %vm5272, %v5413, %v4233
        %v5418 = vsel %vm5272, %v5414, %v4235
        %v5419 = vsel %vm5277, %v5415, %v4241
        %v5420 = vsel %vm5277, %v5416, %v4243
        %v5421 = vsel %vm5277, %v5417, %v4245
        %v5422 = vsel %vm5277, %v5418, %v4247
        %v5423 = vsel %vm5282, %v5419, %v4253
        %v5424 = vsel %vm5282, %v5420, %v4255
        %v5425 = vsel %vm5282, %v5421, %v4257
        %v5426 = vsel %vm5282, %v5422, %v4259
        %v5427 = vsel %vm5252, %v4269, %v4281
        %v5428 = vsel %vm5252, %v4271, %v4283
        %v5429 = vsel %vm5252, %v4273, %v4285
        %v5430 = vsel %vm5252, %v4275, %v4287
        %v5431 = vsel %vm5257, %v5427, %v4293
        %v5432 = vsel %vm5257, %v5428, %v4295
        %v5433 = vsel %vm5257, %v5429, %v4297
        %v5434 = vsel %vm5257, %v5430, %v4299
        %v5435 = vsel %vm5262, %v5431, %v4305
        %v5436 = vsel %vm5262, %v5432, %v4307
        %v5437 = vsel %vm5262, %v5433, %v4309
        %v5438 = vsel %vm5262, %v5434, %v4311
        %v5439 = vsel %vm5267, %v5435, %v4317
        %v5440 = vsel %vm5267, %v5436, %v4319
        %v5441 = vsel %vm5267, %v5437, %v4321
        %v5442 = vsel %vm5267, %v5438, %v4323
        %v5443 = vsel %vm5272, %v5439, %v4329
        %v5444 = vsel %vm5272, %v5440, %v4331
        %v5445 = vsel %vm5272, %v5441, %v4333
        %v5446 = vsel %vm5272, %v5442, %v4335
        %v5447 = vsel %vm5277, %v5443, %v4341
        %v5448 = vsel %vm5277, %v5444, %v4343
        %v5449 = vsel %vm5277, %v5445, %v4345
        %v5450 = vsel %vm5277, %v5446, %v4347
        %v5451 = vsel %vm5282, %v5447, %v4353
        %v5452 = vsel %vm5282, %v5448, %v4355
        %v5453 = vsel %vm5282, %v5449, %v4357
        %v5454 = vsel %vm5282, %v5450, %v4359
        %v5455 = vsel %vm5252, %v4369, %v4381
        %v5456 = vsel %vm5252, %v4371, %v4383
        %v5457 = vsel %vm5252, %v4373, %v4385
        %v5458 = vsel %vm5252, %v4375, %v4387
        %v5459 = vsel %vm5257, %v5455, %v4393
        %v5460 = vsel %vm5257, %v5456, %v4395
        %v5461 = vsel %vm5257, %v5457, %v4397
        %v5462 = vsel %vm5257, %v5458, %v4399
        %v5463 = vsel %vm5262, %v5459, %v4405
        %v5464 = vsel %vm5262, %v5460, %v4407
        %v5465 = vsel %vm5262, %v5461, %v4409
        %v5466 = vsel %vm5262, %v5462, %v4411
        %v5467 = vsel %vm5267, %v5463, %v4417
        %v5468 = vsel %vm5267, %v5464, %v4419
        %v5469 = vsel %vm5267, %v5465, %v4421
        %v5470 = vsel %vm5267, %v5466, %v4423
        %v5471 = vsel %vm5272, %v5467, %v4429
        %v5472 = vsel %vm5272, %v5468, %v4431
        %v5473 = vsel %vm5272, %v5469, %v4433
        %v5474 = vsel %vm5272, %v5470, %v4435
        %v5475 = vsel %vm5277, %v5471, %v4441
        %v5476 = vsel %vm5277, %v5472, %v4443
        %v5477 = vsel %vm5277, %v5473, %v4445
        %v5478 = vsel %vm5277, %v5474, %v4447
        %v5479 = vsel %vm5282, %v5475, %v4453
        %v5480 = vsel %vm5282, %v5476, %v4455
        %v5481 = vsel %vm5282, %v5477, %v4457
        %v5482 = vsel %vm5282, %v5478, %v4459
        %v5483 = vsel %vm5252, %v4469, %v4481
        %v5484 = vsel %vm5252, %v4471, %v4483
        %v5485 = vsel %vm5252, %v4473, %v4485
        %v5486 = vsel %vm5252, %v4475, %v4487
        %v5487 = vsel %vm5257, %v5483, %v4493
        %v5488 = vsel %vm5257, %v5484, %v4495
        %v5489 = vsel %vm5257, %v5485, %v4497
        %v5490 = vsel %vm5257, %v5486, %v4499
        %v5491 = vsel %vm5262, %v5487, %v4505
        %v5492 = vsel %vm5262, %v5488, %v4507
        %v5493 = vsel %vm5262, %v5489, %v4509
        %v5494 = vsel %vm5262, %v5490, %v4511
        %v5495 = vsel %vm5267, %v5491, %v4517
        %v5496 = vsel %vm5267, %v5492, %v4519
        %v5497 = vsel %vm5267, %v5493, %v4521
        %v5498 = vsel %vm5267, %v5494, %v4523
        %v5499 = vsel %vm5272, %v5495, %v4529
        %v5500 = vsel %vm5272, %v5496, %v4531
        %v5501 = vsel %vm5272, %v5497, %v4533
        %v5502 = vsel %vm5272, %v5498, %v4535
        %v5503 = vsel %vm5277, %v5499, %v4541
        %v5504 = vsel %vm5277, %v5500, %v4543
        %v5505 = vsel %vm5277, %v5501, %v4545
        %v5506 = vsel %vm5277, %v5502, %v4547
        %v5507 = vsel %vm5282, %v5503, %v4553
        %v5508 = vsel %vm5282, %v5504, %v4555
        %v5509 = vsel %vm5282, %v5505, %v4557
        %v5510 = vsel %vm5282, %v5506, %v4559
        %v5511 = vsel %vm5252, %v4569, %v4581
        %v5512 = vsel %vm5252, %v4571, %v4583
        %v5513 = vsel %vm5252, %v4573, %v4585
        %v5514 = vsel %vm5252, %v4575, %v4587
        %v5515 = vsel %vm5257, %v5511, %v4593
        %v5516 = vsel %vm5257, %v5512, %v4595
        %v5517 = vsel %vm5257, %v5513, %v4597
        %v5518 = vsel %vm5257, %v5514, %v4599
        %v5519 = vsel %vm5262, %v5515, %v4605
        %v5520 = vsel %vm5262, %v5516, %v4607
        %v5521 = vsel %vm5262, %v5517, %v4609
        %v5522 = vsel %vm5262, %v5518, %v4611
        %v5523 = vsel %vm5267, %v5519, %v4617
        %v5524 = vsel %vm5267, %v5520, %v4619
        %v5525 = vsel %vm5267, %v5521, %v4621
        %v5526 = vsel %vm5267, %v5522, %v4623
        %v5527 = vsel %vm5272, %v5523, %v4629
        %v5528 = vsel %vm5272, %v5524, %v4631
        %v5529 = vsel %vm5272, %v5525, %v4633
        %v5530 = vsel %vm5272, %v5526, %v4635
        %v5531 = vsel %vm5277, %v5527, %v4641
        %v5532 = vsel %vm5277, %v5528, %v4643
        %v5533 = vsel %vm5277, %v5529, %v4645
        %v5534 = vsel %vm5277, %v5530, %v4647
        %v5535 = vsel %vm5282, %v5531, %v4653
        %v5536 = vsel %vm5282, %v5532, %v4655
        %v5537 = vsel %vm5282, %v5533, %v4657
        %v5538 = vsel %vm5282, %v5534, %v4659
        %v5539 = vsel %vm5252, %v4669, %v4681
        %v5540 = vsel %vm5252, %v4671, %v4683
        %v5541 = vsel %vm5252, %v4673, %v4685
        %v5542 = vsel %vm5252, %v4675, %v4687
        %v5543 = vsel %vm5257, %v5539, %v4693
        %v5544 = vsel %vm5257, %v5540, %v4695
        %v5545 = vsel %vm5257, %v5541, %v4697
        %v5546 = vsel %vm5257, %v5542, %v4699
        %v5547 = vsel %vm5262, %v5543, %v4705
        %v5548 = vsel %vm5262, %v5544, %v4707
        %v5549 = vsel %vm5262, %v5545, %v4709
        %v5550 = vsel %vm5262, %v5546, %v4711
        %v5551 = vsel %vm5267, %v5547, %v4717
        %v5552 = vsel %vm5267, %v5548, %v4719
        %v5553 = vsel %vm5267, %v5549, %v4721
        %v5554 = vsel %vm5267, %v5550, %v4723
        %v5555 = vsel %vm5272, %v5551, %v4729
        %v5556 = vsel %vm5272, %v5552, %v4731
        %v5557 = vsel %vm5272, %v5553, %v4733
        %v5558 = vsel %vm5272, %v5554, %v4735
        %v5559 = vsel %vm5277, %v5555, %v4741
        %v5560 = vsel %vm5277, %v5556, %v4743
        %v5561 = vsel %vm5277, %v5557, %v4745
        %v5562 = vsel %vm5277, %v5558, %v4747
        %v5563 = vsel %vm5282, %v5559, %v4753
        %v5564 = vsel %vm5282, %v5560, %v4755
        %v5565 = vsel %vm5282, %v5561, %v4757
        %v5566 = vsel %vm5282, %v5562, %v4759
        %v5567 = vsel %vm5252, %v4769, %v4781
        %v5568 = vsel %vm5252, %v4771, %v4783
        %v5569 = vsel %vm5252, %v4773, %v4785
        %v5570 = vsel %vm5252, %v4775, %v4787
        %v5571 = vsel %vm5257, %v5567, %v4793
        %v5572 = vsel %vm5257, %v5568, %v4795
        %v5573 = vsel %vm5257, %v5569, %v4797
        %v5574 = vsel %vm5257, %v5570, %v4799
        %v5575 = vsel %vm5262, %v5571, %v4805
        %v5576 = vsel %vm5262, %v5572, %v4807
        %v5577 = vsel %vm5262, %v5573, %v4809
        %v5578 = vsel %vm5262, %v5574, %v4811
        %v5579 = vsel %vm5267, %v5575, %v4817
        %v5580 = vsel %vm5267, %v5576, %v4819
        %v5581 = vsel %vm5267, %v5577, %v4821
        %v5582 = vsel %vm5267, %v5578, %v4823
        %v5583 = vsel %vm5272, %v5579, %v4829
        %v5584 = vsel %vm5272, %v5580, %v4831
        %v5585 = vsel %vm5272, %v5581, %v4833
        %v5586 = vsel %vm5272, %v5582, %v4835
        %v5587 = vsel %vm5277, %v5583, %v4841
        %v5588 = vsel %vm5277, %v5584, %v4843
        %v5589 = vsel %vm5277, %v5585, %v4845
        %v5590 = vsel %vm5277, %v5586, %v4847
        %v5591 = vsel %vm5282, %v5587, %v4853
        %v5592 = vsel %vm5282, %v5588, %v4855
        %v5593 = vsel %vm5282, %v5589, %v4857
        %v5594 = vsel %vm5282, %v5590, %v4859
        %v5595 = vsel %vm5252, %v4869, %v4881
        %v5596 = vsel %vm5252, %v4871, %v4883
        %v5597 = vsel %vm5252, %v4873, %v4885
        %v5598 = vsel %vm5252, %v4875, %v4887
        %v5599 = vsel %vm5257, %v5595, %v4893
        %v5600 = vsel %vm5257, %v5596, %v4895
        %v5601 = vsel %vm5257, %v5597, %v4897
        %v5602 = vsel %vm5257, %v5598, %v4899
        %v5603 = vsel %vm5262, %v5599, %v4905
        %v5604 = vsel %vm5262, %v5600, %v4907
        %v5605 = vsel %vm5262, %v5601, %v4909
        %v5606 = vsel %vm5262, %v5602, %v4911
        %v5607 = vsel %vm5267, %v5603, %v4917
        %v5608 = vsel %vm5267, %v5604, %v4919
        %v5609 = vsel %vm5267, %v5605, %v4921
        %v5610 = vsel %vm5267, %v5606, %v4923
        %v5611 = vsel %vm5272, %v5607, %v4929
        %v5612 = vsel %vm5272, %v5608, %v4931
        %v5613 = vsel %vm5272, %v5609, %v4933
        %v5614 = vsel %vm5272, %v5610, %v4935
        %v5615 = vsel %vm5277, %v5611, %v4941
        %v5616 = vsel %vm5277, %v5612, %v4943
        %v5617 = vsel %vm5277, %v5613, %v4945
        %v5618 = vsel %vm5277, %v5614, %v4947
        %v5619 = vsel %vm5282, %v5615, %v4953
        %v5620 = vsel %vm5282, %v5616, %v4955
        %v5621 = vsel %vm5282, %v5617, %v4957
        %v5622 = vsel %vm5282, %v5618, %v4959
        %v5623 = vsel %vm5252, %v4969, %v4981
        %v5624 = vsel %vm5252, %v4971, %v4983
        %v5625 = vsel %vm5252, %v4973, %v4985
        %v5626 = vsel %vm5252, %v4975, %v4987
        %v5627 = vsel %vm5257, %v5623, %v4993
        %v5628 = vsel %vm5257, %v5624, %v4995
        %v5629 = vsel %vm5257, %v5625, %v4997
        %v5630 = vsel %vm5257, %v5626, %v4999
        %v5631 = vsel %vm5262, %v5627, %v5005
        %v5632 = vsel %vm5262, %v5628, %v5007
        %v5633 = vsel %vm5262, %v5629, %v5009
        %v5634 = vsel %vm5262, %v5630, %v5011
        %v5635 = vsel %vm5267, %v5631, %v5017
        %v5636 = vsel %vm5267, %v5632, %v5019
        %v5637 = vsel %vm5267, %v5633, %v5021
        %v5638 = vsel %vm5267, %v5634, %v5023
        %v5639 = vsel %vm5272, %v5635, %v5029
        %v5640 = vsel %vm5272, %v5636, %v5031
        %v5641 = vsel %vm5272, %v5637, %v5033
        %v5642 = vsel %vm5272, %v5638, %v5035
        %v5643 = vsel %vm5277, %v5639, %v5041
        %v5644 = vsel %vm5277, %v5640, %v5043
        %v5645 = vsel %vm5277, %v5641, %v5045
        %v5646 = vsel %vm5277, %v5642, %v5047
        %v5647 = vsel %vm5282, %v5643, %v5053
        %v5648 = vsel %vm5282, %v5644, %v5055
        %v5649 = vsel %vm5282, %v5645, %v5057
        %v5650 = vsel %vm5282, %v5646, %v5059
        %v5651 = vsel %vm5252, %v5069, %v5081
        %v5652 = vsel %vm5252, %v5071, %v5083
        %v5653 = vsel %vm5252, %v5073, %v5085
        %v5654 = vsel %vm5252, %v5075, %v5087
        %v5655 = vsel %vm5257, %v5651, %v5093
        %v5656 = vsel %vm5257, %v5652, %v5095
        %v5657 = vsel %vm5257, %v5653, %v5097
        %v5658 = vsel %vm5257, %v5654, %v5099
        %v5659 = vsel %vm5262, %v5655, %v5105
        %v5660 = vsel %vm5262, %v5656, %v5107
        %v5661 = vsel %vm5262, %v5657, %v5109
        %v5662 = vsel %vm5262, %v5658, %v5111
        %v5663 = vsel %vm5267, %v5659, %v5117
        %v5664 = vsel %vm5267, %v5660, %v5119
        %v5665 = vsel %vm5267, %v5661, %v5121
        %v5666 = vsel %vm5267, %v5662, %v5123
        %v5667 = vsel %vm5272, %v5663, %v5129
        %v5668 = vsel %vm5272, %v5664, %v5131
        %v5669 = vsel %vm5272, %v5665, %v5133
        %v5670 = vsel %vm5272, %v5666, %v5135
        %v5671 = vsel %vm5277, %v5667, %v5141
        %v5672 = vsel %vm5277, %v5668, %v5143
        %v5673 = vsel %vm5277, %v5669, %v5145
        %v5674 = vsel %vm5277, %v5670, %v5147
        %v5675 = vsel %vm5282, %v5671, %v5153
        %v5676 = vsel %vm5282, %v5672, %v5155
        %v5677 = vsel %vm5282, %v5673, %v5157
        %v5678 = vsel %vm5282, %v5674, %v5159
        %v5679 = vsel %vm5252, %v5169, %v5181
        %v5680 = vsel %vm5252, %v5171, %v5183
        %v5681 = vsel %vm5252, %v5173, %v5185
        %v5682 = vsel %vm5252, %v5175, %v5187
        %v5683 = vsel %vm5257, %v5679, %v5193
        %v5684 = vsel %vm5257, %v5680, %v5195
        %v5685 = vsel %vm5257, %v5681, %v5197
        %v5686 = vsel %vm5257, %v5682, %v5199
        %v5687 = vsel %vm5262, %v5683, %v5205
        %v5688 = vsel %vm5262, %v5684, %v5207
        %v5689 = vsel %vm5262, %v5685, %v5209
        %v5690 = vsel %vm5262, %v5686, %v5211
        %v5691 = vsel %vm5267, %v5687, %v5217
        %v5692 = vsel %vm5267, %v5688, %v5219
        %v5693 = vsel %vm5267, %v5689, %v5221
        %v5694 = vsel %vm5267, %v5690, %v5223
        %v5695 = vsel %vm5272, %v5691, %v5229
        %v5696 = vsel %vm5272, %v5692, %v5231
        %v5697 = vsel %vm5272, %v5693, %v5233
        %v5698 = vsel %vm5272, %v5694, %v5235
        %v5699 = vsel %vm5277, %v5695, %v5241
        %v5700 = vsel %vm5277, %v5696, %v5243
        %v5701 = vsel %vm5277, %v5697, %v5245
        %v5702 = vsel %vm5277, %v5698, %v5247
        %v5703 = vsel %vm5282, %v5699, %v3226
        %v5704 = vsel %vm5282, %v5700, %v3371
        %v5705 = vsel %vm5282, %v5701, %v3516
        %v5706 = vsel %vm5282, %v5702, %v3661
        %v5771 = vrot.slane %v5283, 1
        %v5772 = vrot.slane %v5311, 1
        %v5773 = vsel %vm5282, %v5771, %v5772
        %v5774 = vrot.slane %v5339, 1
        %v5775 = vsel %vm5282, %v5772, %v5774
        %v5776 = vrot.slane %v5367, 1
        %v5777 = vsel %vm5282, %v5774, %v5776
        %v5778 = vrot.slane %v5395, 1
        %v5779 = vsel %vm5282, %v5776, %v5778
        %v5780 = vrot.slane %v5423, 1
        %v5781 = vsel %vm5282, %v5778, %v5780
        %v5782 = vrot.slane %v5451, 1
        %v5783 = vsel %vm5282, %v5780, %v5782
        %v5784 = vrot.slane %v5479, 1
        %v5785 = vsel %vm5282, %v5782, %v5784
        %v5786 = vrot.slane %v5507, 1
        %v5787 = vsel %vm5282, %v5784, %v5786
        %v5788 = vrot.slane %v5535, 1
        %v5789 = vsel %vm5282, %v5786, %v5788
        %v5790 = vrot.slane %v5563, 1
        %v5791 = vsel %vm5282, %v5788, %v5790
        %v5792 = vrot.slane %v5591, 1
        %v5793 = vsel %vm5282, %v5790, %v5792
        %v5794 = vrot.slane %v5619, 1
        %v5795 = vsel %vm5282, %v5792, %v5794
        %v5796 = vrot.slane %v5647, 1
        %v5797 = vsel %vm5282, %v5794, %v5796
        %v5798 = vrot.slane %v5675, 1
        %v5799 = vsel %vm5282, %v5796, %v5798
        %v5800 = vrot.slane %v5703, 1
        %v5801 = vsel %vm5282, %v5798, %v5800
        %v5802 = vrot.slane %v5284, 1
        %v5803 = vrot.slane %v5312, 1
        %v5804 = vsel %vm5282, %v5802, %v5803
        %v5805 = vrot.slane %v5340, 1
        %v5806 = vsel %vm5282, %v5803, %v5805
        %v5807 = vrot.slane %v5368, 1
        %v5808 = vsel %vm5282, %v5805, %v5807
        %v5809 = vrot.slane %v5396, 1
        %v5810 = vsel %vm5282, %v5807, %v5809
        %v5811 = vrot.slane %v5424, 1
        %v5812 = vsel %vm5282, %v5809, %v5811
        %v5813 = vrot.slane %v5452, 1
        %v5814 = vsel %vm5282, %v5811, %v5813
        %v5815 = vrot.slane %v5480, 1
        %v5816 = vsel %vm5282, %v5813, %v5815
        %v5817 = vrot.slane %v5508, 1
        %v5818 = vsel %vm5282, %v5815, %v5817
        %v5819 = vrot.slane %v5536, 1
        %v5820 = vsel %vm5282, %v5817, %v5819
        %v5821 = vrot.slane %v5564, 1
        %v5822 = vsel %vm5282, %v5819, %v5821
        %v5823 = vrot.slane %v5592, 1
        %v5824 = vsel %vm5282, %v5821, %v5823
        %v5825 = vrot.slane %v5620, 1
        %v5826 = vsel %vm5282, %v5823, %v5825
        %v5827 = vrot.slane %v5648, 1
        %v5828 = vsel %vm5282, %v5825, %v5827
        %v5829 = vrot.slane %v5676, 1
        %v5830 = vsel %vm5282, %v5827, %v5829
        %v5831 = vrot.slane %v5704, 1
        %v5832 = vsel %vm5282, %v5829, %v5831
        %v5833 = vrot.slane %v5285, 1
        %v5834 = vrot.slane %v5313, 1
        %v5835 = vsel %vm5282, %v5833, %v5834
        %v5836 = vrot.slane %v5341, 1
        %v5837 = vsel %vm5282, %v5834, %v5836
        %v5838 = vrot.slane %v5369, 1
        %v5839 = vsel %vm5282, %v5836, %v5838
        %v5840 = vrot.slane %v5397, 1
        %v5841 = vsel %vm5282, %v5838, %v5840
        %v5842 = vrot.slane %v5425, 1
        %v5843 = vsel %vm5282, %v5840, %v5842
        %v5844 = vrot.slane %v5453, 1
        %v5845 = vsel %vm5282, %v5842, %v5844
        %v5846 = vrot.slane %v5481, 1
        %v5847 = vsel %vm5282, %v5844, %v5846
        %v5848 = vrot.slane %v5509, 1
        %v5849 = vsel %vm5282, %v5846, %v5848
        %v5850 = vrot.slane %v5537, 1
        %v5851 = vsel %vm5282, %v5848, %v5850
        %v5852 = vrot.slane %v5565, 1
        %v5853 = vsel %vm5282, %v5850, %v5852
        %v5854 = vrot.slane %v5593, 1
        %v5855 = vsel %vm5282, %v5852, %v5854
        %v5856 = vrot.slane %v5621, 1
        %v5857 = vsel %vm5282, %v5854, %v5856
        %v5858 = vrot.slane %v5649, 1
        %v5859 = vsel %vm5282, %v5856, %v5858
        %v5860 = vrot.slane %v5677, 1
        %v5861 = vsel %vm5282, %v5858, %v5860
        %v5862 = vrot.slane %v5705, 1
        %v5863 = vsel %vm5282, %v5860, %v5862
        %v5864 = vrot.slane %v5286, 1
        %v5865 = vrot.slane %v5314, 1
        %v5866 = vsel %vm5282, %v5864, %v5865
        %v5867 = vrot.slane %v5342, 1
        %v5868 = vsel %vm5282, %v5865, %v5867
        %v5869 = vrot.slane %v5370, 1
        %v5870 = vsel %vm5282, %v5867, %v5869
        %v5871 = vrot.slane %v5398, 1
        %v5872 = vsel %vm5282, %v5869, %v5871
        %v5873 = vrot.slane %v5426, 1
        %v5874 = vsel %vm5282, %v5871, %v5873
        %v5875 = vrot.slane %v5454, 1
        %v5876 = vsel %vm5282, %v5873, %v5875
        %v5877 = vrot.slane %v5482, 1
        %v5878 = vsel %vm5282, %v5875, %v5877
        %v5879 = vrot.slane %v5510, 1
        %v5880 = vsel %vm5282, %v5877, %v5879
        %v5881 = vrot.slane %v5538, 1
        %v5882 = vsel %vm5282, %v5879, %v5881
        %v5883 = vrot.slane %v5566, 1
        %v5884 = vsel %vm5282, %v5881, %v5883
        %v5885 = vrot.slane %v5594, 1
        %v5886 = vsel %vm5282, %v5883, %v5885
        %v5887 = vrot.slane %v5622, 1
        %v5888 = vsel %vm5282, %v5885, %v5887
        %v5889 = vrot.slane %v5650, 1
        %v5890 = vsel %vm5282, %v5887, %v5889
        %v5891 = vrot.slane %v5678, 1
        %v5892 = vsel %vm5282, %v5889, %v5891
        %v5893 = vrot.slane %v5706, 1
        %v5894 = vsel %vm5282, %v5891, %v5893
        %v5963 = vsel %vm5282, %v5800, %v5771
        %v5964 = vsel %vm5282, %v5831, %v5802
        %v5965 = vsel %vm5282, %v5862, %v5833
        %v5966 = vsel %vm5282, %v5893, %v5864
        %v5967 = vlaneseq
        %v5968 = vshrl.u32 %v5967, 7
        %v5969 = vadd.s32 %v5968, 8
        %v5970 = vadd.s32 %v5968, 16
        %v5971 = vadd.s32 %v5968, 24
        %v5972 = vadd.s32 %v5968, 32
        %v5973 = vadd.s32 %v5968, 40
        %v5974 = vadd.s32 %v5968, 48
        %v5975 = vadd.s32 %v5968, 56
        %v5976 = vadd.s32 %v5968, 64
        %v5977 = vadd.s32 %v5968, 72
        %v5978 = vadd.s32 %v5968, 80
        %v5979 = vadd.s32 %v5968, 88
        %v5980 = vadd.s32 %v5968, 96
        %v5981 = vadd.s32 %v5968, 104
        %v5982 = vadd.s32 %v5968, 112
        %v5983 = vadd.s32 %v5968, 120
        %v5984 = vlaneseq
        %v5985 = vand.u32 %v5984, 127
        %vm5986 = vcmp.le.s32.totalorder %v5985, %v5968
        %vm5987 = vcmp.le.s32.totalorder %v5985, %v5969
        %vm5988 = vcmp.le.s32.totalorder %v5985, %v5970
        %vm5989 = vcmp.le.s32.totalorder %v5985, %v5971
        %vm5990 = vcmp.le.s32.totalorder %v5985, %v5972
        %vm5991 = vcmp.le.s32.totalorder %v5985, %v5973
        %vm5992 = vcmp.le.s32.totalorder %v5985, %v5974
        %vm5993 = vcmp.le.s32.totalorder %v5985, %v5975
        %vm5994 = vcmp.le.s32.totalorder %v5985, %v5976
        %vm5995 = vcmp.le.s32.totalorder %v5985, %v5977
        %vm5996 = vcmp.le.s32.totalorder %v5985, %v5978
        %vm5997 = vcmp.le.s32.totalorder %v5985, %v5979
        %vm5998 = vcmp.le.s32.totalorder %v5985, %v5980
        %vm5999 = vcmp.le.s32.totalorder %v5985, %v5981
        %vm6000 = vcmp.le.s32.totalorder %v5985, %v5982
        %vm6001 = vcmp.le.s32.totalorder %v5985, %v5983
        %v6002 = vadd.s32 %v5968, 1
        %v6003 = vadd.s32 %v5969, 1
        %v6004 = vadd.s32 %v5970, 1
        %v6005 = vadd.s32 %v5971, 1
        %v6006 = vadd.s32 %v5972, 1
        %v6007 = vadd.s32 %v5973, 1
        %v6008 = vadd.s32 %v5974, 1
        %v6009 = vadd.s32 %v5975, 1
        %v6010 = vadd.s32 %v5976, 1
        %v6011 = vadd.s32 %v5977, 1
        %v6012 = vadd.s32 %v5978, 1
        %v6013 = vadd.s32 %v5979, 1
        %v6014 = vadd.s32 %v5980, 1
        %v6015 = vadd.s32 %v5981, 1
        %v6016 = vadd.s32 %v5982, 1
        %v6017 = vadd.s32 %v5983, 1
        %vm6018 = vcmp.eq.s32.totalorder %v5985, %v6002
        %vm6019 = vcmp.eq.s32.totalorder %v5985, %v6003
        %vm6020 = vcmp.eq.s32.totalorder %v5985, %v6004
        %vm6021 = vcmp.eq.s32.totalorder %v5985, %v6005
        %vm6022 = vcmp.eq.s32.totalorder %v5985, %v6006
        %vm6023 = vcmp.eq.s32.totalorder %v5985, %v6007
        %vm6024 = vcmp.eq.s32.totalorder %v5985, %v6008
        %vm6025 = vcmp.eq.s32.totalorder %v5985, %v6009
        %vm6026 = vcmp.eq.s32.totalorder %v5985, %v6010
        %vm6027 = vcmp.eq.s32.totalorder %v5985, %v6011
        %vm6028 = vcmp.eq.s32.totalorder %v5985, %v6012
        %vm6029 = vcmp.eq.s32.totalorder %v5985, %v6013
        %vm6030 = vcmp.eq.s32.totalorder %v5985, %v6014
        %vm6031 = vcmp.eq.s32.totalorder %v5985, %v6015
        %vm6032 = vcmp.eq.s32.totalorder %v5985, %v6016
        %vm6033 = vcmp.eq.s32.totalorder %v5985, %v6017
        %v6034 = vsel %vm6018, 1, 0
        %v6035 = vsel %vm6019, 1, 0
        %v6036 = vsel %vm6020, 1, 0
        %v6037 = vsel %vm6021, 1, 0
        %v6038 = vsel %vm6022, 1, 0
        %v6039 = vsel %vm6023, 1, 0
        %v6040 = vsel %vm6024, 1, 0
        %v6041 = vsel %vm6025, 1, 0
        %v6042 = vsel %vm6026, 1, 0
        %v6043 = vsel %vm6027, 1, 0
        %v6044 = vsel %vm6028, 1, 0
        %v6045 = vsel %vm6029, 1, 0
        %v6046 = vsel %vm6030, 1, 0
        %v6047 = vsel %vm6031, 1, 0
        %v6048 = vsel %vm6032, 1, 0
        %v6049 = vsel %vm6033, 1, 0
        %vm6050 = vcmp.eq.s32.totalorder %v6034, 1
        %vm6051 = vcmp.eq.s32.totalorder %v6035, 1
        %vm6052 = vcmp.eq.s32.totalorder %v6036, 1
        %vm6053 = vcmp.eq.s32.totalorder %v6037, 1
        %vm6054 = vcmp.eq.s32.totalorder %v6038, 1
        %vm6055 = vcmp.eq.s32.totalorder %v6039, 1
        %vm6056 = vcmp.eq.s32.totalorder %v6040, 1
        %vm6057 = vcmp.eq.s32.totalorder %v6041, 1
        %vm6058 = vcmp.eq.s32.totalorder %v6042, 1
        %vm6059 = vcmp.eq.s32.totalorder %v6043, 1
        %vm6060 = vcmp.eq.s32.totalorder %v6044, 1
        %vm6061 = vcmp.eq.s32.totalorder %v6045, 1
        %vm6062 = vcmp.eq.s32.totalorder %v6046, 1
        %vm6063 = vcmp.eq.s32.totalorder %v6047, 1
        %vm6064 = vcmp.eq.s32.totalorder %v6048, 1
        %vm6065 = vcmp.eq.s32.totalorder %v6049, 1
        %v6066 = vsel %vm6050, 0.0, %v5773
        %v6067 = vsel %vm6051, 0.0, %v5775
        %v6068 = vsel %vm6052, 0.0, %v5777
        %v6069 = vsel %vm6053, 0.0, %v5779
        %v6070 = vsel %vm6054, 0.0, %v5781
        %v6071 = vsel %vm6055, 0.0, %v5783
        %v6072 = vsel %vm6056, 0.0, %v5785
        %v6073 = vsel %vm6057, 0.0, %v5787
        %v6074 = vsel %vm6058, 0.0, %v5789
        %v6075 = vsel %vm6059, 0.0, %v5791
        %v6076 = vsel %vm6060, 0.0, %v5793
        %v6077 = vsel %vm6061, 0.0, %v5795
        %v6078 = vsel %vm6062, 0.0, %v5797
        %v6079 = vsel %vm6063, 0.0, %v5799
        %v6080 = vsel %vm6064, 0.0, %v5801
        %v6081 = vsel %vm6065, 0.0, %v5963
        %v6082 = vsel %vm6050, 0.0, %v5804
        %v6083 = vsel %vm6051, 0.0, %v5806
        %v6084 = vsel %vm6052, 0.0, %v5808
        %v6085 = vsel %vm6053, 0.0, %v5810
        %v6086 = vsel %vm6054, 0.0, %v5812
        %v6087 = vsel %vm6055, 0.0, %v5814
        %v6088 = vsel %vm6056, 0.0, %v5816
        %v6089 = vsel %vm6057, 0.0, %v5818
        %v6090 = vsel %vm6058, 0.0, %v5820
        %v6091 = vsel %vm6059, 0.0, %v5822
        %v6092 = vsel %vm6060, 0.0, %v5824
        %v6093 = vsel %vm6061, 0.0, %v5826
        %v6094 = vsel %vm6062, 0.0, %v5828
        %v6095 = vsel %vm6063, 0.0, %v5830
        %v6096 = vsel %vm6064, 0.0, %v5832
        %v6097 = vsel %vm6065, 0.0, %v5964
        %v6098 = vsel %vm6050, 0.0, %v5835
        %v6099 = vsel %vm6051, 0.0, %v5837
        %v6100 = vsel %vm6052, 0.0, %v5839
        %v6101 = vsel %vm6053, 0.0, %v5841
        %v6102 = vsel %vm6054, 0.0, %v5843
        %v6103 = vsel %vm6055, 0.0, %v5845
        %v6104 = vsel %vm6056, 0.0, %v5847
        %v6105 = vsel %vm6057, 0.0, %v5849
        %v6106 = vsel %vm6058, 0.0, %v5851
        %v6107 = vsel %vm6059, 0.0, %v5853
        %v6108 = vsel %vm6060, 0.0, %v5855
        %v6109 = vsel %vm6061, 0.0, %v5857
        %v6110 = vsel %vm6062, 0.0, %v5859
        %v6111 = vsel %vm6063, 0.0, %v5861
        %v6112 = vsel %vm6064, 0.0, %v5863
        %v6113 = vsel %vm6065, 0.0, %v5965
        %v6114 = vsel %vm6050, 0.0, %v5866
        %v6115 = vsel %vm6051, 0.0, %v5868
        %v6116 = vsel %vm6052, 0.0, %v5870
        %v6117 = vsel %vm6053, 0.0, %v5872
        %v6118 = vsel %vm6054, 0.0, %v5874
        %v6119 = vsel %vm6055, 0.0, %v5876
        %v6120 = vsel %vm6056, 0.0, %v5878
        %v6121 = vsel %vm6057, 0.0, %v5880
        %v6122 = vsel %vm6058, 0.0, %v5882
        %v6123 = vsel %vm6059, 0.0, %v5884
        %v6124 = vsel %vm6060, 0.0, %v5886
        %v6125 = vsel %vm6061, 0.0, %v5888
        %v6126 = vsel %vm6062, 0.0, %v5890
        %v6127 = vsel %vm6063, 0.0, %v5892
        %v6128 = vsel %vm6064, 0.0, %v5894
        %v6129 = vsel %vm6065, 0.0, %v5966
        %v6130 = vsel %vm5986, 1, 0
        %v6131 = vsel %vm5987, 1, 0
        %v6132 = vsel %vm5988, 1, 0
        %v6133 = vsel %vm5989, 1, 0
        %v6134 = vsel %vm5990, 1, 0
        %v6135 = vsel %vm5991, 1, 0
        %v6136 = vsel %vm5992, 1, 0
        %v6137 = vsel %vm5993, 1, 0
        %v6138 = vsel %vm5994, 1, 0
        %v6139 = vsel %vm5995, 1, 0
        %v6140 = vsel %vm5996, 1, 0
        %v6141 = vsel %vm5997, 1, 0
        %v6142 = vsel %vm5998, 1, 0
        %v6143 = vsel %vm5999, 1, 0
        %v6144 = vsel %vm6000, 1, 0
        %v6145 = vsel %vm6001, 1, 0
        %vm6146 = vcmp.eq.s32.totalorder %v6130, 1
        %vm6147 = vcmp.eq.s32.totalorder %v6131, 1
        %vm6148 = vcmp.eq.s32.totalorder %v6132, 1
        %vm6149 = vcmp.eq.s32.totalorder %v6133, 1
        %vm6150 = vcmp.eq.s32.totalorder %v6134, 1
        %vm6151 = vcmp.eq.s32.totalorder %v6135, 1
        %vm6152 = vcmp.eq.s32.totalorder %v6136, 1
        %vm6153 = vcmp.eq.s32.totalorder %v6137, 1
        %vm6154 = vcmp.eq.s32.totalorder %v6138, 1
        %vm6155 = vcmp.eq.s32.totalorder %v6139, 1
        %vm6156 = vcmp.eq.s32.totalorder %v6140, 1
        %vm6157 = vcmp.eq.s32.totalorder %v6141, 1
        %vm6158 = vcmp.eq.s32.totalorder %v6142, 1
        %vm6159 = vcmp.eq.s32.totalorder %v6143, 1
        %vm6160 = vcmp.eq.s32.totalorder %v6144, 1
        %vm6161 = vcmp.eq.s32.totalorder %v6145, 1
        %v6162 = vsel %vm6146, %v5283, %v6066
        %v6163 = vsel %vm6147, %v5311, %v6067
        %v6164 = vsel %vm6148, %v5339, %v6068
        %v6165 = vsel %vm6149, %v5367, %v6069
        %v6166 = vsel %vm6150, %v5395, %v6070
        %v6167 = vsel %vm6151, %v5423, %v6071
        %v6168 = vsel %vm6152, %v5451, %v6072
        %v6169 = vsel %vm6153, %v5479, %v6073
        %v6170 = vsel %vm6154, %v5507, %v6074
        %v6171 = vsel %vm6155, %v5535, %v6075
        %v6172 = vsel %vm6156, %v5563, %v6076
        %v6173 = vsel %vm6157, %v5591, %v6077
        %v6174 = vsel %vm6158, %v5619, %v6078
        %v6175 = vsel %vm6159, %v5647, %v6079
        %v6176 = vsel %vm6160, %v5675, %v6080
        %v6177 = vsel %vm6161, %v5703, %v6081
        %v6178 = vsel %vm6146, %v5284, %v6082
        %v6179 = vsel %vm6147, %v5312, %v6083
        %v6180 = vsel %vm6148, %v5340, %v6084
        %v6181 = vsel %vm6149, %v5368, %v6085
        %v6182 = vsel %vm6150, %v5396, %v6086
        %v6183 = vsel %vm6151, %v5424, %v6087
        %v6184 = vsel %vm6152, %v5452, %v6088
        %v6185 = vsel %vm6153, %v5480, %v6089
        %v6186 = vsel %vm6154, %v5508, %v6090
        %v6187 = vsel %vm6155, %v5536, %v6091
        %v6188 = vsel %vm6156, %v5564, %v6092
        %v6189 = vsel %vm6157, %v5592, %v6093
        %v6190 = vsel %vm6158, %v5620, %v6094
        %v6191 = vsel %vm6159, %v5648, %v6095
        %v6192 = vsel %vm6160, %v5676, %v6096
        %v6193 = vsel %vm6161, %v5704, %v6097
        %v6194 = vsel %vm6146, %v5285, %v6098
        %v6195 = vsel %vm6147, %v5313, %v6099
        %v6196 = vsel %vm6148, %v5341, %v6100
        %v6197 = vsel %vm6149, %v5369, %v6101
        %v6198 = vsel %vm6150, %v5397, %v6102
        %v6199 = vsel %vm6151, %v5425, %v6103
        %v6200 = vsel %vm6152, %v5453, %v6104
        %v6201 = vsel %vm6153, %v5481, %v6105
        %v6202 = vsel %vm6154, %v5509, %v6106
        %v6203 = vsel %vm6155, %v5537, %v6107
        %v6204 = vsel %vm6156, %v5565, %v6108
        %v6205 = vsel %vm6157, %v5593, %v6109
        %v6206 = vsel %vm6158, %v5621, %v6110
        %v6207 = vsel %vm6159, %v5649, %v6111
        %v6208 = vsel %vm6160, %v5677, %v6112
        %v6209 = vsel %vm6161, %v5705, %v6113
        %v6210 = vsel %vm6146, %v5286, %v6114
        %v6211 = vsel %vm6147, %v5314, %v6115
        %v6212 = vsel %vm6148, %v5342, %v6116
        %v6213 = vsel %vm6149, %v5370, %v6117
        %v6214 = vsel %vm6150, %v5398, %v6118
        %v6215 = vsel %vm6151, %v5426, %v6119
        %v6216 = vsel %vm6152, %v5454, %v6120
        %v6217 = vsel %vm6153, %v5482, %v6121
        %v6218 = vsel %vm6154, %v5510, %v6122
        %v6219 = vsel %vm6155, %v5538, %v6123
        %v6220 = vsel %vm6156, %v5566, %v6124
        %v6221 = vsel %vm6157, %v5594, %v6125
        %v6222 = vsel %vm6158, %v5622, %v6126
        %v6223 = vsel %vm6159, %v5650, %v6127
        %v6224 = vsel %vm6160, %v5678, %v6128
        %v6225 = vsel %vm6161, %v5706, %v6129
        %v6227 = vsel %vm3083, %v2910, 0
        %v6230 = vsel %vm3083, %v2911, 0
        %v6233 = vsel %vm3083, %v2912, 0
        %v6236 = vsel %vm3083, %v2913, 0
        %v6239 = vsel %vm3083, %v2914, 0
        %v6242 = vsel %vm3083, %v2915, 0
        %v6245 = vsel %vm3083, %v2916, 0
        %v6248 = vsel %vm3083, %v2917, 0
        %v6251 = vsel %vm3083, %v2449, 0
        %v6254 = vsel %vm3083, %v2450, 0
        %v6257 = vsel %vm3083, %v2451, 0
        %v6260 = vsel %vm3083, %v2452, 0
        %v6263 = vsel %vm3083, %v2453, 0
        %v6266 = vsel %vm3083, %v2454, 0
        %v6269 = vsel %vm3083, %v2455, 0
        %v6272 = vsel %vm3083, %v2456, 0
        %6274 = vmatprep.subr.bf16.mxu0 0
        %6275 = vmatpush1.bf16.xpose.msra.mxu0 %v6251
        %6276 = vmatprep.subr.bf16.mxu0 0
        %6277 = vmatpush1.bf16.xpose.msra.mxu0 %v6254
        %6278 = vmatprep.subr.bf16.mxu0 0
        %6279 = vmatpush1.bf16.xpose.msra.mxu0 %v6257
        %6280 = vmatprep.subr.bf16.mxu0 0
        %6281 = vmatpush1.bf16.xpose.msra.mxu0 %v6260
        %6282 = vmatprep.subr.bf16.mxu0 0
        %6283 = vmatpush1.bf16.xpose.msra.mxu0 %v6263
        %6284 = vmatprep.subr.bf16.mxu0 0
        %6285 = vmatpush1.bf16.xpose.msra.mxu0 %v6266
        %6286 = vmatprep.subr.bf16.mxu0 0
        %6287 = vmatpush1.bf16.xpose.msra.mxu0 %v6269
        %6288 = vmatprep.subr.bf16.mxu0 0
        %6289 = vmatpush1.bf16.xpose.msra.mxu0 %v6272
        %6290 = vmatprep.subr.bf16.mxu0 0
        %6291 = vmatpush1.bf16.xpose.msra.mxu0 0
        %6292 = vmatprep.subr.bf16.mxu0 0
        %6293 = vmatpush1.bf16.xpose.msra.mxu0 0
        %6294 = vmatprep.subr.bf16.mxu0 0
        %6295 = vmatpush1.bf16.xpose.msra.mxu0 0
        %6296 = vmatprep.subr.bf16.mxu0 0
        %6297 = vmatpush1.bf16.xpose.msra.mxu0 0
        %6298 = vmatprep.subr.bf16.mxu0 0
        %6299 = vmatpush1.bf16.xpose.msra.mxu0 0
        %6300 = vmatprep.subr.bf16.mxu0 0
        %6301 = vmatpush1.bf16.xpose.msra.mxu0 0
        %6302 = vmatprep.subr.bf16.mxu0 0
        %6303 = vmatpush1.bf16.xpose.msra.mxu0 0
        %6304 = vmatprep.subr.bf16.mxu0 0
        %6305 = vmatpush1.bf16.xpose.msra.mxu0 0
        %6306 = vmatprep.mubr.bf16.mxu0 0
        %6307 = vmatmul.mubr.bf16.gmra.mrb[0].mxu0 %v6227
        %v6308 = vpop.f32.mrb[0].mxu0
        %v6309 = vadd.f32 %v6162, %v6308
        %v6310 = vpop.f32.mrb[0].mxu0
        %v6311 = vpop.f32.mrb[0].mxu0
        %v6312 = vadd.f32 %v6163, %v6311
        %v6313 = vpop.f32.mrb[0].mxu0
        %6314 = vmatprep.mubr.bf16.mxu0 0
        %6315 = vmatmul.mubr.bf16.gmra.mrb[0].mxu0 %v6230
        %v6316 = vpop.f32.mrb[0].mxu0
        %v6317 = vadd.f32 %v6164, %v6316
        %v6318 = vpop.f32.mrb[0].mxu0
        %v6319 = vpop.f32.mrb[0].mxu0
        %v6320 = vadd.f32 %v6165, %v6319
        %v6321 = vpop.f32.mrb[0].mxu0
        %6322 = vmatprep.mubr.bf16.mxu0 0
        %6323 = vmatmul.mubr.bf16.gmra.mrb[0].mxu0 %v6233
        %v6324 = vpop.f32.mrb[0].mxu0
        %v6325 = vadd.f32 %v6166, %v6324
        %v6326 = vpop.f32.mrb[0].mxu0
        %v6327 = vpop.f32.mrb[0].mxu0
        %v6328 = vadd.f32 %v6167, %v6327
        %v6329 = vpop.f32.mrb[0].mxu0
        %6330 = vmatprep.mubr.bf16.mxu0 0
        %6331 = vmatmul.mubr.bf16.gmra.mrb[0].mxu0 %v6236
        %v6332 = vpop.f32.mrb[0].mxu0
        %v6333 = vadd.f32 %v6168, %v6332
        %v6334 = vpop.f32.mrb[0].mxu0
        %v6335 = vpop.f32.mrb[0].mxu0
        %v6336 = vadd.f32 %v6169, %v6335
        %v6337 = vpop.f32.mrb[0].mxu0
        %6338 = vmatprep.mubr.bf16.mxu0 0
        %6339 = vmatmul.mubr.bf16.gmra.mrb[0].mxu0 %v6239
        %v6340 = vpop.f32.mrb[0].mxu0
        %v6341 = vadd.f32 %v6170, %v6340
        %v6342 = vpop.f32.mrb[0].mxu0
        %v6343 = vpop.f32.mrb[0].mxu0
        %v6344 = vadd.f32 %v6171, %v6343
        %v6345 = vpop.f32.mrb[0].mxu0
        %6346 = vmatprep.mubr.bf16.mxu0 0
        %6347 = vmatmul.mubr.bf16.gmra.mrb[0].mxu0 %v6242
        %v6348 = vpop.f32.mrb[0].mxu0
        %v6349 = vadd.f32 %v6172, %v6348
        %v6350 = vpop.f32.mrb[0].mxu0
        %v6351 = vpop.f32.mrb[0].mxu0
        %v6352 = vadd.f32 %v6173, %v6351
        %v6353 = vpop.f32.mrb[0].mxu0
        %6354 = vmatprep.mubr.bf16.mxu0 0
        %6355 = vmatmul.mubr.bf16.gmra.mrb[0].mxu0 %v6245
        %v6356 = vpop.f32.mrb[0].mxu0
        %v6357 = vadd.f32 %v6174, %v6356
        %v6358 = vpop.f32.mrb[0].mxu0
        %v6359 = vpop.f32.mrb[0].mxu0
        %v6360 = vadd.f32 %v6175, %v6359
        %v6361 = vpop.f32.mrb[0].mxu0
        %6362 = vmatprep.mubr.bf16.mxu0 0
        %6363 = vmatmul.mubr.bf16.gmra.mrb[0].mxu0 %v6248
        %v6364 = vpop.f32.mrb[0].mxu0
        %v6365 = vadd.f32 %v6176, %v6364
        %v6366 = vpop.f32.mrb[0].mxu0
        %v6367 = vpop.f32.mrb[0].mxu0
        %v6368 = vadd.f32 %v6177, %v6367
        %v6369 = vpop.f32.mrb[0].mxu0
        %6370 = vdwg.mxu0
        %v6372 = vsel %vm3083, %v2918, 0
        %v6375 = vsel %vm3083, %v2919, 0
        %v6378 = vsel %vm3083, %v2920, 0
        %v6381 = vsel %vm3083, %v2921, 0
        %v6384 = vsel %vm3083, %v2922, 0
        %v6387 = vsel %vm3083, %v2923, 0
        %v6390 = vsel %vm3083, %v2924, 0
        %v6393 = vsel %vm3083, %v2925, 0
        %v6396 = vsel %vm3083, %v2457, 0
        %v6399 = vsel %vm3083, %v2458, 0
        %v6402 = vsel %vm3083, %v2459, 0
        %v6405 = vsel %vm3083, %v2460, 0
        %v6408 = vsel %vm3083, %v2461, 0
        %v6411 = vsel %vm3083, %v2462, 0
        %v6414 = vsel %vm3083, %v2463, 0
        %v6417 = vsel %vm3083, %v2464, 0
        %6419 = vmatprep.subr.bf16.mxu0 0
        %6420 = vmatpush1.bf16.xpose.msra.mxu0 %v6396
        %6421 = vmatprep.subr.bf16.mxu0 0
        %6422 = vmatpush1.bf16.xpose.msra.mxu0 %v6399
        %6423 = vmatprep.subr.bf16.mxu0 0
        %6424 = vmatpush1.bf16.xpose.msra.mxu0 %v6402
        %6425 = vmatprep.subr.bf16.mxu0 0
        %6426 = vmatpush1.bf16.xpose.msra.mxu0 %v6405
        %6427 = vmatprep.subr.bf16.mxu0 0
        %6428 = vmatpush1.bf16.xpose.msra.mxu0 %v6408
        %6429 = vmatprep.subr.bf16.mxu0 0
        %6430 = vmatpush1.bf16.xpose.msra.mxu0 %v6411
        %6431 = vmatprep.subr.bf16.mxu0 0
        %6432 = vmatpush1.bf16.xpose.msra.mxu0 %v6414
        %6433 = vmatprep.subr.bf16.mxu0 0
        %6434 = vmatpush1.bf16.xpose.msra.mxu0 %v6417
        %6435 = vmatprep.subr.bf16.mxu0 0
        %6436 = vmatpush1.bf16.xpose.msra.mxu0 0
        %6437 = vmatprep.subr.bf16.mxu0 0
        %6438 = vmatpush1.bf16.xpose.msra.mxu0 0
        %6439 = vmatprep.subr.bf16.mxu0 0
        %6440 = vmatpush1.bf16.xpose.msra.mxu0 0
        %6441 = vmatprep.subr.bf16.mxu0 0
        %6442 = vmatpush1.bf16.xpose.msra.mxu0 0
        %6443 = vmatprep.subr.bf16.mxu0 0
        %6444 = vmatpush1.bf16.xpose.msra.mxu0 0
        %6445 = vmatprep.subr.bf16.mxu0 0
        %6446 = vmatpush1.bf16.xpose.msra.mxu0 0
        %6447 = vmatprep.subr.bf16.mxu0 0
        %6448 = vmatpush1.bf16.xpose.msra.mxu0 0
        %6449 = vmatprep.subr.bf16.mxu0 0
        %6450 = vmatpush1.bf16.xpose.msra.mxu0 0
        %6451 = vmatprep.mubr.bf16.mxu0 0
        %6452 = vmatmul.mubr.bf16.gmra.mrb[0].mxu0 %v6372
        %v6453 = vpop.f32.mrb[0].mxu0
        %v6454 = vadd.f32 %v6178, %v6453
        %v6455 = vpop.f32.mrb[0].mxu0
        %v6456 = vpop.f32.mrb[0].mxu0
        %v6457 = vadd.f32 %v6179, %v6456
        %v6458 = vpop.f32.mrb[0].mxu0
        %6459 = vmatprep.mubr.bf16.mxu0 0
        %6460 = vmatmul.mubr.bf16.gmra.mrb[0].mxu0 %v6375
        %v6461 = vpop.f32.mrb[0].mxu0
        %v6462 = vadd.f32 %v6180, %v6461
        %v6463 = vpop.f32.mrb[0].mxu0
        %v6464 = vpop.f32.mrb[0].mxu0
        %v6465 = vadd.f32 %v6181, %v6464
        %v6466 = vpop.f32.mrb[0].mxu0
        %6467 = vmatprep.mubr.bf16.mxu0 0
        %6468 = vmatmul.mubr.bf16.gmra.mrb[0].mxu0 %v6378
        %v6469 = vpop.f32.mrb[0].mxu0
        %v6470 = vadd.f32 %v6182, %v6469
        %v6471 = vpop.f32.mrb[0].mxu0
        %v6472 = vpop.f32.mrb[0].mxu0
        %v6473 = vadd.f32 %v6183, %v6472
        %v6474 = vpop.f32.mrb[0].mxu0
        %6475 = vmatprep.mubr.bf16.mxu0 0
        %6476 = vmatmul.mubr.bf16.gmra.mrb[0].mxu0 %v6381
        %v6477 = vpop.f32.mrb[0].mxu0
        %v6478 = vadd.f32 %v6184, %v6477
        %v6479 = vpop.f32.mrb[0].mxu0
        %v6480 = vpop.f32.mrb[0].mxu0
        %v6481 = vadd.f32 %v6185, %v6480
        %v6482 = vpop.f32.mrb[0].mxu0
        %6483 = vmatprep.mubr.bf16.mxu0 0
        %6484 = vmatmul.mubr.bf16.gmra.mrb[0].mxu0 %v6384
        %v6485 = vpop.f32.mrb[0].mxu0
        %v6486 = vadd.f32 %v6186, %v6485
        %v6487 = vpop.f32.mrb[0].mxu0
        %v6488 = vpop.f32.mrb[0].mxu0
        %v6489 = vadd.f32 %v6187, %v6488
        %v6490 = vpop.f32.mrb[0].mxu0
        %6491 = vmatprep.mubr.bf16.mxu0 0
        %6492 = vmatmul.mubr.bf16.gmra.mrb[0].mxu0 %v6387
        %v6493 = vpop.f32.mrb[0].mxu0
        %v6494 = vadd.f32 %v6188, %v6493
        %v6495 = vpop.f32.mrb[0].mxu0
        %v6496 = vpop.f32.mrb[0].mxu0
        %v6497 = vadd.f32 %v6189, %v6496
        %v6498 = vpop.f32.mrb[0].mxu0
        %6499 = vmatprep.mubr.bf16.mxu0 0
        %6500 = vmatmul.mubr.bf16.gmra.mrb[0].mxu0 %v6390
        %v6501 = vpop.f32.mrb[0].mxu0
        %v6502 = vadd.f32 %v6190, %v6501
        %v6503 = vpop.f32.mrb[0].mxu0
        %v6504 = vpop.f32.mrb[0].mxu0
        %v6505 = vadd.f32 %v6191, %v6504
        %v6506 = vpop.f32.mrb[0].mxu0
        %6507 = vmatprep.mubr.bf16.mxu0 0
        %6508 = vmatmul.mubr.bf16.gmra.mrb[0].mxu0 %v6393
        %v6509 = vpop.f32.mrb[0].mxu0
        %v6510 = vadd.f32 %v6192, %v6509
        %v6511 = vpop.f32.mrb[0].mxu0
        %v6512 = vpop.f32.mrb[0].mxu0
        %v6513 = vadd.f32 %v6193, %v6512
        %v6514 = vpop.f32.mrb[0].mxu0
        %6515 = vdwg.mxu0
        %v6517 = vsel %vm3083, %v2926, 0
        %v6520 = vsel %vm3083, %v2927, 0
        %v6523 = vsel %vm3083, %v2928, 0
        %v6526 = vsel %vm3083, %v2929, 0
        %v6529 = vsel %vm3083, %v2930, 0
        %v6532 = vsel %vm3083, %v2931, 0
        %v6535 = vsel %vm3083, %v2932, 0
        %v6538 = vsel %vm3083, %v2933, 0
        %v6541 = vsel %vm3083, %v2465, 0
        %v6544 = vsel %vm3083, %v2466, 0
        %v6547 = vsel %vm3083, %v2467, 0
        %v6550 = vsel %vm3083, %v2468, 0
        %v6553 = vsel %vm3083, %v2469, 0
        %v6556 = vsel %vm3083, %v2470, 0
        %v6559 = vsel %vm3083, %v2471, 0
        %v6562 = vsel %vm3083, %v2472, 0
        %6564 = vmatprep.subr.bf16.mxu0 0
        %6565 = vmatpush1.bf16.xpose.msra.mxu0 %v6541
        %6566 = vmatprep.subr.bf16.mxu0 0
        %6567 = vmatpush1.bf16.xpose.msra.mxu0 %v6544
        %6568 = vmatprep.subr.bf16.mxu0 0
        %6569 = vmatpush1.bf16.xpose.msra.mxu0 %v6547
        %6570 = vmatprep.subr.bf16.mxu0 0
        %6571 = vmatpush1.bf16.xpose.msra.mxu0 %v6550
        %6572 = vmatprep.subr.bf16.mxu0 0
        %6573 = vmatpush1.bf16.xpose.msra.mxu0 %v6553
        %6574 = vmatprep.subr.bf16.mxu0 0
        %6575 = vmatpush1.bf16.xpose.msra.mxu0 %v6556
        %6576 = vmatprep.subr.bf16.mxu0 0
        %6577 = vmatpush1.bf16.xpose.msra.mxu0 %v6559
        %6578 = vmatprep.subr.bf16.mxu0 0
        %6579 = vmatpush1.bf16.xpose.msra.mxu0 %v6562
        %6580 = vmatprep.subr.bf16.mxu0 0
        %6581 = vmatpush1.bf16.xpose.msra.mxu0 0
        %6582 = vmatprep.subr.bf16.mxu0 0
        %6583 = vmatpush1.bf16.xpose.msra.mxu0 0
        %6584 = vmatprep.subr.bf16.mxu0 0
        %6585 = vmatpush1.bf16.xpose.msra.mxu0 0
        %6586 = vmatprep.subr.bf16.mxu0 0
        %6587 = vmatpush1.bf16.xpose.msra.mxu0 0
        %6588 = vmatprep.subr.bf16.mxu0 0
        %6589 = vmatpush1.bf16.xpose.msra.mxu0 0
        %6590 = vmatprep.subr.bf16.mxu0 0
        %6591 = vmatpush1.bf16.xpose.msra.mxu0 0
        %6592 = vmatprep.subr.bf16.mxu0 0
        %6593 = vmatpush1.bf16.xpose.msra.mxu0 0
        %6594 = vmatprep.subr.bf16.mxu0 0
        %6595 = vmatpush1.bf16.xpose.msra.mxu0 0
        %6596 = vmatprep.mubr.bf16.mxu0 0
        %6597 = vmatmul.mubr.bf16.gmra.mrb[0].mxu0 %v6517
        %v6598 = vpop.f32.mrb[0].mxu0
        %v6599 = vadd.f32 %v6194, %v6598
        %v6600 = vpop.f32.mrb[0].mxu0
        %v6601 = vpop.f32.mrb[0].mxu0
        %v6602 = vadd.f32 %v6195, %v6601
        %v6603 = vpop.f32.mrb[0].mxu0
        %6604 = vmatprep.mubr.bf16.mxu0 0
        %6605 = vmatmul.mubr.bf16.gmra.mrb[0].mxu0 %v6520
        %v6606 = vpop.f32.mrb[0].mxu0
        %v6607 = vadd.f32 %v6196, %v6606
        %v6608 = vpop.f32.mrb[0].mxu0
        %v6609 = vpop.f32.mrb[0].mxu0
        %v6610 = vadd.f32 %v6197, %v6609
        %v6611 = vpop.f32.mrb[0].mxu0
        %6612 = vmatprep.mubr.bf16.mxu0 0
        %6613 = vmatmul.mubr.bf16.gmra.mrb[0].mxu0 %v6523
        %v6614 = vpop.f32.mrb[0].mxu0
        %v6615 = vadd.f32 %v6198, %v6614
        %v6616 = vpop.f32.mrb[0].mxu0
        %v6617 = vpop.f32.mrb[0].mxu0
        %v6618 = vadd.f32 %v6199, %v6617
        %v6619 = vpop.f32.mrb[0].mxu0
        %6620 = vmatprep.mubr.bf16.mxu0 0
        %6621 = vmatmul.mubr.bf16.gmra.mrb[0].mxu0 %v6526
        %v6622 = vpop.f32.mrb[0].mxu0
        %v6623 = vadd.f32 %v6200, %v6622
        %v6624 = vpop.f32.mrb[0].mxu0
        %v6625 = vpop.f32.mrb[0].mxu0
        %v6626 = vadd.f32 %v6201, %v6625
        %v6627 = vpop.f32.mrb[0].mxu0
        %6628 = vmatprep.mubr.bf16.mxu0 0
        %6629 = vmatmul.mubr.bf16.gmra.mrb[0].mxu0 %v6529
        %v6630 = vpop.f32.mrb[0].mxu0
        %v6631 = vadd.f32 %v6202, %v6630
        %v6632 = vpop.f32.mrb[0].mxu0
        %v6633 = vpop.f32.mrb[0].mxu0
        %v6634 = vadd.f32 %v6203, %v6633
        %v6635 = vpop.f32.mrb[0].mxu0
        %6636 = vmatprep.mubr.bf16.mxu0 0
        %6637 = vmatmul.mubr.bf16.gmra.mrb[0].mxu0 %v6532
        %v6638 = vpop.f32.mrb[0].mxu0
        %v6639 = vadd.f32 %v6204, %v6638
        %v6640 = vpop.f32.mrb[0].mxu0
        %v6641 = vpop.f32.mrb[0].mxu0
        %v6642 = vadd.f32 %v6205, %v6641
        %v6643 = vpop.f32.mrb[0].mxu0
        %6644 = vmatprep.mubr.bf16.mxu0 0
        %6645 = vmatmul.mubr.bf16.gmra.mrb[0].mxu0 %v6535
        %v6646 = vpop.f32.mrb[0].mxu0
        %v6647 = vadd.f32 %v6206, %v6646
        %v6648 = vpop.f32.mrb[0].mxu0
        %v6649 = vpop.f32.mrb[0].mxu0
        %v6650 = vadd.f32 %v6207, %v6649
        %v6651 = vpop.f32.mrb[0].mxu0
        %6652 = vmatprep.mubr.bf16.mxu0 0
        %6653 = vmatmul.mubr.bf16.gmra.mrb[0].mxu0 %v6538
        %v6654 = vpop.f32.mrb[0].mxu0
        %v6655 = vadd.f32 %v6208, %v6654
        %v6656 = vpop.f32.mrb[0].mxu0
        %v6657 = vpop.f32.mrb[0].mxu0
        %v6658 = vadd.f32 %v6209, %v6657
        %v6659 = vpop.f32.mrb[0].mxu0
        %6660 = vdwg.mxu0
        %v6662 = vsel %vm3083, %v2934, 0
        %v6665 = vsel %vm3083, %v2935, 0
        %v6668 = vsel %vm3083, %v2936, 0
        %v6671 = vsel %vm3083, %v2937, 0
        %v6674 = vsel %vm3083, %v2938, 0
        %v6677 = vsel %vm3083, %v2939, 0
        %v6680 = vsel %vm3083, %v2940, 0
        %v6683 = vsel %vm3083, %v2941, 0
        %v6686 = vsel %vm3083, %v2473, 0
        %v6689 = vsel %vm3083, %v2474, 0
        %v6692 = vsel %vm3083, %v2475, 0
        %v6695 = vsel %vm3083, %v2476, 0
        %v6698 = vsel %vm3083, %v2477, 0
        %v6701 = vsel %vm3083, %v2478, 0
        %v6704 = vsel %vm3083, %v2479, 0
        %v6707 = vsel %vm3083, %v2480, 0
        %6709 = vmatprep.subr.bf16.mxu0 0
        %6710 = vmatpush1.bf16.xpose.msra.mxu0 %v6686
        %6711 = vmatprep.subr.bf16.mxu0 0
        %6712 = vmatpush1.bf16.xpose.msra.mxu0 %v6689
        %6713 = vmatprep.subr.bf16.mxu0 0
        %6714 = vmatpush1.bf16.xpose.msra.mxu0 %v6692
        %6715 = vmatprep.subr.bf16.mxu0 0
        %6716 = vmatpush1.bf16.xpose.msra.mxu0 %v6695
        %6717 = vmatprep.subr.bf16.mxu0 0
        %6718 = vmatpush1.bf16.xpose.msra.mxu0 %v6698
        %6719 = vmatprep.subr.bf16.mxu0 0
        %6720 = vmatpush1.bf16.xpose.msra.mxu0 %v6701
        %6721 = vmatprep.subr.bf16.mxu0 0
        %6722 = vmatpush1.bf16.xpose.msra.mxu0 %v6704
        %6723 = vmatprep.subr.bf16.mxu0 0
        %6724 = vmatpush1.bf16.xpose.msra.mxu0 %v6707
        %6725 = vmatprep.subr.bf16.mxu0 0
        %6726 = vmatpush1.bf16.xpose.msra.mxu0 0
        %6727 = vmatprep.subr.bf16.mxu0 0
        %6728 = vmatpush1.bf16.xpose.msra.mxu0 0
        %6729 = vmatprep.subr.bf16.mxu0 0
        %6730 = vmatpush1.bf16.xpose.msra.mxu0 0
        %6731 = vmatprep.subr.bf16.mxu0 0
        %6732 = vmatpush1.bf16.xpose.msra.mxu0 0
        %6733 = vmatprep.subr.bf16.mxu0 0
        %6734 = vmatpush1.bf16.xpose.msra.mxu0 0
        %6735 = vmatprep.subr.bf16.mxu0 0
        %6736 = vmatpush1.bf16.xpose.msra.mxu0 0
        %6737 = vmatprep.subr.bf16.mxu0 0
        %6738 = vmatpush1.bf16.xpose.msra.mxu0 0
        %6739 = vmatprep.subr.bf16.mxu0 0
        %6740 = vmatpush1.bf16.xpose.msra.mxu0 0
        %6741 = vmatprep.mubr.bf16.mxu0 0
        %6742 = vmatmul.mubr.bf16.gmra.mrb[0].mxu0 %v6662
        %v6743 = vpop.f32.mrb[0].mxu0
        %v6744 = vadd.f32 %v6210, %v6743
        %v6745 = vpop.f32.mrb[0].mxu0
        %v6746 = vpop.f32.mrb[0].mxu0
        %v6747 = vadd.f32 %v6211, %v6746
        %v6748 = vpop.f32.mrb[0].mxu0
        %6749 = vmatprep.mubr.bf16.mxu0 0
        %6750 = vmatmul.mubr.bf16.gmra.mrb[0].mxu0 %v6665
        %v6751 = vpop.f32.mrb[0].mxu0
        %v6752 = vadd.f32 %v6212, %v6751
        %v6753 = vpop.f32.mrb[0].mxu0
        %v6754 = vpop.f32.mrb[0].mxu0
        %v6755 = vadd.f32 %v6213, %v6754
        %v6756 = vpop.f32.mrb[0].mxu0
        %6757 = vmatprep.mubr.bf16.mxu0 0
        %6758 = vmatmul.mubr.bf16.gmra.mrb[0].mxu0 %v6668
        %v6759 = vpop.f32.mrb[0].mxu0
        %v6760 = vadd.f32 %v6214, %v6759
        %v6761 = vpop.f32.mrb[0].mxu0
        %v6762 = vpop.f32.mrb[0].mxu0
        %v6763 = vadd.f32 %v6215, %v6762
        %v6764 = vpop.f32.mrb[0].mxu0
        %6765 = vmatprep.mubr.bf16.mxu0 0
        %6766 = vmatmul.mubr.bf16.gmra.mrb[0].mxu0 %v6671
        %v6767 = vpop.f32.mrb[0].mxu0
        %v6768 = vadd.f32 %v6216, %v6767
        %v6769 = vpop.f32.mrb[0].mxu0
        %v6770 = vpop.f32.mrb[0].mxu0
        %v6771 = vadd.f32 %v6217, %v6770
        %v6772 = vpop.f32.mrb[0].mxu0
        %6773 = vmatprep.mubr.bf16.mxu0 0
        %6774 = vmatmul.mubr.bf16.gmra.mrb[0].mxu0 %v6674
        %v6775 = vpop.f32.mrb[0].mxu0
        %v6776 = vadd.f32 %v6218, %v6775
        %v6777 = vpop.f32.mrb[0].mxu0
        %v6778 = vpop.f32.mrb[0].mxu0
        %v6779 = vadd.f32 %v6219, %v6778
        %v6780 = vpop.f32.mrb[0].mxu0
        %6781 = vmatprep.mubr.bf16.mxu0 0
        %6782 = vmatmul.mubr.bf16.gmra.mrb[0].mxu0 %v6677
        %v6783 = vpop.f32.mrb[0].mxu0
        %v6784 = vadd.f32 %v6220, %v6783
        %v6785 = vpop.f32.mrb[0].mxu0
        %v6786 = vpop.f32.mrb[0].mxu0
        %v6787 = vadd.f32 %v6221, %v6786
        %v6788 = vpop.f32.mrb[0].mxu0
        %6789 = vmatprep.mubr.bf16.mxu0 0
        %6790 = vmatmul.mubr.bf16.gmra.mrb[0].mxu0 %v6680
        %v6791 = vpop.f32.mrb[0].mxu0
        %v6792 = vadd.f32 %v6222, %v6791
        %v6793 = vpop.f32.mrb[0].mxu0
        %v6794 = vpop.f32.mrb[0].mxu0
        %v6795 = vadd.f32 %v6223, %v6794
        %v6796 = vpop.f32.mrb[0].mxu0
        %6797 = vmatprep.mubr.bf16.mxu0 0
        %6798 = vmatmul.mubr.bf16.gmra.mrb[0].mxu0 %v6683
        %v6799 = vpop.f32.mrb[0].mxu0
        %v6800 = vadd.f32 %v6224, %v6799
        %v6801 = vpop.f32.mrb[0].mxu0
        %v6802 = vpop.f32.mrb[0].mxu0
        %v6803 = vadd.f32 %v6225, %v6802
        %v6804 = vpop.f32.mrb[0].mxu0
        %6805 = vdwg.mxu0
        %6806 = vmax.xlane.f32.xlu0 %v6309
        %v6807 = vpop.xlane.xlu0 %6806
        %6808 = vmax.xlane.f32.xlu0 %v6312
        %v6809 = vpop.xlane.xlu0 %6808
        %6810 = vmax.xlane.f32.xlu0 %v6317
        %v6811 = vpop.xlane.xlu0 %6810
        %6812 = vmax.xlane.f32.xlu0 %v6320
        %v6813 = vpop.xlane.xlu0 %6812
        %6814 = vmax.xlane.f32.xlu0 %v6325
        %v6815 = vpop.xlane.xlu0 %6814
        %6816 = vmax.xlane.f32.xlu0 %v6328
        %v6817 = vpop.xlane.xlu0 %6816
        %6818 = vmax.xlane.f32.xlu0 %v6333
        %v6819 = vpop.xlane.xlu0 %6818
        %6820 = vmax.xlane.f32.xlu0 %v6336
        %v6821 = vpop.xlane.xlu0 %6820
        %6822 = vmax.xlane.f32.xlu0 %v6341
        %v6823 = vpop.xlane.xlu0 %6822
        %6824 = vmax.xlane.f32.xlu0 %v6344
        %v6825 = vpop.xlane.xlu0 %6824
        %6826 = vmax.xlane.f32.xlu0 %v6349
        %v6827 = vpop.xlane.xlu0 %6826
        %6828 = vmax.xlane.f32.xlu0 %v6352
        %v6829 = vpop.xlane.xlu0 %6828
        %6830 = vmax.xlane.f32.xlu0 %v6357
        %v6831 = vpop.xlane.xlu0 %6830
        %6832 = vmax.xlane.f32.xlu0 %v6360
        %v6833 = vpop.xlane.xlu0 %6832
        %6834 = vmax.xlane.f32.xlu0 %v6365
        %v6835 = vpop.xlane.xlu0 %6834
        %6836 = vmax.xlane.f32.xlu0 %v6368
        %v6837 = vpop.xlane.xlu0 %6836
        %6838 = vmax.xlane.f32.xlu0 %v6454
        %v6839 = vpop.xlane.xlu0 %6838
        %6840 = vmax.xlane.f32.xlu0 %v6457
        %v6841 = vpop.xlane.xlu0 %6840
        %6842 = vmax.xlane.f32.xlu0 %v6462
        %v6843 = vpop.xlane.xlu0 %6842
        %6844 = vmax.xlane.f32.xlu0 %v6465
        %v6845 = vpop.xlane.xlu0 %6844
        %6846 = vmax.xlane.f32.xlu0 %v6470
        %v6847 = vpop.xlane.xlu0 %6846
        %6848 = vmax.xlane.f32.xlu0 %v6473
        %v6849 = vpop.xlane.xlu0 %6848
        %6850 = vmax.xlane.f32.xlu0 %v6478
        %v6851 = vpop.xlane.xlu0 %6850
        %6852 = vmax.xlane.f32.xlu0 %v6481
        %v6853 = vpop.xlane.xlu0 %6852
        %6854 = vmax.xlane.f32.xlu0 %v6486
        %v6855 = vpop.xlane.xlu0 %6854
        %6856 = vmax.xlane.f32.xlu0 %v6489
        %v6857 = vpop.xlane.xlu0 %6856
        %6858 = vmax.xlane.f32.xlu0 %v6494
        %v6859 = vpop.xlane.xlu0 %6858
        %6860 = vmax.xlane.f32.xlu0 %v6497
        %v6861 = vpop.xlane.xlu0 %6860
        %6862 = vmax.xlane.f32.xlu0 %v6502
        %v6863 = vpop.xlane.xlu0 %6862
        %6864 = vmax.xlane.f32.xlu0 %v6505
        %v6865 = vpop.xlane.xlu0 %6864
        %6866 = vmax.xlane.f32.xlu0 %v6510
        %v6867 = vpop.xlane.xlu0 %6866
        %6868 = vmax.xlane.f32.xlu0 %v6513
        %v6869 = vpop.xlane.xlu0 %6868
        %6870 = vmax.xlane.f32.xlu0 %v6599
        %v6871 = vpop.xlane.xlu0 %6870
        %6872 = vmax.xlane.f32.xlu0 %v6602
        %v6873 = vpop.xlane.xlu0 %6872
        %6874 = vmax.xlane.f32.xlu0 %v6607
        %v6875 = vpop.xlane.xlu0 %6874
        %6876 = vmax.xlane.f32.xlu0 %v6610
        %v6877 = vpop.xlane.xlu0 %6876
        %6878 = vmax.xlane.f32.xlu0 %v6615
        %v6879 = vpop.xlane.xlu0 %6878
        %6880 = vmax.xlane.f32.xlu0 %v6618
        %v6881 = vpop.xlane.xlu0 %6880
        %6882 = vmax.xlane.f32.xlu0 %v6623
        %v6883 = vpop.xlane.xlu0 %6882
        %6884 = vmax.xlane.f32.xlu0 %v6626
        %v6885 = vpop.xlane.xlu0 %6884
        %6886 = vmax.xlane.f32.xlu0 %v6631
        %v6887 = vpop.xlane.xlu0 %6886
        %6888 = vmax.xlane.f32.xlu0 %v6634
        %v6889 = vpop.xlane.xlu0 %6888
        %6890 = vmax.xlane.f32.xlu0 %v6639
        %v6891 = vpop.xlane.xlu0 %6890
        %6892 = vmax.xlane.f32.xlu0 %v6642
        %v6893 = vpop.xlane.xlu0 %6892
        %6894 = vmax.xlane.f32.xlu0 %v6647
        %v6895 = vpop.xlane.xlu0 %6894
        %6896 = vmax.xlane.f32.xlu0 %v6650
        %v6897 = vpop.xlane.xlu0 %6896
        %6898 = vmax.xlane.f32.xlu0 %v6655
        %v6899 = vpop.xlane.xlu0 %6898
        %6900 = vmax.xlane.f32.xlu0 %v6658
        %v6901 = vpop.xlane.xlu0 %6900
        %6902 = vmax.xlane.f32.xlu0 %v6744
        %v6903 = vpop.xlane.xlu0 %6902
        %6904 = vmax.xlane.f32.xlu0 %v6747
        %v6905 = vpop.xlane.xlu0 %6904
        %6906 = vmax.xlane.f32.xlu0 %v6752
        %v6907 = vpop.xlane.xlu0 %6906
        %6908 = vmax.xlane.f32.xlu0 %v6755
        %v6909 = vpop.xlane.xlu0 %6908
        %6910 = vmax.xlane.f32.xlu0 %v6760
        %v6911 = vpop.xlane.xlu0 %6910
        %6912 = vmax.xlane.f32.xlu0 %v6763
        %v6913 = vpop.xlane.xlu0 %6912
        %6914 = vmax.xlane.f32.xlu0 %v6768
        %v6915 = vpop.xlane.xlu0 %6914
        %6916 = vmax.xlane.f32.xlu0 %v6771
        %v6917 = vpop.xlane.xlu0 %6916
        %6918 = vmax.xlane.f32.xlu0 %v6776
        %v6919 = vpop.xlane.xlu0 %6918
        %6920 = vmax.xlane.f32.xlu0 %v6779
        %v6921 = vpop.xlane.xlu0 %6920
        %6922 = vmax.xlane.f32.xlu0 %v6784
        %v6923 = vpop.xlane.xlu0 %6922
        %6924 = vmax.xlane.f32.xlu0 %v6787
        %v6925 = vpop.xlane.xlu0 %6924
        %6926 = vmax.xlane.f32.xlu0 %v6792
        %v6927 = vpop.xlane.xlu0 %6926
        %6928 = vmax.xlane.f32.xlu0 %v6795
        %v6929 = vpop.xlane.xlu0 %6928
        %6930 = vmax.xlane.f32.xlu0 %v6800
        %v6931 = vpop.xlane.xlu0 %6930
        %6932 = vmax.xlane.f32.xlu0 %v6803
        %v6933 = vpop.xlane.xlu0 %6932
        %v6934 = vsub.f32 %v6309, %v6807
        %v6935 = vsub.f32 %v6312, %v6809
        %v6936 = vsub.f32 %v6317, %v6811
        %v6937 = vsub.f32 %v6320, %v6813
        %v6938 = vsub.f32 %v6325, %v6815
        %v6939 = vsub.f32 %v6328, %v6817
        %v6940 = vsub.f32 %v6333, %v6819
        %v6941 = vsub.f32 %v6336, %v6821
        %v6942 = vsub.f32 %v6341, %v6823
        %v6943 = vsub.f32 %v6344, %v6825
        %v6944 = vsub.f32 %v6349, %v6827
        %v6945 = vsub.f32 %v6352, %v6829
        %v6946 = vsub.f32 %v6357, %v6831
        %v6947 = vsub.f32 %v6360, %v6833
        %v6948 = vsub.f32 %v6365, %v6835
        %v6949 = vsub.f32 %v6368, %v6837
        %v6950 = vsub.f32 %v6454, %v6839
        %v6951 = vsub.f32 %v6457, %v6841
        %v6952 = vsub.f32 %v6462, %v6843
        %v6953 = vsub.f32 %v6465, %v6845
        %v6954 = vsub.f32 %v6470, %v6847
        %v6955 = vsub.f32 %v6473, %v6849
        %v6956 = vsub.f32 %v6478, %v6851
        %v6957 = vsub.f32 %v6481, %v6853
        %v6958 = vsub.f32 %v6486, %v6855
        %v6959 = vsub.f32 %v6489, %v6857
        %v6960 = vsub.f32 %v6494, %v6859
        %v6961 = vsub.f32 %v6497, %v6861
        %v6962 = vsub.f32 %v6502, %v6863
        %v6963 = vsub.f32 %v6505, %v6865
        %v6964 = vsub.f32 %v6510, %v6867
        %v6965 = vsub.f32 %v6513, %v6869
        %v6966 = vsub.f32 %v6599, %v6871
        %v6967 = vsub.f32 %v6602, %v6873
        %v6968 = vsub.f32 %v6607, %v6875
        %v6969 = vsub.f32 %v6610, %v6877
        %v6970 = vsub.f32 %v6615, %v6879
        %v6971 = vsub.f32 %v6618, %v6881
        %v6972 = vsub.f32 %v6623, %v6883
        %v6973 = vsub.f32 %v6626, %v6885
        %v6974 = vsub.f32 %v6631, %v6887
        %v6975 = vsub.f32 %v6634, %v6889
        %v6976 = vsub.f32 %v6639, %v6891
        %v6977 = vsub.f32 %v6642, %v6893
        %v6978 = vsub.f32 %v6647, %v6895
        %v6979 = vsub.f32 %v6650, %v6897
        %v6980 = vsub.f32 %v6655, %v6899
        %v6981 = vsub.f32 %v6658, %v6901
        %v6982 = vsub.f32 %v6744, %v6903
        %v6983 = vsub.f32 %v6747, %v6905
        %v6984 = vsub.f32 %v6752, %v6907
        %v6985 = vsub.f32 %v6755, %v6909
        %v6986 = vsub.f32 %v6760, %v6911
        %v6987 = vsub.f32 %v6763, %v6913
        %v6988 = vsub.f32 %v6768, %v6915
        %v6989 = vsub.f32 %v6771, %v6917
        %v6990 = vsub.f32 %v6776, %v6919
        %v6991 = vsub.f32 %v6779, %v6921
        %v6992 = vsub.f32 %v6784, %v6923
        %v6993 = vsub.f32 %v6787, %v6925
        %v6994 = vsub.f32 %v6792, %v6927
        %v6995 = vsub.f32 %v6795, %v6929
        %v6996 = vsub.f32 %v6800, %v6931
        %v6997 = vsub.f32 %v6803, %v6933
        %v6998 = vmul.f32 %v6934, 1.442695
        %v6999 = vpow.pop %v6998
        %v7000 = vmul.f32 %v6935, 1.442695
        %v7001 = vpow.pop %v7000
        %v7002 = vmul.f32 %v6936, 1.442695
        %v7003 = vpow.pop %v7002
        %v7004 = vmul.f32 %v6937, 1.442695
        %v7005 = vpow.pop %v7004
        %v7006 = vmul.f32 %v6938, 1.442695
        %v7007 = vpow.pop %v7006
        %v7008 = vmul.f32 %v6939, 1.442695
        %v7009 = vpow.pop %v7008
        %v7010 = vmul.f32 %v6940, 1.442695
        %v7011 = vpow.pop %v7010
        %v7012 = vmul.f32 %v6941, 1.442695
        %v7013 = vpow.pop %v7012
        %v7014 = vmul.f32 %v6942, 1.442695
        %v7015 = vpow.pop %v7014
        %v7016 = vmul.f32 %v6943, 1.442695
        %v7017 = vpow.pop %v7016
        %v7018 = vmul.f32 %v6944, 1.442695
        %v7019 = vpow.pop %v7018
        %v7020 = vmul.f32 %v6945, 1.442695
        %v7021 = vpow.pop %v7020
        %v7022 = vmul.f32 %v6946, 1.442695
        %v7023 = vpow.pop %v7022
        %v7024 = vmul.f32 %v6947, 1.442695
        %v7025 = vpow.pop %v7024
        %v7026 = vmul.f32 %v6948, 1.442695
        %v7027 = vpow.pop %v7026
        %v7028 = vmul.f32 %v6949, 1.442695
        %v7029 = vpow.pop %v7028
        %v7030 = vmul.f32 %v6950, 1.442695
        %v7031 = vpow.pop %v7030
        %v7032 = vmul.f32 %v6951, 1.442695
        %v7033 = vpow.pop %v7032
        %v7034 = vmul.f32 %v6952, 1.442695
        %v7035 = vpow.pop %v7034
        %v7036 = vmul.f32 %v6953, 1.442695
        %v7037 = vpow.pop %v7036
        %v7038 = vmul.f32 %v6954, 1.442695
        %v7039 = vpow.pop %v7038
        %v7040 = vmul.f32 %v6955, 1.442695
        %v7041 = vpow.pop %v7040
        %v7042 = vmul.f32 %v6956, 1.442695
        %v7043 = vpow.pop %v7042
        %v7044 = vmul.f32 %v6957, 1.442695
        %v7045 = vpow.pop %v7044
        %v7046 = vmul.f32 %v6958, 1.442695
        %v7047 = vpow.pop %v7046
        %v7048 = vmul.f32 %v6959, 1.442695
        %v7049 = vpow.pop %v7048
        %v7050 = vmul.f32 %v6960, 1.442695
        %v7051 = vpow.pop %v7050
        %v7052 = vmul.f32 %v6961, 1.442695
        %v7053 = vpow.pop %v7052
        %v7054 = vmul.f32 %v6962, 1.442695
        %v7055 = vpow.pop %v7054
        %v7056 = vmul.f32 %v6963, 1.442695
        %v7057 = vpow.pop %v7056
        %v7058 = vmul.f32 %v6964, 1.442695
        %v7059 = vpow.pop %v7058
        %v7060 = vmul.f32 %v6965, 1.442695
        %v7061 = vpow.pop %v7060
        %v7062 = vmul.f32 %v6966, 1.442695
        %v7063 = vpow.pop %v7062
        %v7064 = vmul.f32 %v6967, 1.442695
        %v7065 = vpow.pop %v7064
        %v7066 = vmul.f32 %v6968, 1.442695
        %v7067 = vpow.pop %v7066
        %v7068 = vmul.f32 %v6969, 1.442695
        %v7069 = vpow.pop %v7068
        %v7070 = vmul.f32 %v6970, 1.442695
        %v7071 = vpow.pop %v7070
        %v7072 = vmul.f32 %v6971, 1.442695
        %v7073 = vpow.pop %v7072
        %v7074 = vmul.f32 %v6972, 1.442695
        %v7075 = vpow.pop %v7074
        %v7076 = vmul.f32 %v6973, 1.442695
        %v7077 = vpow.pop %v7076
        %v7078 = vmul.f32 %v6974, 1.442695
        %v7079 = vpow.pop %v7078
        %v7080 = vmul.f32 %v6975, 1.442695
        %v7081 = vpow.pop %v7080
        %v7082 = vmul.f32 %v6976, 1.442695
        %v7083 = vpow.pop %v7082
        %v7084 = vmul.f32 %v6977, 1.442695
        %v7085 = vpow.pop %v7084
        %v7086 = vmul.f32 %v6978, 1.442695
        %v7087 = vpow.pop %v7086
        %v7088 = vmul.f32 %v6979, 1.442695
        %v7089 = vpow.pop %v7088
        %v7090 = vmul.f32 %v6980, 1.442695
        %v7091 = vpow.pop %v7090
        %v7092 = vmul.f32 %v6981, 1.442695
        %v7093 = vpow.pop %v7092
        %v7094 = vmul.f32 %v6982, 1.442695
        %v7095 = vpow.pop %v7094
        %v7096 = vmul.f32 %v6983, 1.442695
        %v7097 = vpow.pop %v7096
        %v7098 = vmul.f32 %v6984, 1.442695
        %v7099 = vpow.pop %v7098
        %v7100 = vmul.f32 %v6985, 1.442695
        %v7101 = vpow.pop %v7100
        %v7102 = vmul.f32 %v6986, 1.442695
        %v7103 = vpow.pop %v7102
        %v7104 = vmul.f32 %v6987, 1.442695
        %v7105 = vpow.pop %v7104
        %v7106 = vmul.f32 %v6988, 1.442695
        %v7107 = vpow.pop %v7106
        %v7108 = vmul.f32 %v6989, 1.442695
        %v7109 = vpow.pop %v7108
        %v7110 = vmul.f32 %v6990, 1.442695
        %v7111 = vpow.pop %v7110
        %v7112 = vmul.f32 %v6991, 1.442695
        %v7113 = vpow.pop %v7112
        %v7114 = vmul.f32 %v6992, 1.442695
        %v7115 = vpow.pop %v7114
        %v7116 = vmul.f32 %v6993, 1.442695
        %v7117 = vpow.pop %v7116
        %v7118 = vmul.f32 %v6994, 1.442695
        %v7119 = vpow.pop %v7118
        %v7120 = vmul.f32 %v6995, 1.442695
        %v7121 = vpow.pop %v7120
        %v7122 = vmul.f32 %v6996, 1.442695
        %v7123 = vpow.pop %v7122
        %v7124 = vmul.f32 %v6997, 1.442695
        %v7125 = vpow.pop %v7124
        %7126 = vadd.xlane.f32.xlu0 %v6999
        %v7127 = vpop.xlane.xlu0 %7126
        %7128 = vadd.xlane.f32.xlu0 %v7001
        %v7129 = vpop.xlane.xlu0 %7128
        %7130 = vadd.xlane.f32.xlu0 %v7003
        %v7131 = vpop.xlane.xlu0 %7130
        %7132 = vadd.xlane.f32.xlu0 %v7005
        %v7133 = vpop.xlane.xlu0 %7132
        %7134 = vadd.xlane.f32.xlu0 %v7007
        %v7135 = vpop.xlane.xlu0 %7134
        %7136 = vadd.xlane.f32.xlu0 %v7009
        %v7137 = vpop.xlane.xlu0 %7136
        %7138 = vadd.xlane.f32.xlu0 %v7011
        %v7139 = vpop.xlane.xlu0 %7138
        %7140 = vadd.xlane.f32.xlu0 %v7013
        %v7141 = vpop.xlane.xlu0 %7140
        %7142 = vadd.xlane.f32.xlu0 %v7015
        %v7143 = vpop.xlane.xlu0 %7142
        %7144 = vadd.xlane.f32.xlu0 %v7017
        %v7145 = vpop.xlane.xlu0 %7144
        %7146 = vadd.xlane.f32.xlu0 %v7019
        %v7147 = vpop.xlane.xlu0 %7146
        %7148 = vadd.xlane.f32.xlu0 %v7021
        %v7149 = vpop.xlane.xlu0 %7148
        %7150 = vadd.xlane.f32.xlu0 %v7023
        %v7151 = vpop.xlane.xlu0 %7150
        %7152 = vadd.xlane.f32.xlu0 %v7025
        %v7153 = vpop.xlane.xlu0 %7152
        %7154 = vadd.xlane.f32.xlu0 %v7027
        %v7155 = vpop.xlane.xlu0 %7154
        %7156 = vadd.xlane.f32.xlu0 %v7029
        %v7157 = vpop.xlane.xlu0 %7156
        %7158 = vadd.xlane.f32.xlu0 %v7031
        %v7159 = vpop.xlane.xlu0 %7158
        %7160 = vadd.xlane.f32.xlu0 %v7033
        %v7161 = vpop.xlane.xlu0 %7160
        %7162 = vadd.xlane.f32.xlu0 %v7035
        %v7163 = vpop.xlane.xlu0 %7162
        %7164 = vadd.xlane.f32.xlu0 %v7037
        %v7165 = vpop.xlane.xlu0 %7164
        %7166 = vadd.xlane.f32.xlu0 %v7039
        %v7167 = vpop.xlane.xlu0 %7166
        %7168 = vadd.xlane.f32.xlu0 %v7041
        %v7169 = vpop.xlane.xlu0 %7168
        %7170 = vadd.xlane.f32.xlu0 %v7043
        %v7171 = vpop.xlane.xlu0 %7170
        %7172 = vadd.xlane.f32.xlu0 %v7045
        %v7173 = vpop.xlane.xlu0 %7172
        %7174 = vadd.xlane.f32.xlu0 %v7047
        %v7175 = vpop.xlane.xlu0 %7174
        %7176 = vadd.xlane.f32.xlu0 %v7049
        %v7177 = vpop.xlane.xlu0 %7176
        %7178 = vadd.xlane.f32.xlu0 %v7051
        %v7179 = vpop.xlane.xlu0 %7178
        %7180 = vadd.xlane.f32.xlu0 %v7053
        %v7181 = vpop.xlane.xlu0 %7180
        %7182 = vadd.xlane.f32.xlu0 %v7055
        %v7183 = vpop.xlane.xlu0 %7182
        %7184 = vadd.xlane.f32.xlu0 %v7057
        %v7185 = vpop.xlane.xlu0 %7184
        %7186 = vadd.xlane.f32.xlu0 %v7059
        %v7187 = vpop.xlane.xlu0 %7186
        %7188 = vadd.xlane.f32.xlu0 %v7061
        %v7189 = vpop.xlane.xlu0 %7188
        %7190 = vadd.xlane.f32.xlu0 %v7063
        %v7191 = vpop.xlane.xlu0 %7190
        %7192 = vadd.xlane.f32.xlu0 %v7065
        %v7193 = vpop.xlane.xlu0 %7192
        %7194 = vadd.xlane.f32.xlu0 %v7067
        %v7195 = vpop.xlane.xlu0 %7194
        %7196 = vadd.xlane.f32.xlu0 %v7069
        %v7197 = vpop.xlane.xlu0 %7196
        %7198 = vadd.xlane.f32.xlu0 %v7071
        %v7199 = vpop.xlane.xlu0 %7198
        %7200 = vadd.xlane.f32.xlu0 %v7073
        %v7201 = vpop.xlane.xlu0 %7200
        %7202 = vadd.xlane.f32.xlu0 %v7075
        %v7203 = vpop.xlane.xlu0 %7202
        %7204 = vadd.xlane.f32.xlu0 %v7077
        %v7205 = vpop.xlane.xlu0 %7204
        %7206 = vadd.xlane.f32.xlu0 %v7079
        %v7207 = vpop.xlane.xlu0 %7206
        %7208 = vadd.xlane.f32.xlu0 %v7081
        %v7209 = vpop.xlane.xlu0 %7208
        %7210 = vadd.xlane.f32.xlu0 %v7083
        %v7211 = vpop.xlane.xlu0 %7210
        %7212 = vadd.xlane.f32.xlu0 %v7085
        %v7213 = vpop.xlane.xlu0 %7212
        %7214 = vadd.xlane.f32.xlu0 %v7087
        %v7215 = vpop.xlane.xlu0 %7214
        %7216 = vadd.xlane.f32.xlu0 %v7089
        %v7217 = vpop.xlane.xlu0 %7216
        %7218 = vadd.xlane.f32.xlu0 %v7091
        %v7219 = vpop.xlane.xlu0 %7218
        %7220 = vadd.xlane.f32.xlu0 %v7093
        %v7221 = vpop.xlane.xlu0 %7220
        %7222 = vadd.xlane.f32.xlu0 %v7095
        %v7223 = vpop.xlane.xlu0 %7222
        %7224 = vadd.xlane.f32.xlu0 %v7097
        %v7225 = vpop.xlane.xlu0 %7224
        %7226 = vadd.xlane.f32.xlu0 %v7099
        %v7227 = vpop.xlane.xlu0 %7226
        %7228 = vadd.xlane.f32.xlu0 %v7101
        %v7229 = vpop.xlane.xlu0 %7228
        %7230 = vadd.xlane.f32.xlu0 %v7103
        %v7231 = vpop.xlane.xlu0 %7230
        %7232 = vadd.xlane.f32.xlu0 %v7105
        %v7233 = vpop.xlane.xlu0 %7232
        %7234 = vadd.xlane.f32.xlu0 %v7107
        %v7235 = vpop.xlane.xlu0 %7234
        %7236 = vadd.xlane.f32.xlu0 %v7109
        %v7237 = vpop.xlane.xlu0 %7236
        %7238 = vadd.xlane.f32.xlu0 %v7111
        %v7239 = vpop.xlane.xlu0 %7238
        %7240 = vadd.xlane.f32.xlu0 %v7113
        %v7241 = vpop.xlane.xlu0 %7240
        %7242 = vadd.xlane.f32.xlu0 %v7115
        %v7243 = vpop.xlane.xlu0 %7242
        %7244 = vadd.xlane.f32.xlu0 %v7117
        %v7245 = vpop.xlane.xlu0 %7244
        %7246 = vadd.xlane.f32.xlu0 %v7119
        %v7247 = vpop.xlane.xlu0 %7246
        %7248 = vadd.xlane.f32.xlu0 %v7121
        %v7249 = vpop.xlane.xlu0 %7248
        %7250 = vadd.xlane.f32.xlu0 %v7123
        %v7251 = vpop.xlane.xlu0 %7250
        %7252 = vadd.xlane.f32.xlu0 %v7125
        %v7253 = vpop.xlane.xlu0 %7252
        %v7254 = vrcp.pop %v7127
        %v7255 = vrcp.pop %v7129
        %v7256 = vrcp.pop %v7131
        %v7257 = vrcp.pop %v7133
        %v7258 = vrcp.pop %v7135
        %v7259 = vrcp.pop %v7137
        %v7260 = vrcp.pop %v7139
        %v7261 = vrcp.pop %v7141
        %v7262 = vrcp.pop %v7143
        %v7263 = vrcp.pop %v7145
        %v7264 = vrcp.pop %v7147
        %v7265 = vrcp.pop %v7149
        %v7266 = vrcp.pop %v7151
        %v7267 = vrcp.pop %v7153
        %v7268 = vrcp.pop %v7155
        %v7269 = vrcp.pop %v7157
        %v7270 = vrcp.pop %v7159
        %v7271 = vrcp.pop %v7161
        %v7272 = vrcp.pop %v7163
        %v7273 = vrcp.pop %v7165
        %v7274 = vrcp.pop %v7167
        %v7275 = vrcp.pop %v7169
        %v7276 = vrcp.pop %v7171
        %v7277 = vrcp.pop %v7173
        %v7278 = vrcp.pop %v7175
        %v7279 = vrcp.pop %v7177
        %v7280 = vrcp.pop %v7179
        %v7281 = vrcp.pop %v7181
        %v7282 = vrcp.pop %v7183
        %v7283 = vrcp.pop %v7185
        %v7284 = vrcp.pop %v7187
        %v7285 = vrcp.pop %v7189
        %v7286 = vrcp.pop %v7191
        %v7287 = vrcp.pop %v7193
        %v7288 = vrcp.pop %v7195
        %v7289 = vrcp.pop %v7197
        %v7290 = vrcp.pop %v7199
        %v7291 = vrcp.pop %v7201
        %v7292 = vrcp.pop %v7203
        %v7293 = vrcp.pop %v7205
        %v7294 = vrcp.pop %v7207
        %v7295 = vrcp.pop %v7209
        %v7296 = vrcp.pop %v7211
        %v7297 = vrcp.pop %v7213
        %v7298 = vrcp.pop %v7215
        %v7299 = vrcp.pop %v7217
        %v7300 = vrcp.pop %v7219
        %v7301 = vrcp.pop %v7221
        %v7302 = vrcp.pop %v7223
        %v7303 = vrcp.pop %v7225
        %v7304 = vrcp.pop %v7227
        %v7305 = vrcp.pop %v7229
        %v7306 = vrcp.pop %v7231
        %v7307 = vrcp.pop %v7233
        %v7308 = vrcp.pop %v7235
        %v7309 = vrcp.pop %v7237
        %v7310 = vrcp.pop %v7239
        %v7311 = vrcp.pop %v7241
        %v7312 = vrcp.pop %v7243
        %v7313 = vrcp.pop %v7245
        %v7314 = vrcp.pop %v7247
        %v7315 = vrcp.pop %v7249
        %v7316 = vrcp.pop %v7251
        %v7317 = vrcp.pop %v7253
        %v7318 = vmul.f32 %v6999, %v7254
        %v7319 = vmul.f32 %v7001, %v7255
        %v7320 = vmul.f32 %v7003, %v7256
        %v7321 = vmul.f32 %v7005, %v7257
        %v7322 = vmul.f32 %v7007, %v7258
        %v7323 = vmul.f32 %v7009, %v7259
        %v7324 = vmul.f32 %v7011, %v7260
        %v7325 = vmul.f32 %v7013, %v7261
        %v7326 = vmul.f32 %v7015, %v7262
        %v7327 = vmul.f32 %v7017, %v7263
        %v7328 = vmul.f32 %v7019, %v7264
        %v7329 = vmul.f32 %v7021, %v7265
        %v7330 = vmul.f32 %v7023, %v7266
        %v7331 = vmul.f32 %v7025, %v7267
        %v7332 = vmul.f32 %v7027, %v7268
        %v7333 = vmul.f32 %v7029, %v7269
        %v7334 = vmul.f32 %v7031, %v7270
        %v7335 = vmul.f32 %v7033, %v7271
        %v7336 = vmul.f32 %v7035, %v7272
        %v7337 = vmul.f32 %v7037, %v7273
        %v7338 = vmul.f32 %v7039, %v7274
        %v7339 = vmul.f32 %v7041, %v7275
        %v7340 = vmul.f32 %v7043, %v7276
        %v7341 = vmul.f32 %v7045, %v7277
        %v7342 = vmul.f32 %v7047, %v7278
        %v7343 = vmul.f32 %v7049, %v7279
        %v7344 = vmul.f32 %v7051, %v7280
        %v7345 = vmul.f32 %v7053, %v7281
        %v7346 = vmul.f32 %v7055, %v7282
        %v7347 = vmul.f32 %v7057, %v7283
        %v7348 = vmul.f32 %v7059, %v7284
        %v7349 = vmul.f32 %v7061, %v7285
        %v7350 = vmul.f32 %v7063, %v7286
        %v7351 = vmul.f32 %v7065, %v7287
        %v7352 = vmul.f32 %v7067, %v7288
        %v7353 = vmul.f32 %v7069, %v7289
        %v7354 = vmul.f32 %v7071, %v7290
        %v7355 = vmul.f32 %v7073, %v7291
        %v7356 = vmul.f32 %v7075, %v7292
        %v7357 = vmul.f32 %v7077, %v7293
        %v7358 = vmul.f32 %v7079, %v7294
        %v7359 = vmul.f32 %v7081, %v7295
        %v7360 = vmul.f32 %v7083, %v7296
        %v7361 = vmul.f32 %v7085, %v7297
        %v7362 = vmul.f32 %v7087, %v7298
        %v7363 = vmul.f32 %v7089, %v7299
        %v7364 = vmul.f32 %v7091, %v7300
        %v7365 = vmul.f32 %v7093, %v7301
        %v7366 = vmul.f32 %v7095, %v7302
        %v7367 = vmul.f32 %v7097, %v7303
        %v7368 = vmul.f32 %v7099, %v7304
        %v7369 = vmul.f32 %v7101, %v7305
        %v7370 = vmul.f32 %v7103, %v7306
        %v7371 = vmul.f32 %v7105, %v7307
        %v7372 = vmul.f32 %v7107, %v7308
        %v7373 = vmul.f32 %v7109, %v7309
        %v7374 = vmul.f32 %v7111, %v7310
        %v7375 = vmul.f32 %v7113, %v7311
        %v7376 = vmul.f32 %v7115, %v7312
        %v7377 = vmul.f32 %v7117, %v7313
        %v7378 = vmul.f32 %v7119, %v7314
        %v7379 = vmul.f32 %v7121, %v7315
        %v7380 = vmul.f32 %v7123, %v7316
        %v7381 = vmul.f32 %v7125, %v7317
        %v7382 = vpack.c.bf16 %v7319, %v7318
        %v7383 = vpack.c.bf16 %v7321, %v7320
        %v7384 = vpack.c.bf16 %v7323, %v7322
        %v7385 = vpack.c.bf16 %v7325, %v7324
        %v7386 = vpack.c.bf16 %v7327, %v7326
        %v7387 = vpack.c.bf16 %v7329, %v7328
        %v7388 = vpack.c.bf16 %v7331, %v7330
        %v7389 = vpack.c.bf16 %v7333, %v7332
        %v7390 = vpack.c.bf16 %v7335, %v7334
        %v7391 = vpack.c.bf16 %v7337, %v7336
        %v7392 = vpack.c.bf16 %v7339, %v7338
        %v7393 = vpack.c.bf16 %v7341, %v7340
        %v7394 = vpack.c.bf16 %v7343, %v7342
        %v7395 = vpack.c.bf16 %v7345, %v7344
        %v7396 = vpack.c.bf16 %v7347, %v7346
        %v7397 = vpack.c.bf16 %v7349, %v7348
        %v7398 = vpack.c.bf16 %v7351, %v7350
        %v7399 = vpack.c.bf16 %v7353, %v7352
        %v7400 = vpack.c.bf16 %v7355, %v7354
        %v7401 = vpack.c.bf16 %v7357, %v7356
        %v7402 = vpack.c.bf16 %v7359, %v7358
        %v7403 = vpack.c.bf16 %v7361, %v7360
        %v7404 = vpack.c.bf16 %v7363, %v7362
        %v7405 = vpack.c.bf16 %v7365, %v7364
        %v7406 = vpack.c.bf16 %v7367, %v7366
        %v7407 = vpack.c.bf16 %v7369, %v7368
        %v7408 = vpack.c.bf16 %v7371, %v7370
        %v7409 = vpack.c.bf16 %v7373, %v7372
        %v7410 = vpack.c.bf16 %v7375, %v7374
        %v7411 = vpack.c.bf16 %v7377, %v7376
        %v7412 = vpack.c.bf16 %v7379, %v7378
        %v7413 = vpack.c.bf16 %v7381, %v7380
        %7414 = vmatprep.subr.bf16.mxu0 0
        %7415 = vmatpush1.bf16.msra.mxu0 %v2609
        %7416 = vmatprep.subr.bf16.mxu0 0
        %7417 = vmatpush1.bf16.msra.mxu0 %v2610
        %7418 = vmatprep.subr.bf16.mxu0 0
        %7419 = vmatpush1.bf16.msra.mxu0 %v2611
        %7420 = vmatprep.subr.bf16.mxu0 0
        %7421 = vmatpush1.bf16.msra.mxu0 %v2612
        %7422 = vmatprep.subr.bf16.mxu0 0
        %7423 = vmatpush1.bf16.msra.mxu0 %v2613
        %7424 = vmatprep.subr.bf16.mxu0 0
        %7425 = vmatpush1.bf16.msra.mxu0 %v2614
        %7426 = vmatprep.subr.bf16.mxu0 0
        %7427 = vmatpush1.bf16.msra.mxu0 %v2615
        %7428 = vmatprep.subr.bf16.mxu0 0
        %7429 = vmatpush1.bf16.msra.mxu0 %v2616
        %7430 = vmatprep.subr.bf16.mxu0 0
        %7431 = vmatpush1.bf16.msra.mxu0 0
        %7432 = vmatprep.subr.bf16.mxu0 0
        %7433 = vmatpush1.bf16.msra.mxu0 0
        %7434 = vmatprep.subr.bf16.mxu0 0
        %7435 = vmatpush1.bf16.msra.mxu0 0
        %7436 = vmatprep.subr.bf16.mxu0 0
        %7437 = vmatpush1.bf16.msra.mxu0 0
        %7438 = vmatprep.subr.bf16.mxu0 0
        %7439 = vmatpush1.bf16.msra.mxu0 0
        %7440 = vmatprep.subr.bf16.mxu0 0
        %7441 = vmatpush1.bf16.msra.mxu0 0
        %7442 = vmatprep.subr.bf16.mxu0 0
        %7443 = vmatpush1.bf16.msra.mxu0 0
        %7444 = vmatprep.subr.bf16.mxu0 0
        %7445 = vmatpush1.bf16.msra.mxu0 0
        %7446 = vmatprep.mubr.bf16.mxu0 0
        %7447 = vmatmul.mubr.bf16.gmra.mrb[0].mxu0 %v7382
        %v7448 = vpop.f32.mrb[0].mxu0
        %v7449 = vadd.f32 0.0, %v7448
        %v7450 = vpop.f32.mrb[0].mxu0
        %v7451 = vpop.f32.mrb[0].mxu0
        %v7452 = vadd.f32 0.0, %v7451
        %v7453 = vpop.f32.mrb[0].mxu0
        %7454 = vmatprep.mubr.bf16.mxu0 0
        %7455 = vmatmul.mubr.bf16.gmra.mrb[0].mxu0 %v7383
        %v7456 = vpop.f32.mrb[0].mxu0
        %v7457 = vadd.f32 0.0, %v7456
        %v7458 = vpop.f32.mrb[0].mxu0
        %v7459 = vpop.f32.mrb[0].mxu0
        %v7460 = vadd.f32 0.0, %v7459
        %v7461 = vpop.f32.mrb[0].mxu0
        %7462 = vmatprep.mubr.bf16.mxu0 0
        %7463 = vmatmul.mubr.bf16.gmra.mrb[0].mxu0 %v7384
        %v7464 = vpop.f32.mrb[0].mxu0
        %v7465 = vadd.f32 0.0, %v7464
        %v7466 = vpop.f32.mrb[0].mxu0
        %v7467 = vpop.f32.mrb[0].mxu0
        %v7468 = vadd.f32 0.0, %v7467
        %v7469 = vpop.f32.mrb[0].mxu0
        %7470 = vmatprep.mubr.bf16.mxu0 0
        %7471 = vmatmul.mubr.bf16.gmra.mrb[0].mxu0 %v7385
        %v7472 = vpop.f32.mrb[0].mxu0
        %v7473 = vadd.f32 0.0, %v7472
        %v7474 = vpop.f32.mrb[0].mxu0
        %v7475 = vpop.f32.mrb[0].mxu0
        %v7476 = vadd.f32 0.0, %v7475
        %v7477 = vpop.f32.mrb[0].mxu0
        %7478 = vmatprep.mubr.bf16.mxu0 0
        %7479 = vmatmul.mubr.bf16.gmra.mrb[0].mxu0 %v7386
        %v7480 = vpop.f32.mrb[0].mxu0
        %v7481 = vadd.f32 0.0, %v7480
        %v7482 = vpop.f32.mrb[0].mxu0
        %v7483 = vpop.f32.mrb[0].mxu0
        %v7484 = vadd.f32 0.0, %v7483
        %v7485 = vpop.f32.mrb[0].mxu0
        %7486 = vmatprep.mubr.bf16.mxu0 0
        %7487 = vmatmul.mubr.bf16.gmra.mrb[0].mxu0 %v7387
        %v7488 = vpop.f32.mrb[0].mxu0
        %v7489 = vadd.f32 0.0, %v7488
        %v7490 = vpop.f32.mrb[0].mxu0
        %v7491 = vpop.f32.mrb[0].mxu0
        %v7492 = vadd.f32 0.0, %v7491
        %v7493 = vpop.f32.mrb[0].mxu0
        %7494 = vmatprep.mubr.bf16.mxu0 0
        %7495 = vmatmul.mubr.bf16.gmra.mrb[0].mxu0 %v7388
        %v7496 = vpop.f32.mrb[0].mxu0
        %v7497 = vadd.f32 0.0, %v7496
        %v7498 = vpop.f32.mrb[0].mxu0
        %v7499 = vpop.f32.mrb[0].mxu0
        %v7500 = vadd.f32 0.0, %v7499
        %v7501 = vpop.f32.mrb[0].mxu0
        %7502 = vmatprep.mubr.bf16.mxu0 0
        %7503 = vmatmul.mubr.bf16.gmra.mrb[0].mxu0 %v7389
        %v7504 = vpop.f32.mrb[0].mxu0
        %v7505 = vadd.f32 0.0, %v7504
        %v7506 = vpop.f32.mrb[0].mxu0
        %v7507 = vpop.f32.mrb[0].mxu0
        %v7508 = vadd.f32 0.0, %v7507
        %v7509 = vpop.f32.mrb[0].mxu0
        %7510 = vdwg.mxu0
        %7511 = vmatprep.subr.bf16.mxu0 0
        %7512 = vmatpush1.bf16.msra.mxu0 %v2617
        %7513 = vmatprep.subr.bf16.mxu0 0
        %7514 = vmatpush1.bf16.msra.mxu0 %v2618
        %7515 = vmatprep.subr.bf16.mxu0 0
        %7516 = vmatpush1.bf16.msra.mxu0 %v2619
        %7517 = vmatprep.subr.bf16.mxu0 0
        %7518 = vmatpush1.bf16.msra.mxu0 %v2620
        %7519 = vmatprep.subr.bf16.mxu0 0
        %7520 = vmatpush1.bf16.msra.mxu0 %v2621
        %7521 = vmatprep.subr.bf16.mxu0 0
        %7522 = vmatpush1.bf16.msra.mxu0 %v2622
        %7523 = vmatprep.subr.bf16.mxu0 0
        %7524 = vmatpush1.bf16.msra.mxu0 %v2623
        %7525 = vmatprep.subr.bf16.mxu0 0
        %7526 = vmatpush1.bf16.msra.mxu0 %v2624
        %7527 = vmatprep.subr.bf16.mxu0 0
        %7528 = vmatpush1.bf16.msra.mxu0 0
        %7529 = vmatprep.subr.bf16.mxu0 0
        %7530 = vmatpush1.bf16.msra.mxu0 0
        %7531 = vmatprep.subr.bf16.mxu0 0
        %7532 = vmatpush1.bf16.msra.mxu0 0
        %7533 = vmatprep.subr.bf16.mxu0 0
        %7534 = vmatpush1.bf16.msra.mxu0 0
        %7535 = vmatprep.subr.bf16.mxu0 0
        %7536 = vmatpush1.bf16.msra.mxu0 0
        %7537 = vmatprep.subr.bf16.mxu0 0
        %7538 = vmatpush1.bf16.msra.mxu0 0
        %7539 = vmatprep.subr.bf16.mxu0 0
        %7540 = vmatpush1.bf16.msra.mxu0 0
        %7541 = vmatprep.subr.bf16.mxu0 0
        %7542 = vmatpush1.bf16.msra.mxu0 0
        %7543 = vmatprep.mubr.bf16.mxu0 0
        %7544 = vmatmul.mubr.bf16.gmra.mrb[0].mxu0 %v7390
        %v7545 = vpop.f32.mrb[0].mxu0
        %v7546 = vadd.f32 0.0, %v7545
        %v7547 = vpop.f32.mrb[0].mxu0
        %v7548 = vpop.f32.mrb[0].mxu0
        %v7549 = vadd.f32 0.0, %v7548
        %v7550 = vpop.f32.mrb[0].mxu0
        %7551 = vmatprep.mubr.bf16.mxu0 0
        %7552 = vmatmul.mubr.bf16.gmra.mrb[0].mxu0 %v7391
        %v7553 = vpop.f32.mrb[0].mxu0
        %v7554 = vadd.f32 0.0, %v7553
        %v7555 = vpop.f32.mrb[0].mxu0
        %v7556 = vpop.f32.mrb[0].mxu0
        %v7557 = vadd.f32 0.0, %v7556
        %v7558 = vpop.f32.mrb[0].mxu0
        %7559 = vmatprep.mubr.bf16.mxu0 0
        %7560 = vmatmul.mubr.bf16.gmra.mrb[0].mxu0 %v7392
        %v7561 = vpop.f32.mrb[0].mxu0
        %v7562 = vadd.f32 0.0, %v7561
        %v7563 = vpop.f32.mrb[0].mxu0
        %v7564 = vpop.f32.mrb[0].mxu0
        %v7565 = vadd.f32 0.0, %v7564
        %v7566 = vpop.f32.mrb[0].mxu0
        %7567 = vmatprep.mubr.bf16.mxu0 0
        %7568 = vmatmul.mubr.bf16.gmra.mrb[0].mxu0 %v7393
        %v7569 = vpop.f32.mrb[0].mxu0
        %v7570 = vadd.f32 0.0, %v7569
        %v7571 = vpop.f32.mrb[0].mxu0
        %v7572 = vpop.f32.mrb[0].mxu0
        %v7573 = vadd.f32 0.0, %v7572
        %v7574 = vpop.f32.mrb[0].mxu0
        %7575 = vmatprep.mubr.bf16.mxu0 0
        %7576 = vmatmul.mubr.bf16.gmra.mrb[0].mxu0 %v7394
        %v7577 = vpop.f32.mrb[0].mxu0
        %v7578 = vadd.f32 0.0, %v7577
        %v7579 = vpop.f32.mrb[0].mxu0
        %v7580 = vpop.f32.mrb[0].mxu0
        %v7581 = vadd.f32 0.0, %v7580
        %v7582 = vpop.f32.mrb[0].mxu0
        %7583 = vmatprep.mubr.bf16.mxu0 0
        %7584 = vmatmul.mubr.bf16.gmra.mrb[0].mxu0 %v7395
        %v7585 = vpop.f32.mrb[0].mxu0
        %v7586 = vadd.f32 0.0, %v7585
        %v7587 = vpop.f32.mrb[0].mxu0
        %v7588 = vpop.f32.mrb[0].mxu0
        %v7589 = vadd.f32 0.0, %v7588
        %v7590 = vpop.f32.mrb[0].mxu0
        %7591 = vmatprep.mubr.bf16.mxu0 0
        %7592 = vmatmul.mubr.bf16.gmra.mrb[0].mxu0 %v7396
        %v7593 = vpop.f32.mrb[0].mxu0
        %v7594 = vadd.f32 0.0, %v7593
        %v7595 = vpop.f32.mrb[0].mxu0
        %v7596 = vpop.f32.mrb[0].mxu0
        %v7597 = vadd.f32 0.0, %v7596
        %v7598 = vpop.f32.mrb[0].mxu0
        %7599 = vmatprep.mubr.bf16.mxu0 0
        %7600 = vmatmul.mubr.bf16.gmra.mrb[0].mxu0 %v7397
        %v7601 = vpop.f32.mrb[0].mxu0
        %v7602 = vadd.f32 0.0, %v7601
        %v7603 = vpop.f32.mrb[0].mxu0
        %v7604 = vpop.f32.mrb[0].mxu0
        %v7605 = vadd.f32 0.0, %v7604
        %v7606 = vpop.f32.mrb[0].mxu0
        %7607 = vdwg.mxu0
        %7608 = vmatprep.subr.bf16.mxu0 0
        %7609 = vmatpush1.bf16.msra.mxu0 %v2625
        %7610 = vmatprep.subr.bf16.mxu0 0
        %7611 = vmatpush1.bf16.msra.mxu0 %v2626
        %7612 = vmatprep.subr.bf16.mxu0 0
        %7613 = vmatpush1.bf16.msra.mxu0 %v2627
        %7614 = vmatprep.subr.bf16.mxu0 0
        %7615 = vmatpush1.bf16.msra.mxu0 %v2628
        %7616 = vmatprep.subr.bf16.mxu0 0
        %7617 = vmatpush1.bf16.msra.mxu0 %v2629
        %7618 = vmatprep.subr.bf16.mxu0 0
        %7619 = vmatpush1.bf16.msra.mxu0 %v2630
        %7620 = vmatprep.subr.bf16.mxu0 0
        %7621 = vmatpush1.bf16.msra.mxu0 %v2631
        %7622 = vmatprep.subr.bf16.mxu0 0
        %7623 = vmatpush1.bf16.msra.mxu0 %v2632
        %7624 = vmatprep.subr.bf16.mxu0 0
        %7625 = vmatpush1.bf16.msra.mxu0 0
        %7626 = vmatprep.subr.bf16.mxu0 0
        %7627 = vmatpush1.bf16.msra.mxu0 0
        %7628 = vmatprep.subr.bf16.mxu0 0
        %7629 = vmatpush1.bf16.msra.mxu0 0
        %7630 = vmatprep.subr.bf16.mxu0 0
        %7631 = vmatpush1.bf16.msra.mxu0 0
        %7632 = vmatprep.subr.bf16.mxu0 0
        %7633 = vmatpush1.bf16.msra.mxu0 0
        %7634 = vmatprep.subr.bf16.mxu0 0
        %7635 = vmatpush1.bf16.msra.mxu0 0
        %7636 = vmatprep.subr.bf16.mxu0 0
        %7637 = vmatpush1.bf16.msra.mxu0 0
        %7638 = vmatprep.subr.bf16.mxu0 0
        %7639 = vmatpush1.bf16.msra.mxu0 0
        %7640 = vmatprep.mubr.bf16.mxu0 0
        %7641 = vmatmul.mubr.bf16.gmra.mrb[0].mxu0 %v7398
        %v7642 = vpop.f32.mrb[0].mxu0
        %v7643 = vadd.f32 0.0, %v7642
        %v7644 = vpop.f32.mrb[0].mxu0
        %v7645 = vpop.f32.mrb[0].mxu0
        %v7646 = vadd.f32 0.0, %v7645
        %v7647 = vpop.f32.mrb[0].mxu0
        %7648 = vmatprep.mubr.bf16.mxu0 0
        %7649 = vmatmul.mubr.bf16.gmra.mrb[0].mxu0 %v7399
        %v7650 = vpop.f32.mrb[0].mxu0
        %v7651 = vadd.f32 0.0, %v7650
        %v7652 = vpop.f32.mrb[0].mxu0
        %v7653 = vpop.f32.mrb[0].mxu0
        %v7654 = vadd.f32 0.0, %v7653
        %v7655 = vpop.f32.mrb[0].mxu0
        %7656 = vmatprep.mubr.bf16.mxu0 0
        %7657 = vmatmul.mubr.bf16.gmra.mrb[0].mxu0 %v7400
        %v7658 = vpop.f32.mrb[0].mxu0
        %v7659 = vadd.f32 0.0, %v7658
        %v7660 = vpop.f32.mrb[0].mxu0
        %v7661 = vpop.f32.mrb[0].mxu0
        %v7662 = vadd.f32 0.0, %v7661
        %v7663 = vpop.f32.mrb[0].mxu0
        %7664 = vmatprep.mubr.bf16.mxu0 0
        %7665 = vmatmul.mubr.bf16.gmra.mrb[0].mxu0 %v7401
        %v7666 = vpop.f32.mrb[0].mxu0
        %v7667 = vadd.f32 0.0, %v7666
        %v7668 = vpop.f32.mrb[0].mxu0
        %v7669 = vpop.f32.mrb[0].mxu0
        %v7670 = vadd.f32 0.0, %v7669
        %v7671 = vpop.f32.mrb[0].mxu0
        %7672 = vmatprep.mubr.bf16.mxu0 0
        %7673 = vmatmul.mubr.bf16.gmra.mrb[0].mxu0 %v7402
        %v7674 = vpop.f32.mrb[0].mxu0
        %v7675 = vadd.f32 0.0, %v7674
        %v7676 = vpop.f32.mrb[0].mxu0
        %v7677 = vpop.f32.mrb[0].mxu0
        %v7678 = vadd.f32 0.0, %v7677
        %v7679 = vpop.f32.mrb[0].mxu0
        %7680 = vmatprep.mubr.bf16.mxu0 0
        %7681 = vmatmul.mubr.bf16.gmra.mrb[0].mxu0 %v7403
        %v7682 = vpop.f32.mrb[0].mxu0
        %v7683 = vadd.f32 0.0, %v7682
        %v7684 = vpop.f32.mrb[0].mxu0
        %v7685 = vpop.f32.mrb[0].mxu0
        %v7686 = vadd.f32 0.0, %v7685
        %v7687 = vpop.f32.mrb[0].mxu0
        %7688 = vmatprep.mubr.bf16.mxu0 0
        %7689 = vmatmul.mubr.bf16.gmra.mrb[0].mxu0 %v7404
        %v7690 = vpop.f32.mrb[0].mxu0
        %v7691 = vadd.f32 0.0, %v7690
        %v7692 = vpop.f32.mrb[0].mxu0
        %v7693 = vpop.f32.mrb[0].mxu0
        %v7694 = vadd.f32 0.0, %v7693
        %v7695 = vpop.f32.mrb[0].mxu0
        %7696 = vmatprep.mubr.bf16.mxu0 0
        %7697 = vmatmul.mubr.bf16.gmra.mrb[0].mxu0 %v7405
        %v7698 = vpop.f32.mrb[0].mxu0
        %v7699 = vadd.f32 0.0, %v7698
        %v7700 = vpop.f32.mrb[0].mxu0
        %v7701 = vpop.f32.mrb[0].mxu0
        %v7702 = vadd.f32 0.0, %v7701
        %v7703 = vpop.f32.mrb[0].mxu0
        %7704 = vdwg.mxu0
        %7705 = vmatprep.subr.bf16.mxu0 0
        %7706 = vmatpush1.bf16.msra.mxu0 %v2633
        %7707 = vmatprep.subr.bf16.mxu0 0
        %7708 = vmatpush1.bf16.msra.mxu0 %v2634
        %7709 = vmatprep.subr.bf16.mxu0 0
        %7710 = vmatpush1.bf16.msra.mxu0 %v2635
        %7711 = vmatprep.subr.bf16.mxu0 0
        %7712 = vmatpush1.bf16.msra.mxu0 %v2636
        %7713 = vmatprep.subr.bf16.mxu0 0
        %7714 = vmatpush1.bf16.msra.mxu0 %v2637
        %7715 = vmatprep.subr.bf16.mxu0 0
        %7716 = vmatpush1.bf16.msra.mxu0 %v2638
        %7717 = vmatprep.subr.bf16.mxu0 0
        %7718 = vmatpush1.bf16.msra.mxu0 %v2639
        %7719 = vmatprep.subr.bf16.mxu0 0
        %7720 = vmatpush1.bf16.msra.mxu0 %v2640
        %7721 = vmatprep.subr.bf16.mxu0 0
        %7722 = vmatpush1.bf16.msra.mxu0 0
        %7723 = vmatprep.subr.bf16.mxu0 0
        %7724 = vmatpush1.bf16.msra.mxu0 0
        %7725 = vmatprep.subr.bf16.mxu0 0
        %7726 = vmatpush1.bf16.msra.mxu0 0
        %7727 = vmatprep.subr.bf16.mxu0 0
        %7728 = vmatpush1.bf16.msra.mxu0 0
        %7729 = vmatprep.subr.bf16.mxu0 0
        %7730 = vmatpush1.bf16.msra.mxu0 0
        %7731 = vmatprep.subr.bf16.mxu0 0
        %7732 = vmatpush1.bf16.msra.mxu0 0
        %7733 = vmatprep.subr.bf16.mxu0 0
        %7734 = vmatpush1.bf16.msra.mxu0 0
        %7735 = vmatprep.subr.bf16.mxu0 0
        %7736 = vmatpush1.bf16.msra.mxu0 0
        %7737 = vmatprep.mubr.bf16.mxu0 0
        %7738 = vmatmul.mubr.bf16.gmra.mrb[0].mxu0 %v7406
        %v7739 = vpop.f32.mrb[0].mxu0
        %v7740 = vadd.f32 0.0, %v7739
        %v7741 = vpop.f32.mrb[0].mxu0
        %v7742 = vpop.f32.mrb[0].mxu0
        %v7743 = vadd.f32 0.0, %v7742
        %v7744 = vpop.f32.mrb[0].mxu0
        %7745 = vmatprep.mubr.bf16.mxu0 0
        %7746 = vmatmul.mubr.bf16.gmra.mrb[0].mxu0 %v7407
        %v7747 = vpop.f32.mrb[0].mxu0
        %v7748 = vadd.f32 0.0, %v7747
        %v7749 = vpop.f32.mrb[0].mxu0
        %v7750 = vpop.f32.mrb[0].mxu0
        %v7751 = vadd.f32 0.0, %v7750
        %v7752 = vpop.f32.mrb[0].mxu0
        %7753 = vmatprep.mubr.bf16.mxu0 0
        %7754 = vmatmul.mubr.bf16.gmra.mrb[0].mxu0 %v7408
        %v7755 = vpop.f32.mrb[0].mxu0
        %v7756 = vadd.f32 0.0, %v7755
        %v7757 = vpop.f32.mrb[0].mxu0
        %v7758 = vpop.f32.mrb[0].mxu0
        %v7759 = vadd.f32 0.0, %v7758
        %v7760 = vpop.f32.mrb[0].mxu0
        %7761 = vmatprep.mubr.bf16.mxu0 0
        %7762 = vmatmul.mubr.bf16.gmra.mrb[0].mxu0 %v7409
        %v7763 = vpop.f32.mrb[0].mxu0
        %v7764 = vadd.f32 0.0, %v7763
        %v7765 = vpop.f32.mrb[0].mxu0
        %v7766 = vpop.f32.mrb[0].mxu0
        %v7767 = vadd.f32 0.0, %v7766
        %v7768 = vpop.f32.mrb[0].mxu0
        %7769 = vmatprep.mubr.bf16.mxu0 0
        %7770 = vmatmul.mubr.bf16.gmra.mrb[0].mxu0 %v7410
        %v7771 = vpop.f32.mrb[0].mxu0
        %v7772 = vadd.f32 0.0, %v7771
        %v7773 = vpop.f32.mrb[0].mxu0
        %v7774 = vpop.f32.mrb[0].mxu0
        %v7775 = vadd.f32 0.0, %v7774
        %v7776 = vpop.f32.mrb[0].mxu0
        %7777 = vmatprep.mubr.bf16.mxu0 0
        %7778 = vmatmul.mubr.bf16.gmra.mrb[0].mxu0 %v7411
        %v7779 = vpop.f32.mrb[0].mxu0
        %v7780 = vadd.f32 0.0, %v7779
        %v7781 = vpop.f32.mrb[0].mxu0
        %v7782 = vpop.f32.mrb[0].mxu0
        %v7783 = vadd.f32 0.0, %v7782
        %v7784 = vpop.f32.mrb[0].mxu0
        %7785 = vmatprep.mubr.bf16.mxu0 0
        %7786 = vmatmul.mubr.bf16.gmra.mrb[0].mxu0 %v7412
        %v7787 = vpop.f32.mrb[0].mxu0
        %v7788 = vadd.f32 0.0, %v7787
        %v7789 = vpop.f32.mrb[0].mxu0
        %v7790 = vpop.f32.mrb[0].mxu0
        %v7791 = vadd.f32 0.0, %v7790
        %v7792 = vpop.f32.mrb[0].mxu0
        %7793 = vmatprep.mubr.bf16.mxu0 0
        %7794 = vmatmul.mubr.bf16.gmra.mrb[0].mxu0 %v7413
        %v7795 = vpop.f32.mrb[0].mxu0
        %v7796 = vadd.f32 0.0, %v7795
        %v7797 = vpop.f32.mrb[0].mxu0
        %v7798 = vpop.f32.mrb[0].mxu0
        %v7799 = vadd.f32 0.0, %v7798
        %v7800 = vpop.f32.mrb[0].mxu0
        %7801 = vdwg.mxu0
        %v7802 = vpack.c.bf16 %v7452, %v7449
        %v7803 = vpack.c.bf16 %v7460, %v7457
        %v7804 = vpack.c.bf16 %v7468, %v7465
        %v7805 = vpack.c.bf16 %v7476, %v7473
        %v7806 = vpack.c.bf16 %v7484, %v7481
        %v7807 = vpack.c.bf16 %v7492, %v7489
        %v7808 = vpack.c.bf16 %v7500, %v7497
        %v7809 = vpack.c.bf16 %v7508, %v7505
        %7810 = vst.msk [vmem:[#allocation2] sm:$0xff] %vm3083, %v7802
        %7811 = vst.msk [vmem:[#allocation2 + $0x10] sm:$0xff] %vm3083, %v7803
        %7812 = vst.msk [vmem:[#allocation2 + $0x20] sm:$0xff] %vm3083, %v7804
        %7813 = vst.msk [vmem:[#allocation2 + $0x30] sm:$0xff] %vm3083, %v7805
        %7814 = vst.msk [vmem:[#allocation2 + $0x40] sm:$0xff] %vm3083, %v7806
        %7815 = vst.msk [vmem:[#allocation2 + $0x50] sm:$0xff] %vm3083, %v7807
        %7816 = vst.msk [vmem:[#allocation2 + $0x60] sm:$0xff] %vm3083, %v7808
        %7817 = vst.msk [vmem:[#allocation2 + $0x70] sm:$0xff] %vm3083, %v7809
        %v7818 = vpack.c.bf16 %v7549, %v7546
        %v7819 = vpack.c.bf16 %v7557, %v7554
        %v7820 = vpack.c.bf16 %v7565, %v7562
        %v7821 = vpack.c.bf16 %v7573, %v7570
        %v7822 = vpack.c.bf16 %v7581, %v7578
        %v7823 = vpack.c.bf16 %v7589, %v7586
        %v7824 = vpack.c.bf16 %v7597, %v7594
        %v7825 = vpack.c.bf16 %v7605, %v7602
        %7834 = vrot.lane.b32.xlu0 %v7818, 64
        %v7835 = vpop.permute.xlu0 %7834
        %7836 = vrot.lane.b32.xlu0 %v7819, 64
        %v7837 = vpop.permute.xlu0 %7836
        %7838 = vrot.lane.b32.xlu0 %v7820, 64
        %v7839 = vpop.permute.xlu0 %7838
        %7840 = vrot.lane.b32.xlu0 %v7821, 64
        %v7841 = vpop.permute.xlu0 %7840
        %7842 = vrot.lane.b32.xlu0 %v7822, 64
        %v7843 = vpop.permute.xlu0 %7842
        %7844 = vrot.lane.b32.xlu0 %v7823, 64
        %v7845 = vpop.permute.xlu0 %7844
        %7846 = vrot.lane.b32.xlu0 %v7824, 64
        %v7847 = vpop.permute.xlu0 %7846
        %7848 = vrot.lane.b32.xlu0 %v7825, 64
        %v7849 = vpop.permute.xlu0 %7848
        %vm7858 = vcmask 1048064
        %7859 = vst.msk [vmem:[#allocation2] sm:$0xff] %vm7858, %v7835
        %7860 = vst.msk [vmem:[#allocation2 + $0x10] sm:$0xff] %vm7858, %v7837
        %7861 = vst.msk [vmem:[#allocation2 + $0x20] sm:$0xff] %vm7858, %v7839
        %7862 = vst.msk [vmem:[#allocation2 + $0x30] sm:$0xff] %vm7858, %v7841
        %7863 = vst.msk [vmem:[#allocation2 + $0x40] sm:$0xff] %vm7858, %v7843
        %7864 = vst.msk [vmem:[#allocation2 + $0x50] sm:$0xff] %vm7858, %v7845
        %7865 = vst.msk [vmem:[#allocation2 + $0x60] sm:$0xff] %vm7858, %v7847
        %7866 = vst.msk [vmem:[#allocation2 + $0x70] sm:$0xff] %vm7858, %v7849
        %v7867 = vpack.c.bf16 %v7646, %v7643
        %v7868 = vpack.c.bf16 %v7654, %v7651
        %v7869 = vpack.c.bf16 %v7662, %v7659
        %v7870 = vpack.c.bf16 %v7670, %v7667
        %v7871 = vpack.c.bf16 %v7678, %v7675
        %v7872 = vpack.c.bf16 %v7686, %v7683
        %v7873 = vpack.c.bf16 %v7694, %v7691
        %v7874 = vpack.c.bf16 %v7702, %v7699
        %7875 = vst.msk [vmem:[#allocation2 + $0x8] sm:$0xff] %vm3083, %v7867
        %7876 = vst.msk [vmem:[#allocation2 + $0x18] sm:$0xff] %vm3083, %v7868
        %7877 = vst.msk [vmem:[#allocation2 + $0x28] sm:$0xff] %vm3083, %v7869
        %7878 = vst.msk [vmem:[#allocation2 + $0x38] sm:$0xff] %vm3083, %v7870
        %7879 = vst.msk [vmem:[#allocation2 + $0x48] sm:$0xff] %vm3083, %v7871
        %7880 = vst.msk [vmem:[#allocation2 + $0x58] sm:$0xff] %vm3083, %v7872
        %7881 = vst.msk [vmem:[#allocation2 + $0x68] sm:$0xff] %vm3083, %v7873
        %7882 = vst.msk [vmem:[#allocation2 + $0x78] sm:$0xff] %vm3083, %v7874
        %v7883 = vpack.c.bf16 %v7743, %v7740
        %v7884 = vpack.c.bf16 %v7751, %v7748
        %v7885 = vpack.c.bf16 %v7759, %v7756
        %v7886 = vpack.c.bf16 %v7767, %v7764
        %v7887 = vpack.c.bf16 %v7775, %v7772
        %v7888 = vpack.c.bf16 %v7783, %v7780
        %v7889 = vpack.c.bf16 %v7791, %v7788
        %v7890 = vpack.c.bf16 %v7799, %v7796
        %7899 = vrot.lane.b32.xlu0 %v7883, 64
        %v7900 = vpop.permute.xlu0 %7899
        %7901 = vrot.lane.b32.xlu0 %v7884, 64
        %v7902 = vpop.permute.xlu0 %7901
        %7903 = vrot.lane.b32.xlu0 %v7885, 64
        %v7904 = vpop.permute.xlu0 %7903
        %7905 = vrot.lane.b32.xlu0 %v7886, 64
        %v7906 = vpop.permute.xlu0 %7905
        %7907 = vrot.lane.b32.xlu0 %v7887, 64
        %v7908 = vpop.permute.xlu0 %7907
        %7909 = vrot.lane.b32.xlu0 %v7888, 64
        %v7910 = vpop.permute.xlu0 %7909
        %7911 = vrot.lane.b32.xlu0 %v7889, 64
        %v7912 = vpop.permute.xlu0 %7911
        %7913 = vrot.lane.b32.xlu0 %v7890, 64
        %v7914 = vpop.permute.xlu0 %7913
        %7923 = vst.msk [vmem:[#allocation2 + $0x8] sm:$0xff] %vm7858, %v7900
        %7924 = vst.msk [vmem:[#allocation2 + $0x18] sm:$0xff] %vm7858, %v7902
        %7925 = vst.msk [vmem:[#allocation2 + $0x28] sm:$0xff] %vm7858, %v7904
        %7926 = vst.msk [vmem:[#allocation2 + $0x38] sm:$0xff] %vm7858, %v7906
        %7927 = vst.msk [vmem:[#allocation2 + $0x48] sm:$0xff] %vm7858, %v7908
        %7928 = vst.msk [vmem:[#allocation2 + $0x58] sm:$0xff] %vm7858, %v7910
        %7929 = vst.msk [vmem:[#allocation2 + $0x68] sm:$0xff] %vm7858, %v7912
        %7930 = vst.msk [vmem:[#allocation2 + $0x78] sm:$0xff] %vm7858, %v7914
        %v7931 = vld [vmem:[#allocation2] sm:$0xff]
        %v7932 = vld [vmem:[#allocation2 + $0x8] sm:$0xff]
        %v7933 = vld [vmem:[#allocation2 + $0x10] sm:$0xff]
        %v7934 = vld [vmem:[#allocation2 + $0x18] sm:$0xff]
        %v7935 = vld [vmem:[#allocation2 + $0x20] sm:$0xff]
        %v7936 = vld [vmem:[#allocation2 + $0x28] sm:$0xff]
        %v7937 = vld [vmem:[#allocation2 + $0x30] sm:$0xff]
        %v7938 = vld [vmem:[#allocation2 + $0x38] sm:$0xff]
        %v7939 = vld [vmem:[#allocation2 + $0x40] sm:$0xff]
        %v7940 = vld [vmem:[#allocation2 + $0x48] sm:$0xff]
        %v7941 = vld [vmem:[#allocation2 + $0x50] sm:$0xff]
        %v7942 = vld [vmem:[#allocation2 + $0x58] sm:$0xff]
        %v7943 = vld [vmem:[#allocation2 + $0x60] sm:$0xff]
        %v7944 = vld [vmem:[#allocation2 + $0x68] sm:$0xff]
        %v7945 = vld [vmem:[#allocation2 + $0x70] sm:$0xff]
        %v7946 = vld [vmem:[#allocation2 + $0x78] sm:$0xff]
        %v7947 = vld [vmem:[#allocation11] sm:$0xff]
        %v7948 = vld [vmem:[#allocation11 + $0x8] sm:$0xff]
        %v7949 = vld [vmem:[#allocation11 + $0x10] sm:$0xff]
        %v7950 = vld [vmem:[#allocation11 + $0x18] sm:$0xff]
        %v7951 = vld [vmem:[#allocation11 + $0x20] sm:$0xff]
        %v7952 = vld [vmem:[#allocation11 + $0x28] sm:$0xff]
        %v7953 = vld [vmem:[#allocation11 + $0x30] sm:$0xff]
        %v7954 = vld [vmem:[#allocation11 + $0x38] sm:$0xff]
        %v7955 = vld [vmem:[#allocation11 + $0x40] sm:$0xff]
        %v7956 = vld [vmem:[#allocation11 + $0x48] sm:$0xff]
        %v7957 = vld [vmem:[#allocation11 + $0x50] sm:$0xff]
        %v7958 = vld [vmem:[#allocation11 + $0x58] sm:$0xff]
        %v7959 = vld [vmem:[#allocation11 + $0x60] sm:$0xff]
        %v7960 = vld [vmem:[#allocation11 + $0x68] sm:$0xff]
        %v7961 = vld [vmem:[#allocation11 + $0x70] sm:$0xff]
        %v7962 = vld [vmem:[#allocation11 + $0x78] sm:$0xff]
        %v7963 = vld [vmem:[#allocation11 + $0x80] sm:$0xff]
        %v7964 = vld [vmem:[#allocation11 + $0x88] sm:$0xff]
        %v7965 = vld [vmem:[#allocation11 + $0x90] sm:$0xff]
        %v7966 = vld [vmem:[#allocation11 + $0x98] sm:$0xff]
        %v7967 = vld [vmem:[#allocation11 + $0xa0] sm:$0xff]
        %v7968 = vld [vmem:[#allocation11 + $0xa8] sm:$0xff]
        %v7969 = vld [vmem:[#allocation11 + $0xb0] sm:$0xff]
        %v7970 = vld [vmem:[#allocation11 + $0xb8] sm:$0xff]
        %v7971 = vld [vmem:[#allocation11 + $0xc0] sm:$0xff]
        %v7972 = vld [vmem:[#allocation11 + $0xc8] sm:$0xff]
        %v7973 = vld [vmem:[#allocation11 + $0xd0] sm:$0xff]
        %v7974 = vld [vmem:[#allocation11 + $0xd8] sm:$0xff]
        %v7975 = vld [vmem:[#allocation11 + $0xe0] sm:$0xff]
        %v7976 = vld [vmem:[#allocation11 + $0xe8] sm:$0xff]
        %v7977 = vld [vmem:[#allocation11 + $0xf0] sm:$0xff]
        %v7978 = vld [vmem:[#allocation11 + $0xf8] sm:$0xff]
        %v7979 = vld [vmem:[%s8] sm:$0x3]
        %v7981 = vlaneseq
        %v7982 = vshrl.u32 %v7981, 7
        %v7983 = vsub.s32 0, %v7982
        %v7984 = vrot.slane %v7979, %v7983
        %v7985 = vlaneseq
        %v7986 = vshrl.u32 %v7985, 7
        %v7987 = vsub.s32 1, %v7986
        %v7988 = vrot.slane %v7979, %v7987
        %v8023 = vunpack.c.l.b16 %v7947
        %v8024 = vunpack.c.h.b16 %v7947
        %v8025 = vunpack.c.l.b16 %v7948
        %v8026 = vunpack.c.h.b16 %v7948
        %v8027 = vunpack.c.l.b16 %v7949
        %v8028 = vunpack.c.h.b16 %v7949
        %v8029 = vunpack.c.l.b16 %v7950
        %v8030 = vunpack.c.h.b16 %v7950
        %v8031 = vunpack.c.l.b16 %v7951
        %v8032 = vunpack.c.h.b16 %v7951
        %v8033 = vunpack.c.l.b16 %v7952
        %v8034 = vunpack.c.h.b16 %v7952
        %v8035 = vunpack.c.l.b16 %v7953
        %v8036 = vunpack.c.h.b16 %v7953
        %v8037 = vunpack.c.l.b16 %v7954
        %v8038 = vunpack.c.h.b16 %v7954
        %v8039 = vunpack.c.l.b16 %v7955
        %v8040 = vunpack.c.h.b16 %v7955
        %v8041 = vunpack.c.l.b16 %v7956
        %v8042 = vunpack.c.h.b16 %v7956
        %v8043 = vunpack.c.l.b16 %v7957
        %v8044 = vunpack.c.h.b16 %v7957
        %v8045 = vunpack.c.l.b16 %v7958
        %v8046 = vunpack.c.h.b16 %v7958
        %v8047 = vunpack.c.l.b16 %v7959
        %v8048 = vunpack.c.h.b16 %v7959
        %v8049 = vunpack.c.l.b16 %v7960
        %v8050 = vunpack.c.h.b16 %v7960
        %v8051 = vunpack.c.l.b16 %v7961
        %v8052 = vunpack.c.h.b16 %v7961
        %v8053 = vunpack.c.l.b16 %v7962
        %v8054 = vunpack.c.h.b16 %v7962
        %v8055 = vunpack.c.l.b16 %v7963
        %v8056 = vunpack.c.h.b16 %v7963
        %v8057 = vunpack.c.l.b16 %v7964
        %v8058 = vunpack.c.h.b16 %v7964
        %v8059 = vunpack.c.l.b16 %v7965
        %v8060 = vunpack.c.h.b16 %v7965
        %v8061 = vunpack.c.l.b16 %v7966
        %v8062 = vunpack.c.h.b16 %v7966
        %v8063 = vunpack.c.l.b16 %v7967
        %v8064 = vunpack.c.h.b16 %v7967
        %v8065 = vunpack.c.l.b16 %v7968
        %v8066 = vunpack.c.h.b16 %v7968
        %v8067 = vunpack.c.l.b16 %v7969
        %v8068 = vunpack.c.h.b16 %v7969
        %v8069 = vunpack.c.l.b16 %v7970
        %v8070 = vunpack.c.h.b16 %v7970
        %v8071 = vunpack.c.l.b16 %v7971
        %v8072 = vunpack.c.h.b16 %v7971
        %v8073 = vunpack.c.l.b16 %v7972
        %v8074 = vunpack.c.h.b16 %v7972
        %v8075 = vunpack.c.l.b16 %v7973
        %v8076 = vunpack.c.h.b16 %v7973
        %v8077 = vunpack.c.l.b16 %v7974
        %v8078 = vunpack.c.h.b16 %v7974
        %v8079 = vunpack.c.l.b16 %v7975
        %v8080 = vunpack.c.h.b16 %v7975
        %v8081 = vunpack.c.l.b16 %v7976
        %v8082 = vunpack.c.h.b16 %v7976
        %v8083 = vunpack.c.l.b16 %v7977
        %v8084 = vunpack.c.h.b16 %v7977
        %v8085 = vunpack.c.l.b16 %v7978
        %v8086 = vunpack.c.h.b16 %v7978
        %v8087 = vpack.c.b16 %v8025, %v8023
        %v8088 = vpack.c.b16 %v8026, %v8024
        %v8089 = vpack.c.b16 %v8029, %v8027
        %v8090 = vpack.c.b16 %v8030, %v8028
        %v8091 = vpack.c.b16 %v8033, %v8031
        %v8092 = vpack.c.b16 %v8034, %v8032
        %v8093 = vpack.c.b16 %v8037, %v8035
        %v8094 = vpack.c.b16 %v8038, %v8036
        %v8095 = vpack.c.b16 %v8041, %v8039
        %v8096 = vpack.c.b16 %v8042, %v8040
        %v8097 = vpack.c.b16 %v8045, %v8043
        %v8098 = vpack.c.b16 %v8046, %v8044
        %v8099 = vpack.c.b16 %v8049, %v8047
        %v8100 = vpack.c.b16 %v8050, %v8048
        %v8101 = vpack.c.b16 %v8053, %v8051
        %v8102 = vpack.c.b16 %v8054, %v8052
        %v8103 = vpack.c.b16 %v8057, %v8055
        %v8104 = vpack.c.b16 %v8058, %v8056
        %v8105 = vpack.c.b16 %v8061, %v8059
        %v8106 = vpack.c.b16 %v8062, %v8060
        %v8107 = vpack.c.b16 %v8065, %v8063
        %v8108 = vpack.c.b16 %v8066, %v8064
        %v8109 = vpack.c.b16 %v8069, %v8067
        %v8110 = vpack.c.b16 %v8070, %v8068
        %v8111 = vpack.c.b16 %v8073, %v8071
        %v8112 = vpack.c.b16 %v8074, %v8072
        %v8113 = vpack.c.b16 %v8077, %v8075
        %v8114 = vpack.c.b16 %v8078, %v8076
        %v8115 = vpack.c.b16 %v8081, %v8079
        %v8116 = vpack.c.b16 %v8082, %v8080
        %v8117 = vpack.c.b16 %v8085, %v8083
        %v8118 = vpack.c.b16 %v8086, %v8084
        %8151 = vmatprep.subr.bf16.mxu0 %v8088
        %8152 = vmatpush1.bf16.msra.mxu0 %v8087
        %8153 = vmatprep.subr.bf16.mxu0 %v8090
        %8154 = vmatpush1.bf16.msra.mxu0 %v8089
        %8155 = vmatprep.subr.bf16.mxu0 %v8092
        %8156 = vmatpush1.bf16.msra.mxu0 %v8091
        %8157 = vmatprep.subr.bf16.mxu0 %v8094
        %8158 = vmatpush1.bf16.msra.mxu0 %v8093
        %8159 = vmatprep.subr.bf16.mxu0 %v8096
        %8160 = vmatpush1.bf16.msra.mxu0 %v8095
        %8161 = vmatprep.subr.bf16.mxu0 %v8098
        %8162 = vmatpush1.bf16.msra.mxu0 %v8097
        %8163 = vmatprep.subr.bf16.mxu0 %v8100
        %8164 = vmatpush1.bf16.msra.mxu0 %v8099
        %8165 = vmatprep.subr.bf16.mxu0 %v8102
        %8166 = vmatpush1.bf16.msra.mxu0 %v8101
        %8167 = vmatprep.subr.bf16.mxu0 %v8104
        %8168 = vmatpush1.bf16.msra.mxu0 %v8103
        %8169 = vmatprep.subr.bf16.mxu0 %v8106
        %8170 = vmatpush1.bf16.msra.mxu0 %v8105
        %8171 = vmatprep.subr.bf16.mxu0 %v8108
        %8172 = vmatpush1.bf16.msra.mxu0 %v8107
        %8173 = vmatprep.subr.bf16.mxu0 %v8110
        %8174 = vmatpush1.bf16.msra.mxu0 %v8109
        %8175 = vmatprep.subr.bf16.mxu0 %v8112
        %8176 = vmatpush1.bf16.msra.mxu0 %v8111
        %8177 = vmatprep.subr.bf16.mxu0 %v8114
        %8178 = vmatpush1.bf16.msra.mxu0 %v8113
        %8179 = vmatprep.subr.bf16.mxu0 %v8116
        %8180 = vmatpush1.bf16.msra.mxu0 %v8115
        %8181 = vmatprep.subr.bf16.mxu0 %v8118
        %8182 = vmatpush1.bf16.msra.mxu0 %v8117
        %8183 = vmatprep.mubr.bf16.mxu0 %v7932
        %8184 = vmatmul.mubr.bf16.gmra.mrb[0].mxu0 %v7931
        %v8185 = vpop.f32.mrb[0].mxu0
        %v8186 = vadd.f32 %v7984, %v8185
        %v8187 = vpop.f32.mrb[0].mxu0
        %v8188 = vadd.f32 %v7988, %v8187
        %v8189 = vpop.f32.mrb[0].mxu0
        %v8190 = vadd.f32 %v7984, %v8189
        %v8191 = vpop.f32.mrb[0].mxu0
        %v8192 = vadd.f32 %v7988, %v8191
        %8193 = vmatprep.mubr.bf16.mxu0 %v7934
        %8194 = vmatmul.mubr.bf16.gmra.mrb[0].mxu0 %v7933
        %v8195 = vpop.f32.mrb[0].mxu0
        %v8196 = vadd.f32 %v7984, %v8195
        %v8197 = vpop.f32.mrb[0].mxu0
        %v8198 = vadd.f32 %v7988, %v8197
        %v8199 = vpop.f32.mrb[0].mxu0
        %v8200 = vadd.f32 %v7984, %v8199
        %v8201 = vpop.f32.mrb[0].mxu0
        %v8202 = vadd.f32 %v7988, %v8201
        %8203 = vmatprep.mubr.bf16.mxu0 %v7936
        %8204 = vmatmul.mubr.bf16.gmra.mrb[0].mxu0 %v7935
        %v8205 = vpop.f32.mrb[0].mxu0
        %v8206 = vadd.f32 %v7984, %v8205
        %v8207 = vpop.f32.mrb[0].mxu0
        %v8208 = vadd.f32 %v7988, %v8207
        %v8209 = vpop.f32.mrb[0].mxu0
        %v8210 = vadd.f32 %v7984, %v8209
        %v8211 = vpop.f32.mrb[0].mxu0
        %v8212 = vadd.f32 %v7988, %v8211
        %8213 = vmatprep.mubr.bf16.mxu0 %v7938
        %8214 = vmatmul.mubr.bf16.gmra.mrb[0].mxu0 %v7937
        %v8215 = vpop.f32.mrb[0].mxu0
        %v8216 = vadd.f32 %v7984, %v8215
        %v8217 = vpop.f32.mrb[0].mxu0
        %v8218 = vadd.f32 %v7988, %v8217
        %v8219 = vpop.f32.mrb[0].mxu0
        %v8220 = vadd.f32 %v7984, %v8219
        %v8221 = vpop.f32.mrb[0].mxu0
        %v8222 = vadd.f32 %v7988, %v8221
        %8223 = vmatprep.mubr.bf16.mxu0 %v7940
        %8224 = vmatmul.mubr.bf16.gmra.mrb[0].mxu0 %v7939
        %v8225 = vpop.f32.mrb[0].mxu0
        %v8226 = vadd.f32 %v7984, %v8225
        %v8227 = vpop.f32.mrb[0].mxu0
        %v8228 = vadd.f32 %v7988, %v8227
        %v8229 = vpop.f32.mrb[0].mxu0
        %v8230 = vadd.f32 %v7984, %v8229
        %v8231 = vpop.f32.mrb[0].mxu0
        %v8232 = vadd.f32 %v7988, %v8231
        %8233 = vmatprep.mubr.bf16.mxu0 %v7942
        %8234 = vmatmul.mubr.bf16.gmra.mrb[0].mxu0 %v7941
        %v8235 = vpop.f32.mrb[0].mxu0
        %v8236 = vadd.f32 %v7984, %v8235
        %v8237 = vpop.f32.mrb[0].mxu0
        %v8238 = vadd.f32 %v7988, %v8237
        %v8239 = vpop.f32.mrb[0].mxu0
        %v8240 = vadd.f32 %v7984, %v8239
        %v8241 = vpop.f32.mrb[0].mxu0
        %v8242 = vadd.f32 %v7988, %v8241
        %8243 = vmatprep.mubr.bf16.mxu0 %v7944
        %8244 = vmatmul.mubr.bf16.gmra.mrb[0].mxu0 %v7943
        %v8245 = vpop.f32.mrb[0].mxu0
        %v8246 = vadd.f32 %v7984, %v8245
        %v8247 = vpop.f32.mrb[0].mxu0
        %v8248 = vadd.f32 %v7988, %v8247
        %v8249 = vpop.f32.mrb[0].mxu0
        %v8250 = vadd.f32 %v7984, %v8249
        %v8251 = vpop.f32.mrb[0].mxu0
        %v8252 = vadd.f32 %v7988, %v8251
        %8253 = vmatprep.mubr.bf16.mxu0 %v7946
        %8254 = vmatmul.mubr.bf16.gmra.mrb[0].mxu0 %v7945
        %v8255 = vpop.f32.mrb[0].mxu0
        %v8256 = vadd.f32 %v7984, %v8255
        %v8257 = vpop.f32.mrb[0].mxu0
        %v8258 = vadd.f32 %v7988, %v8257
        %v8259 = vpop.f32.mrb[0].mxu0
        %v8260 = vadd.f32 %v7984, %v8259
        %v8261 = vpop.f32.mrb[0].mxu0
        %v8262 = vadd.f32 %v7988, %v8261
        %8263 = vdwg.mxu0
        %8264 = vst [vmem:[%s462] sm:$0xff] %v8186
        %8265 = vst [vmem:[%s462 + $0x8] sm:$0xff] %v8188
        %8266 = vst [vmem:[%s462 + $0x10] sm:$0xff] %v8190
        %8267 = vst [vmem:[%s462 + $0x18] sm:$0xff] %v8192
        %8268 = vst [vmem:[%s462 + $0x20] sm:$0xff] %v8196
        %8269 = vst [vmem:[%s462 + $0x28] sm:$0xff] %v8198
        %8270 = vst [vmem:[%s462 + $0x30] sm:$0xff] %v8200
        %8271 = vst [vmem:[%s462 + $0x38] sm:$0xff] %v8202
        %8272 = vst [vmem:[%s462 + $0x40] sm:$0xff] %v8206
        %8273 = vst [vmem:[%s462 + $0x48] sm:$0xff] %v8208
        %8274 = vst [vmem:[%s462 + $0x50] sm:$0xff] %v8210
        %8275 = vst [vmem:[%s462 + $0x58] sm:$0xff] %v8212
        %8276 = vst [vmem:[%s462 + $0x60] sm:$0xff] %v8216
        %8277 = vst [vmem:[%s462 + $0x68] sm:$0xff] %v8218
        %8278 = vst [vmem:[%s462 + $0x70] sm:$0xff] %v8220
        %8279 = vst [vmem:[%s462 + $0x78] sm:$0xff] %v8222
        %8280 = vst [vmem:[%s462 + $0x80] sm:$0xff] %v8226
        %8281 = vst [vmem:[%s462 + $0x88] sm:$0xff] %v8228
        %8282 = vst [vmem:[%s462 + $0x90] sm:$0xff] %v8230
        %8283 = vst [vmem:[%s462 + $0x98] sm:$0xff] %v8232
        %8284 = vst [vmem:[%s462 + $0xa0] sm:$0xff] %v8236
        %8285 = vst [vmem:[%s462 + $0xa8] sm:$0xff] %v8238
        %8286 = vst [vmem:[%s462 + $0xb0] sm:$0xff] %v8240
        %8287 = vst [vmem:[%s462 + $0xb8] sm:$0xff] %v8242
        %8288 = vst [vmem:[%s462 + $0xc0] sm:$0xff] %v8246
        %8289 = vst [vmem:[%s462 + $0xc8] sm:$0xff] %v8248
        %8290 = vst [vmem:[%s462 + $0xd0] sm:$0xff] %v8250
        %8291 = vst [vmem:[%s462 + $0xd8] sm:$0xff] %v8252
        %8292 = vst [vmem:[%s462 + $0xe0] sm:$0xff] %v8256
        %8293 = vst [vmem:[%s462 + $0xe8] sm:$0xff] %v8258
        %8294 = vst [vmem:[%s462 + $0xf0] sm:$0xff] %v8260
        %8295 = vst [vmem:[%s462 + $0xf8] sm:$0xff] %v8262
        %s8296 = sand.u32 %s274, 1
        %s8297 = scalar_lea.sflag [#allocation5], %s8296
        %s8298 = sand.u32 %s274, 1
        %s8299 = smul.addr %s8298, 256
        %s8300 = scalar_lea.vmem [#allocation12], %s8299
        // Predicated region
        $region85: #{tpu_custom_call.1} parent=63 // pred_check
          %p8301 = pneg %p284
        $region86: #{tpu_custom_call.1} parent=63 // pred_check_branch
          %8303 = sbr.rel (%p8301) target = $region88
        $region87: #{tpu_custom_call.1} parent=63 // pred_region
          %s8305 = ssub.s32 4096, 4096
          %8306 = vsyncadd %s8297, %s8305
          %s8307 = smul.addr %s30, 32
          %s8308 = smul.addr %s8307, 128
          %s8309 = scalar_lea.hbm %s11, %s8308
          %s8310 = sshll.u32 %s8300, 4
          %s8311 = int_to_ptr.vmem [resolvable:$true] %s8310
          %8316 = dma.vmem_to_hbm [thread:$0]  %s8311, 4096, %s8309, %s8297, 256, 256, 16
        $region88: #{tpu_custom_call.1} parent=63 // pred_fallthru
          _
      $region64: #{tpu_custom_call.1} parent=5 // pred_fallthru
        _
      %p8317 = scmp.le.s32.totalorder 2, %s25
      // Predicated region
      $region89: #{tpu_custom_call.1} parent=5 // pred_check
        %p8318 = pneg %p8317
      $region90: #{tpu_custom_call.1} parent=5 // pred_check_branch
        %8320 = sbr.rel (%p8318) target = $region92
      $region91: #{tpu_custom_call.1} parent=5 // pred_region
        %s8321 = ssub.s32 %s25, 2
        // Predicated region
        $region93: #{tpu_custom_call.1} parent=91 // pred_check
          %p8322 = pneg %p290
        $region94: #{tpu_custom_call.1} parent=91 // pred_check_branch
          %8324 = sbr.rel (%p8322) target = $region96
        $region95: #{tpu_custom_call.1} parent=91 // pred_region
          %s8325 = sand.u32 %s275, 1
          %s8326 = scalar_lea.sflag [#allocation5], %s8325
          %s8327 = sand.u32 %s275, 1
          %s8328 = smul.addr %s8327, 256
          %s8329 = scalar_lea.vmem [#allocation12], %s8328
          %8330 = dma.done %s8326, 4096
        $region96: #{tpu_custom_call.1} parent=91 // pred_fallthru
          _
      $region92: #{tpu_custom_call.1} parent=5 // pred_fallthru
        _
    $region6: #{tpu_custom_call.1} parent=1 // loop_footer
      %s29 = sadd.s32 1, %s25
    $region7: #{tpu_custom_call.1} parent=1 // loop_footer_branch
      %24 = sbr.rel target = $region3
    $region8: #{tpu_custom_call.1} parent=1 // loop_exit
      _
    %8331 = vsyncpa [#allocation4], 1
    %s8332 = scalar_lea.sflag [#allocation4], 1
    %8333 = vsyncpa %s8332, 1
    %8334 = vsyncpa [#allocation7], 1
    %8335 = vsyncpa [#allocation10], 1
    %8336 = vsyncpa [#allocation5], 1
    %s8337 = scalar_lea.sflag [#allocation5], 1
    %8338 = vsyncpa %s8337, 1

</llo_original>
